<compile_context>
chip_gen: v5e
topology: v5e:2x2
jax: 0.10.0
libtpu: 0.0.40
codegen_flags: <defaults>
</compile_context>

<pallas_src>
import functools

import jax
import jax.numpy as jnp
import numpy as np
from jax.experimental import pallas as pl
from jax.experimental.pallas import tpu as pltpu


# ----------------------------------------------------------------------------
# Kernel: out = sin(x @ W_t + b), omega_0 already folded into W_t and b.
# ----------------------------------------------------------------------------
def _sine_layer_kernel(x_ref, w_ref, b_ref, o_ref, *, matmul_dtype, precision):
    K = x_ref.shape[-1]
    b = b_ref[...].astype(jnp.float32)          # (1, N), broadcasts over rows
    if K < 8:
        # Degenerate contraction (first SIREN layer: K = 2/3 coordinates).
        # A KxN matmul with K < 8 leaves the MXU ~99% idle; a handful of VPU
        # broadcast-FMAs is cheaper and removes the degenerate MXU dependency.
        x = x_ref[...].astype(jnp.float32)
        w = w_ref[...].astype(jnp.float32)
        z = b
        for c in range(K):
            z = z + x[:, c:c + 1] * w[c:c + 1, :]
    else:
        x = x_ref[...].astype(matmul_dtype)
        w = w_ref[...].astype(matmul_dtype)
        z = jnp.dot(x, w, preferred_element_type=jnp.float32,
                    precision=precision) + b
    o_ref[...] = jnp.sin(z).astype(o_ref.dtype)


# ----------------------------------------------------------------------------
# One-time parameter preparation (do this at init, NOT per forward call)
# ----------------------------------------------------------------------------
def prepare_sine_layer_params(weight, bias, omega_0=30.0,
                              param_dtype=jnp.bfloat16):
    """Fold omega_0 into W/b and pre-transpose W to (in_features, out_features).

    sin(omega_0 * (x @ W^T + b)) == sin(x @ (omega_0*W)^T + omega_0*b)

    W^T is stored in `param_dtype` (bf16 by default: halves resident/streamed
    W bytes and enables native bf16 MXU passes).  The bias row is tiny and is
    always kept in f32 so the epilogue add is not quantized.
    """
    w = jnp.asarray(weight, jnp.float32)                   # (out, in)
    b = jnp.asarray(bias, jnp.float32)                     # (out,)
    w_t = (omega_0 * w).T.astype(param_dtype)              # (in, out)
    b2 = (omega_0 * b).reshape(1, -1).astype(jnp.float32)  # (1, out)
    return w_t, b2


# ----------------------------------------------------------------------------
# Generation-aware tile selection (layer is HBM-bandwidth bound)
# ----------------------------------------------------------------------------
_TM_CANDIDATES = (8192, 4096, 2048, 1024, 512, 256, 128)


def _vmem_capacity_bytes():
    try:
        info = pltpu.get_tpu_info()
        cap = int(getattr(info, "vmem_capacity_bytes", 0) or 0)
        if cap > 0:
            return cap
    except Exception:
        pass
    return 64 * 1024 * 1024   # conservative fallback = v7x per-TC VMEM


def _pick_tile_m(M, K, Np, x_item, w_item, o_item, budget):
    # Resident block: W^T + bias (conservatively counted as double-buffered).
    resident = 2 * (K * Np * w_item + Np * 4)
    tm = 128
    for cand in _TM_CANDIDATES:
        streamed = 2 * cand * (K * x_item + Np * o_item)   # dbl-buffered x/out
        if resident + streamed <= budget:
            tm = cand
            break
    tm = min(tm, M)
    # v7x shards the 'parallel' axis across 2 TensorCores; a 2-3 step grid with
    # a ragged last tile idles one core, so aim for >= 4 steps when M allows.
    # (Harmless on single-TC v5e/v6e: the layer is HBM-bound either way.)
    steps = pl.cdiv(M, tm)
    while tm > 128 and 1 < steps < 4:
        tm //= 2
        steps = pl.cdiv(M, tm)
    return tm


# ----------------------------------------------------------------------------
# Forward pass (hot path): takes kernel-ready params from prepare_*()
# ----------------------------------------------------------------------------
def sine_layer_apply(x, w_t, b2, *, matmul_dtype=None, precision=None,
                     tile_m=None, out_dtype=None):
    """x: (M, K); w_t: (K, N) omega-scaled; b2: (1, N) omega-scaled (f32)."""
    M, K = x.shape
    Kw, N = w_t.shape
    assert K == Kw and b2.shape[-1] == N

    out_dtype = out_dtype or x.dtype
    if matmul_dtype is None:
        matmul_dtype = (jnp.bfloat16 if w_t.dtype == jnp.bfloat16
                        else jnp.float32)
    if precision is None:
        # Explicit accuracy/speed choice: true-f32 MXU passes only when the
        # caller kept f32 operands; bf16 operands use the native fast path.
        precision = (jax.lax.Precision.HIGHEST
                     if matmul_dtype == jnp.float32
                     else jax.lax.Precision.DEFAULT)

    # Lane-dense output: pad N up to a multiple of 128 so stores are unmasked
    # vst (masked partial stores measured ~4.5x slower); slice back afterwards.
    Np = ((N + 127) // 128) * 128
    if Np != N:
        w_t = jnp.pad(w_t, ((0, 0), (0, Np - N)))
        b2 = jnp.pad(b2, ((0, 0), (0, Np - N)))

    x_item = jnp.dtype(x.dtype).itemsize
    w_item = jnp.dtype(w_t.dtype).itemsize
    o_item = jnp.dtype(out_dtype).itemsize

    cap = _vmem_capacity_bytes()
    budget = (cap * 3) // 4
    if tile_m is not None:
        tm = int(tile_m)
        if tm < M:
            tm = max(8, (tm // 8) * 8)    # keep the (8,128) sublane constraint
        tm = min(tm, M)
    else:
        tm = _pick_tile_m(M, K, Np, x_item, w_item, o_item, budget)

    grid = (pl.cdiv(M, tm),)

    # Explicit scoped-VMEM limit: never below the computed need, never above
    # physical capacity for this TPU generation.
    vmem_need = 2 * (K * Np * w_item + Np * 4 + tm * (K * x_item + Np * o_item))
    vmem_limit = min(max(vmem_need + (2 << 20), 8 << 20), cap)
    vmem_limit = int(max(vmem_limit, vmem_need))

    kernel = functools.partial(_sine_layer_kernel,
                               matmul_dtype=matmul_dtype, precision=precision)

    out = pl.pallas_call(
        kernel,
        out_shape=jax.ShapeDtypeStruct((M, Np), out_dtype),
        grid_spec=pltpu.PrefetchScalarGridSpec(
            num_scalar_prefetch=0,
            grid=grid,
            in_specs=[
                pl.BlockSpec((tm, K), lambda i: (i, 0)),    # streamed x tile
                pl.BlockSpec((K, Np), lambda i: (0, 0)),    # resident W^T
                pl.BlockSpec((1, Np), lambda i: (0, 0)),    # resident bias row
            ],
            out_specs=pl.BlockSpec((tm, Np), lambda i: (i, 0)),
        ),
        compiler_params=pltpu.CompilerParams(
            dimension_semantics=("parallel",),
            vmem_limit_bytes=vmem_limit,
        ),
    )(x, w_t, b2)

    return out[:, :N] if Np != N else out


def sine_layer(x, weight, bias, omega_0=30.0, *, param_dtype=jnp.bfloat16,
               matmul_dtype=None, precision=None, tile_m=None):
    """Convenience one-shot API matching the PyTorch module signature.

    For repeated calls, do `prepare_sine_layer_params` once and call
    `sine_layer_apply` directly (avoids the per-call transpose/scale/pad).
    """
    w_t, b2 = prepare_sine_layer_params(weight, bias, omega_0,
                                        param_dtype=param_dtype)
    return sine_layer_apply(x, w_t, b2, matmul_dtype=matmul_dtype,
                            precision=precision, tile_m=tile_m)


# TODO(synk): fusing a full stack of SineLayers into one pallas_call (keeping
# the activation resident in VMEM between layers) removes the per-layer
# activation HBM round-trip (~2x at the network level); out of scope for this
# single-module spec.


# ----------------------------------------------------------------------------
# Parameter init mirroring SineLayer.init_weights (SIREN paper)
# ----------------------------------------------------------------------------
def init_sine_layer_params(key, in_features, out_features, is_first, omega_0):
    kw, kb = jax.random.split(key)
    if is_first:
        bound = 1.0 / in_features
    else:
        bound = np.sqrt(6.0 / in_features) / omega_0
    weight = jax.random.uniform(
        kw, (out_features, in_features), jnp.float32, minval=-bound, maxval=bound
    )
    # nn.Linear default bias init: U(-1/sqrt(in_features), 1/sqrt(in_features))
    b_bound = 1.0 / np.sqrt(in_features)
    bias = jax.random.uniform(
        kb, (out_features,), jnp.float32, minval=-b_bound, maxval=b_bound
    )
    return weight, bias


def _ref_numpy(x, w, b, omega_0):
    x64 = np.asarray(x, np.float64)
    w64 = np.asarray(w, np.float64)
    b64 = np.asarray(b, np.float64)
    return np.sin(omega_0 * (x64 @ w64.T + b64))


if __name__ == "__main__":
    key = jax.random.PRNGKey(0)
    k_x, k_p1, k_p2, k_p3 = jax.random.split(key, 4)
    omega_0 = 30.0

    M, K, N = 512, 64, 128
    x = jax.random.uniform(k_x, (M, K), jnp.float32, minval=-1.0, maxval=1.0)
    w, b = init_sine_layer_params(k_p1, K, N, is_first=True, omega_0=omega_0)
    ref = _ref_numpy(x, w, b, omega_0)

    # Case 1: hidden-style layer, default bf16 matmul operands (fast path).
    w_t_bf16, b2 = prepare_sine_layer_params(w, b, omega_0,
                                             param_dtype=jnp.bfloat16)
    out_bf16 = jax.block_until_ready(sine_layer_apply(x, w_t_bf16, b2))
    np.testing.assert_allclose(np.asarray(out_bf16), ref, atol=1e-1)

    # Case 2: same layer, full-f32 operands with explicit Precision.HIGHEST.
    w_t_f32, b2_f32 = prepare_sine_layer_params(w, b, omega_0,
                                                param_dtype=jnp.float32)
    out_f32 = jax.block_until_ready(sine_layer_apply(x, w_t_f32, b2_f32))
    np.testing.assert_allclose(np.asarray(out_f32), ref, atol=2e-4, rtol=2e-4)

    # Case 3: first SIREN layer (K=2 coordinates) -> VPU FMA path (no MXU).
    x2 = jax.random.uniform(k_x, (M, 2), jnp.float32, minval=-1.0, maxval=1.0)
    w2, b2v = init_sine_layer_params(k_p2, 2, N, is_first=True, omega_0=omega_0)
    ref2 = _ref_numpy(x2, w2, b2v, omega_0)
    out2 = jax.block_until_ready(
        sine_layer(x2, w2, b2v, omega_0, param_dtype=jnp.float32))
    np.testing.assert_allclose(np.asarray(out2), ref2, atol=2e-4, rtol=2e-4)

    # Case 4: final SIREN layer (out_features=3) -> lane padding to 128.
    w3, b3 = init_sine_layer_params(k_p3, K, 3, is_first=False, omega_0=omega_0)
    ref3 = _ref_numpy(x, w3, b3, omega_0)
    out3 = jax.block_until_ready(
        sine_layer(x, w3, b3, omega_0, param_dtype=jnp.float32))
    np.testing.assert_allclose(np.asarray(out3), ref3, atol=2e-4, rtol=2e-4)

    print("KERNEL_OK")
</pallas_src>

<mosaic_0001>
module attributes {stable_mosaic.version = 11 : i64} {
  func.func @_sine_layer_kernel(%arg0: i32, %arg1: memref<512x64xf32, #tpu.memory_space<vmem>>, %arg2: memref<64x128xbf16, #tpu.memory_space<vmem>>, %arg3: memref<1x128xf32, #tpu.memory_space<vmem>>, %arg4: memref<512x128xf32, #tpu.memory_space<vmem>>) attributes {dimension_semantics = [#tpu.dimension_semantics<parallel>], iteration_bounds = array<i64: 1>, scalar_prefetch = 0 : i64, scratch_operands = 0 : i64, tpu.core_type = #tpu.core_type<tc>, window_params = [{transform_indices = @transform_0, window_bounds = array<i64: 512, 64>}, {pipeline_mode = #tpu.pipeline_mode<synchronous>, transform_indices = @transform_1, window_bounds = array<i64: 64, 128>}, {pipeline_mode = #tpu.pipeline_mode<synchronous>, transform_indices = @transform_2, window_bounds = array<i64: 1, 128>}, {transform_indices = @transform_3, window_bounds = array<i64: 512, 128>}]} {
    %c0 = arith.constant 0 : index
    %c0_0 = arith.constant 0 : index
    %0 = vector.load %arg3[%c0, %c0_0] : memref<1x128xf32, #tpu.memory_space<vmem>>, vector<1x128xf32>
    %c0_1 = arith.constant 0 : index
    %c0_2 = arith.constant 0 : index
    %1 = vector.load %arg1[%c0_1, %c0_2] : memref<512x64xf32, #tpu.memory_space<vmem>>, vector<512x64xf32>
    %2 = arith.truncf %1 : vector<512x64xf32> to vector<512x64xbf16>
    %c0_3 = arith.constant 0 : index
    %c0_4 = arith.constant 0 : index
    %3 = vector.load %arg2[%c0_3, %c0_4] : memref<64x128xbf16, #tpu.memory_space<vmem>>, vector<64x128xbf16>
    %cst = arith.constant dense<0.000000e+00> : vector<512x128xf32>
    %4 = tpu.matmul %2, %3, %cst {dimension_numbers = #tpu.dot_dimension_numbers<[1], [0], [0], [1], [0, 0, 1, 1], [], []>} : vector<512x64xbf16>, vector<64x128xbf16>, vector<512x128xf32> -> vector<512x128xf32>
    %5 = vector.broadcast %0 : vector<1x128xf32> to vector<512x128xf32>
    %6 = arith.addf %4, %5 : vector<512x128xf32>
    %7 = math.sin %6 : vector<512x128xf32>
    %c0_5 = arith.constant 0 : index
    %c0_6 = arith.constant 0 : index
    %8 = vector.load %arg4[%c0_5, %c0_6] : memref<512x128xf32, #tpu.memory_space<vmem>>, vector<512x128xf32>
    tpu.vector_store %arg4[%c0_5, %c0_6], %7 {strides = array<i32>} : memref<512x128xf32, #tpu.memory_space<vmem>>, vector<512x128xf32>,
    return
  }
  func.func @transform_0(%arg0: i32) -> (i32, i32) {
    %c0_i32 = arith.constant 0 : i32
    %c0_i32_0 = arith.constant 0 : i32
    return %arg0, %c0_i32 : i32, i32
  }
  func.func @transform_1(%arg0: i32) -> (i32, i32) {
    %c0_i32 = arith.constant 0 : i32
    %c0_i32_0 = arith.constant 0 : i32
    %c0_i32_1 = arith.constant 0 : i32
    return %c0_i32, %c0_i32_0 : i32, i32
  }
  func.func @transform_2(%arg0: i32) -> (i32, i32) {
    %c0_i32 = arith.constant 0 : i32
    %c0_i32_0 = arith.constant 0 : i32
    %c0_i32_1 = arith.constant 0 : i32
    return %c0_i32, %c0_i32_0 : i32, i32
  }
  func.func @transform_3(%arg0: i32) -> (i32, i32) {
    %c0_i32 = arith.constant 0 : i32
    %c0_i32_0 = arith.constant 0 : i32
    return %arg0, %c0_i32 : i32, i32
  }
}

</mosaic_0001>

<llo_original>
// kernel: tpu_custom_call.1
$region0: #{tpu_custom_call.1}
  #allocation0 [shape = 'u32[]', space=smem, size = 0x4, offset = 0x4, fixed_abs, tag = 'smem constant byte address 0x4 - core index']
  #allocation1 [shape = 'u32[72,128]{1,0:T(1,128)}', space=vmem, size = 0x9000, scoped, tag = 'internal scratch']
  %s0 = inlined_call_operand.vmem [shape: f32[512,64], index: 0, kind: input, shape index: {}]
  %s1 = inlined_call_operand.vmem [shape: bf16[64,128], index: 1, kind: input, shape index: {}]
  %s2 = inlined_call_operand.vmem [shape: f32[1,128], index: 2, kind: input, shape index: {}]
  %s3 = inlined_call_operand.hbm [shape: f32[512,128], index: 3, kind: output, shape index: {}]
  %s4 = sld [smem:[#allocation0]]
  $region22: #{tpu_custom_call.1} parent=0
    _
  %s6 = ssub.s32 1, %s4
  %s7 = scalar_select 0, %s6, %s4
  $region1: #{tpu_custom_call.1} parent=0
    #allocation2 [shape = 'u8[262144]{0}', space=vmem, size = 0x40000, scoped, tag = 'output window, operand 0, single buffered']
    #allocation3 [shape = 's32[1]{0}', space=sflag, size = 0x4, scoped, tag = 'scoped memory for tpu_custom_call.1']
    %8 = vsyncpa [#allocation3], 0
    // Predicated region
    $region2: #{tpu_custom_call.1} parent=1 // pred_check
      _
    $region3: #{tpu_custom_call.1} parent=1 // pred_check_branch
      %10 = sbr.rel (0) target = $region5
    $region4: #{tpu_custom_call.1} parent=1 // pred_region
      _
    $region5: #{tpu_custom_call.1} parent=1 // pred_fallthru
      _
    // Predicated region
    $region6: #{tpu_custom_call.1} parent=1 // pred_check
      _
    $region7: #{tpu_custom_call.1} parent=1 // pred_check_branch
      %12 = sbr.rel (0) target = $region9
    $region8: #{tpu_custom_call.1} parent=1 // pred_region
      _
    $region9: #{tpu_custom_call.1} parent=1 // pred_fallthru
      _
    // Predicated region
    $region10: #{tpu_custom_call.1} parent=1 // pred_check
      _
    $region11: #{tpu_custom_call.1} parent=1 // pred_check_branch
      %14 = sbr.rel (0) target = $region13
    $region12: #{tpu_custom_call.1} parent=1 // pred_region
      _
    $region13: #{tpu_custom_call.1} parent=1 // pred_fallthru
      _
    %v16 = vld [vmem:[%s2] sm:$0x1]
    %v17 = vld [vmem:[%s0] sm:$0xff]
    %v18 = vld [vmem:[%s0 + $0x8] sm:$0xff]
    %v19 = vld [vmem:[%s0 + $0x10] sm:$0xff]
    %v20 = vld [vmem:[%s0 + $0x18] sm:$0xff]
    %v21 = vld [vmem:[%s0 + $0x20] sm:$0xff]
    %v22 = vld [vmem:[%s0 + $0x28] sm:$0xff]
    %v23 = vld [vmem:[%s0 + $0x30] sm:$0xff]
    %v24 = vld [vmem:[%s0 + $0x38] sm:$0xff]
    %v25 = vld [vmem:[%s0 + $0x40] sm:$0xff]
    %v26 = vld [vmem:[%s0 + $0x48] sm:$0xff]
    %v27 = vld [vmem:[%s0 + $0x50] sm:$0xff]
    %v28 = vld [vmem:[%s0 + $0x58] sm:$0xff]
    %v29 = vld [vmem:[%s0 + $0x60] sm:$0xff]
    %v30 = vld [vmem:[%s0 + $0x68] sm:$0xff]
    %v31 = vld [vmem:[%s0 + $0x70] sm:$0xff]
    %v32 = vld [vmem:[%s0 + $0x78] sm:$0xff]
    %v33 = vld [vmem:[%s0 + $0x80] sm:$0xff]
    %v34 = vld [vmem:[%s0 + $0x88] sm:$0xff]
    %v35 = vld [vmem:[%s0 + $0x90] sm:$0xff]
    %v36 = vld [vmem:[%s0 + $0x98] sm:$0xff]
    %v37 = vld [vmem:[%s0 + $0xa0] sm:$0xff]
    %v38 = vld [vmem:[%s0 + $0xa8] sm:$0xff]
    %v39 = vld [vmem:[%s0 + $0xb0] sm:$0xff]
    %v40 = vld [vmem:[%s0 + $0xb8] sm:$0xff]
    %v41 = vld [vmem:[%s0 + $0xc0] sm:$0xff]
    %v42 = vld [vmem:[%s0 + $0xc8] sm:$0xff]
    %v43 = vld [vmem:[%s0 + $0xd0] sm:$0xff]
    %v44 = vld [vmem:[%s0 + $0xd8] sm:$0xff]
    %v45 = vld [vmem:[%s0 + $0xe0] sm:$0xff]
    %v46 = vld [vmem:[%s0 + $0xe8] sm:$0xff]
    %v47 = vld [vmem:[%s0 + $0xf0] sm:$0xff]
    %v48 = vld [vmem:[%s0 + $0xf8] sm:$0xff]
    %v49 = vld [vmem:[%s0 + $0x100] sm:$0xff]
    %v50 = vld [vmem:[%s0 + $0x108] sm:$0xff]
    %v51 = vld [vmem:[%s0 + $0x110] sm:$0xff]
    %v52 = vld [vmem:[%s0 + $0x118] sm:$0xff]
    %v53 = vld [vmem:[%s0 + $0x120] sm:$0xff]
    %v54 = vld [vmem:[%s0 + $0x128] sm:$0xff]
    %v55 = vld [vmem:[%s0 + $0x130] sm:$0xff]
    %v56 = vld [vmem:[%s0 + $0x138] sm:$0xff]
    %v57 = vld [vmem:[%s0 + $0x140] sm:$0xff]
    %v58 = vld [vmem:[%s0 + $0x148] sm:$0xff]
    %v59 = vld [vmem:[%s0 + $0x150] sm:$0xff]
    %v60 = vld [vmem:[%s0 + $0x158] sm:$0xff]
    %v61 = vld [vmem:[%s0 + $0x160] sm:$0xff]
    %v62 = vld [vmem:[%s0 + $0x168] sm:$0xff]
    %v63 = vld [vmem:[%s0 + $0x170] sm:$0xff]
    %v64 = vld [vmem:[%s0 + $0x178] sm:$0xff]
    %v65 = vld [vmem:[%s0 + $0x180] sm:$0xff]
    %v66 = vld [vmem:[%s0 + $0x188] sm:$0xff]
    %v67 = vld [vmem:[%s0 + $0x190] sm:$0xff]
    %v68 = vld [vmem:[%s0 + $0x198] sm:$0xff]
    %v69 = vld [vmem:[%s0 + $0x1a0] sm:$0xff]
    %v70 = vld [vmem:[%s0 + $0x1a8] sm:$0xff]
    %v71 = vld [vmem:[%s0 + $0x1b0] sm:$0xff]
    %v72 = vld [vmem:[%s0 + $0x1b8] sm:$0xff]
    %v73 = vld [vmem:[%s0 + $0x1c0] sm:$0xff]
    %v74 = vld [vmem:[%s0 + $0x1c8] sm:$0xff]
    %v75 = vld [vmem:[%s0 + $0x1d0] sm:$0xff]
    %v76 = vld [vmem:[%s0 + $0x1d8] sm:$0xff]
    %v77 = vld [vmem:[%s0 + $0x1e0] sm:$0xff]
    %v78 = vld [vmem:[%s0 + $0x1e8] sm:$0xff]
    %v79 = vld [vmem:[%s0 + $0x1f0] sm:$0xff]
    %v80 = vld [vmem:[%s0 + $0x1f8] sm:$0xff]
    %v81 = vpack.c.bf16 %v18, %v17
    %v82 = vpack.c.bf16 %v20, %v19
    %v83 = vpack.c.bf16 %v22, %v21
    %v84 = vpack.c.bf16 %v24, %v23
    %v85 = vpack.c.bf16 %v26, %v25
    %v86 = vpack.c.bf16 %v28, %v27
    %v87 = vpack.c.bf16 %v30, %v29
    %v88 = vpack.c.bf16 %v32, %v31
    %v89 = vpack.c.bf16 %v34, %v33
    %v90 = vpack.c.bf16 %v36, %v35
    %v91 = vpack.c.bf16 %v38, %v37
    %v92 = vpack.c.bf16 %v40, %v39
    %v93 = vpack.c.bf16 %v42, %v41
    %v94 = vpack.c.bf16 %v44, %v43
    %v95 = vpack.c.bf16 %v46, %v45
    %v96 = vpack.c.bf16 %v48, %v47
    %v97 = vpack.c.bf16 %v50, %v49
    %v98 = vpack.c.bf16 %v52, %v51
    %v99 = vpack.c.bf16 %v54, %v53
    %v100 = vpack.c.bf16 %v56, %v55
    %v101 = vpack.c.bf16 %v58, %v57
    %v102 = vpack.c.bf16 %v60, %v59
    %v103 = vpack.c.bf16 %v62, %v61
    %v104 = vpack.c.bf16 %v64, %v63
    %v105 = vpack.c.bf16 %v66, %v65
    %v106 = vpack.c.bf16 %v68, %v67
    %v107 = vpack.c.bf16 %v70, %v69
    %v108 = vpack.c.bf16 %v72, %v71
    %v109 = vpack.c.bf16 %v74, %v73
    %v110 = vpack.c.bf16 %v76, %v75
    %v111 = vpack.c.bf16 %v78, %v77
    %v112 = vpack.c.bf16 %v80, %v79
    %v113 = vld [vmem:[%s1] sm:$0xf]
    %v114 = vld [vmem:[%s1 + $0x4] sm:$0xf]
    %v115 = vld [vmem:[%s1 + $0x8] sm:$0xf]
    %v116 = vld [vmem:[%s1 + $0xc] sm:$0xf]
    %v117 = vld [vmem:[%s1 + $0x10] sm:$0xf]
    %v118 = vld [vmem:[%s1 + $0x14] sm:$0xf]
    %v119 = vld [vmem:[%s1 + $0x18] sm:$0xf]
    %v120 = vld [vmem:[%s1 + $0x1c] sm:$0xf]
    %v122 = vperm.slane %v16, 0
    %v132 = vunpack.c.l.b16 %v113
    %v133 = vunpack.c.l.b16 %v114
    %v134 = vunpack.c.l.b16 %v115
    %v135 = vunpack.c.l.b16 %v116
    %v136 = vunpack.c.l.b16 %v117
    %v137 = vunpack.c.l.b16 %v118
    %v138 = vunpack.c.l.b16 %v119
    %v139 = vunpack.c.l.b16 %v120
    %v140 = vpack.c.b16 %v133, %v132
    %v141 = vpack.c.b16 %v135, %v134
    %v142 = vpack.c.b16 %v137, %v136
    %v143 = vpack.c.b16 %v139, %v138
    %vm148 = vcmask 523264
    %v150 = vsel %vm148, %v81, 0
    %v153 = vsel %vm148, %v82, 0
    %v156 = vsel %vm148, %v83, 0
    %v159 = vsel %vm148, %v84, 0
    %v162 = vsel %vm148, %v85, 0
    %v165 = vsel %vm148, %v86, 0
    %v168 = vsel %vm148, %v87, 0
    %v171 = vsel %vm148, %v88, 0
    %v174 = vsel %vm148, %v89, 0
    %v177 = vsel %vm148, %v90, 0
    %v180 = vsel %vm148, %v91, 0
    %v183 = vsel %vm148, %v92, 0
    %v186 = vsel %vm148, %v93, 0
    %v189 = vsel %vm148, %v94, 0
    %v192 = vsel %vm148, %v95, 0
    %v195 = vsel %vm148, %v96, 0
    %v198 = vsel %vm148, %v97, 0
    %v201 = vsel %vm148, %v98, 0
    %v204 = vsel %vm148, %v99, 0
    %v207 = vsel %vm148, %v100, 0
    %v210 = vsel %vm148, %v101, 0
    %v213 = vsel %vm148, %v102, 0
    %v216 = vsel %vm148, %v103, 0
    %v219 = vsel %vm148, %v104, 0
    %v222 = vsel %vm148, %v105, 0
    %v225 = vsel %vm148, %v106, 0
    %v228 = vsel %vm148, %v107, 0
    %v231 = vsel %vm148, %v108, 0
    %v234 = vsel %vm148, %v109, 0
    %v237 = vsel %vm148, %v110, 0
    %v240 = vsel %vm148, %v111, 0
    %v243 = vsel %vm148, %v112, 0
    %245 = vmatpush.bf16.msra.mxu0 0
    %246 = vmatpush.bf16.msra.mxu0 0
    %247 = vmatpush.bf16.msra.mxu0 0
    %248 = vmatpush.bf16.msra.mxu0 0
    %249 = vmatpush.bf16.msra.mxu0 %v143
    %250 = vmatpush.bf16.msra.mxu0 %v142
    %251 = vmatpush.bf16.msra.mxu0 %v141
    %252 = vmatpush.bf16.msra.mxu0 %v140
    %253 = vmatmul.bf16.gmra.mxu0 %v150
    %v254 = vpop.f32.mrf.mxu0
    %v255 = vadd.f32 %v122, %v254
    %v256 = vpop.f32.mrf.mxu0
    %v257 = vadd.f32 %v122, %v256
    %258 = vmatmul.bf16.gmra.mxu0 %v153
    %v259 = vpop.f32.mrf.mxu0
    %v260 = vadd.f32 %v122, %v259
    %v261 = vpop.f32.mrf.mxu0
    %v262 = vadd.f32 %v122, %v261
    %263 = vmatmul.bf16.gmra.mxu0 %v156
    %v264 = vpop.f32.mrf.mxu0
    %v265 = vadd.f32 %v122, %v264
    %v266 = vpop.f32.mrf.mxu0
    %v267 = vadd.f32 %v122, %v266
    %268 = vmatmul.bf16.gmra.mxu0 %v159
    %v269 = vpop.f32.mrf.mxu0
    %v270 = vadd.f32 %v122, %v269
    %v271 = vpop.f32.mrf.mxu0
    %v272 = vadd.f32 %v122, %v271
    %273 = vmatmul.bf16.gmra.mxu0 %v162
    %v274 = vpop.f32.mrf.mxu0
    %v275 = vadd.f32 %v122, %v274
    %v276 = vpop.f32.mrf.mxu0
    %v277 = vadd.f32 %v122, %v276
    %278 = vmatmul.bf16.gmra.mxu0 %v165
    %v279 = vpop.f32.mrf.mxu0
    %v280 = vadd.f32 %v122, %v279
    %v281 = vpop.f32.mrf.mxu0
    %v282 = vadd.f32 %v122, %v281
    %283 = vmatmul.bf16.gmra.mxu0 %v168
    %v284 = vpop.f32.mrf.mxu0
    %v285 = vadd.f32 %v122, %v284
    %v286 = vpop.f32.mrf.mxu0
    %v287 = vadd.f32 %v122, %v286
    %288 = vmatmul.bf16.gmra.mxu0 %v171
    %v289 = vpop.f32.mrf.mxu0
    %v290 = vadd.f32 %v122, %v289
    %v291 = vpop.f32.mrf.mxu0
    %v292 = vadd.f32 %v122, %v291
    %293 = vmatmul.bf16.gmra.mxu0 %v174
    %v294 = vpop.f32.mrf.mxu0
    %v295 = vadd.f32 %v122, %v294
    %v296 = vpop.f32.mrf.mxu0
    %v297 = vadd.f32 %v122, %v296
    %298 = vmatmul.bf16.gmra.mxu0 %v177
    %v299 = vpop.f32.mrf.mxu0
    %v300 = vadd.f32 %v122, %v299
    %v301 = vpop.f32.mrf.mxu0
    %v302 = vadd.f32 %v122, %v301
    %303 = vmatmul.bf16.gmra.mxu0 %v180
    %v304 = vpop.f32.mrf.mxu0
    %v305 = vadd.f32 %v122, %v304
    %v306 = vpop.f32.mrf.mxu0
    %v307 = vadd.f32 %v122, %v306
    %308 = vmatmul.bf16.gmra.mxu0 %v183
    %v309 = vpop.f32.mrf.mxu0
    %v310 = vadd.f32 %v122, %v309
    %v311 = vpop.f32.mrf.mxu0
    %v312 = vadd.f32 %v122, %v311
    %313 = vmatmul.bf16.gmra.mxu0 %v186
    %v314 = vpop.f32.mrf.mxu0
    %v315 = vadd.f32 %v122, %v314
    %v316 = vpop.f32.mrf.mxu0
    %v317 = vadd.f32 %v122, %v316
    %318 = vmatmul.bf16.gmra.mxu0 %v189
    %v319 = vpop.f32.mrf.mxu0
    %v320 = vadd.f32 %v122, %v319
    %v321 = vpop.f32.mrf.mxu0
    %v322 = vadd.f32 %v122, %v321
    %323 = vmatmul.bf16.gmra.mxu0 %v192
    %v324 = vpop.f32.mrf.mxu0
    %v325 = vadd.f32 %v122, %v324
    %v326 = vpop.f32.mrf.mxu0
    %v327 = vadd.f32 %v122, %v326
    %328 = vmatmul.bf16.gmra.mxu0 %v195
    %v329 = vpop.f32.mrf.mxu0
    %v330 = vadd.f32 %v122, %v329
    %v331 = vpop.f32.mrf.mxu0
    %v332 = vadd.f32 %v122, %v331
    %333 = vmatmul.bf16.gmra.mxu0 %v198
    %v334 = vpop.f32.mrf.mxu0
    %v335 = vadd.f32 %v122, %v334
    %v336 = vpop.f32.mrf.mxu0
    %v337 = vadd.f32 %v122, %v336
    %338 = vmatmul.bf16.gmra.mxu0 %v201
    %v339 = vpop.f32.mrf.mxu0
    %v340 = vadd.f32 %v122, %v339
    %v341 = vpop.f32.mrf.mxu0
    %v342 = vadd.f32 %v122, %v341
    %343 = vmatmul.bf16.gmra.mxu0 %v204
    %v344 = vpop.f32.mrf.mxu0
    %v345 = vadd.f32 %v122, %v344
    %v346 = vpop.f32.mrf.mxu0
    %v347 = vadd.f32 %v122, %v346
    %348 = vmatmul.bf16.gmra.mxu0 %v207
    %v349 = vpop.f32.mrf.mxu0
    %v350 = vadd.f32 %v122, %v349
    %v351 = vpop.f32.mrf.mxu0
    %v352 = vadd.f32 %v122, %v351
    %353 = vmatmul.bf16.gmra.mxu0 %v210
    %v354 = vpop.f32.mrf.mxu0
    %v355 = vadd.f32 %v122, %v354
    %v356 = vpop.f32.mrf.mxu0
    %v357 = vadd.f32 %v122, %v356
    %358 = vmatmul.bf16.gmra.mxu0 %v213
    %v359 = vpop.f32.mrf.mxu0
    %v360 = vadd.f32 %v122, %v359
    %v361 = vpop.f32.mrf.mxu0
    %v362 = vadd.f32 %v122, %v361
    %363 = vmatmul.bf16.gmra.mxu0 %v216
    %v364 = vpop.f32.mrf.mxu0
    %v365 = vadd.f32 %v122, %v364
    %v366 = vpop.f32.mrf.mxu0
    %v367 = vadd.f32 %v122, %v366
    %368 = vmatmul.bf16.gmra.mxu0 %v219
    %v369 = vpop.f32.mrf.mxu0
    %v370 = vadd.f32 %v122, %v369
    %v371 = vpop.f32.mrf.mxu0
    %v372 = vadd.f32 %v122, %v371
    %373 = vmatmul.bf16.gmra.mxu0 %v222
    %v374 = vpop.f32.mrf.mxu0
    %v375 = vadd.f32 %v122, %v374
    %v376 = vpop.f32.mrf.mxu0
    %v377 = vadd.f32 %v122, %v376
    %378 = vmatmul.bf16.gmra.mxu0 %v225
    %v379 = vpop.f32.mrf.mxu0
    %v380 = vadd.f32 %v122, %v379
    %v381 = vpop.f32.mrf.mxu0
    %v382 = vadd.f32 %v122, %v381
    %383 = vmatmul.bf16.gmra.mxu0 %v228
    %v384 = vpop.f32.mrf.mxu0
    %v385 = vadd.f32 %v122, %v384
    %v386 = vpop.f32.mrf.mxu0
    %v387 = vadd.f32 %v122, %v386
    %388 = vmatmul.bf16.gmra.mxu0 %v231
    %v389 = vpop.f32.mrf.mxu0
    %v390 = vadd.f32 %v122, %v389
    %v391 = vpop.f32.mrf.mxu0
    %v392 = vadd.f32 %v122, %v391
    %393 = vmatmul.bf16.gmra.mxu0 %v234
    %v394 = vpop.f32.mrf.mxu0
    %v395 = vadd.f32 %v122, %v394
    %v396 = vpop.f32.mrf.mxu0
    %v397 = vadd.f32 %v122, %v396
    %398 = vmatmul.bf16.gmra.mxu0 %v237
    %v399 = vpop.f32.mrf.mxu0
    %v400 = vadd.f32 %v122, %v399
    %v401 = vpop.f32.mrf.mxu0
    %v402 = vadd.f32 %v122, %v401
    %403 = vmatmul.bf16.gmra.mxu0 %v240
    %v404 = vpop.f32.mrf.mxu0
    %v405 = vadd.f32 %v122, %v404
    %v406 = vpop.f32.mrf.mxu0
    %v407 = vadd.f32 %v122, %v406
    %408 = vmatmul.bf16.gmra.mxu0 %v243
    %v409 = vpop.f32.mrf.mxu0
    %v410 = vadd.f32 %v122, %v409
    %v411 = vpop.f32.mrf.mxu0
    %v412 = vadd.f32 %v122, %v411
    %413 = vdwg.mxu0
    %v414 = vand.u32 2147483647, %v255
    %vm415 = vcmp.le.f32.partialorder %v414, 0.7853982
    %vm416 = vcmp.lt.s32.totalorder %v255, 0
    %v417 = vand.u32 %v255, 2139095040
    %v418 = vshrl.u32 %v417, 23
    %v419 = vsub.s32 %v418, 127
    %v420 = vand.u32 2147483647, %v255
    %v421 = vand.u32 %v420, 8388607
    %v422 = vor.u32 %v421, 8388608
    %v423 = vsub.s32 0, %v422
    %v424 = vadd.s32 %v419, 1
    %vm425 = vcmp.gt.s32.totalorder %v424, 0
    %v426 = vsel %vm425, %v424, 0
    %v427 = vshrl.u32 %v426, 5
    %v428 = vand.u32 %v426, 31
    %v429 = vsub.s32 32, %v428
    %v430 = vshrl.u32 683565275, %v429
    %v431 = vshll.u32 683565275, %v428
    %v432 = vshrl.u32 2475754826, %v429
    %v433 = vor.u32 %v431, %v432
    %v434 = vshll.u32 2475754826, %v428
    %v435 = vshrl.u32 2131351028, %v429
    %v436 = vor.u32 %v434, %v435
    %v437 = vshll.u32 2131351028, %v428
    %v438 = vshrl.u32 2102212464, %v429
    %v439 = vor.u32 %v437, %v438
    %v440 = vshll.u32 2102212464, %v428
    %v441 = vshrl.u32 920167782, %v429
    %v442 = vor.u32 %v440, %v441
    %v443 = vshll.u32 920167782, %v428
    %v444 = vshrl.u32 1326507024, %v429
    %v445 = vor.u32 %v443, %v444
    %vm446 = vcmp.lt.s32.totalorder %v427, 1
    %vm447 = vcmp.lt.s32.totalorder %v427, 2
    %vm448 = vcmp.lt.s32.totalorder %v427, 3
    %vm449 = vcmp.lt.s32.totalorder %v427, 4
    %v450 = vsel %vm446, %v430, %v433
    %v451 = vsel %vm449, %v439, 2102212464
    %v452 = vsel %vm448, %v436, %v451
    %v453 = vsel %vm447, %v450, %v452
    %v454 = vsel %vm446, %v433, %v436
    %v455 = vsel %vm449, %v442, 920167782
    %v456 = vsel %vm448, %v439, %v455
    %v457 = vsel %vm447, %v454, %v456
    %v458 = vsel %vm446, %v436, %v439
    %v459 = vsel %vm449, %v445, 1326507024
    %v460 = vsel %vm448, %v442, %v459
    %v461 = vsel %vm447, %v458, %v460
    %v462 = vshll.u32 %v422, 8
    %v463 = vand.u32 %v462, 65535
    %v464 = vshrl.u32 %v462, 16
    %v465 = vand.u32 %v461, 65535
    %v466 = vshrl.u32 %v461, 16
    %v467 = vmul.u32 %v463, %v465
    %v468 = vmul.u32 %v463, %v466
    %v469 = vmul.u32 %v464, %v465
    %v470 = vmul.u32 %v464, %v466
    %v471 = vshll.u32 %v468, 16
    %v472 = vshrl.u32 %v468, 16
    %v473 = vshll.u32 %v469, 16
    %v474 = vshrl.u32 %v469, 16
    %vm475 = vc.u32 %v467, %v471
    %v476 = vsel %vm475, 1, 0
    %v477 = vadd.s32 %v467, %v471
    %v478 = vadd.s32 %v470, %v476
    %vm479 = vc.u32 %v477, %v473
    %v480 = vsel %vm479, 1, 0
    %v481 = vadd.s32 %v477, %v473
    %v482 = vadd.s32 %v478, %v480
    %v483 = vadd.s32 %v482, %v472
    %v484 = vadd.s32 %v483, %v474
    %v485 = vand.u32 %v462, 65535
    %v486 = vshrl.u32 %v462, 16
    %v487 = vand.u32 %v457, 65535
    %v488 = vshrl.u32 %v457, 16
    %v489 = vmul.u32 %v485, %v487
    %v490 = vmul.u32 %v485, %v488
    %v491 = vmul.u32 %v486, %v487
    %v492 = vmul.u32 %v486, %v488
    %v493 = vshll.u32 %v490, 16
    %v494 = vshrl.u32 %v490, 16
    %v495 = vshll.u32 %v491, 16
    %v496 = vshrl.u32 %v491, 16
    %vm497 = vc.u32 %v489, %v493
    %v498 = vsel %vm497, 1, 0
    %v499 = vadd.s32 %v489, %v493
    %v500 = vadd.s32 %v492, %v498
    %vm501 = vc.u32 %v499, %v495
    %v502 = vsel %vm501, 1, 0
    %v503 = vadd.s32 %v499, %v495
    %v504 = vadd.s32 %v500, %v502
    %v505 = vadd.s32 %v504, %v494
    %v506 = vadd.s32 %v505, %v496
    %v507 = vmul.u32 %v462, %v453
    %v508 = vadd.s32 %v484, %v503
    %vm509 = vc.u32 %v484, %v503
    %v510 = vadd.s32 %v506, 1
    %v511 = vsel %vm509, %v510, %v506
    %v512 = vadd.s32 %v507, %v511
    %v513 = vadd.s32 %v512, 536870912
    %v514 = vshrl.u32 %v513, 30
    %v515 = vshll.u32 %v514, 30
    %v516 = vsub.s32 %v512, %v515
    %vm517 = vcmp.lt.s32.totalorder %v516, 0
    %v518 = vsub.s32 0, %v516
    %v519 = vsel %vm517, %v518, %v516
    %v520 = vclz %v519
    %v521 = vsub.s32 %v520, 2
    %vm522 = vcmp.gt.s32.totalorder 0, %v521
    %v523 = vsel %vm522, 0, %v521
    %v524 = vsub.s32 32, %v523
    %v525 = vshll.u32 %v516, %v523
    %v526 = vshrl.u32 %v508, %v524
    %v527 = vor.u32 %v525, %v526
    %v528 = vsub.s32 4294967266, %v523
    %v529 = vadd.s32 %v528, 127
    %v530 = vshll.u32 %v529, 23
    %v531 = vor.u32 4788187, %v530
    %v532 = vand.u32 2147483647, %v531
    %v534 = vcvt.s32.f32 %v527
    %v535 = vmul.f32 %v534, %v532
    %v536 = vxor.u32 %v535, 2147483648
    %v537 = vsel %vm416, %v536, %v535
    %v538 = vsub.s32 4, %v514
    %v539 = vsel %vm416, %v538, %v514
    %v540 = vsel %vm415, %v255, %v537
    %v541 = vsel %vm415, 0, %v539
    %v542 = vmul.f32 %v540, %v540
    %v543 = vmul.f32 %v542, -0.001358992
    %v544 = vadd.f32 %v543, 0.041655596
    %v545 = vmul.f32 %v542, %v544
    %v546 = vadd.f32 %v545, -0.4999988
    %v547 = vmul.f32 %v542, %v546
    %v548 = vadd.f32 1.0, %v547
    %v549 = vmul.f32 %v540, %v540
    %v550 = vmul.f32 %v549, -0.00019511016
    %v551 = vadd.f32 %v550, 0.008332121
    %v552 = vmul.f32 %v549, %v551
    %v553 = vadd.f32 %v552, -0.16666654
    %v554 = vmul.f32 %v549, %v553
    %v555 = vadd.f32 %v554, 1.0
    %v556 = vmul.f32 %v555, %v540
    %vm557 = vweird.f32 %v255
    %v558 = vadd.s32 %v541, 3
    %v559 = vand.u32 %v558, 3
    %vm560 = vcmp.lt.s32.totalorder %v559, 2
    %vm561 = vcmp.eq.s32.totalorder %v559, 0
    %v562 = vxor.u32 %v556, 2147483648
    %v563 = vsel %vm561, %v548, %v562
    %vm564 = vcmp.eq.s32.totalorder %v559, 2
    %v565 = vxor.u32 %v548, 2147483648
    %v566 = vsel %vm564, %v565, %v556
    %v567 = vsel %vm560, %v563, %v566
    %v568 = vsel %vm557, nan, %v567
    %v569 = vand.u32 2147483647, %v257
    %vm570 = vcmp.le.f32.partialorder %v569, 0.7853982
    %vm571 = vcmp.lt.s32.totalorder %v257, 0
    %v572 = vand.u32 %v257, 2139095040
    %v573 = vshrl.u32 %v572, 23
    %v574 = vsub.s32 %v573, 127
    %v575 = vand.u32 2147483647, %v257
    %v576 = vand.u32 %v575, 8388607
    %v577 = vor.u32 %v576, 8388608
    %v578 = vsub.s32 0, %v577
    %v579 = vadd.s32 %v574, 1
    %vm580 = vcmp.gt.s32.totalorder %v579, 0
    %v581 = vsel %vm580, %v579, 0
    %v582 = vshrl.u32 %v581, 5
    %v583 = vand.u32 %v581, 31
    %v584 = vsub.s32 32, %v583
    %v585 = vshrl.u32 683565275, %v584
    %v586 = vshll.u32 683565275, %v583
    %v587 = vshrl.u32 2475754826, %v584
    %v588 = vor.u32 %v586, %v587
    %v589 = vshll.u32 2475754826, %v583
    %v590 = vshrl.u32 2131351028, %v584
    %v591 = vor.u32 %v589, %v590
    %v592 = vshll.u32 2131351028, %v583
    %v593 = vshrl.u32 2102212464, %v584
    %v594 = vor.u32 %v592, %v593
    %v595 = vshll.u32 2102212464, %v583
    %v596 = vshrl.u32 920167782, %v584
    %v597 = vor.u32 %v595, %v596
    %v598 = vshll.u32 920167782, %v583
    %v599 = vshrl.u32 1326507024, %v584
    %v600 = vor.u32 %v598, %v599
    %vm601 = vcmp.lt.s32.totalorder %v582, 1
    %vm602 = vcmp.lt.s32.totalorder %v582, 2
    %vm603 = vcmp.lt.s32.totalorder %v582, 3
    %vm604 = vcmp.lt.s32.totalorder %v582, 4
    %v605 = vsel %vm601, %v585, %v588
    %v606 = vsel %vm604, %v594, 2102212464
    %v607 = vsel %vm603, %v591, %v606
    %v608 = vsel %vm602, %v605, %v607
    %v609 = vsel %vm601, %v588, %v591
    %v610 = vsel %vm604, %v597, 920167782
    %v611 = vsel %vm603, %v594, %v610
    %v612 = vsel %vm602, %v609, %v611
    %v613 = vsel %vm601, %v591, %v594
    %v614 = vsel %vm604, %v600, 1326507024
    %v615 = vsel %vm603, %v597, %v614
    %v616 = vsel %vm602, %v613, %v615
    %v617 = vshll.u32 %v577, 8
    %v618 = vand.u32 %v617, 65535
    %v619 = vshrl.u32 %v617, 16
    %v620 = vand.u32 %v616, 65535
    %v621 = vshrl.u32 %v616, 16
    %v622 = vmul.u32 %v618, %v620
    %v623 = vmul.u32 %v618, %v621
    %v624 = vmul.u32 %v619, %v620
    %v625 = vmul.u32 %v619, %v621
    %v626 = vshll.u32 %v623, 16
    %v627 = vshrl.u32 %v623, 16
    %v628 = vshll.u32 %v624, 16
    %v629 = vshrl.u32 %v624, 16
    %vm630 = vc.u32 %v622, %v626
    %v631 = vsel %vm630, 1, 0
    %v632 = vadd.s32 %v622, %v626
    %v633 = vadd.s32 %v625, %v631
    %vm634 = vc.u32 %v632, %v628
    %v635 = vsel %vm634, 1, 0
    %v636 = vadd.s32 %v632, %v628
    %v637 = vadd.s32 %v633, %v635
    %v638 = vadd.s32 %v637, %v627
    %v639 = vadd.s32 %v638, %v629
    %v640 = vand.u32 %v617, 65535
    %v641 = vshrl.u32 %v617, 16
    %v642 = vand.u32 %v612, 65535
    %v643 = vshrl.u32 %v612, 16
    %v644 = vmul.u32 %v640, %v642
    %v645 = vmul.u32 %v640, %v643
    %v646 = vmul.u32 %v641, %v642
    %v647 = vmul.u32 %v641, %v643
    %v648 = vshll.u32 %v645, 16
    %v649 = vshrl.u32 %v645, 16
    %v650 = vshll.u32 %v646, 16
    %v651 = vshrl.u32 %v646, 16
    %vm652 = vc.u32 %v644, %v648
    %v653 = vsel %vm652, 1, 0
    %v654 = vadd.s32 %v644, %v648
    %v655 = vadd.s32 %v647, %v653
    %vm656 = vc.u32 %v654, %v650
    %v657 = vsel %vm656, 1, 0
    %v658 = vadd.s32 %v654, %v650
    %v659 = vadd.s32 %v655, %v657
    %v660 = vadd.s32 %v659, %v649
    %v661 = vadd.s32 %v660, %v651
    %v662 = vmul.u32 %v617, %v608
    %v663 = vadd.s32 %v639, %v658
    %vm664 = vc.u32 %v639, %v658
    %v665 = vadd.s32 %v661, 1
    %v666 = vsel %vm664, %v665, %v661
    %v667 = vadd.s32 %v662, %v666
    %v668 = vadd.s32 %v667, 536870912
    %v669 = vshrl.u32 %v668, 30
    %v670 = vshll.u32 %v669, 30
    %v671 = vsub.s32 %v667, %v670
    %vm672 = vcmp.lt.s32.totalorder %v671, 0
    %v673 = vsub.s32 0, %v671
    %v674 = vsel %vm672, %v673, %v671
    %v675 = vclz %v674
    %v676 = vsub.s32 %v675, 2
    %vm677 = vcmp.gt.s32.totalorder 0, %v676
    %v678 = vsel %vm677, 0, %v676
    %v679 = vsub.s32 32, %v678
    %v680 = vshll.u32 %v671, %v678
    %v681 = vshrl.u32 %v663, %v679
    %v682 = vor.u32 %v680, %v681
    %v683 = vsub.s32 4294967266, %v678
    %v684 = vadd.s32 %v683, 127
    %v685 = vshll.u32 %v684, 23
    %v686 = vor.u32 4788187, %v685
    %v687 = vand.u32 2147483647, %v686
    %v689 = vcvt.s32.f32 %v682
    %v690 = vmul.f32 %v689, %v687
    %v691 = vxor.u32 %v690, 2147483648
    %v692 = vsel %vm571, %v691, %v690
    %v693 = vsub.s32 4, %v669
    %v694 = vsel %vm571, %v693, %v669
    %v695 = vsel %vm570, %v257, %v692
    %v696 = vsel %vm570, 0, %v694
    %v697 = vmul.f32 %v695, %v695
    %v698 = vmul.f32 %v697, -0.001358992
    %v699 = vadd.f32 %v698, 0.041655596
    %v700 = vmul.f32 %v697, %v699
    %v701 = vadd.f32 %v700, -0.4999988
    %v702 = vmul.f32 %v697, %v701
    %v703 = vadd.f32 1.0, %v702
    %v704 = vmul.f32 %v695, %v695
    %v705 = vmul.f32 %v704, -0.00019511016
    %v706 = vadd.f32 %v705, 0.008332121
    %v707 = vmul.f32 %v704, %v706
    %v708 = vadd.f32 %v707, -0.16666654
    %v709 = vmul.f32 %v704, %v708
    %v710 = vadd.f32 %v709, 1.0
    %v711 = vmul.f32 %v710, %v695
    %vm712 = vweird.f32 %v257
    %v713 = vadd.s32 %v696, 3
    %v714 = vand.u32 %v713, 3
    %vm715 = vcmp.lt.s32.totalorder %v714, 2
    %vm716 = vcmp.eq.s32.totalorder %v714, 0
    %v717 = vxor.u32 %v711, 2147483648
    %v718 = vsel %vm716, %v703, %v717
    %vm719 = vcmp.eq.s32.totalorder %v714, 2
    %v720 = vxor.u32 %v703, 2147483648
    %v721 = vsel %vm719, %v720, %v711
    %v722 = vsel %vm715, %v718, %v721
    %v723 = vsel %vm712, nan, %v722
    %v724 = vand.u32 2147483647, %v260
    %vm725 = vcmp.le.f32.partialorder %v724, 0.7853982
    %vm726 = vcmp.lt.s32.totalorder %v260, 0
    %v727 = vand.u32 %v260, 2139095040
    %v728 = vshrl.u32 %v727, 23
    %v729 = vsub.s32 %v728, 127
    %v730 = vand.u32 2147483647, %v260
    %v731 = vand.u32 %v730, 8388607
    %v732 = vor.u32 %v731, 8388608
    %v733 = vsub.s32 0, %v732
    %v734 = vadd.s32 %v729, 1
    %vm735 = vcmp.gt.s32.totalorder %v734, 0
    %v736 = vsel %vm735, %v734, 0
    %v737 = vshrl.u32 %v736, 5
    %v738 = vand.u32 %v736, 31
    %v739 = vsub.s32 32, %v738
    %v740 = vshrl.u32 683565275, %v739
    %v741 = vshll.u32 683565275, %v738
    %v742 = vshrl.u32 2475754826, %v739
    %v743 = vor.u32 %v741, %v742
    %v744 = vshll.u32 2475754826, %v738
    %v745 = vshrl.u32 2131351028, %v739
    %v746 = vor.u32 %v744, %v745
    %v747 = vshll.u32 2131351028, %v738
    %v748 = vshrl.u32 2102212464, %v739
    %v749 = vor.u32 %v747, %v748
    %v750 = vshll.u32 2102212464, %v738
    %v751 = vshrl.u32 920167782, %v739
    %v752 = vor.u32 %v750, %v751
    %v753 = vshll.u32 920167782, %v738
    %v754 = vshrl.u32 1326507024, %v739
    %v755 = vor.u32 %v753, %v754
    %vm756 = vcmp.lt.s32.totalorder %v737, 1
    %vm757 = vcmp.lt.s32.totalorder %v737, 2
    %vm758 = vcmp.lt.s32.totalorder %v737, 3
    %vm759 = vcmp.lt.s32.totalorder %v737, 4
    %v760 = vsel %vm756, %v740, %v743
    %v761 = vsel %vm759, %v749, 2102212464
    %v762 = vsel %vm758, %v746, %v761
    %v763 = vsel %vm757, %v760, %v762
    %v764 = vsel %vm756, %v743, %v746
    %v765 = vsel %vm759, %v752, 920167782
    %v766 = vsel %vm758, %v749, %v765
    %v767 = vsel %vm757, %v764, %v766
    %v768 = vsel %vm756, %v746, %v749
    %v769 = vsel %vm759, %v755, 1326507024
    %v770 = vsel %vm758, %v752, %v769
    %v771 = vsel %vm757, %v768, %v770
    %v772 = vshll.u32 %v732, 8
    %v773 = vand.u32 %v772, 65535
    %v774 = vshrl.u32 %v772, 16
    %v775 = vand.u32 %v771, 65535
    %v776 = vshrl.u32 %v771, 16
    %v777 = vmul.u32 %v773, %v775
    %v778 = vmul.u32 %v773, %v776
    %v779 = vmul.u32 %v774, %v775
    %v780 = vmul.u32 %v774, %v776
    %v781 = vshll.u32 %v778, 16
    %v782 = vshrl.u32 %v778, 16
    %v783 = vshll.u32 %v779, 16
    %v784 = vshrl.u32 %v779, 16
    %vm785 = vc.u32 %v777, %v781
    %v786 = vsel %vm785, 1, 0
    %v787 = vadd.s32 %v777, %v781
    %v788 = vadd.s32 %v780, %v786
    %vm789 = vc.u32 %v787, %v783
    %v790 = vsel %vm789, 1, 0
    %v791 = vadd.s32 %v787, %v783
    %v792 = vadd.s32 %v788, %v790
    %v793 = vadd.s32 %v792, %v782
    %v794 = vadd.s32 %v793, %v784
    %v795 = vand.u32 %v772, 65535
    %v796 = vshrl.u32 %v772, 16
    %v797 = vand.u32 %v767, 65535
    %v798 = vshrl.u32 %v767, 16
    %v799 = vmul.u32 %v795, %v797
    %v800 = vmul.u32 %v795, %v798
    %v801 = vmul.u32 %v796, %v797
    %v802 = vmul.u32 %v796, %v798
    %v803 = vshll.u32 %v800, 16
    %v804 = vshrl.u32 %v800, 16
    %v805 = vshll.u32 %v801, 16
    %v806 = vshrl.u32 %v801, 16
    %vm807 = vc.u32 %v799, %v803
    %v808 = vsel %vm807, 1, 0
    %v809 = vadd.s32 %v799, %v803
    %v810 = vadd.s32 %v802, %v808
    %vm811 = vc.u32 %v809, %v805
    %v812 = vsel %vm811, 1, 0
    %v813 = vadd.s32 %v809, %v805
    %v814 = vadd.s32 %v810, %v812
    %v815 = vadd.s32 %v814, %v804
    %v816 = vadd.s32 %v815, %v806
    %v817 = vmul.u32 %v772, %v763
    %v818 = vadd.s32 %v794, %v813
    %vm819 = vc.u32 %v794, %v813
    %v820 = vadd.s32 %v816, 1
    %v821 = vsel %vm819, %v820, %v816
    %v822 = vadd.s32 %v817, %v821
    %v823 = vadd.s32 %v822, 536870912
    %v824 = vshrl.u32 %v823, 30
    %v825 = vshll.u32 %v824, 30
    %v826 = vsub.s32 %v822, %v825
    %vm827 = vcmp.lt.s32.totalorder %v826, 0
    %v828 = vsub.s32 0, %v826
    %v829 = vsel %vm827, %v828, %v826
    %v830 = vclz %v829
    %v831 = vsub.s32 %v830, 2
    %vm832 = vcmp.gt.s32.totalorder 0, %v831
    %v833 = vsel %vm832, 0, %v831
    %v834 = vsub.s32 32, %v833
    %v835 = vshll.u32 %v826, %v833
    %v836 = vshrl.u32 %v818, %v834
    %v837 = vor.u32 %v835, %v836
    %v838 = vsub.s32 4294967266, %v833
    %v839 = vadd.s32 %v838, 127
    %v840 = vshll.u32 %v839, 23
    %v841 = vor.u32 4788187, %v840
    %v842 = vand.u32 2147483647, %v841
    %v844 = vcvt.s32.f32 %v837
    %v845 = vmul.f32 %v844, %v842
    %v846 = vxor.u32 %v845, 2147483648
    %v847 = vsel %vm726, %v846, %v845
    %v848 = vsub.s32 4, %v824
    %v849 = vsel %vm726, %v848, %v824
    %v850 = vsel %vm725, %v260, %v847
    %v851 = vsel %vm725, 0, %v849
    %v852 = vmul.f32 %v850, %v850
    %v853 = vmul.f32 %v852, -0.001358992
    %v854 = vadd.f32 %v853, 0.041655596
    %v855 = vmul.f32 %v852, %v854
    %v856 = vadd.f32 %v855, -0.4999988
    %v857 = vmul.f32 %v852, %v856
    %v858 = vadd.f32 1.0, %v857
    %v859 = vmul.f32 %v850, %v850
    %v860 = vmul.f32 %v859, -0.00019511016
    %v861 = vadd.f32 %v860, 0.008332121
    %v862 = vmul.f32 %v859, %v861
    %v863 = vadd.f32 %v862, -0.16666654
    %v864 = vmul.f32 %v859, %v863
    %v865 = vadd.f32 %v864, 1.0
    %v866 = vmul.f32 %v865, %v850
    %vm867 = vweird.f32 %v260
    %v868 = vadd.s32 %v851, 3
    %v869 = vand.u32 %v868, 3
    %vm870 = vcmp.lt.s32.totalorder %v869, 2
    %vm871 = vcmp.eq.s32.totalorder %v869, 0
    %v872 = vxor.u32 %v866, 2147483648
    %v873 = vsel %vm871, %v858, %v872
    %vm874 = vcmp.eq.s32.totalorder %v869, 2
    %v875 = vxor.u32 %v858, 2147483648
    %v876 = vsel %vm874, %v875, %v866
    %v877 = vsel %vm870, %v873, %v876
    %v878 = vsel %vm867, nan, %v877
    %v879 = vand.u32 2147483647, %v262
    %vm880 = vcmp.le.f32.partialorder %v879, 0.7853982
    %vm881 = vcmp.lt.s32.totalorder %v262, 0
    %v882 = vand.u32 %v262, 2139095040
    %v883 = vshrl.u32 %v882, 23
    %v884 = vsub.s32 %v883, 127
    %v885 = vand.u32 2147483647, %v262
    %v886 = vand.u32 %v885, 8388607
    %v887 = vor.u32 %v886, 8388608
    %v888 = vsub.s32 0, %v887
    %v889 = vadd.s32 %v884, 1
    %vm890 = vcmp.gt.s32.totalorder %v889, 0
    %v891 = vsel %vm890, %v889, 0
    %v892 = vshrl.u32 %v891, 5
    %v893 = vand.u32 %v891, 31
    %v894 = vsub.s32 32, %v893
    %v895 = vshrl.u32 683565275, %v894
    %v896 = vshll.u32 683565275, %v893
    %v897 = vshrl.u32 2475754826, %v894
    %v898 = vor.u32 %v896, %v897
    %v899 = vshll.u32 2475754826, %v893
    %v900 = vshrl.u32 2131351028, %v894
    %v901 = vor.u32 %v899, %v900
    %v902 = vshll.u32 2131351028, %v893
    %v903 = vshrl.u32 2102212464, %v894
    %v904 = vor.u32 %v902, %v903
    %v905 = vshll.u32 2102212464, %v893
    %v906 = vshrl.u32 920167782, %v894
    %v907 = vor.u32 %v905, %v906
    %v908 = vshll.u32 920167782, %v893
    %v909 = vshrl.u32 1326507024, %v894
    %v910 = vor.u32 %v908, %v909
    %vm911 = vcmp.lt.s32.totalorder %v892, 1
    %vm912 = vcmp.lt.s32.totalorder %v892, 2
    %vm913 = vcmp.lt.s32.totalorder %v892, 3
    %vm914 = vcmp.lt.s32.totalorder %v892, 4
    %v915 = vsel %vm911, %v895, %v898
    %v916 = vsel %vm914, %v904, 2102212464
    %v917 = vsel %vm913, %v901, %v916
    %v918 = vsel %vm912, %v915, %v917
    %v919 = vsel %vm911, %v898, %v901
    %v920 = vsel %vm914, %v907, 920167782
    %v921 = vsel %vm913, %v904, %v920
    %v922 = vsel %vm912, %v919, %v921
    %v923 = vsel %vm911, %v901, %v904
    %v924 = vsel %vm914, %v910, 1326507024
    %v925 = vsel %vm913, %v907, %v924
    %v926 = vsel %vm912, %v923, %v925
    %v927 = vshll.u32 %v887, 8
    %v928 = vand.u32 %v927, 65535
    %v929 = vshrl.u32 %v927, 16
    %v930 = vand.u32 %v926, 65535
    %v931 = vshrl.u32 %v926, 16
    %v932 = vmul.u32 %v928, %v930
    %v933 = vmul.u32 %v928, %v931
    %v934 = vmul.u32 %v929, %v930
    %v935 = vmul.u32 %v929, %v931
    %v936 = vshll.u32 %v933, 16
    %v937 = vshrl.u32 %v933, 16
    %v938 = vshll.u32 %v934, 16
    %v939 = vshrl.u32 %v934, 16
    %vm940 = vc.u32 %v932, %v936
    %v941 = vsel %vm940, 1, 0
    %v942 = vadd.s32 %v932, %v936
    %v943 = vadd.s32 %v935, %v941
    %vm944 = vc.u32 %v942, %v938
    %v945 = vsel %vm944, 1, 0
    %v946 = vadd.s32 %v942, %v938
    %v947 = vadd.s32 %v943, %v945
    %v948 = vadd.s32 %v947, %v937
    %v949 = vadd.s32 %v948, %v939
    %v950 = vand.u32 %v927, 65535
    %v951 = vshrl.u32 %v927, 16
    %v952 = vand.u32 %v922, 65535
    %v953 = vshrl.u32 %v922, 16
    %v954 = vmul.u32 %v950, %v952
    %v955 = vmul.u32 %v950, %v953
    %v956 = vmul.u32 %v951, %v952
    %v957 = vmul.u32 %v951, %v953
    %v958 = vshll.u32 %v955, 16
    %v959 = vshrl.u32 %v955, 16
    %v960 = vshll.u32 %v956, 16
    %v961 = vshrl.u32 %v956, 16
    %vm962 = vc.u32 %v954, %v958
    %v963 = vsel %vm962, 1, 0
    %v964 = vadd.s32 %v954, %v958
    %v965 = vadd.s32 %v957, %v963
    %vm966 = vc.u32 %v964, %v960
    %v967 = vsel %vm966, 1, 0
    %v968 = vadd.s32 %v964, %v960
    %v969 = vadd.s32 %v965, %v967
    %v970 = vadd.s32 %v969, %v959
    %v971 = vadd.s32 %v970, %v961
    %v972 = vmul.u32 %v927, %v918
    %v973 = vadd.s32 %v949, %v968
    %vm974 = vc.u32 %v949, %v968
    %v975 = vadd.s32 %v971, 1
    %v976 = vsel %vm974, %v975, %v971
    %v977 = vadd.s32 %v972, %v976
    %v978 = vadd.s32 %v977, 536870912
    %v979 = vshrl.u32 %v978, 30
    %v980 = vshll.u32 %v979, 30
    %v981 = vsub.s32 %v977, %v980
    %vm982 = vcmp.lt.s32.totalorder %v981, 0
    %v983 = vsub.s32 0, %v981
    %v984 = vsel %vm982, %v983, %v981
    %v985 = vclz %v984
    %v986 = vsub.s32 %v985, 2
    %vm987 = vcmp.gt.s32.totalorder 0, %v986
    %v988 = vsel %vm987, 0, %v986
    %v989 = vsub.s32 32, %v988
    %v990 = vshll.u32 %v981, %v988
    %v991 = vshrl.u32 %v973, %v989
    %v992 = vor.u32 %v990, %v991
    %v993 = vsub.s32 4294967266, %v988
    %v994 = vadd.s32 %v993, 127
    %v995 = vshll.u32 %v994, 23
    %v996 = vor.u32 4788187, %v995
    %v997 = vand.u32 2147483647, %v996
    %v999 = vcvt.s32.f32 %v992
    %v1000 = vmul.f32 %v999, %v997
    %v1001 = vxor.u32 %v1000, 2147483648
    %v1002 = vsel %vm881, %v1001, %v1000
    %v1003 = vsub.s32 4, %v979
    %v1004 = vsel %vm881, %v1003, %v979
    %v1005 = vsel %vm880, %v262, %v1002
    %v1006 = vsel %vm880, 0, %v1004
    %v1007 = vmul.f32 %v1005, %v1005
    %v1008 = vmul.f32 %v1007, -0.001358992
    %v1009 = vadd.f32 %v1008, 0.041655596
    %v1010 = vmul.f32 %v1007, %v1009
    %v1011 = vadd.f32 %v1010, -0.4999988
    %v1012 = vmul.f32 %v1007, %v1011
    %v1013 = vadd.f32 1.0, %v1012
    %v1014 = vmul.f32 %v1005, %v1005
    %v1015 = vmul.f32 %v1014, -0.00019511016
    %v1016 = vadd.f32 %v1015, 0.008332121
    %v1017 = vmul.f32 %v1014, %v1016
    %v1018 = vadd.f32 %v1017, -0.16666654
    %v1019 = vmul.f32 %v1014, %v1018
    %v1020 = vadd.f32 %v1019, 1.0
    %v1021 = vmul.f32 %v1020, %v1005
    %vm1022 = vweird.f32 %v262
    %v1023 = vadd.s32 %v1006, 3
    %v1024 = vand.u32 %v1023, 3
    %vm1025 = vcmp.lt.s32.totalorder %v1024, 2
    %vm1026 = vcmp.eq.s32.totalorder %v1024, 0
    %v1027 = vxor.u32 %v1021, 2147483648
    %v1028 = vsel %vm1026, %v1013, %v1027
    %vm1029 = vcmp.eq.s32.totalorder %v1024, 2
    %v1030 = vxor.u32 %v1013, 2147483648
    %v1031 = vsel %vm1029, %v1030, %v1021
    %v1032 = vsel %vm1025, %v1028, %v1031
    %v1033 = vsel %vm1022, nan, %v1032
    %v1034 = vand.u32 2147483647, %v265
    %vm1035 = vcmp.le.f32.partialorder %v1034, 0.7853982
    %vm1036 = vcmp.lt.s32.totalorder %v265, 0
    %v1037 = vand.u32 %v265, 2139095040
    %v1038 = vshrl.u32 %v1037, 23
    %v1039 = vsub.s32 %v1038, 127
    %v1040 = vand.u32 2147483647, %v265
    %v1041 = vand.u32 %v1040, 8388607
    %v1042 = vor.u32 %v1041, 8388608
    %v1043 = vsub.s32 0, %v1042
    %v1044 = vadd.s32 %v1039, 1
    %vm1045 = vcmp.gt.s32.totalorder %v1044, 0
    %v1046 = vsel %vm1045, %v1044, 0
    %v1047 = vshrl.u32 %v1046, 5
    %v1048 = vand.u32 %v1046, 31
    %v1049 = vsub.s32 32, %v1048
    %v1050 = vshrl.u32 683565275, %v1049
    %v1051 = vshll.u32 683565275, %v1048
    %v1052 = vshrl.u32 2475754826, %v1049
    %v1053 = vor.u32 %v1051, %v1052
    %v1054 = vshll.u32 2475754826, %v1048
    %v1055 = vshrl.u32 2131351028, %v1049
    %v1056 = vor.u32 %v1054, %v1055
    %v1057 = vshll.u32 2131351028, %v1048
    %v1058 = vshrl.u32 2102212464, %v1049
    %v1059 = vor.u32 %v1057, %v1058
    %v1060 = vshll.u32 2102212464, %v1048
    %v1061 = vshrl.u32 920167782, %v1049
    %v1062 = vor.u32 %v1060, %v1061
    %v1063 = vshll.u32 920167782, %v1048
    %v1064 = vshrl.u32 1326507024, %v1049
    %v1065 = vor.u32 %v1063, %v1064
    %vm1066 = vcmp.lt.s32.totalorder %v1047, 1
    %vm1067 = vcmp.lt.s32.totalorder %v1047, 2
    %vm1068 = vcmp.lt.s32.totalorder %v1047, 3
    %vm1069 = vcmp.lt.s32.totalorder %v1047, 4
    %v1070 = vsel %vm1066, %v1050, %v1053
    %v1071 = vsel %vm1069, %v1059, 2102212464
    %v1072 = vsel %vm1068, %v1056, %v1071
    %v1073 = vsel %vm1067, %v1070, %v1072
    %v1074 = vsel %vm1066, %v1053, %v1056
    %v1075 = vsel %vm1069, %v1062, 920167782
    %v1076 = vsel %vm1068, %v1059, %v1075
    %v1077 = vsel %vm1067, %v1074, %v1076
    %v1078 = vsel %vm1066, %v1056, %v1059
    %v1079 = vsel %vm1069, %v1065, 1326507024
    %v1080 = vsel %vm1068, %v1062, %v1079
    %v1081 = vsel %vm1067, %v1078, %v1080
    %v1082 = vshll.u32 %v1042, 8
    %v1083 = vand.u32 %v1082, 65535
    %v1084 = vshrl.u32 %v1082, 16
    %v1085 = vand.u32 %v1081, 65535
    %v1086 = vshrl.u32 %v1081, 16
    %v1087 = vmul.u32 %v1083, %v1085
    %v1088 = vmul.u32 %v1083, %v1086
    %v1089 = vmul.u32 %v1084, %v1085
    %v1090 = vmul.u32 %v1084, %v1086
    %v1091 = vshll.u32 %v1088, 16
    %v1092 = vshrl.u32 %v1088, 16
    %v1093 = vshll.u32 %v1089, 16
    %v1094 = vshrl.u32 %v1089, 16
    %vm1095 = vc.u32 %v1087, %v1091
    %v1096 = vsel %vm1095, 1, 0
    %v1097 = vadd.s32 %v1087, %v1091
    %v1098 = vadd.s32 %v1090, %v1096
    %vm1099 = vc.u32 %v1097, %v1093
    %v1100 = vsel %vm1099, 1, 0
    %v1101 = vadd.s32 %v1097, %v1093
    %v1102 = vadd.s32 %v1098, %v1100
    %v1103 = vadd.s32 %v1102, %v1092
    %v1104 = vadd.s32 %v1103, %v1094
    %v1105 = vand.u32 %v1082, 65535
    %v1106 = vshrl.u32 %v1082, 16
    %v1107 = vand.u32 %v1077, 65535
    %v1108 = vshrl.u32 %v1077, 16
    %v1109 = vmul.u32 %v1105, %v1107
    %v1110 = vmul.u32 %v1105, %v1108
    %v1111 = vmul.u32 %v1106, %v1107
    %v1112 = vmul.u32 %v1106, %v1108
    %v1113 = vshll.u32 %v1110, 16
    %v1114 = vshrl.u32 %v1110, 16
    %v1115 = vshll.u32 %v1111, 16
    %v1116 = vshrl.u32 %v1111, 16
    %vm1117 = vc.u32 %v1109, %v1113
    %v1118 = vsel %vm1117, 1, 0
    %v1119 = vadd.s32 %v1109, %v1113
    %v1120 = vadd.s32 %v1112, %v1118
    %vm1121 = vc.u32 %v1119, %v1115
    %v1122 = vsel %vm1121, 1, 0
    %v1123 = vadd.s32 %v1119, %v1115
    %v1124 = vadd.s32 %v1120, %v1122
    %v1125 = vadd.s32 %v1124, %v1114
    %v1126 = vadd.s32 %v1125, %v1116
    %v1127 = vmul.u32 %v1082, %v1073
    %v1128 = vadd.s32 %v1104, %v1123
    %vm1129 = vc.u32 %v1104, %v1123
    %v1130 = vadd.s32 %v1126, 1
    %v1131 = vsel %vm1129, %v1130, %v1126
    %v1132 = vadd.s32 %v1127, %v1131
    %v1133 = vadd.s32 %v1132, 536870912
    %v1134 = vshrl.u32 %v1133, 30
    %v1135 = vshll.u32 %v1134, 30
    %v1136 = vsub.s32 %v1132, %v1135
    %vm1137 = vcmp.lt.s32.totalorder %v1136, 0
    %v1138 = vsub.s32 0, %v1136
    %v1139 = vsel %vm1137, %v1138, %v1136
    %v1140 = vclz %v1139
    %v1141 = vsub.s32 %v1140, 2
    %vm1142 = vcmp.gt.s32.totalorder 0, %v1141
    %v1143 = vsel %vm1142, 0, %v1141
    %v1144 = vsub.s32 32, %v1143
    %v1145 = vshll.u32 %v1136, %v1143
    %v1146 = vshrl.u32 %v1128, %v1144
    %v1147 = vor.u32 %v1145, %v1146
    %v1148 = vsub.s32 4294967266, %v1143
    %v1149 = vadd.s32 %v1148, 127
    %v1150 = vshll.u32 %v1149, 23
    %v1151 = vor.u32 4788187, %v1150
    %v1152 = vand.u32 2147483647, %v1151
    %v1154 = vcvt.s32.f32 %v1147
    %v1155 = vmul.f32 %v1154, %v1152
    %v1156 = vxor.u32 %v1155, 2147483648
    %v1157 = vsel %vm1036, %v1156, %v1155
    %v1158 = vsub.s32 4, %v1134
    %v1159 = vsel %vm1036, %v1158, %v1134
    %v1160 = vsel %vm1035, %v265, %v1157
    %v1161 = vsel %vm1035, 0, %v1159
    %v1162 = vmul.f32 %v1160, %v1160
    %v1163 = vmul.f32 %v1162, -0.001358992
    %v1164 = vadd.f32 %v1163, 0.041655596
    %v1165 = vmul.f32 %v1162, %v1164
    %v1166 = vadd.f32 %v1165, -0.4999988
    %v1167 = vmul.f32 %v1162, %v1166
    %v1168 = vadd.f32 1.0, %v1167
    %v1169 = vmul.f32 %v1160, %v1160
    %v1170 = vmul.f32 %v1169, -0.00019511016
    %v1171 = vadd.f32 %v1170, 0.008332121
    %v1172 = vmul.f32 %v1169, %v1171
    %v1173 = vadd.f32 %v1172, -0.16666654
    %v1174 = vmul.f32 %v1169, %v1173
    %v1175 = vadd.f32 %v1174, 1.0
    %v1176 = vmul.f32 %v1175, %v1160
    %vm1177 = vweird.f32 %v265
    %v1178 = vadd.s32 %v1161, 3
    %v1179 = vand.u32 %v1178, 3
    %vm1180 = vcmp.lt.s32.totalorder %v1179, 2
    %vm1181 = vcmp.eq.s32.totalorder %v1179, 0
    %v1182 = vxor.u32 %v1176, 2147483648
    %v1183 = vsel %vm1181, %v1168, %v1182
    %vm1184 = vcmp.eq.s32.totalorder %v1179, 2
    %v1185 = vxor.u32 %v1168, 2147483648
    %v1186 = vsel %vm1184, %v1185, %v1176
    %v1187 = vsel %vm1180, %v1183, %v1186
    %v1188 = vsel %vm1177, nan, %v1187
    %v1189 = vand.u32 2147483647, %v267
    %vm1190 = vcmp.le.f32.partialorder %v1189, 0.7853982
    %vm1191 = vcmp.lt.s32.totalorder %v267, 0
    %v1192 = vand.u32 %v267, 2139095040
    %v1193 = vshrl.u32 %v1192, 23
    %v1194 = vsub.s32 %v1193, 127
    %v1195 = vand.u32 2147483647, %v267
    %v1196 = vand.u32 %v1195, 8388607
    %v1197 = vor.u32 %v1196, 8388608
    %v1198 = vsub.s32 0, %v1197
    %v1199 = vadd.s32 %v1194, 1
    %vm1200 = vcmp.gt.s32.totalorder %v1199, 0
    %v1201 = vsel %vm1200, %v1199, 0
    %v1202 = vshrl.u32 %v1201, 5
    %v1203 = vand.u32 %v1201, 31
    %v1204 = vsub.s32 32, %v1203
    %v1205 = vshrl.u32 683565275, %v1204
    %v1206 = vshll.u32 683565275, %v1203
    %v1207 = vshrl.u32 2475754826, %v1204
    %v1208 = vor.u32 %v1206, %v1207
    %v1209 = vshll.u32 2475754826, %v1203
    %v1210 = vshrl.u32 2131351028, %v1204
    %v1211 = vor.u32 %v1209, %v1210
    %v1212 = vshll.u32 2131351028, %v1203
    %v1213 = vshrl.u32 2102212464, %v1204
    %v1214 = vor.u32 %v1212, %v1213
    %v1215 = vshll.u32 2102212464, %v1203
    %v1216 = vshrl.u32 920167782, %v1204
    %v1217 = vor.u32 %v1215, %v1216
    %v1218 = vshll.u32 920167782, %v1203
    %v1219 = vshrl.u32 1326507024, %v1204
    %v1220 = vor.u32 %v1218, %v1219
    %vm1221 = vcmp.lt.s32.totalorder %v1202, 1
    %vm1222 = vcmp.lt.s32.totalorder %v1202, 2
    %vm1223 = vcmp.lt.s32.totalorder %v1202, 3
    %vm1224 = vcmp.lt.s32.totalorder %v1202, 4
    %v1225 = vsel %vm1221, %v1205, %v1208
    %v1226 = vsel %vm1224, %v1214, 2102212464
    %v1227 = vsel %vm1223, %v1211, %v1226
    %v1228 = vsel %vm1222, %v1225, %v1227
    %v1229 = vsel %vm1221, %v1208, %v1211
    %v1230 = vsel %vm1224, %v1217, 920167782
    %v1231 = vsel %vm1223, %v1214, %v1230
    %v1232 = vsel %vm1222, %v1229, %v1231
    %v1233 = vsel %vm1221, %v1211, %v1214
    %v1234 = vsel %vm1224, %v1220, 1326507024
    %v1235 = vsel %vm1223, %v1217, %v1234
    %v1236 = vsel %vm1222, %v1233, %v1235
    %v1237 = vshll.u32 %v1197, 8
    %v1238 = vand.u32 %v1237, 65535
    %v1239 = vshrl.u32 %v1237, 16
    %v1240 = vand.u32 %v1236, 65535
    %v1241 = vshrl.u32 %v1236, 16
    %v1242 = vmul.u32 %v1238, %v1240
    %v1243 = vmul.u32 %v1238, %v1241
    %v1244 = vmul.u32 %v1239, %v1240
    %v1245 = vmul.u32 %v1239, %v1241
    %v1246 = vshll.u32 %v1243, 16
    %v1247 = vshrl.u32 %v1243, 16
    %v1248 = vshll.u32 %v1244, 16
    %v1249 = vshrl.u32 %v1244, 16
    %vm1250 = vc.u32 %v1242, %v1246
    %v1251 = vsel %vm1250, 1, 0
    %v1252 = vadd.s32 %v1242, %v1246
    %v1253 = vadd.s32 %v1245, %v1251
    %vm1254 = vc.u32 %v1252, %v1248
    %v1255 = vsel %vm1254, 1, 0
    %v1256 = vadd.s32 %v1252, %v1248
    %v1257 = vadd.s32 %v1253, %v1255
    %v1258 = vadd.s32 %v1257, %v1247
    %v1259 = vadd.s32 %v1258, %v1249
    %v1260 = vand.u32 %v1237, 65535
    %v1261 = vshrl.u32 %v1237, 16
    %v1262 = vand.u32 %v1232, 65535
    %v1263 = vshrl.u32 %v1232, 16
    %v1264 = vmul.u32 %v1260, %v1262
    %v1265 = vmul.u32 %v1260, %v1263
    %v1266 = vmul.u32 %v1261, %v1262
    %v1267 = vmul.u32 %v1261, %v1263
    %v1268 = vshll.u32 %v1265, 16
    %v1269 = vshrl.u32 %v1265, 16
    %v1270 = vshll.u32 %v1266, 16
    %v1271 = vshrl.u32 %v1266, 16
    %vm1272 = vc.u32 %v1264, %v1268
    %v1273 = vsel %vm1272, 1, 0
    %v1274 = vadd.s32 %v1264, %v1268
    %v1275 = vadd.s32 %v1267, %v1273
    %vm1276 = vc.u32 %v1274, %v1270
    %v1277 = vsel %vm1276, 1, 0
    %v1278 = vadd.s32 %v1274, %v1270
    %v1279 = vadd.s32 %v1275, %v1277
    %v1280 = vadd.s32 %v1279, %v1269
    %v1281 = vadd.s32 %v1280, %v1271
    %v1282 = vmul.u32 %v1237, %v1228
    %v1283 = vadd.s32 %v1259, %v1278
    %vm1284 = vc.u32 %v1259, %v1278
    %v1285 = vadd.s32 %v1281, 1
    %v1286 = vsel %vm1284, %v1285, %v1281
    %v1287 = vadd.s32 %v1282, %v1286
    %v1288 = vadd.s32 %v1287, 536870912
    %v1289 = vshrl.u32 %v1288, 30
    %v1290 = vshll.u32 %v1289, 30
    %v1291 = vsub.s32 %v1287, %v1290
    %vm1292 = vcmp.lt.s32.totalorder %v1291, 0
    %v1293 = vsub.s32 0, %v1291
    %v1294 = vsel %vm1292, %v1293, %v1291
    %v1295 = vclz %v1294
    %v1296 = vsub.s32 %v1295, 2
    %vm1297 = vcmp.gt.s32.totalorder 0, %v1296
    %v1298 = vsel %vm1297, 0, %v1296
    %v1299 = vsub.s32 32, %v1298
    %v1300 = vshll.u32 %v1291, %v1298
    %v1301 = vshrl.u32 %v1283, %v1299
    %v1302 = vor.u32 %v1300, %v1301
    %v1303 = vsub.s32 4294967266, %v1298
    %v1304 = vadd.s32 %v1303, 127
    %v1305 = vshll.u32 %v1304, 23
    %v1306 = vor.u32 4788187, %v1305
    %v1307 = vand.u32 2147483647, %v1306
    %v1309 = vcvt.s32.f32 %v1302
    %v1310 = vmul.f32 %v1309, %v1307
    %v1311 = vxor.u32 %v1310, 2147483648
    %v1312 = vsel %vm1191, %v1311, %v1310
    %v1313 = vsub.s32 4, %v1289
    %v1314 = vsel %vm1191, %v1313, %v1289
    %v1315 = vsel %vm1190, %v267, %v1312
    %v1316 = vsel %vm1190, 0, %v1314
    %v1317 = vmul.f32 %v1315, %v1315
    %v1318 = vmul.f32 %v1317, -0.001358992
    %v1319 = vadd.f32 %v1318, 0.041655596
    %v1320 = vmul.f32 %v1317, %v1319
    %v1321 = vadd.f32 %v1320, -0.4999988
    %v1322 = vmul.f32 %v1317, %v1321
    %v1323 = vadd.f32 1.0, %v1322
    %v1324 = vmul.f32 %v1315, %v1315
    %v1325 = vmul.f32 %v1324, -0.00019511016
    %v1326 = vadd.f32 %v1325, 0.008332121
    %v1327 = vmul.f32 %v1324, %v1326
    %v1328 = vadd.f32 %v1327, -0.16666654
    %v1329 = vmul.f32 %v1324, %v1328
    %v1330 = vadd.f32 %v1329, 1.0
    %v1331 = vmul.f32 %v1330, %v1315
    %vm1332 = vweird.f32 %v267
    %v1333 = vadd.s32 %v1316, 3
    %v1334 = vand.u32 %v1333, 3
    %vm1335 = vcmp.lt.s32.totalorder %v1334, 2
    %vm1336 = vcmp.eq.s32.totalorder %v1334, 0
    %v1337 = vxor.u32 %v1331, 2147483648
    %v1338 = vsel %vm1336, %v1323, %v1337
    %vm1339 = vcmp.eq.s32.totalorder %v1334, 2
    %v1340 = vxor.u32 %v1323, 2147483648
    %v1341 = vsel %vm1339, %v1340, %v1331
    %v1342 = vsel %vm1335, %v1338, %v1341
    %v1343 = vsel %vm1332, nan, %v1342
    %v1344 = vand.u32 2147483647, %v270
    %vm1345 = vcmp.le.f32.partialorder %v1344, 0.7853982
    %vm1346 = vcmp.lt.s32.totalorder %v270, 0
    %v1347 = vand.u32 %v270, 2139095040
    %v1348 = vshrl.u32 %v1347, 23
    %v1349 = vsub.s32 %v1348, 127
    %v1350 = vand.u32 2147483647, %v270
    %v1351 = vand.u32 %v1350, 8388607
    %v1352 = vor.u32 %v1351, 8388608
    %v1353 = vsub.s32 0, %v1352
    %v1354 = vadd.s32 %v1349, 1
    %vm1355 = vcmp.gt.s32.totalorder %v1354, 0
    %v1356 = vsel %vm1355, %v1354, 0
    %v1357 = vshrl.u32 %v1356, 5
    %v1358 = vand.u32 %v1356, 31
    %v1359 = vsub.s32 32, %v1358
    %v1360 = vshrl.u32 683565275, %v1359
    %v1361 = vshll.u32 683565275, %v1358
    %v1362 = vshrl.u32 2475754826, %v1359
    %v1363 = vor.u32 %v1361, %v1362
    %v1364 = vshll.u32 2475754826, %v1358
    %v1365 = vshrl.u32 2131351028, %v1359
    %v1366 = vor.u32 %v1364, %v1365
    %v1367 = vshll.u32 2131351028, %v1358
    %v1368 = vshrl.u32 2102212464, %v1359
    %v1369 = vor.u32 %v1367, %v1368
    %v1370 = vshll.u32 2102212464, %v1358
    %v1371 = vshrl.u32 920167782, %v1359
    %v1372 = vor.u32 %v1370, %v1371
    %v1373 = vshll.u32 920167782, %v1358
    %v1374 = vshrl.u32 1326507024, %v1359
    %v1375 = vor.u32 %v1373, %v1374
    %vm1376 = vcmp.lt.s32.totalorder %v1357, 1
    %vm1377 = vcmp.lt.s32.totalorder %v1357, 2
    %vm1378 = vcmp.lt.s32.totalorder %v1357, 3
    %vm1379 = vcmp.lt.s32.totalorder %v1357, 4
    %v1380 = vsel %vm1376, %v1360, %v1363
    %v1381 = vsel %vm1379, %v1369, 2102212464
    %v1382 = vsel %vm1378, %v1366, %v1381
    %v1383 = vsel %vm1377, %v1380, %v1382
    %v1384 = vsel %vm1376, %v1363, %v1366
    %v1385 = vsel %vm1379, %v1372, 920167782
    %v1386 = vsel %vm1378, %v1369, %v1385
    %v1387 = vsel %vm1377, %v1384, %v1386
    %v1388 = vsel %vm1376, %v1366, %v1369
    %v1389 = vsel %vm1379, %v1375, 1326507024
    %v1390 = vsel %vm1378, %v1372, %v1389
    %v1391 = vsel %vm1377, %v1388, %v1390
    %v1392 = vshll.u32 %v1352, 8
    %v1393 = vand.u32 %v1392, 65535
    %v1394 = vshrl.u32 %v1392, 16
    %v1395 = vand.u32 %v1391, 65535
    %v1396 = vshrl.u32 %v1391, 16
    %v1397 = vmul.u32 %v1393, %v1395
    %v1398 = vmul.u32 %v1393, %v1396
    %v1399 = vmul.u32 %v1394, %v1395
    %v1400 = vmul.u32 %v1394, %v1396
    %v1401 = vshll.u32 %v1398, 16
    %v1402 = vshrl.u32 %v1398, 16
    %v1403 = vshll.u32 %v1399, 16
    %v1404 = vshrl.u32 %v1399, 16
    %vm1405 = vc.u32 %v1397, %v1401
    %v1406 = vsel %vm1405, 1, 0
    %v1407 = vadd.s32 %v1397, %v1401
    %v1408 = vadd.s32 %v1400, %v1406
    %vm1409 = vc.u32 %v1407, %v1403
    %v1410 = vsel %vm1409, 1, 0
    %v1411 = vadd.s32 %v1407, %v1403
    %v1412 = vadd.s32 %v1408, %v1410
    %v1413 = vadd.s32 %v1412, %v1402
    %v1414 = vadd.s32 %v1413, %v1404
    %v1415 = vand.u32 %v1392, 65535
    %v1416 = vshrl.u32 %v1392, 16
    %v1417 = vand.u32 %v1387, 65535
    %v1418 = vshrl.u32 %v1387, 16
    %v1419 = vmul.u32 %v1415, %v1417
    %v1420 = vmul.u32 %v1415, %v1418
    %v1421 = vmul.u32 %v1416, %v1417
    %v1422 = vmul.u32 %v1416, %v1418
    %v1423 = vshll.u32 %v1420, 16
    %v1424 = vshrl.u32 %v1420, 16
    %v1425 = vshll.u32 %v1421, 16
    %v1426 = vshrl.u32 %v1421, 16
    %vm1427 = vc.u32 %v1419, %v1423
    %v1428 = vsel %vm1427, 1, 0
    %v1429 = vadd.s32 %v1419, %v1423
    %v1430 = vadd.s32 %v1422, %v1428
    %vm1431 = vc.u32 %v1429, %v1425
    %v1432 = vsel %vm1431, 1, 0
    %v1433 = vadd.s32 %v1429, %v1425
    %v1434 = vadd.s32 %v1430, %v1432
    %v1435 = vadd.s32 %v1434, %v1424
    %v1436 = vadd.s32 %v1435, %v1426
    %v1437 = vmul.u32 %v1392, %v1383
    %v1438 = vadd.s32 %v1414, %v1433
    %vm1439 = vc.u32 %v1414, %v1433
    %v1440 = vadd.s32 %v1436, 1
    %v1441 = vsel %vm1439, %v1440, %v1436
    %v1442 = vadd.s32 %v1437, %v1441
    %v1443 = vadd.s32 %v1442, 536870912
    %v1444 = vshrl.u32 %v1443, 30
    %v1445 = vshll.u32 %v1444, 30
    %v1446 = vsub.s32 %v1442, %v1445
    %vm1447 = vcmp.lt.s32.totalorder %v1446, 0
    %v1448 = vsub.s32 0, %v1446
    %v1449 = vsel %vm1447, %v1448, %v1446
    %v1450 = vclz %v1449
    %v1451 = vsub.s32 %v1450, 2
    %vm1452 = vcmp.gt.s32.totalorder 0, %v1451
    %v1453 = vsel %vm1452, 0, %v1451
    %v1454 = vsub.s32 32, %v1453
    %v1455 = vshll.u32 %v1446, %v1453
    %v1456 = vshrl.u32 %v1438, %v1454
    %v1457 = vor.u32 %v1455, %v1456
    %v1458 = vsub.s32 4294967266, %v1453
    %v1459 = vadd.s32 %v1458, 127
    %v1460 = vshll.u32 %v1459, 23
    %v1461 = vor.u32 4788187, %v1460
    %v1462 = vand.u32 2147483647, %v1461
    %v1464 = vcvt.s32.f32 %v1457
    %v1465 = vmul.f32 %v1464, %v1462
    %v1466 = vxor.u32 %v1465, 2147483648
    %v1467 = vsel %vm1346, %v1466, %v1465
    %v1468 = vsub.s32 4, %v1444
    %v1469 = vsel %vm1346, %v1468, %v1444
    %v1470 = vsel %vm1345, %v270, %v1467
    %v1471 = vsel %vm1345, 0, %v1469
    %v1472 = vmul.f32 %v1470, %v1470
    %v1473 = vmul.f32 %v1472, -0.001358992
    %v1474 = vadd.f32 %v1473, 0.041655596
    %v1475 = vmul.f32 %v1472, %v1474
    %v1476 = vadd.f32 %v1475, -0.4999988
    %v1477 = vmul.f32 %v1472, %v1476
    %v1478 = vadd.f32 1.0, %v1477
    %v1479 = vmul.f32 %v1470, %v1470
    %v1480 = vmul.f32 %v1479, -0.00019511016
    %v1481 = vadd.f32 %v1480, 0.008332121
    %v1482 = vmul.f32 %v1479, %v1481
    %v1483 = vadd.f32 %v1482, -0.16666654
    %v1484 = vmul.f32 %v1479, %v1483
    %v1485 = vadd.f32 %v1484, 1.0
    %v1486 = vmul.f32 %v1485, %v1470
    %vm1487 = vweird.f32 %v270
    %v1488 = vadd.s32 %v1471, 3
    %v1489 = vand.u32 %v1488, 3
    %vm1490 = vcmp.lt.s32.totalorder %v1489, 2
    %vm1491 = vcmp.eq.s32.totalorder %v1489, 0
    %v1492 = vxor.u32 %v1486, 2147483648
    %v1493 = vsel %vm1491, %v1478, %v1492
    %vm1494 = vcmp.eq.s32.totalorder %v1489, 2
    %v1495 = vxor.u32 %v1478, 2147483648
    %v1496 = vsel %vm1494, %v1495, %v1486
    %v1497 = vsel %vm1490, %v1493, %v1496
    %v1498 = vsel %vm1487, nan, %v1497
    %v1499 = vand.u32 2147483647, %v272
    %vm1500 = vcmp.le.f32.partialorder %v1499, 0.7853982
    %vm1501 = vcmp.lt.s32.totalorder %v272, 0
    %v1502 = vand.u32 %v272, 2139095040
    %v1503 = vshrl.u32 %v1502, 23
    %v1504 = vsub.s32 %v1503, 127
    %v1505 = vand.u32 2147483647, %v272
    %v1506 = vand.u32 %v1505, 8388607
    %v1507 = vor.u32 %v1506, 8388608
    %v1508 = vsub.s32 0, %v1507
    %v1509 = vadd.s32 %v1504, 1
    %vm1510 = vcmp.gt.s32.totalorder %v1509, 0
    %v1511 = vsel %vm1510, %v1509, 0
    %v1512 = vshrl.u32 %v1511, 5
    %v1513 = vand.u32 %v1511, 31
    %v1514 = vsub.s32 32, %v1513
    %v1515 = vshrl.u32 683565275, %v1514
    %v1516 = vshll.u32 683565275, %v1513
    %v1517 = vshrl.u32 2475754826, %v1514
    %v1518 = vor.u32 %v1516, %v1517
    %v1519 = vshll.u32 2475754826, %v1513
    %v1520 = vshrl.u32 2131351028, %v1514
    %v1521 = vor.u32 %v1519, %v1520
    %v1522 = vshll.u32 2131351028, %v1513
    %v1523 = vshrl.u32 2102212464, %v1514
    %v1524 = vor.u32 %v1522, %v1523
    %v1525 = vshll.u32 2102212464, %v1513
    %v1526 = vshrl.u32 920167782, %v1514
    %v1527 = vor.u32 %v1525, %v1526
    %v1528 = vshll.u32 920167782, %v1513
    %v1529 = vshrl.u32 1326507024, %v1514
    %v1530 = vor.u32 %v1528, %v1529
    %vm1531 = vcmp.lt.s32.totalorder %v1512, 1
    %vm1532 = vcmp.lt.s32.totalorder %v1512, 2
    %vm1533 = vcmp.lt.s32.totalorder %v1512, 3
    %vm1534 = vcmp.lt.s32.totalorder %v1512, 4
    %v1535 = vsel %vm1531, %v1515, %v1518
    %v1536 = vsel %vm1534, %v1524, 2102212464
    %v1537 = vsel %vm1533, %v1521, %v1536
    %v1538 = vsel %vm1532, %v1535, %v1537
    %v1539 = vsel %vm1531, %v1518, %v1521
    %v1540 = vsel %vm1534, %v1527, 920167782
    %v1541 = vsel %vm1533, %v1524, %v1540
    %v1542 = vsel %vm1532, %v1539, %v1541
    %v1543 = vsel %vm1531, %v1521, %v1524
    %v1544 = vsel %vm1534, %v1530, 1326507024
    %v1545 = vsel %vm1533, %v1527, %v1544
    %v1546 = vsel %vm1532, %v1543, %v1545
    %v1547 = vshll.u32 %v1507, 8
    %v1548 = vand.u32 %v1547, 65535
    %v1549 = vshrl.u32 %v1547, 16
    %v1550 = vand.u32 %v1546, 65535
    %v1551 = vshrl.u32 %v1546, 16
    %v1552 = vmul.u32 %v1548, %v1550
    %v1553 = vmul.u32 %v1548, %v1551
    %v1554 = vmul.u32 %v1549, %v1550
    %v1555 = vmul.u32 %v1549, %v1551
    %v1556 = vshll.u32 %v1553, 16
    %v1557 = vshrl.u32 %v1553, 16
    %v1558 = vshll.u32 %v1554, 16
    %v1559 = vshrl.u32 %v1554, 16
    %vm1560 = vc.u32 %v1552, %v1556
    %v1561 = vsel %vm1560, 1, 0
    %v1562 = vadd.s32 %v1552, %v1556
    %v1563 = vadd.s32 %v1555, %v1561
    %vm1564 = vc.u32 %v1562, %v1558
    %v1565 = vsel %vm1564, 1, 0
    %v1566 = vadd.s32 %v1562, %v1558
    %v1567 = vadd.s32 %v1563, %v1565
    %v1568 = vadd.s32 %v1567, %v1557
    %v1569 = vadd.s32 %v1568, %v1559
    %v1570 = vand.u32 %v1547, 65535
    %v1571 = vshrl.u32 %v1547, 16
    %v1572 = vand.u32 %v1542, 65535
    %v1573 = vshrl.u32 %v1542, 16
    %v1574 = vmul.u32 %v1570, %v1572
    %v1575 = vmul.u32 %v1570, %v1573
    %v1576 = vmul.u32 %v1571, %v1572
    %v1577 = vmul.u32 %v1571, %v1573
    %v1578 = vshll.u32 %v1575, 16
    %v1579 = vshrl.u32 %v1575, 16
    %v1580 = vshll.u32 %v1576, 16
    %v1581 = vshrl.u32 %v1576, 16
    %vm1582 = vc.u32 %v1574, %v1578
    %v1583 = vsel %vm1582, 1, 0
    %v1584 = vadd.s32 %v1574, %v1578
    %v1585 = vadd.s32 %v1577, %v1583
    %vm1586 = vc.u32 %v1584, %v1580
    %v1587 = vsel %vm1586, 1, 0
    %v1588 = vadd.s32 %v1584, %v1580
    %v1589 = vadd.s32 %v1585, %v1587
    %v1590 = vadd.s32 %v1589, %v1579
    %v1591 = vadd.s32 %v1590, %v1581
    %v1592 = vmul.u32 %v1547, %v1538
    %v1593 = vadd.s32 %v1569, %v1588
    %vm1594 = vc.u32 %v1569, %v1588
    %v1595 = vadd.s32 %v1591, 1
    %v1596 = vsel %vm1594, %v1595, %v1591
    %v1597 = vadd.s32 %v1592, %v1596
    %v1598 = vadd.s32 %v1597, 536870912
    %v1599 = vshrl.u32 %v1598, 30
    %v1600 = vshll.u32 %v1599, 30
    %v1601 = vsub.s32 %v1597, %v1600
    %vm1602 = vcmp.lt.s32.totalorder %v1601, 0
    %v1603 = vsub.s32 0, %v1601
    %v1604 = vsel %vm1602, %v1603, %v1601
    %v1605 = vclz %v1604
    %v1606 = vsub.s32 %v1605, 2
    %vm1607 = vcmp.gt.s32.totalorder 0, %v1606
    %v1608 = vsel %vm1607, 0, %v1606
    %v1609 = vsub.s32 32, %v1608
    %v1610 = vshll.u32 %v1601, %v1608
    %v1611 = vshrl.u32 %v1593, %v1609
    %v1612 = vor.u32 %v1610, %v1611
    %v1613 = vsub.s32 4294967266, %v1608
    %v1614 = vadd.s32 %v1613, 127
    %v1615 = vshll.u32 %v1614, 23
    %v1616 = vor.u32 4788187, %v1615
    %v1617 = vand.u32 2147483647, %v1616
    %v1619 = vcvt.s32.f32 %v1612
    %v1620 = vmul.f32 %v1619, %v1617
    %v1621 = vxor.u32 %v1620, 2147483648
    %v1622 = vsel %vm1501, %v1621, %v1620
    %v1623 = vsub.s32 4, %v1599
    %v1624 = vsel %vm1501, %v1623, %v1599
    %v1625 = vsel %vm1500, %v272, %v1622
    %v1626 = vsel %vm1500, 0, %v1624
    %v1627 = vmul.f32 %v1625, %v1625
    %v1628 = vmul.f32 %v1627, -0.001358992
    %v1629 = vadd.f32 %v1628, 0.041655596
    %v1630 = vmul.f32 %v1627, %v1629
    %v1631 = vadd.f32 %v1630, -0.4999988
    %v1632 = vmul.f32 %v1627, %v1631
    %v1633 = vadd.f32 1.0, %v1632
    %v1634 = vmul.f32 %v1625, %v1625
    %v1635 = vmul.f32 %v1634, -0.00019511016
    %v1636 = vadd.f32 %v1635, 0.008332121
    %v1637 = vmul.f32 %v1634, %v1636
    %v1638 = vadd.f32 %v1637, -0.16666654
    %v1639 = vmul.f32 %v1634, %v1638
    %v1640 = vadd.f32 %v1639, 1.0
    %v1641 = vmul.f32 %v1640, %v1625
    %vm1642 = vweird.f32 %v272
    %v1643 = vadd.s32 %v1626, 3
    %v1644 = vand.u32 %v1643, 3
    %vm1645 = vcmp.lt.s32.totalorder %v1644, 2
    %vm1646 = vcmp.eq.s32.totalorder %v1644, 0
    %v1647 = vxor.u32 %v1641, 2147483648
    %v1648 = vsel %vm1646, %v1633, %v1647
    %vm1649 = vcmp.eq.s32.totalorder %v1644, 2
    %v1650 = vxor.u32 %v1633, 2147483648
    %v1651 = vsel %vm1649, %v1650, %v1641
    %v1652 = vsel %vm1645, %v1648, %v1651
    %v1653 = vsel %vm1642, nan, %v1652
    %v1654 = vand.u32 2147483647, %v275
    %vm1655 = vcmp.le.f32.partialorder %v1654, 0.7853982
    %vm1656 = vcmp.lt.s32.totalorder %v275, 0
    %v1657 = vand.u32 %v275, 2139095040
    %v1658 = vshrl.u32 %v1657, 23
    %v1659 = vsub.s32 %v1658, 127
    %v1660 = vand.u32 2147483647, %v275
    %v1661 = vand.u32 %v1660, 8388607
    %v1662 = vor.u32 %v1661, 8388608
    %v1663 = vsub.s32 0, %v1662
    %v1664 = vadd.s32 %v1659, 1
    %vm1665 = vcmp.gt.s32.totalorder %v1664, 0
    %v1666 = vsel %vm1665, %v1664, 0
    %v1667 = vshrl.u32 %v1666, 5
    %v1668 = vand.u32 %v1666, 31
    %v1669 = vsub.s32 32, %v1668
    %v1670 = vshrl.u32 683565275, %v1669
    %v1671 = vshll.u32 683565275, %v1668
    %v1672 = vshrl.u32 2475754826, %v1669
    %v1673 = vor.u32 %v1671, %v1672
    %v1674 = vshll.u32 2475754826, %v1668
    %v1675 = vshrl.u32 2131351028, %v1669
    %v1676 = vor.u32 %v1674, %v1675
    %v1677 = vshll.u32 2131351028, %v1668
    %v1678 = vshrl.u32 2102212464, %v1669
    %v1679 = vor.u32 %v1677, %v1678
    %v1680 = vshll.u32 2102212464, %v1668
    %v1681 = vshrl.u32 920167782, %v1669
    %v1682 = vor.u32 %v1680, %v1681
    %v1683 = vshll.u32 920167782, %v1668
    %v1684 = vshrl.u32 1326507024, %v1669
    %v1685 = vor.u32 %v1683, %v1684
    %vm1686 = vcmp.lt.s32.totalorder %v1667, 1
    %vm1687 = vcmp.lt.s32.totalorder %v1667, 2
    %vm1688 = vcmp.lt.s32.totalorder %v1667, 3
    %vm1689 = vcmp.lt.s32.totalorder %v1667, 4
    %v1690 = vsel %vm1686, %v1670, %v1673
    %v1691 = vsel %vm1689, %v1679, 2102212464
    %v1692 = vsel %vm1688, %v1676, %v1691
    %v1693 = vsel %vm1687, %v1690, %v1692
    %v1694 = vsel %vm1686, %v1673, %v1676
    %v1695 = vsel %vm1689, %v1682, 920167782
    %v1696 = vsel %vm1688, %v1679, %v1695
    %v1697 = vsel %vm1687, %v1694, %v1696
    %v1698 = vsel %vm1686, %v1676, %v1679
    %v1699 = vsel %vm1689, %v1685, 1326507024
    %v1700 = vsel %vm1688, %v1682, %v1699
    %v1701 = vsel %vm1687, %v1698, %v1700
    %v1702 = vshll.u32 %v1662, 8
    %v1703 = vand.u32 %v1702, 65535
    %v1704 = vshrl.u32 %v1702, 16
    %v1705 = vand.u32 %v1701, 65535
    %v1706 = vshrl.u32 %v1701, 16
    %v1707 = vmul.u32 %v1703, %v1705
    %v1708 = vmul.u32 %v1703, %v1706
    %v1709 = vmul.u32 %v1704, %v1705
    %v1710 = vmul.u32 %v1704, %v1706
    %v1711 = vshll.u32 %v1708, 16
    %v1712 = vshrl.u32 %v1708, 16
    %v1713 = vshll.u32 %v1709, 16
    %v1714 = vshrl.u32 %v1709, 16
    %vm1715 = vc.u32 %v1707, %v1711
    %v1716 = vsel %vm1715, 1, 0
    %v1717 = vadd.s32 %v1707, %v1711
    %v1718 = vadd.s32 %v1710, %v1716
    %vm1719 = vc.u32 %v1717, %v1713
    %v1720 = vsel %vm1719, 1, 0
    %v1721 = vadd.s32 %v1717, %v1713
    %v1722 = vadd.s32 %v1718, %v1720
    %v1723 = vadd.s32 %v1722, %v1712
    %v1724 = vadd.s32 %v1723, %v1714
    %v1725 = vand.u32 %v1702, 65535
    %v1726 = vshrl.u32 %v1702, 16
    %v1727 = vand.u32 %v1697, 65535
    %v1728 = vshrl.u32 %v1697, 16
    %v1729 = vmul.u32 %v1725, %v1727
    %v1730 = vmul.u32 %v1725, %v1728
    %v1731 = vmul.u32 %v1726, %v1727
    %v1732 = vmul.u32 %v1726, %v1728
    %v1733 = vshll.u32 %v1730, 16
    %v1734 = vshrl.u32 %v1730, 16
    %v1735 = vshll.u32 %v1731, 16
    %v1736 = vshrl.u32 %v1731, 16
    %vm1737 = vc.u32 %v1729, %v1733
    %v1738 = vsel %vm1737, 1, 0
    %v1739 = vadd.s32 %v1729, %v1733
    %v1740 = vadd.s32 %v1732, %v1738
    %vm1741 = vc.u32 %v1739, %v1735
    %v1742 = vsel %vm1741, 1, 0
    %v1743 = vadd.s32 %v1739, %v1735
    %v1744 = vadd.s32 %v1740, %v1742
    %v1745 = vadd.s32 %v1744, %v1734
    %v1746 = vadd.s32 %v1745, %v1736
    %v1747 = vmul.u32 %v1702, %v1693
    %v1748 = vadd.s32 %v1724, %v1743
    %vm1749 = vc.u32 %v1724, %v1743
    %v1750 = vadd.s32 %v1746, 1
    %v1751 = vsel %vm1749, %v1750, %v1746
    %v1752 = vadd.s32 %v1747, %v1751
    %v1753 = vadd.s32 %v1752, 536870912
    %v1754 = vshrl.u32 %v1753, 30
    %v1755 = vshll.u32 %v1754, 30
    %v1756 = vsub.s32 %v1752, %v1755
    %vm1757 = vcmp.lt.s32.totalorder %v1756, 0
    %v1758 = vsub.s32 0, %v1756
    %v1759 = vsel %vm1757, %v1758, %v1756
    %v1760 = vclz %v1759
    %v1761 = vsub.s32 %v1760, 2
    %vm1762 = vcmp.gt.s32.totalorder 0, %v1761
    %v1763 = vsel %vm1762, 0, %v1761
    %v1764 = vsub.s32 32, %v1763
    %v1765 = vshll.u32 %v1756, %v1763
    %v1766 = vshrl.u32 %v1748, %v1764
    %v1767 = vor.u32 %v1765, %v1766
    %v1768 = vsub.s32 4294967266, %v1763
    %v1769 = vadd.s32 %v1768, 127
    %v1770 = vshll.u32 %v1769, 23
    %v1771 = vor.u32 4788187, %v1770
    %v1772 = vand.u32 2147483647, %v1771
    %v1774 = vcvt.s32.f32 %v1767
    %v1775 = vmul.f32 %v1774, %v1772
    %v1776 = vxor.u32 %v1775, 2147483648
    %v1777 = vsel %vm1656, %v1776, %v1775
    %v1778 = vsub.s32 4, %v1754
    %v1779 = vsel %vm1656, %v1778, %v1754
    %v1780 = vsel %vm1655, %v275, %v1777
    %v1781 = vsel %vm1655, 0, %v1779
    %v1782 = vmul.f32 %v1780, %v1780
    %v1783 = vmul.f32 %v1782, -0.001358992
    %v1784 = vadd.f32 %v1783, 0.041655596
    %v1785 = vmul.f32 %v1782, %v1784
    %v1786 = vadd.f32 %v1785, -0.4999988
    %v1787 = vmul.f32 %v1782, %v1786
    %v1788 = vadd.f32 1.0, %v1787
    %v1789 = vmul.f32 %v1780, %v1780
    %v1790 = vmul.f32 %v1789, -0.00019511016
    %v1791 = vadd.f32 %v1790, 0.008332121
    %v1792 = vmul.f32 %v1789, %v1791
    %v1793 = vadd.f32 %v1792, -0.16666654
    %v1794 = vmul.f32 %v1789, %v1793
    %v1795 = vadd.f32 %v1794, 1.0
    %v1796 = vmul.f32 %v1795, %v1780
    %vm1797 = vweird.f32 %v275
    %v1798 = vadd.s32 %v1781, 3
    %v1799 = vand.u32 %v1798, 3
    %vm1800 = vcmp.lt.s32.totalorder %v1799, 2
    %vm1801 = vcmp.eq.s32.totalorder %v1799, 0
    %v1802 = vxor.u32 %v1796, 2147483648
    %v1803 = vsel %vm1801, %v1788, %v1802
    %vm1804 = vcmp.eq.s32.totalorder %v1799, 2
    %v1805 = vxor.u32 %v1788, 2147483648
    %v1806 = vsel %vm1804, %v1805, %v1796
    %v1807 = vsel %vm1800, %v1803, %v1806
    %v1808 = vsel %vm1797, nan, %v1807
    %v1809 = vand.u32 2147483647, %v277
    %vm1810 = vcmp.le.f32.partialorder %v1809, 0.7853982
    %vm1811 = vcmp.lt.s32.totalorder %v277, 0
    %v1812 = vand.u32 %v277, 2139095040
    %v1813 = vshrl.u32 %v1812, 23
    %v1814 = vsub.s32 %v1813, 127
    %v1815 = vand.u32 2147483647, %v277
    %v1816 = vand.u32 %v1815, 8388607
    %v1817 = vor.u32 %v1816, 8388608
    %v1818 = vsub.s32 0, %v1817
    %v1819 = vadd.s32 %v1814, 1
    %vm1820 = vcmp.gt.s32.totalorder %v1819, 0
    %v1821 = vsel %vm1820, %v1819, 0
    %v1822 = vshrl.u32 %v1821, 5
    %v1823 = vand.u32 %v1821, 31
    %v1824 = vsub.s32 32, %v1823
    %v1825 = vshrl.u32 683565275, %v1824
    %v1826 = vshll.u32 683565275, %v1823
    %v1827 = vshrl.u32 2475754826, %v1824
    %v1828 = vor.u32 %v1826, %v1827
    %v1829 = vshll.u32 2475754826, %v1823
    %v1830 = vshrl.u32 2131351028, %v1824
    %v1831 = vor.u32 %v1829, %v1830
    %v1832 = vshll.u32 2131351028, %v1823
    %v1833 = vshrl.u32 2102212464, %v1824
    %v1834 = vor.u32 %v1832, %v1833
    %v1835 = vshll.u32 2102212464, %v1823
    %v1836 = vshrl.u32 920167782, %v1824
    %v1837 = vor.u32 %v1835, %v1836
    %v1838 = vshll.u32 920167782, %v1823
    %v1839 = vshrl.u32 1326507024, %v1824
    %v1840 = vor.u32 %v1838, %v1839
    %vm1841 = vcmp.lt.s32.totalorder %v1822, 1
    %vm1842 = vcmp.lt.s32.totalorder %v1822, 2
    %vm1843 = vcmp.lt.s32.totalorder %v1822, 3
    %vm1844 = vcmp.lt.s32.totalorder %v1822, 4
    %v1845 = vsel %vm1841, %v1825, %v1828
    %v1846 = vsel %vm1844, %v1834, 2102212464
    %v1847 = vsel %vm1843, %v1831, %v1846
    %v1848 = vsel %vm1842, %v1845, %v1847
    %v1849 = vsel %vm1841, %v1828, %v1831
    %v1850 = vsel %vm1844, %v1837, 920167782
    %v1851 = vsel %vm1843, %v1834, %v1850
    %v1852 = vsel %vm1842, %v1849, %v1851
    %v1853 = vsel %vm1841, %v1831, %v1834
    %v1854 = vsel %vm1844, %v1840, 1326507024
    %v1855 = vsel %vm1843, %v1837, %v1854
    %v1856 = vsel %vm1842, %v1853, %v1855
    %v1857 = vshll.u32 %v1817, 8
    %v1858 = vand.u32 %v1857, 65535
    %v1859 = vshrl.u32 %v1857, 16
    %v1860 = vand.u32 %v1856, 65535
    %v1861 = vshrl.u32 %v1856, 16
    %v1862 = vmul.u32 %v1858, %v1860
    %v1863 = vmul.u32 %v1858, %v1861
    %v1864 = vmul.u32 %v1859, %v1860
    %v1865 = vmul.u32 %v1859, %v1861
    %v1866 = vshll.u32 %v1863, 16
    %v1867 = vshrl.u32 %v1863, 16
    %v1868 = vshll.u32 %v1864, 16
    %v1869 = vshrl.u32 %v1864, 16
    %vm1870 = vc.u32 %v1862, %v1866
    %v1871 = vsel %vm1870, 1, 0
    %v1872 = vadd.s32 %v1862, %v1866
    %v1873 = vadd.s32 %v1865, %v1871
    %vm1874 = vc.u32 %v1872, %v1868
    %v1875 = vsel %vm1874, 1, 0
    %v1876 = vadd.s32 %v1872, %v1868
    %v1877 = vadd.s32 %v1873, %v1875
    %v1878 = vadd.s32 %v1877, %v1867
    %v1879 = vadd.s32 %v1878, %v1869
    %v1880 = vand.u32 %v1857, 65535
    %v1881 = vshrl.u32 %v1857, 16
    %v1882 = vand.u32 %v1852, 65535
    %v1883 = vshrl.u32 %v1852, 16
    %v1884 = vmul.u32 %v1880, %v1882
    %v1885 = vmul.u32 %v1880, %v1883
    %v1886 = vmul.u32 %v1881, %v1882
    %v1887 = vmul.u32 %v1881, %v1883
    %v1888 = vshll.u32 %v1885, 16
    %v1889 = vshrl.u32 %v1885, 16
    %v1890 = vshll.u32 %v1886, 16
    %v1891 = vshrl.u32 %v1886, 16
    %vm1892 = vc.u32 %v1884, %v1888
    %v1893 = vsel %vm1892, 1, 0
    %v1894 = vadd.s32 %v1884, %v1888
    %v1895 = vadd.s32 %v1887, %v1893
    %vm1896 = vc.u32 %v1894, %v1890
    %v1897 = vsel %vm1896, 1, 0
    %v1898 = vadd.s32 %v1894, %v1890
    %v1899 = vadd.s32 %v1895, %v1897
    %v1900 = vadd.s32 %v1899, %v1889
    %v1901 = vadd.s32 %v1900, %v1891
    %v1902 = vmul.u32 %v1857, %v1848
    %v1903 = vadd.s32 %v1879, %v1898
    %vm1904 = vc.u32 %v1879, %v1898
    %v1905 = vadd.s32 %v1901, 1
    %v1906 = vsel %vm1904, %v1905, %v1901
    %v1907 = vadd.s32 %v1902, %v1906
    %v1908 = vadd.s32 %v1907, 536870912
    %v1909 = vshrl.u32 %v1908, 30
    %v1910 = vshll.u32 %v1909, 30
    %v1911 = vsub.s32 %v1907, %v1910
    %vm1912 = vcmp.lt.s32.totalorder %v1911, 0
    %v1913 = vsub.s32 0, %v1911
    %v1914 = vsel %vm1912, %v1913, %v1911
    %v1915 = vclz %v1914
    %v1916 = vsub.s32 %v1915, 2
    %vm1917 = vcmp.gt.s32.totalorder 0, %v1916
    %v1918 = vsel %vm1917, 0, %v1916
    %v1919 = vsub.s32 32, %v1918
    %v1920 = vshll.u32 %v1911, %v1918
    %v1921 = vshrl.u32 %v1903, %v1919
    %v1922 = vor.u32 %v1920, %v1921
    %v1923 = vsub.s32 4294967266, %v1918
    %v1924 = vadd.s32 %v1923, 127
    %v1925 = vshll.u32 %v1924, 23
    %v1926 = vor.u32 4788187, %v1925
    %v1927 = vand.u32 2147483647, %v1926
    %v1929 = vcvt.s32.f32 %v1922
    %v1930 = vmul.f32 %v1929, %v1927
    %v1931 = vxor.u32 %v1930, 2147483648
    %v1932 = vsel %vm1811, %v1931, %v1930
    %v1933 = vsub.s32 4, %v1909
    %v1934 = vsel %vm1811, %v1933, %v1909
    %v1935 = vsel %vm1810, %v277, %v1932
    %v1936 = vsel %vm1810, 0, %v1934
    %v1937 = vmul.f32 %v1935, %v1935
    %v1938 = vmul.f32 %v1937, -0.001358992
    %v1939 = vadd.f32 %v1938, 0.041655596
    %v1940 = vmul.f32 %v1937, %v1939
    %v1941 = vadd.f32 %v1940, -0.4999988
    %v1942 = vmul.f32 %v1937, %v1941
    %v1943 = vadd.f32 1.0, %v1942
    %v1944 = vmul.f32 %v1935, %v1935
    %v1945 = vmul.f32 %v1944, -0.00019511016
    %v1946 = vadd.f32 %v1945, 0.008332121
    %v1947 = vmul.f32 %v1944, %v1946
    %v1948 = vadd.f32 %v1947, -0.16666654
    %v1949 = vmul.f32 %v1944, %v1948
    %v1950 = vadd.f32 %v1949, 1.0
    %v1951 = vmul.f32 %v1950, %v1935
    %vm1952 = vweird.f32 %v277
    %v1953 = vadd.s32 %v1936, 3
    %v1954 = vand.u32 %v1953, 3
    %vm1955 = vcmp.lt.s32.totalorder %v1954, 2
    %vm1956 = vcmp.eq.s32.totalorder %v1954, 0
    %v1957 = vxor.u32 %v1951, 2147483648
    %v1958 = vsel %vm1956, %v1943, %v1957
    %vm1959 = vcmp.eq.s32.totalorder %v1954, 2
    %v1960 = vxor.u32 %v1943, 2147483648
    %v1961 = vsel %vm1959, %v1960, %v1951
    %v1962 = vsel %vm1955, %v1958, %v1961
    %v1963 = vsel %vm1952, nan, %v1962
    %v1964 = vand.u32 2147483647, %v280
    %vm1965 = vcmp.le.f32.partialorder %v1964, 0.7853982
    %vm1966 = vcmp.lt.s32.totalorder %v280, 0
    %v1967 = vand.u32 %v280, 2139095040
    %v1968 = vshrl.u32 %v1967, 23
    %v1969 = vsub.s32 %v1968, 127
    %v1970 = vand.u32 2147483647, %v280
    %v1971 = vand.u32 %v1970, 8388607
    %v1972 = vor.u32 %v1971, 8388608
    %v1973 = vsub.s32 0, %v1972
    %v1974 = vadd.s32 %v1969, 1
    %vm1975 = vcmp.gt.s32.totalorder %v1974, 0
    %v1976 = vsel %vm1975, %v1974, 0
    %v1977 = vshrl.u32 %v1976, 5
    %v1978 = vand.u32 %v1976, 31
    %v1979 = vsub.s32 32, %v1978
    %v1980 = vshrl.u32 683565275, %v1979
    %v1981 = vshll.u32 683565275, %v1978
    %v1982 = vshrl.u32 2475754826, %v1979
    %v1983 = vor.u32 %v1981, %v1982
    %v1984 = vshll.u32 2475754826, %v1978
    %v1985 = vshrl.u32 2131351028, %v1979
    %v1986 = vor.u32 %v1984, %v1985
    %v1987 = vshll.u32 2131351028, %v1978
    %v1988 = vshrl.u32 2102212464, %v1979
    %v1989 = vor.u32 %v1987, %v1988
    %v1990 = vshll.u32 2102212464, %v1978
    %v1991 = vshrl.u32 920167782, %v1979
    %v1992 = vor.u32 %v1990, %v1991
    %v1993 = vshll.u32 920167782, %v1978
    %v1994 = vshrl.u32 1326507024, %v1979
    %v1995 = vor.u32 %v1993, %v1994
    %vm1996 = vcmp.lt.s32.totalorder %v1977, 1
    %vm1997 = vcmp.lt.s32.totalorder %v1977, 2
    %vm1998 = vcmp.lt.s32.totalorder %v1977, 3
    %vm1999 = vcmp.lt.s32.totalorder %v1977, 4
    %v2000 = vsel %vm1996, %v1980, %v1983
    %v2001 = vsel %vm1999, %v1989, 2102212464
    %v2002 = vsel %vm1998, %v1986, %v2001
    %v2003 = vsel %vm1997, %v2000, %v2002
    %v2004 = vsel %vm1996, %v1983, %v1986
    %v2005 = vsel %vm1999, %v1992, 920167782
    %v2006 = vsel %vm1998, %v1989, %v2005
    %v2007 = vsel %vm1997, %v2004, %v2006
    %v2008 = vsel %vm1996, %v1986, %v1989
    %v2009 = vsel %vm1999, %v1995, 1326507024
    %v2010 = vsel %vm1998, %v1992, %v2009
    %v2011 = vsel %vm1997, %v2008, %v2010
    %v2012 = vshll.u32 %v1972, 8
    %v2013 = vand.u32 %v2012, 65535
    %v2014 = vshrl.u32 %v2012, 16
    %v2015 = vand.u32 %v2011, 65535
    %v2016 = vshrl.u32 %v2011, 16
    %v2017 = vmul.u32 %v2013, %v2015
    %v2018 = vmul.u32 %v2013, %v2016
    %v2019 = vmul.u32 %v2014, %v2015
    %v2020 = vmul.u32 %v2014, %v2016
    %v2021 = vshll.u32 %v2018, 16
    %v2022 = vshrl.u32 %v2018, 16
    %v2023 = vshll.u32 %v2019, 16
    %v2024 = vshrl.u32 %v2019, 16
    %vm2025 = vc.u32 %v2017, %v2021
    %v2026 = vsel %vm2025, 1, 0
    %v2027 = vadd.s32 %v2017, %v2021
    %v2028 = vadd.s32 %v2020, %v2026
    %vm2029 = vc.u32 %v2027, %v2023
    %v2030 = vsel %vm2029, 1, 0
    %v2031 = vadd.s32 %v2027, %v2023
    %v2032 = vadd.s32 %v2028, %v2030
    %v2033 = vadd.s32 %v2032, %v2022
    %v2034 = vadd.s32 %v2033, %v2024
    %v2035 = vand.u32 %v2012, 65535
    %v2036 = vshrl.u32 %v2012, 16
    %v2037 = vand.u32 %v2007, 65535
    %v2038 = vshrl.u32 %v2007, 16
    %v2039 = vmul.u32 %v2035, %v2037
    %v2040 = vmul.u32 %v2035, %v2038
    %v2041 = vmul.u32 %v2036, %v2037
    %v2042 = vmul.u32 %v2036, %v2038
    %v2043 = vshll.u32 %v2040, 16
    %v2044 = vshrl.u32 %v2040, 16
    %v2045 = vshll.u32 %v2041, 16
    %v2046 = vshrl.u32 %v2041, 16
    %vm2047 = vc.u32 %v2039, %v2043
    %v2048 = vsel %vm2047, 1, 0
    %v2049 = vadd.s32 %v2039, %v2043
    %v2050 = vadd.s32 %v2042, %v2048
    %vm2051 = vc.u32 %v2049, %v2045
    %v2052 = vsel %vm2051, 1, 0
    %v2053 = vadd.s32 %v2049, %v2045
    %v2054 = vadd.s32 %v2050, %v2052
    %v2055 = vadd.s32 %v2054, %v2044
    %v2056 = vadd.s32 %v2055, %v2046
    %v2057 = vmul.u32 %v2012, %v2003
    %v2058 = vadd.s32 %v2034, %v2053
    %vm2059 = vc.u32 %v2034, %v2053
    %v2060 = vadd.s32 %v2056, 1
    %v2061 = vsel %vm2059, %v2060, %v2056
    %v2062 = vadd.s32 %v2057, %v2061
    %v2063 = vadd.s32 %v2062, 536870912
    %v2064 = vshrl.u32 %v2063, 30
    %v2065 = vshll.u32 %v2064, 30
    %v2066 = vsub.s32 %v2062, %v2065
    %vm2067 = vcmp.lt.s32.totalorder %v2066, 0
    %v2068 = vsub.s32 0, %v2066
    %v2069 = vsel %vm2067, %v2068, %v2066
    %v2070 = vclz %v2069
    %v2071 = vsub.s32 %v2070, 2
    %vm2072 = vcmp.gt.s32.totalorder 0, %v2071
    %v2073 = vsel %vm2072, 0, %v2071
    %v2074 = vsub.s32 32, %v2073
    %v2075 = vshll.u32 %v2066, %v2073
    %v2076 = vshrl.u32 %v2058, %v2074
    %v2077 = vor.u32 %v2075, %v2076
    %v2078 = vsub.s32 4294967266, %v2073
    %v2079 = vadd.s32 %v2078, 127
    %v2080 = vshll.u32 %v2079, 23
    %v2081 = vor.u32 4788187, %v2080
    %v2082 = vand.u32 2147483647, %v2081
    %v2084 = vcvt.s32.f32 %v2077
    %v2085 = vmul.f32 %v2084, %v2082
    %v2086 = vxor.u32 %v2085, 2147483648
    %v2087 = vsel %vm1966, %v2086, %v2085
    %v2088 = vsub.s32 4, %v2064
    %v2089 = vsel %vm1966, %v2088, %v2064
    %v2090 = vsel %vm1965, %v280, %v2087
    %v2091 = vsel %vm1965, 0, %v2089
    %v2092 = vmul.f32 %v2090, %v2090
    %v2093 = vmul.f32 %v2092, -0.001358992
    %v2094 = vadd.f32 %v2093, 0.041655596
    %v2095 = vmul.f32 %v2092, %v2094
    %v2096 = vadd.f32 %v2095, -0.4999988
    %v2097 = vmul.f32 %v2092, %v2096
    %v2098 = vadd.f32 1.0, %v2097
    %v2099 = vmul.f32 %v2090, %v2090
    %v2100 = vmul.f32 %v2099, -0.00019511016
    %v2101 = vadd.f32 %v2100, 0.008332121
    %v2102 = vmul.f32 %v2099, %v2101
    %v2103 = vadd.f32 %v2102, -0.16666654
    %v2104 = vmul.f32 %v2099, %v2103
    %v2105 = vadd.f32 %v2104, 1.0
    %v2106 = vmul.f32 %v2105, %v2090
    %vm2107 = vweird.f32 %v280
    %v2108 = vadd.s32 %v2091, 3
    %v2109 = vand.u32 %v2108, 3
    %vm2110 = vcmp.lt.s32.totalorder %v2109, 2
    %vm2111 = vcmp.eq.s32.totalorder %v2109, 0
    %v2112 = vxor.u32 %v2106, 2147483648
    %v2113 = vsel %vm2111, %v2098, %v2112
    %vm2114 = vcmp.eq.s32.totalorder %v2109, 2
    %v2115 = vxor.u32 %v2098, 2147483648
    %v2116 = vsel %vm2114, %v2115, %v2106
    %v2117 = vsel %vm2110, %v2113, %v2116
    %v2118 = vsel %vm2107, nan, %v2117
    %v2119 = vand.u32 2147483647, %v282
    %vm2120 = vcmp.le.f32.partialorder %v2119, 0.7853982
    %vm2121 = vcmp.lt.s32.totalorder %v282, 0
    %v2122 = vand.u32 %v282, 2139095040
    %v2123 = vshrl.u32 %v2122, 23
    %v2124 = vsub.s32 %v2123, 127
    %v2125 = vand.u32 2147483647, %v282
    %v2126 = vand.u32 %v2125, 8388607
    %v2127 = vor.u32 %v2126, 8388608
    %v2128 = vsub.s32 0, %v2127
    %v2129 = vadd.s32 %v2124, 1
    %vm2130 = vcmp.gt.s32.totalorder %v2129, 0
    %v2131 = vsel %vm2130, %v2129, 0
    %v2132 = vshrl.u32 %v2131, 5
    %v2133 = vand.u32 %v2131, 31
    %v2134 = vsub.s32 32, %v2133
    %v2135 = vshrl.u32 683565275, %v2134
    %v2136 = vshll.u32 683565275, %v2133
    %v2137 = vshrl.u32 2475754826, %v2134
    %v2138 = vor.u32 %v2136, %v2137
    %v2139 = vshll.u32 2475754826, %v2133
    %v2140 = vshrl.u32 2131351028, %v2134
    %v2141 = vor.u32 %v2139, %v2140
    %v2142 = vshll.u32 2131351028, %v2133
    %v2143 = vshrl.u32 2102212464, %v2134
    %v2144 = vor.u32 %v2142, %v2143
    %v2145 = vshll.u32 2102212464, %v2133
    %v2146 = vshrl.u32 920167782, %v2134
    %v2147 = vor.u32 %v2145, %v2146
    %v2148 = vshll.u32 920167782, %v2133
    %v2149 = vshrl.u32 1326507024, %v2134
    %v2150 = vor.u32 %v2148, %v2149
    %vm2151 = vcmp.lt.s32.totalorder %v2132, 1
    %vm2152 = vcmp.lt.s32.totalorder %v2132, 2
    %vm2153 = vcmp.lt.s32.totalorder %v2132, 3
    %vm2154 = vcmp.lt.s32.totalorder %v2132, 4
    %v2155 = vsel %vm2151, %v2135, %v2138
    %v2156 = vsel %vm2154, %v2144, 2102212464
    %v2157 = vsel %vm2153, %v2141, %v2156
    %v2158 = vsel %vm2152, %v2155, %v2157
    %v2159 = vsel %vm2151, %v2138, %v2141
    %v2160 = vsel %vm2154, %v2147, 920167782
    %v2161 = vsel %vm2153, %v2144, %v2160
    %v2162 = vsel %vm2152, %v2159, %v2161
    %v2163 = vsel %vm2151, %v2141, %v2144
    %v2164 = vsel %vm2154, %v2150, 1326507024
    %v2165 = vsel %vm2153, %v2147, %v2164
    %v2166 = vsel %vm2152, %v2163, %v2165
    %v2167 = vshll.u32 %v2127, 8
    %v2168 = vand.u32 %v2167, 65535
    %v2169 = vshrl.u32 %v2167, 16
    %v2170 = vand.u32 %v2166, 65535
    %v2171 = vshrl.u32 %v2166, 16
    %v2172 = vmul.u32 %v2168, %v2170
    %v2173 = vmul.u32 %v2168, %v2171
    %v2174 = vmul.u32 %v2169, %v2170
    %v2175 = vmul.u32 %v2169, %v2171
    %v2176 = vshll.u32 %v2173, 16
    %v2177 = vshrl.u32 %v2173, 16
    %v2178 = vshll.u32 %v2174, 16
    %v2179 = vshrl.u32 %v2174, 16
    %vm2180 = vc.u32 %v2172, %v2176
    %v2181 = vsel %vm2180, 1, 0
    %v2182 = vadd.s32 %v2172, %v2176
    %v2183 = vadd.s32 %v2175, %v2181
    %vm2184 = vc.u32 %v2182, %v2178
    %v2185 = vsel %vm2184, 1, 0
    %v2186 = vadd.s32 %v2182, %v2178
    %v2187 = vadd.s32 %v2183, %v2185
    %v2188 = vadd.s32 %v2187, %v2177
    %v2189 = vadd.s32 %v2188, %v2179
    %v2190 = vand.u32 %v2167, 65535
    %v2191 = vshrl.u32 %v2167, 16
    %v2192 = vand.u32 %v2162, 65535
    %v2193 = vshrl.u32 %v2162, 16
    %v2194 = vmul.u32 %v2190, %v2192
    %v2195 = vmul.u32 %v2190, %v2193
    %v2196 = vmul.u32 %v2191, %v2192
    %v2197 = vmul.u32 %v2191, %v2193
    %v2198 = vshll.u32 %v2195, 16
    %v2199 = vshrl.u32 %v2195, 16
    %v2200 = vshll.u32 %v2196, 16
    %v2201 = vshrl.u32 %v2196, 16
    %vm2202 = vc.u32 %v2194, %v2198
    %v2203 = vsel %vm2202, 1, 0
    %v2204 = vadd.s32 %v2194, %v2198
    %v2205 = vadd.s32 %v2197, %v2203
    %vm2206 = vc.u32 %v2204, %v2200
    %v2207 = vsel %vm2206, 1, 0
    %v2208 = vadd.s32 %v2204, %v2200
    %v2209 = vadd.s32 %v2205, %v2207
    %v2210 = vadd.s32 %v2209, %v2199
    %v2211 = vadd.s32 %v2210, %v2201
    %v2212 = vmul.u32 %v2167, %v2158
    %v2213 = vadd.s32 %v2189, %v2208
    %vm2214 = vc.u32 %v2189, %v2208
    %v2215 = vadd.s32 %v2211, 1
    %v2216 = vsel %vm2214, %v2215, %v2211
    %v2217 = vadd.s32 %v2212, %v2216
    %v2218 = vadd.s32 %v2217, 536870912
    %v2219 = vshrl.u32 %v2218, 30
    %v2220 = vshll.u32 %v2219, 30
    %v2221 = vsub.s32 %v2217, %v2220
    %vm2222 = vcmp.lt.s32.totalorder %v2221, 0
    %v2223 = vsub.s32 0, %v2221
    %v2224 = vsel %vm2222, %v2223, %v2221
    %v2225 = vclz %v2224
    %v2226 = vsub.s32 %v2225, 2
    %vm2227 = vcmp.gt.s32.totalorder 0, %v2226
    %v2228 = vsel %vm2227, 0, %v2226
    %v2229 = vsub.s32 32, %v2228
    %v2230 = vshll.u32 %v2221, %v2228
    %v2231 = vshrl.u32 %v2213, %v2229
    %v2232 = vor.u32 %v2230, %v2231
    %v2233 = vsub.s32 4294967266, %v2228
    %v2234 = vadd.s32 %v2233, 127
    %v2235 = vshll.u32 %v2234, 23
    %v2236 = vor.u32 4788187, %v2235
    %v2237 = vand.u32 2147483647, %v2236
    %v2239 = vcvt.s32.f32 %v2232
    %v2240 = vmul.f32 %v2239, %v2237
    %v2241 = vxor.u32 %v2240, 2147483648
    %v2242 = vsel %vm2121, %v2241, %v2240
    %v2243 = vsub.s32 4, %v2219
    %v2244 = vsel %vm2121, %v2243, %v2219
    %v2245 = vsel %vm2120, %v282, %v2242
    %v2246 = vsel %vm2120, 0, %v2244
    %v2247 = vmul.f32 %v2245, %v2245
    %v2248 = vmul.f32 %v2247, -0.001358992
    %v2249 = vadd.f32 %v2248, 0.041655596
    %v2250 = vmul.f32 %v2247, %v2249
    %v2251 = vadd.f32 %v2250, -0.4999988
    %v2252 = vmul.f32 %v2247, %v2251
    %v2253 = vadd.f32 1.0, %v2252
    %v2254 = vmul.f32 %v2245, %v2245
    %v2255 = vmul.f32 %v2254, -0.00019511016
    %v2256 = vadd.f32 %v2255, 0.008332121
    %v2257 = vmul.f32 %v2254, %v2256
    %v2258 = vadd.f32 %v2257, -0.16666654
    %v2259 = vmul.f32 %v2254, %v2258
    %v2260 = vadd.f32 %v2259, 1.0
    %v2261 = vmul.f32 %v2260, %v2245
    %vm2262 = vweird.f32 %v282
    %v2263 = vadd.s32 %v2246, 3
    %v2264 = vand.u32 %v2263, 3
    %vm2265 = vcmp.lt.s32.totalorder %v2264, 2
    %vm2266 = vcmp.eq.s32.totalorder %v2264, 0
    %v2267 = vxor.u32 %v2261, 2147483648
    %v2268 = vsel %vm2266, %v2253, %v2267
    %vm2269 = vcmp.eq.s32.totalorder %v2264, 2
    %v2270 = vxor.u32 %v2253, 2147483648
    %v2271 = vsel %vm2269, %v2270, %v2261
    %v2272 = vsel %vm2265, %v2268, %v2271
    %v2273 = vsel %vm2262, nan, %v2272
    %v2274 = vand.u32 2147483647, %v285
    %vm2275 = vcmp.le.f32.partialorder %v2274, 0.7853982
    %vm2276 = vcmp.lt.s32.totalorder %v285, 0
    %v2277 = vand.u32 %v285, 2139095040
    %v2278 = vshrl.u32 %v2277, 23
    %v2279 = vsub.s32 %v2278, 127
    %v2280 = vand.u32 2147483647, %v285
    %v2281 = vand.u32 %v2280, 8388607
    %v2282 = vor.u32 %v2281, 8388608
    %v2283 = vsub.s32 0, %v2282
    %v2284 = vadd.s32 %v2279, 1
    %vm2285 = vcmp.gt.s32.totalorder %v2284, 0
    %v2286 = vsel %vm2285, %v2284, 0
    %v2287 = vshrl.u32 %v2286, 5
    %v2288 = vand.u32 %v2286, 31
    %v2289 = vsub.s32 32, %v2288
    %v2290 = vshrl.u32 683565275, %v2289
    %v2291 = vshll.u32 683565275, %v2288
    %v2292 = vshrl.u32 2475754826, %v2289
    %v2293 = vor.u32 %v2291, %v2292
    %v2294 = vshll.u32 2475754826, %v2288
    %v2295 = vshrl.u32 2131351028, %v2289
    %v2296 = vor.u32 %v2294, %v2295
    %v2297 = vshll.u32 2131351028, %v2288
    %v2298 = vshrl.u32 2102212464, %v2289
    %v2299 = vor.u32 %v2297, %v2298
    %v2300 = vshll.u32 2102212464, %v2288
    %v2301 = vshrl.u32 920167782, %v2289
    %v2302 = vor.u32 %v2300, %v2301
    %v2303 = vshll.u32 920167782, %v2288
    %v2304 = vshrl.u32 1326507024, %v2289
    %v2305 = vor.u32 %v2303, %v2304
    %vm2306 = vcmp.lt.s32.totalorder %v2287, 1
    %vm2307 = vcmp.lt.s32.totalorder %v2287, 2
    %vm2308 = vcmp.lt.s32.totalorder %v2287, 3
    %vm2309 = vcmp.lt.s32.totalorder %v2287, 4
    %v2310 = vsel %vm2306, %v2290, %v2293
    %v2311 = vsel %vm2309, %v2299, 2102212464
    %v2312 = vsel %vm2308, %v2296, %v2311
    %v2313 = vsel %vm2307, %v2310, %v2312
    %v2314 = vsel %vm2306, %v2293, %v2296
    %v2315 = vsel %vm2309, %v2302, 920167782
    %v2316 = vsel %vm2308, %v2299, %v2315
    %v2317 = vsel %vm2307, %v2314, %v2316
    %v2318 = vsel %vm2306, %v2296, %v2299
    %v2319 = vsel %vm2309, %v2305, 1326507024
    %v2320 = vsel %vm2308, %v2302, %v2319
    %v2321 = vsel %vm2307, %v2318, %v2320
    %v2322 = vshll.u32 %v2282, 8
    %v2323 = vand.u32 %v2322, 65535
    %v2324 = vshrl.u32 %v2322, 16
    %v2325 = vand.u32 %v2321, 65535
    %v2326 = vshrl.u32 %v2321, 16
    %v2327 = vmul.u32 %v2323, %v2325
    %v2328 = vmul.u32 %v2323, %v2326
    %v2329 = vmul.u32 %v2324, %v2325
    %v2330 = vmul.u32 %v2324, %v2326
    %v2331 = vshll.u32 %v2328, 16
    %v2332 = vshrl.u32 %v2328, 16
    %v2333 = vshll.u32 %v2329, 16
    %v2334 = vshrl.u32 %v2329, 16
    %vm2335 = vc.u32 %v2327, %v2331
    %v2336 = vsel %vm2335, 1, 0
    %v2337 = vadd.s32 %v2327, %v2331
    %v2338 = vadd.s32 %v2330, %v2336
    %vm2339 = vc.u32 %v2337, %v2333
    %v2340 = vsel %vm2339, 1, 0
    %v2341 = vadd.s32 %v2337, %v2333
    %v2342 = vadd.s32 %v2338, %v2340
    %v2343 = vadd.s32 %v2342, %v2332
    %v2344 = vadd.s32 %v2343, %v2334
    %v2345 = vand.u32 %v2322, 65535
    %v2346 = vshrl.u32 %v2322, 16
    %v2347 = vand.u32 %v2317, 65535
    %v2348 = vshrl.u32 %v2317, 16
    %v2349 = vmul.u32 %v2345, %v2347
    %v2350 = vmul.u32 %v2345, %v2348
    %v2351 = vmul.u32 %v2346, %v2347
    %v2352 = vmul.u32 %v2346, %v2348
    %v2353 = vshll.u32 %v2350, 16
    %v2354 = vshrl.u32 %v2350, 16
    %v2355 = vshll.u32 %v2351, 16
    %v2356 = vshrl.u32 %v2351, 16
    %vm2357 = vc.u32 %v2349, %v2353
    %v2358 = vsel %vm2357, 1, 0
    %v2359 = vadd.s32 %v2349, %v2353
    %v2360 = vadd.s32 %v2352, %v2358
    %vm2361 = vc.u32 %v2359, %v2355
    %v2362 = vsel %vm2361, 1, 0
    %v2363 = vadd.s32 %v2359, %v2355
    %v2364 = vadd.s32 %v2360, %v2362
    %v2365 = vadd.s32 %v2364, %v2354
    %v2366 = vadd.s32 %v2365, %v2356
    %v2367 = vmul.u32 %v2322, %v2313
    %v2368 = vadd.s32 %v2344, %v2363
    %vm2369 = vc.u32 %v2344, %v2363
    %v2370 = vadd.s32 %v2366, 1
    %v2371 = vsel %vm2369, %v2370, %v2366
    %v2372 = vadd.s32 %v2367, %v2371
    %v2373 = vadd.s32 %v2372, 536870912
    %v2374 = vshrl.u32 %v2373, 30
    %v2375 = vshll.u32 %v2374, 30
    %v2376 = vsub.s32 %v2372, %v2375
    %vm2377 = vcmp.lt.s32.totalorder %v2376, 0
    %v2378 = vsub.s32 0, %v2376
    %v2379 = vsel %vm2377, %v2378, %v2376
    %v2380 = vclz %v2379
    %v2381 = vsub.s32 %v2380, 2
    %vm2382 = vcmp.gt.s32.totalorder 0, %v2381
    %v2383 = vsel %vm2382, 0, %v2381
    %v2384 = vsub.s32 32, %v2383
    %v2385 = vshll.u32 %v2376, %v2383
    %v2386 = vshrl.u32 %v2368, %v2384
    %v2387 = vor.u32 %v2385, %v2386
    %v2388 = vsub.s32 4294967266, %v2383
    %v2389 = vadd.s32 %v2388, 127
    %v2390 = vshll.u32 %v2389, 23
    %v2391 = vor.u32 4788187, %v2390
    %v2392 = vand.u32 2147483647, %v2391
    %v2394 = vcvt.s32.f32 %v2387
    %v2395 = vmul.f32 %v2394, %v2392
    %v2396 = vxor.u32 %v2395, 2147483648
    %v2397 = vsel %vm2276, %v2396, %v2395
    %v2398 = vsub.s32 4, %v2374
    %v2399 = vsel %vm2276, %v2398, %v2374
    %v2400 = vsel %vm2275, %v285, %v2397
    %v2401 = vsel %vm2275, 0, %v2399
    %v2402 = vmul.f32 %v2400, %v2400
    %v2403 = vmul.f32 %v2402, -0.001358992
    %v2404 = vadd.f32 %v2403, 0.041655596
    %v2405 = vmul.f32 %v2402, %v2404
    %v2406 = vadd.f32 %v2405, -0.4999988
    %v2407 = vmul.f32 %v2402, %v2406
    %v2408 = vadd.f32 1.0, %v2407
    %v2409 = vmul.f32 %v2400, %v2400
    %v2410 = vmul.f32 %v2409, -0.00019511016
    %v2411 = vadd.f32 %v2410, 0.008332121
    %v2412 = vmul.f32 %v2409, %v2411
    %v2413 = vadd.f32 %v2412, -0.16666654
    %v2414 = vmul.f32 %v2409, %v2413
    %v2415 = vadd.f32 %v2414, 1.0
    %v2416 = vmul.f32 %v2415, %v2400
    %vm2417 = vweird.f32 %v285
    %v2418 = vadd.s32 %v2401, 3
    %v2419 = vand.u32 %v2418, 3
    %vm2420 = vcmp.lt.s32.totalorder %v2419, 2
    %vm2421 = vcmp.eq.s32.totalorder %v2419, 0
    %v2422 = vxor.u32 %v2416, 2147483648
    %v2423 = vsel %vm2421, %v2408, %v2422
    %vm2424 = vcmp.eq.s32.totalorder %v2419, 2
    %v2425 = vxor.u32 %v2408, 2147483648
    %v2426 = vsel %vm2424, %v2425, %v2416
    %v2427 = vsel %vm2420, %v2423, %v2426
    %v2428 = vsel %vm2417, nan, %v2427
    %v2429 = vand.u32 2147483647, %v287
    %vm2430 = vcmp.le.f32.partialorder %v2429, 0.7853982
    %vm2431 = vcmp.lt.s32.totalorder %v287, 0
    %v2432 = vand.u32 %v287, 2139095040
    %v2433 = vshrl.u32 %v2432, 23
    %v2434 = vsub.s32 %v2433, 127
    %v2435 = vand.u32 2147483647, %v287
    %v2436 = vand.u32 %v2435, 8388607
    %v2437 = vor.u32 %v2436, 8388608
    %v2438 = vsub.s32 0, %v2437
    %v2439 = vadd.s32 %v2434, 1
    %vm2440 = vcmp.gt.s32.totalorder %v2439, 0
    %v2441 = vsel %vm2440, %v2439, 0
    %v2442 = vshrl.u32 %v2441, 5
    %v2443 = vand.u32 %v2441, 31
    %v2444 = vsub.s32 32, %v2443
    %v2445 = vshrl.u32 683565275, %v2444
    %v2446 = vshll.u32 683565275, %v2443
    %v2447 = vshrl.u32 2475754826, %v2444
    %v2448 = vor.u32 %v2446, %v2447
    %v2449 = vshll.u32 2475754826, %v2443
    %v2450 = vshrl.u32 2131351028, %v2444
    %v2451 = vor.u32 %v2449, %v2450
    %v2452 = vshll.u32 2131351028, %v2443
    %v2453 = vshrl.u32 2102212464, %v2444
    %v2454 = vor.u32 %v2452, %v2453
    %v2455 = vshll.u32 2102212464, %v2443
    %v2456 = vshrl.u32 920167782, %v2444
    %v2457 = vor.u32 %v2455, %v2456
    %v2458 = vshll.u32 920167782, %v2443
    %v2459 = vshrl.u32 1326507024, %v2444
    %v2460 = vor.u32 %v2458, %v2459
    %vm2461 = vcmp.lt.s32.totalorder %v2442, 1
    %vm2462 = vcmp.lt.s32.totalorder %v2442, 2
    %vm2463 = vcmp.lt.s32.totalorder %v2442, 3
    %vm2464 = vcmp.lt.s32.totalorder %v2442, 4
    %v2465 = vsel %vm2461, %v2445, %v2448
    %v2466 = vsel %vm2464, %v2454, 2102212464
    %v2467 = vsel %vm2463, %v2451, %v2466
    %v2468 = vsel %vm2462, %v2465, %v2467
    %v2469 = vsel %vm2461, %v2448, %v2451
    %v2470 = vsel %vm2464, %v2457, 920167782
    %v2471 = vsel %vm2463, %v2454, %v2470
    %v2472 = vsel %vm2462, %v2469, %v2471
    %v2473 = vsel %vm2461, %v2451, %v2454
    %v2474 = vsel %vm2464, %v2460, 1326507024
    %v2475 = vsel %vm2463, %v2457, %v2474
    %v2476 = vsel %vm2462, %v2473, %v2475
    %v2477 = vshll.u32 %v2437, 8
    %v2478 = vand.u32 %v2477, 65535
    %v2479 = vshrl.u32 %v2477, 16
    %v2480 = vand.u32 %v2476, 65535
    %v2481 = vshrl.u32 %v2476, 16
    %v2482 = vmul.u32 %v2478, %v2480
    %v2483 = vmul.u32 %v2478, %v2481
    %v2484 = vmul.u32 %v2479, %v2480
    %v2485 = vmul.u32 %v2479, %v2481
    %v2486 = vshll.u32 %v2483, 16
    %v2487 = vshrl.u32 %v2483, 16
    %v2488 = vshll.u32 %v2484, 16
    %v2489 = vshrl.u32 %v2484, 16
    %vm2490 = vc.u32 %v2482, %v2486
    %v2491 = vsel %vm2490, 1, 0
    %v2492 = vadd.s32 %v2482, %v2486
    %v2493 = vadd.s32 %v2485, %v2491
    %vm2494 = vc.u32 %v2492, %v2488
    %v2495 = vsel %vm2494, 1, 0
    %v2496 = vadd.s32 %v2492, %v2488
    %v2497 = vadd.s32 %v2493, %v2495
    %v2498 = vadd.s32 %v2497, %v2487
    %v2499 = vadd.s32 %v2498, %v2489
    %v2500 = vand.u32 %v2477, 65535
    %v2501 = vshrl.u32 %v2477, 16
    %v2502 = vand.u32 %v2472, 65535
    %v2503 = vshrl.u32 %v2472, 16
    %v2504 = vmul.u32 %v2500, %v2502
    %v2505 = vmul.u32 %v2500, %v2503
    %v2506 = vmul.u32 %v2501, %v2502
    %v2507 = vmul.u32 %v2501, %v2503
    %v2508 = vshll.u32 %v2505, 16
    %v2509 = vshrl.u32 %v2505, 16
    %v2510 = vshll.u32 %v2506, 16
    %v2511 = vshrl.u32 %v2506, 16
    %vm2512 = vc.u32 %v2504, %v2508
    %v2513 = vsel %vm2512, 1, 0
    %v2514 = vadd.s32 %v2504, %v2508
    %v2515 = vadd.s32 %v2507, %v2513
    %vm2516 = vc.u32 %v2514, %v2510
    %v2517 = vsel %vm2516, 1, 0
    %v2518 = vadd.s32 %v2514, %v2510
    %v2519 = vadd.s32 %v2515, %v2517
    %v2520 = vadd.s32 %v2519, %v2509
    %v2521 = vadd.s32 %v2520, %v2511
    %v2522 = vmul.u32 %v2477, %v2468
    %v2523 = vadd.s32 %v2499, %v2518
    %vm2524 = vc.u32 %v2499, %v2518
    %v2525 = vadd.s32 %v2521, 1
    %v2526 = vsel %vm2524, %v2525, %v2521
    %v2527 = vadd.s32 %v2522, %v2526
    %v2528 = vadd.s32 %v2527, 536870912
    %v2529 = vshrl.u32 %v2528, 30
    %v2530 = vshll.u32 %v2529, 30
    %v2531 = vsub.s32 %v2527, %v2530
    %vm2532 = vcmp.lt.s32.totalorder %v2531, 0
    %v2533 = vsub.s32 0, %v2531
    %v2534 = vsel %vm2532, %v2533, %v2531
    %v2535 = vclz %v2534
    %v2536 = vsub.s32 %v2535, 2
    %vm2537 = vcmp.gt.s32.totalorder 0, %v2536
    %v2538 = vsel %vm2537, 0, %v2536
    %v2539 = vsub.s32 32, %v2538
    %v2540 = vshll.u32 %v2531, %v2538
    %v2541 = vshrl.u32 %v2523, %v2539
    %v2542 = vor.u32 %v2540, %v2541
    %v2543 = vsub.s32 4294967266, %v2538
    %v2544 = vadd.s32 %v2543, 127
    %v2545 = vshll.u32 %v2544, 23
    %v2546 = vor.u32 4788187, %v2545
    %v2547 = vand.u32 2147483647, %v2546
    %v2549 = vcvt.s32.f32 %v2542
    %v2550 = vmul.f32 %v2549, %v2547
    %v2551 = vxor.u32 %v2550, 2147483648
    %v2552 = vsel %vm2431, %v2551, %v2550
    %v2553 = vsub.s32 4, %v2529
    %v2554 = vsel %vm2431, %v2553, %v2529
    %v2555 = vsel %vm2430, %v287, %v2552
    %v2556 = vsel %vm2430, 0, %v2554
    %v2557 = vmul.f32 %v2555, %v2555
    %v2558 = vmul.f32 %v2557, -0.001358992
    %v2559 = vadd.f32 %v2558, 0.041655596
    %v2560 = vmul.f32 %v2557, %v2559
    %v2561 = vadd.f32 %v2560, -0.4999988
    %v2562 = vmul.f32 %v2557, %v2561
    %v2563 = vadd.f32 1.0, %v2562
    %v2564 = vmul.f32 %v2555, %v2555
    %v2565 = vmul.f32 %v2564, -0.00019511016
    %v2566 = vadd.f32 %v2565, 0.008332121
    %v2567 = vmul.f32 %v2564, %v2566
    %v2568 = vadd.f32 %v2567, -0.16666654
    %v2569 = vmul.f32 %v2564, %v2568
    %v2570 = vadd.f32 %v2569, 1.0
    %v2571 = vmul.f32 %v2570, %v2555
    %vm2572 = vweird.f32 %v287
    %v2573 = vadd.s32 %v2556, 3
    %v2574 = vand.u32 %v2573, 3
    %vm2575 = vcmp.lt.s32.totalorder %v2574, 2
    %vm2576 = vcmp.eq.s32.totalorder %v2574, 0
    %v2577 = vxor.u32 %v2571, 2147483648
    %v2578 = vsel %vm2576, %v2563, %v2577
    %vm2579 = vcmp.eq.s32.totalorder %v2574, 2
    %v2580 = vxor.u32 %v2563, 2147483648
    %v2581 = vsel %vm2579, %v2580, %v2571
    %v2582 = vsel %vm2575, %v2578, %v2581
    %v2583 = vsel %vm2572, nan, %v2582
    %v2584 = vand.u32 2147483647, %v290
    %vm2585 = vcmp.le.f32.partialorder %v2584, 0.7853982
    %vm2586 = vcmp.lt.s32.totalorder %v290, 0
    %v2587 = vand.u32 %v290, 2139095040
    %v2588 = vshrl.u32 %v2587, 23
    %v2589 = vsub.s32 %v2588, 127
    %v2590 = vand.u32 2147483647, %v290
    %v2591 = vand.u32 %v2590, 8388607
    %v2592 = vor.u32 %v2591, 8388608
    %v2593 = vsub.s32 0, %v2592
    %v2594 = vadd.s32 %v2589, 1
    %vm2595 = vcmp.gt.s32.totalorder %v2594, 0
    %v2596 = vsel %vm2595, %v2594, 0
    %v2597 = vshrl.u32 %v2596, 5
    %v2598 = vand.u32 %v2596, 31
    %v2599 = vsub.s32 32, %v2598
    %v2600 = vshrl.u32 683565275, %v2599
    %v2601 = vshll.u32 683565275, %v2598
    %v2602 = vshrl.u32 2475754826, %v2599
    %v2603 = vor.u32 %v2601, %v2602
    %v2604 = vshll.u32 2475754826, %v2598
    %v2605 = vshrl.u32 2131351028, %v2599
    %v2606 = vor.u32 %v2604, %v2605
    %v2607 = vshll.u32 2131351028, %v2598
    %v2608 = vshrl.u32 2102212464, %v2599
    %v2609 = vor.u32 %v2607, %v2608
    %v2610 = vshll.u32 2102212464, %v2598
    %v2611 = vshrl.u32 920167782, %v2599
    %v2612 = vor.u32 %v2610, %v2611
    %v2613 = vshll.u32 920167782, %v2598
    %v2614 = vshrl.u32 1326507024, %v2599
    %v2615 = vor.u32 %v2613, %v2614
    %vm2616 = vcmp.lt.s32.totalorder %v2597, 1
    %vm2617 = vcmp.lt.s32.totalorder %v2597, 2
    %vm2618 = vcmp.lt.s32.totalorder %v2597, 3
    %vm2619 = vcmp.lt.s32.totalorder %v2597, 4
    %v2620 = vsel %vm2616, %v2600, %v2603
    %v2621 = vsel %vm2619, %v2609, 2102212464
    %v2622 = vsel %vm2618, %v2606, %v2621
    %v2623 = vsel %vm2617, %v2620, %v2622
    %v2624 = vsel %vm2616, %v2603, %v2606
    %v2625 = vsel %vm2619, %v2612, 920167782
    %v2626 = vsel %vm2618, %v2609, %v2625
    %v2627 = vsel %vm2617, %v2624, %v2626
    %v2628 = vsel %vm2616, %v2606, %v2609
    %v2629 = vsel %vm2619, %v2615, 1326507024
    %v2630 = vsel %vm2618, %v2612, %v2629
    %v2631 = vsel %vm2617, %v2628, %v2630
    %v2632 = vshll.u32 %v2592, 8
    %v2633 = vand.u32 %v2632, 65535
    %v2634 = vshrl.u32 %v2632, 16
    %v2635 = vand.u32 %v2631, 65535
    %v2636 = vshrl.u32 %v2631, 16
    %v2637 = vmul.u32 %v2633, %v2635
    %v2638 = vmul.u32 %v2633, %v2636
    %v2639 = vmul.u32 %v2634, %v2635
    %v2640 = vmul.u32 %v2634, %v2636
    %v2641 = vshll.u32 %v2638, 16
    %v2642 = vshrl.u32 %v2638, 16
    %v2643 = vshll.u32 %v2639, 16
    %v2644 = vshrl.u32 %v2639, 16
    %vm2645 = vc.u32 %v2637, %v2641
    %v2646 = vsel %vm2645, 1, 0
    %v2647 = vadd.s32 %v2637, %v2641
    %v2648 = vadd.s32 %v2640, %v2646
    %vm2649 = vc.u32 %v2647, %v2643
    %v2650 = vsel %vm2649, 1, 0
    %v2651 = vadd.s32 %v2647, %v2643
    %v2652 = vadd.s32 %v2648, %v2650
    %v2653 = vadd.s32 %v2652, %v2642
    %v2654 = vadd.s32 %v2653, %v2644
    %v2655 = vand.u32 %v2632, 65535
    %v2656 = vshrl.u32 %v2632, 16
    %v2657 = vand.u32 %v2627, 65535
    %v2658 = vshrl.u32 %v2627, 16
    %v2659 = vmul.u32 %v2655, %v2657
    %v2660 = vmul.u32 %v2655, %v2658
    %v2661 = vmul.u32 %v2656, %v2657
    %v2662 = vmul.u32 %v2656, %v2658
    %v2663 = vshll.u32 %v2660, 16
    %v2664 = vshrl.u32 %v2660, 16
    %v2665 = vshll.u32 %v2661, 16
    %v2666 = vshrl.u32 %v2661, 16
    %vm2667 = vc.u32 %v2659, %v2663
    %v2668 = vsel %vm2667, 1, 0
    %v2669 = vadd.s32 %v2659, %v2663
    %v2670 = vadd.s32 %v2662, %v2668
    %vm2671 = vc.u32 %v2669, %v2665
    %v2672 = vsel %vm2671, 1, 0
    %v2673 = vadd.s32 %v2669, %v2665
    %v2674 = vadd.s32 %v2670, %v2672
    %v2675 = vadd.s32 %v2674, %v2664
    %v2676 = vadd.s32 %v2675, %v2666
    %v2677 = vmul.u32 %v2632, %v2623
    %v2678 = vadd.s32 %v2654, %v2673
    %vm2679 = vc.u32 %v2654, %v2673
    %v2680 = vadd.s32 %v2676, 1
    %v2681 = vsel %vm2679, %v2680, %v2676
    %v2682 = vadd.s32 %v2677, %v2681
    %v2683 = vadd.s32 %v2682, 536870912
    %v2684 = vshrl.u32 %v2683, 30
    %v2685 = vshll.u32 %v2684, 30
    %v2686 = vsub.s32 %v2682, %v2685
    %vm2687 = vcmp.lt.s32.totalorder %v2686, 0
    %v2688 = vsub.s32 0, %v2686
    %v2689 = vsel %vm2687, %v2688, %v2686
    %v2690 = vclz %v2689
    %v2691 = vsub.s32 %v2690, 2
    %vm2692 = vcmp.gt.s32.totalorder 0, %v2691
    %v2693 = vsel %vm2692, 0, %v2691
    %v2694 = vsub.s32 32, %v2693
    %v2695 = vshll.u32 %v2686, %v2693
    %v2696 = vshrl.u32 %v2678, %v2694
    %v2697 = vor.u32 %v2695, %v2696
    %v2698 = vsub.s32 4294967266, %v2693
    %v2699 = vadd.s32 %v2698, 127
    %v2700 = vshll.u32 %v2699, 23
    %v2701 = vor.u32 4788187, %v2700
    %v2702 = vand.u32 2147483647, %v2701
    %v2704 = vcvt.s32.f32 %v2697
    %v2705 = vmul.f32 %v2704, %v2702
    %v2706 = vxor.u32 %v2705, 2147483648
    %v2707 = vsel %vm2586, %v2706, %v2705
    %v2708 = vsub.s32 4, %v2684
    %v2709 = vsel %vm2586, %v2708, %v2684
    %v2710 = vsel %vm2585, %v290, %v2707
    %v2711 = vsel %vm2585, 0, %v2709
    %v2712 = vmul.f32 %v2710, %v2710
    %v2713 = vmul.f32 %v2712, -0.001358992
    %v2714 = vadd.f32 %v2713, 0.041655596
    %v2715 = vmul.f32 %v2712, %v2714
    %v2716 = vadd.f32 %v2715, -0.4999988
    %v2717 = vmul.f32 %v2712, %v2716
    %v2718 = vadd.f32 1.0, %v2717
    %v2719 = vmul.f32 %v2710, %v2710
    %v2720 = vmul.f32 %v2719, -0.00019511016
    %v2721 = vadd.f32 %v2720, 0.008332121
    %v2722 = vmul.f32 %v2719, %v2721
    %v2723 = vadd.f32 %v2722, -0.16666654
    %v2724 = vmul.f32 %v2719, %v2723
    %v2725 = vadd.f32 %v2724, 1.0
    %v2726 = vmul.f32 %v2725, %v2710
    %vm2727 = vweird.f32 %v290
    %v2728 = vadd.s32 %v2711, 3
    %v2729 = vand.u32 %v2728, 3
    %vm2730 = vcmp.lt.s32.totalorder %v2729, 2
    %vm2731 = vcmp.eq.s32.totalorder %v2729, 0
    %v2732 = vxor.u32 %v2726, 2147483648
    %v2733 = vsel %vm2731, %v2718, %v2732
    %vm2734 = vcmp.eq.s32.totalorder %v2729, 2
    %v2735 = vxor.u32 %v2718, 2147483648
    %v2736 = vsel %vm2734, %v2735, %v2726
    %v2737 = vsel %vm2730, %v2733, %v2736
    %v2738 = vsel %vm2727, nan, %v2737
    %v2739 = vand.u32 2147483647, %v292
    %vm2740 = vcmp.le.f32.partialorder %v2739, 0.7853982
    %vm2741 = vcmp.lt.s32.totalorder %v292, 0
    %v2742 = vand.u32 %v292, 2139095040
    %v2743 = vshrl.u32 %v2742, 23
    %v2744 = vsub.s32 %v2743, 127
    %v2745 = vand.u32 2147483647, %v292
    %v2746 = vand.u32 %v2745, 8388607
    %v2747 = vor.u32 %v2746, 8388608
    %v2748 = vsub.s32 0, %v2747
    %v2749 = vadd.s32 %v2744, 1
    %vm2750 = vcmp.gt.s32.totalorder %v2749, 0
    %v2751 = vsel %vm2750, %v2749, 0
    %v2752 = vshrl.u32 %v2751, 5
    %v2753 = vand.u32 %v2751, 31
    %v2754 = vsub.s32 32, %v2753
    %v2755 = vshrl.u32 683565275, %v2754
    %v2756 = vshll.u32 683565275, %v2753
    %v2757 = vshrl.u32 2475754826, %v2754
    %v2758 = vor.u32 %v2756, %v2757
    %v2759 = vshll.u32 2475754826, %v2753
    %v2760 = vshrl.u32 2131351028, %v2754
    %v2761 = vor.u32 %v2759, %v2760
    %v2762 = vshll.u32 2131351028, %v2753
    %v2763 = vshrl.u32 2102212464, %v2754
    %v2764 = vor.u32 %v2762, %v2763
    %v2765 = vshll.u32 2102212464, %v2753
    %v2766 = vshrl.u32 920167782, %v2754
    %v2767 = vor.u32 %v2765, %v2766
    %v2768 = vshll.u32 920167782, %v2753
    %v2769 = vshrl.u32 1326507024, %v2754
    %v2770 = vor.u32 %v2768, %v2769
    %vm2771 = vcmp.lt.s32.totalorder %v2752, 1
    %vm2772 = vcmp.lt.s32.totalorder %v2752, 2
    %vm2773 = vcmp.lt.s32.totalorder %v2752, 3
    %vm2774 = vcmp.lt.s32.totalorder %v2752, 4
    %v2775 = vsel %vm2771, %v2755, %v2758
    %v2776 = vsel %vm2774, %v2764, 2102212464
    %v2777 = vsel %vm2773, %v2761, %v2776
    %v2778 = vsel %vm2772, %v2775, %v2777
    %v2779 = vsel %vm2771, %v2758, %v2761
    %v2780 = vsel %vm2774, %v2767, 920167782
    %v2781 = vsel %vm2773, %v2764, %v2780
    %v2782 = vsel %vm2772, %v2779, %v2781
    %v2783 = vsel %vm2771, %v2761, %v2764
    %v2784 = vsel %vm2774, %v2770, 1326507024
    %v2785 = vsel %vm2773, %v2767, %v2784
    %v2786 = vsel %vm2772, %v2783, %v2785
    %v2787 = vshll.u32 %v2747, 8
    %v2788 = vand.u32 %v2787, 65535
    %v2789 = vshrl.u32 %v2787, 16
    %v2790 = vand.u32 %v2786, 65535
    %v2791 = vshrl.u32 %v2786, 16
    %v2792 = vmul.u32 %v2788, %v2790
    %v2793 = vmul.u32 %v2788, %v2791
    %v2794 = vmul.u32 %v2789, %v2790
    %v2795 = vmul.u32 %v2789, %v2791
    %v2796 = vshll.u32 %v2793, 16
    %v2797 = vshrl.u32 %v2793, 16
    %v2798 = vshll.u32 %v2794, 16
    %v2799 = vshrl.u32 %v2794, 16
    %vm2800 = vc.u32 %v2792, %v2796
    %v2801 = vsel %vm2800, 1, 0
    %v2802 = vadd.s32 %v2792, %v2796
    %v2803 = vadd.s32 %v2795, %v2801
    %vm2804 = vc.u32 %v2802, %v2798
    %v2805 = vsel %vm2804, 1, 0
    %v2806 = vadd.s32 %v2802, %v2798
    %v2807 = vadd.s32 %v2803, %v2805
    %v2808 = vadd.s32 %v2807, %v2797
    %v2809 = vadd.s32 %v2808, %v2799
    %v2810 = vand.u32 %v2787, 65535
    %v2811 = vshrl.u32 %v2787, 16
    %v2812 = vand.u32 %v2782, 65535
    %v2813 = vshrl.u32 %v2782, 16
    %v2814 = vmul.u32 %v2810, %v2812
    %v2815 = vmul.u32 %v2810, %v2813
    %v2816 = vmul.u32 %v2811, %v2812
    %v2817 = vmul.u32 %v2811, %v2813
    %v2818 = vshll.u32 %v2815, 16
    %v2819 = vshrl.u32 %v2815, 16
    %v2820 = vshll.u32 %v2816, 16
    %v2821 = vshrl.u32 %v2816, 16
    %vm2822 = vc.u32 %v2814, %v2818
    %v2823 = vsel %vm2822, 1, 0
    %v2824 = vadd.s32 %v2814, %v2818
    %v2825 = vadd.s32 %v2817, %v2823
    %vm2826 = vc.u32 %v2824, %v2820
    %v2827 = vsel %vm2826, 1, 0
    %v2828 = vadd.s32 %v2824, %v2820
    %v2829 = vadd.s32 %v2825, %v2827
    %v2830 = vadd.s32 %v2829, %v2819
    %v2831 = vadd.s32 %v2830, %v2821
    %v2832 = vmul.u32 %v2787, %v2778
    %v2833 = vadd.s32 %v2809, %v2828
    %vm2834 = vc.u32 %v2809, %v2828
    %v2835 = vadd.s32 %v2831, 1
    %v2836 = vsel %vm2834, %v2835, %v2831
    %v2837 = vadd.s32 %v2832, %v2836
    %v2838 = vadd.s32 %v2837, 536870912
    %v2839 = vshrl.u32 %v2838, 30
    %v2840 = vshll.u32 %v2839, 30
    %v2841 = vsub.s32 %v2837, %v2840
    %vm2842 = vcmp.lt.s32.totalorder %v2841, 0
    %v2843 = vsub.s32 0, %v2841
    %v2844 = vsel %vm2842, %v2843, %v2841
    %v2845 = vclz %v2844
    %v2846 = vsub.s32 %v2845, 2
    %vm2847 = vcmp.gt.s32.totalorder 0, %v2846
    %v2848 = vsel %vm2847, 0, %v2846
    %v2849 = vsub.s32 32, %v2848
    %v2850 = vshll.u32 %v2841, %v2848
    %v2851 = vshrl.u32 %v2833, %v2849
    %v2852 = vor.u32 %v2850, %v2851
    %v2853 = vsub.s32 4294967266, %v2848
    %v2854 = vadd.s32 %v2853, 127
    %v2855 = vshll.u32 %v2854, 23
    %v2856 = vor.u32 4788187, %v2855
    %v2857 = vand.u32 2147483647, %v2856
    %v2859 = vcvt.s32.f32 %v2852
    %v2860 = vmul.f32 %v2859, %v2857
    %v2861 = vxor.u32 %v2860, 2147483648
    %v2862 = vsel %vm2741, %v2861, %v2860
    %v2863 = vsub.s32 4, %v2839
    %v2864 = vsel %vm2741, %v2863, %v2839
    %v2865 = vsel %vm2740, %v292, %v2862
    %v2866 = vsel %vm2740, 0, %v2864
    %v2867 = vmul.f32 %v2865, %v2865
    %v2868 = vmul.f32 %v2867, -0.001358992
    %v2869 = vadd.f32 %v2868, 0.041655596
    %v2870 = vmul.f32 %v2867, %v2869
    %v2871 = vadd.f32 %v2870, -0.4999988
    %v2872 = vmul.f32 %v2867, %v2871
    %v2873 = vadd.f32 1.0, %v2872
    %v2874 = vmul.f32 %v2865, %v2865
    %v2875 = vmul.f32 %v2874, -0.00019511016
    %v2876 = vadd.f32 %v2875, 0.008332121
    %v2877 = vmul.f32 %v2874, %v2876
    %v2878 = vadd.f32 %v2877, -0.16666654
    %v2879 = vmul.f32 %v2874, %v2878
    %v2880 = vadd.f32 %v2879, 1.0
    %v2881 = vmul.f32 %v2880, %v2865
    %vm2882 = vweird.f32 %v292
    %v2883 = vadd.s32 %v2866, 3
    %v2884 = vand.u32 %v2883, 3
    %vm2885 = vcmp.lt.s32.totalorder %v2884, 2
    %vm2886 = vcmp.eq.s32.totalorder %v2884, 0
    %v2887 = vxor.u32 %v2881, 2147483648
    %v2888 = vsel %vm2886, %v2873, %v2887
    %vm2889 = vcmp.eq.s32.totalorder %v2884, 2
    %v2890 = vxor.u32 %v2873, 2147483648
    %v2891 = vsel %vm2889, %v2890, %v2881
    %v2892 = vsel %vm2885, %v2888, %v2891
    %v2893 = vsel %vm2882, nan, %v2892
    %v2894 = vand.u32 2147483647, %v295
    %vm2895 = vcmp.le.f32.partialorder %v2894, 0.7853982
    %vm2896 = vcmp.lt.s32.totalorder %v295, 0
    %v2897 = vand.u32 %v295, 2139095040
    %v2898 = vshrl.u32 %v2897, 23
    %v2899 = vsub.s32 %v2898, 127
    %v2900 = vand.u32 2147483647, %v295
    %v2901 = vand.u32 %v2900, 8388607
    %v2902 = vor.u32 %v2901, 8388608
    %v2903 = vsub.s32 0, %v2902
    %v2904 = vadd.s32 %v2899, 1
    %vm2905 = vcmp.gt.s32.totalorder %v2904, 0
    %v2906 = vsel %vm2905, %v2904, 0
    %v2907 = vshrl.u32 %v2906, 5
    %v2908 = vand.u32 %v2906, 31
    %v2909 = vsub.s32 32, %v2908
    %v2910 = vshrl.u32 683565275, %v2909
    %v2911 = vshll.u32 683565275, %v2908
    %v2912 = vshrl.u32 2475754826, %v2909
    %v2913 = vor.u32 %v2911, %v2912
    %v2914 = vshll.u32 2475754826, %v2908
    %v2915 = vshrl.u32 2131351028, %v2909
    %v2916 = vor.u32 %v2914, %v2915
    %v2917 = vshll.u32 2131351028, %v2908
    %v2918 = vshrl.u32 2102212464, %v2909
    %v2919 = vor.u32 %v2917, %v2918
    %v2920 = vshll.u32 2102212464, %v2908
    %v2921 = vshrl.u32 920167782, %v2909
    %v2922 = vor.u32 %v2920, %v2921
    %v2923 = vshll.u32 920167782, %v2908
    %v2924 = vshrl.u32 1326507024, %v2909
    %v2925 = vor.u32 %v2923, %v2924
    %vm2926 = vcmp.lt.s32.totalorder %v2907, 1
    %vm2927 = vcmp.lt.s32.totalorder %v2907, 2
    %vm2928 = vcmp.lt.s32.totalorder %v2907, 3
    %vm2929 = vcmp.lt.s32.totalorder %v2907, 4
    %v2930 = vsel %vm2926, %v2910, %v2913
    %v2931 = vsel %vm2929, %v2919, 2102212464
    %v2932 = vsel %vm2928, %v2916, %v2931
    %v2933 = vsel %vm2927, %v2930, %v2932
    %v2934 = vsel %vm2926, %v2913, %v2916
    %v2935 = vsel %vm2929, %v2922, 920167782
    %v2936 = vsel %vm2928, %v2919, %v2935
    %v2937 = vsel %vm2927, %v2934, %v2936
    %v2938 = vsel %vm2926, %v2916, %v2919
    %v2939 = vsel %vm2929, %v2925, 1326507024
    %v2940 = vsel %vm2928, %v2922, %v2939
    %v2941 = vsel %vm2927, %v2938, %v2940
    %v2942 = vshll.u32 %v2902, 8
    %v2943 = vand.u32 %v2942, 65535
    %v2944 = vshrl.u32 %v2942, 16
    %v2945 = vand.u32 %v2941, 65535
    %v2946 = vshrl.u32 %v2941, 16
    %v2947 = vmul.u32 %v2943, %v2945
    %v2948 = vmul.u32 %v2943, %v2946
    %v2949 = vmul.u32 %v2944, %v2945
    %v2950 = vmul.u32 %v2944, %v2946
    %v2951 = vshll.u32 %v2948, 16
    %v2952 = vshrl.u32 %v2948, 16
    %v2953 = vshll.u32 %v2949, 16
    %v2954 = vshrl.u32 %v2949, 16
    %vm2955 = vc.u32 %v2947, %v2951
    %v2956 = vsel %vm2955, 1, 0
    %v2957 = vadd.s32 %v2947, %v2951
    %v2958 = vadd.s32 %v2950, %v2956
    %vm2959 = vc.u32 %v2957, %v2953
    %v2960 = vsel %vm2959, 1, 0
    %v2961 = vadd.s32 %v2957, %v2953
    %v2962 = vadd.s32 %v2958, %v2960
    %v2963 = vadd.s32 %v2962, %v2952
    %v2964 = vadd.s32 %v2963, %v2954
    %v2965 = vand.u32 %v2942, 65535
    %v2966 = vshrl.u32 %v2942, 16
    %v2967 = vand.u32 %v2937, 65535
    %v2968 = vshrl.u32 %v2937, 16
    %v2969 = vmul.u32 %v2965, %v2967
    %v2970 = vmul.u32 %v2965, %v2968
    %v2971 = vmul.u32 %v2966, %v2967
    %v2972 = vmul.u32 %v2966, %v2968
    %v2973 = vshll.u32 %v2970, 16
    %v2974 = vshrl.u32 %v2970, 16
    %v2975 = vshll.u32 %v2971, 16
    %v2976 = vshrl.u32 %v2971, 16
    %vm2977 = vc.u32 %v2969, %v2973
    %v2978 = vsel %vm2977, 1, 0
    %v2979 = vadd.s32 %v2969, %v2973
    %v2980 = vadd.s32 %v2972, %v2978
    %vm2981 = vc.u32 %v2979, %v2975
    %v2982 = vsel %vm2981, 1, 0
    %v2983 = vadd.s32 %v2979, %v2975
    %v2984 = vadd.s32 %v2980, %v2982
    %v2985 = vadd.s32 %v2984, %v2974
    %v2986 = vadd.s32 %v2985, %v2976
    %v2987 = vmul.u32 %v2942, %v2933
    %v2988 = vadd.s32 %v2964, %v2983
    %vm2989 = vc.u32 %v2964, %v2983
    %v2990 = vadd.s32 %v2986, 1
    %v2991 = vsel %vm2989, %v2990, %v2986
    %v2992 = vadd.s32 %v2987, %v2991
    %v2993 = vadd.s32 %v2992, 536870912
    %v2994 = vshrl.u32 %v2993, 30
    %v2995 = vshll.u32 %v2994, 30
    %v2996 = vsub.s32 %v2992, %v2995
    %vm2997 = vcmp.lt.s32.totalorder %v2996, 0
    %v2998 = vsub.s32 0, %v2996
    %v2999 = vsel %vm2997, %v2998, %v2996
    %v3000 = vclz %v2999
    %v3001 = vsub.s32 %v3000, 2
    %vm3002 = vcmp.gt.s32.totalorder 0, %v3001
    %v3003 = vsel %vm3002, 0, %v3001
    %v3004 = vsub.s32 32, %v3003
    %v3005 = vshll.u32 %v2996, %v3003
    %v3006 = vshrl.u32 %v2988, %v3004
    %v3007 = vor.u32 %v3005, %v3006
    %v3008 = vsub.s32 4294967266, %v3003
    %v3009 = vadd.s32 %v3008, 127
    %v3010 = vshll.u32 %v3009, 23
    %v3011 = vor.u32 4788187, %v3010
    %v3012 = vand.u32 2147483647, %v3011
    %v3014 = vcvt.s32.f32 %v3007
    %v3015 = vmul.f32 %v3014, %v3012
    %v3016 = vxor.u32 %v3015, 2147483648
    %v3017 = vsel %vm2896, %v3016, %v3015
    %v3018 = vsub.s32 4, %v2994
    %v3019 = vsel %vm2896, %v3018, %v2994
    %v3020 = vsel %vm2895, %v295, %v3017
    %v3021 = vsel %vm2895, 0, %v3019
    %v3022 = vmul.f32 %v3020, %v3020
    %v3023 = vmul.f32 %v3022, -0.001358992
    %v3024 = vadd.f32 %v3023, 0.041655596
    %v3025 = vmul.f32 %v3022, %v3024
    %v3026 = vadd.f32 %v3025, -0.4999988
    %v3027 = vmul.f32 %v3022, %v3026
    %v3028 = vadd.f32 1.0, %v3027
    %v3029 = vmul.f32 %v3020, %v3020
    %v3030 = vmul.f32 %v3029, -0.00019511016
    %v3031 = vadd.f32 %v3030, 0.008332121
    %v3032 = vmul.f32 %v3029, %v3031
    %v3033 = vadd.f32 %v3032, -0.16666654
    %v3034 = vmul.f32 %v3029, %v3033
    %v3035 = vadd.f32 %v3034, 1.0
    %v3036 = vmul.f32 %v3035, %v3020
    %vm3037 = vweird.f32 %v295
    %v3038 = vadd.s32 %v3021, 3
    %v3039 = vand.u32 %v3038, 3
    %vm3040 = vcmp.lt.s32.totalorder %v3039, 2
    %vm3041 = vcmp.eq.s32.totalorder %v3039, 0
    %v3042 = vxor.u32 %v3036, 2147483648
    %v3043 = vsel %vm3041, %v3028, %v3042
    %vm3044 = vcmp.eq.s32.totalorder %v3039, 2
    %v3045 = vxor.u32 %v3028, 2147483648
    %v3046 = vsel %vm3044, %v3045, %v3036
    %v3047 = vsel %vm3040, %v3043, %v3046
    %v3048 = vsel %vm3037, nan, %v3047
    %v3049 = vand.u32 2147483647, %v297
    %vm3050 = vcmp.le.f32.partialorder %v3049, 0.7853982
    %vm3051 = vcmp.lt.s32.totalorder %v297, 0
    %v3052 = vand.u32 %v297, 2139095040
    %v3053 = vshrl.u32 %v3052, 23
    %v3054 = vsub.s32 %v3053, 127
    %v3055 = vand.u32 2147483647, %v297
    %v3056 = vand.u32 %v3055, 8388607
    %v3057 = vor.u32 %v3056, 8388608
    %v3058 = vsub.s32 0, %v3057
    %v3059 = vadd.s32 %v3054, 1
    %vm3060 = vcmp.gt.s32.totalorder %v3059, 0
    %v3061 = vsel %vm3060, %v3059, 0
    %v3062 = vshrl.u32 %v3061, 5
    %v3063 = vand.u32 %v3061, 31
    %v3064 = vsub.s32 32, %v3063
    %v3065 = vshrl.u32 683565275, %v3064
    %v3066 = vshll.u32 683565275, %v3063
    %v3067 = vshrl.u32 2475754826, %v3064
    %v3068 = vor.u32 %v3066, %v3067
    %v3069 = vshll.u32 2475754826, %v3063
    %v3070 = vshrl.u32 2131351028, %v3064
    %v3071 = vor.u32 %v3069, %v3070
    %v3072 = vshll.u32 2131351028, %v3063
    %v3073 = vshrl.u32 2102212464, %v3064
    %v3074 = vor.u32 %v3072, %v3073
    %v3075 = vshll.u32 2102212464, %v3063
    %v3076 = vshrl.u32 920167782, %v3064
    %v3077 = vor.u32 %v3075, %v3076
    %v3078 = vshll.u32 920167782, %v3063
    %v3079 = vshrl.u32 1326507024, %v3064
    %v3080 = vor.u32 %v3078, %v3079
    %vm3081 = vcmp.lt.s32.totalorder %v3062, 1
    %vm3082 = vcmp.lt.s32.totalorder %v3062, 2
    %vm3083 = vcmp.lt.s32.totalorder %v3062, 3
    %vm3084 = vcmp.lt.s32.totalorder %v3062, 4
    %v3085 = vsel %vm3081, %v3065, %v3068
    %v3086 = vsel %vm3084, %v3074, 2102212464
    %v3087 = vsel %vm3083, %v3071, %v3086
    %v3088 = vsel %vm3082, %v3085, %v3087
    %v3089 = vsel %vm3081, %v3068, %v3071
    %v3090 = vsel %vm3084, %v3077, 920167782
    %v3091 = vsel %vm3083, %v3074, %v3090
    %v3092 = vsel %vm3082, %v3089, %v3091
    %v3093 = vsel %vm3081, %v3071, %v3074
    %v3094 = vsel %vm3084, %v3080, 1326507024
    %v3095 = vsel %vm3083, %v3077, %v3094
    %v3096 = vsel %vm3082, %v3093, %v3095
    %v3097 = vshll.u32 %v3057, 8
    %v3098 = vand.u32 %v3097, 65535
    %v3099 = vshrl.u32 %v3097, 16
    %v3100 = vand.u32 %v3096, 65535
    %v3101 = vshrl.u32 %v3096, 16
    %v3102 = vmul.u32 %v3098, %v3100
    %v3103 = vmul.u32 %v3098, %v3101
    %v3104 = vmul.u32 %v3099, %v3100
    %v3105 = vmul.u32 %v3099, %v3101
    %v3106 = vshll.u32 %v3103, 16
    %v3107 = vshrl.u32 %v3103, 16
    %v3108 = vshll.u32 %v3104, 16
    %v3109 = vshrl.u32 %v3104, 16
    %vm3110 = vc.u32 %v3102, %v3106
    %v3111 = vsel %vm3110, 1, 0
    %v3112 = vadd.s32 %v3102, %v3106
    %v3113 = vadd.s32 %v3105, %v3111
    %vm3114 = vc.u32 %v3112, %v3108
    %v3115 = vsel %vm3114, 1, 0
    %v3116 = vadd.s32 %v3112, %v3108
    %v3117 = vadd.s32 %v3113, %v3115
    %v3118 = vadd.s32 %v3117, %v3107
    %v3119 = vadd.s32 %v3118, %v3109
    %v3120 = vand.u32 %v3097, 65535
    %v3121 = vshrl.u32 %v3097, 16
    %v3122 = vand.u32 %v3092, 65535
    %v3123 = vshrl.u32 %v3092, 16
    %v3124 = vmul.u32 %v3120, %v3122
    %v3125 = vmul.u32 %v3120, %v3123
    %v3126 = vmul.u32 %v3121, %v3122
    %v3127 = vmul.u32 %v3121, %v3123
    %v3128 = vshll.u32 %v3125, 16
    %v3129 = vshrl.u32 %v3125, 16
    %v3130 = vshll.u32 %v3126, 16
    %v3131 = vshrl.u32 %v3126, 16
    %vm3132 = vc.u32 %v3124, %v3128
    %v3133 = vsel %vm3132, 1, 0
    %v3134 = vadd.s32 %v3124, %v3128
    %v3135 = vadd.s32 %v3127, %v3133
    %vm3136 = vc.u32 %v3134, %v3130
    %v3137 = vsel %vm3136, 1, 0
    %v3138 = vadd.s32 %v3134, %v3130
    %v3139 = vadd.s32 %v3135, %v3137
    %v3140 = vadd.s32 %v3139, %v3129
    %v3141 = vadd.s32 %v3140, %v3131
    %v3142 = vmul.u32 %v3097, %v3088
    %v3143 = vadd.s32 %v3119, %v3138
    %vm3144 = vc.u32 %v3119, %v3138
    %v3145 = vadd.s32 %v3141, 1
    %v3146 = vsel %vm3144, %v3145, %v3141
    %v3147 = vadd.s32 %v3142, %v3146
    %v3148 = vadd.s32 %v3147, 536870912
    %v3149 = vshrl.u32 %v3148, 30
    %v3150 = vshll.u32 %v3149, 30
    %v3151 = vsub.s32 %v3147, %v3150
    %vm3152 = vcmp.lt.s32.totalorder %v3151, 0
    %v3153 = vsub.s32 0, %v3151
    %v3154 = vsel %vm3152, %v3153, %v3151
    %v3155 = vclz %v3154
    %v3156 = vsub.s32 %v3155, 2
    %vm3157 = vcmp.gt.s32.totalorder 0, %v3156
    %v3158 = vsel %vm3157, 0, %v3156
    %v3159 = vsub.s32 32, %v3158
    %v3160 = vshll.u32 %v3151, %v3158
    %v3161 = vshrl.u32 %v3143, %v3159
    %v3162 = vor.u32 %v3160, %v3161
    %v3163 = vsub.s32 4294967266, %v3158
    %v3164 = vadd.s32 %v3163, 127
    %v3165 = vshll.u32 %v3164, 23
    %v3166 = vor.u32 4788187, %v3165
    %v3167 = vand.u32 2147483647, %v3166
    %v3169 = vcvt.s32.f32 %v3162
    %v3170 = vmul.f32 %v3169, %v3167
    %v3171 = vxor.u32 %v3170, 2147483648
    %v3172 = vsel %vm3051, %v3171, %v3170
    %v3173 = vsub.s32 4, %v3149
    %v3174 = vsel %vm3051, %v3173, %v3149
    %v3175 = vsel %vm3050, %v297, %v3172
    %v3176 = vsel %vm3050, 0, %v3174
    %v3177 = vmul.f32 %v3175, %v3175
    %v3178 = vmul.f32 %v3177, -0.001358992
    %v3179 = vadd.f32 %v3178, 0.041655596
    %v3180 = vmul.f32 %v3177, %v3179
    %v3181 = vadd.f32 %v3180, -0.4999988
    %v3182 = vmul.f32 %v3177, %v3181
    %v3183 = vadd.f32 1.0, %v3182
    %v3184 = vmul.f32 %v3175, %v3175
    %v3185 = vmul.f32 %v3184, -0.00019511016
    %v3186 = vadd.f32 %v3185, 0.008332121
    %v3187 = vmul.f32 %v3184, %v3186
    %v3188 = vadd.f32 %v3187, -0.16666654
    %v3189 = vmul.f32 %v3184, %v3188
    %v3190 = vadd.f32 %v3189, 1.0
    %v3191 = vmul.f32 %v3190, %v3175
    %vm3192 = vweird.f32 %v297
    %v3193 = vadd.s32 %v3176, 3
    %v3194 = vand.u32 %v3193, 3
    %vm3195 = vcmp.lt.s32.totalorder %v3194, 2
    %vm3196 = vcmp.eq.s32.totalorder %v3194, 0
    %v3197 = vxor.u32 %v3191, 2147483648
    %v3198 = vsel %vm3196, %v3183, %v3197
    %vm3199 = vcmp.eq.s32.totalorder %v3194, 2
    %v3200 = vxor.u32 %v3183, 2147483648
    %v3201 = vsel %vm3199, %v3200, %v3191
    %v3202 = vsel %vm3195, %v3198, %v3201
    %v3203 = vsel %vm3192, nan, %v3202
    %v3204 = vand.u32 2147483647, %v300
    %vm3205 = vcmp.le.f32.partialorder %v3204, 0.7853982
    %vm3206 = vcmp.lt.s32.totalorder %v300, 0
    %v3207 = vand.u32 %v300, 2139095040
    %v3208 = vshrl.u32 %v3207, 23
    %v3209 = vsub.s32 %v3208, 127
    %v3210 = vand.u32 2147483647, %v300
    %v3211 = vand.u32 %v3210, 8388607
    %v3212 = vor.u32 %v3211, 8388608
    %v3213 = vsub.s32 0, %v3212
    %v3214 = vadd.s32 %v3209, 1
    %vm3215 = vcmp.gt.s32.totalorder %v3214, 0
    %v3216 = vsel %vm3215, %v3214, 0
    %v3217 = vshrl.u32 %v3216, 5
    %v3218 = vand.u32 %v3216, 31
    %v3219 = vsub.s32 32, %v3218
    %v3220 = vshrl.u32 683565275, %v3219
    %v3221 = vshll.u32 683565275, %v3218
    %v3222 = vshrl.u32 2475754826, %v3219
    %v3223 = vor.u32 %v3221, %v3222
    %v3224 = vshll.u32 2475754826, %v3218
    %v3225 = vshrl.u32 2131351028, %v3219
    %v3226 = vor.u32 %v3224, %v3225
    %v3227 = vshll.u32 2131351028, %v3218
    %v3228 = vshrl.u32 2102212464, %v3219
    %v3229 = vor.u32 %v3227, %v3228
    %v3230 = vshll.u32 2102212464, %v3218
    %v3231 = vshrl.u32 920167782, %v3219
    %v3232 = vor.u32 %v3230, %v3231
    %v3233 = vshll.u32 920167782, %v3218
    %v3234 = vshrl.u32 1326507024, %v3219
    %v3235 = vor.u32 %v3233, %v3234
    %vm3236 = vcmp.lt.s32.totalorder %v3217, 1
    %vm3237 = vcmp.lt.s32.totalorder %v3217, 2
    %vm3238 = vcmp.lt.s32.totalorder %v3217, 3
    %vm3239 = vcmp.lt.s32.totalorder %v3217, 4
    %v3240 = vsel %vm3236, %v3220, %v3223
    %v3241 = vsel %vm3239, %v3229, 2102212464
    %v3242 = vsel %vm3238, %v3226, %v3241
    %v3243 = vsel %vm3237, %v3240, %v3242
    %v3244 = vsel %vm3236, %v3223, %v3226
    %v3245 = vsel %vm3239, %v3232, 920167782
    %v3246 = vsel %vm3238, %v3229, %v3245
    %v3247 = vsel %vm3237, %v3244, %v3246
    %v3248 = vsel %vm3236, %v3226, %v3229
    %v3249 = vsel %vm3239, %v3235, 1326507024
    %v3250 = vsel %vm3238, %v3232, %v3249
    %v3251 = vsel %vm3237, %v3248, %v3250
    %v3252 = vshll.u32 %v3212, 8
    %v3253 = vand.u32 %v3252, 65535
    %v3254 = vshrl.u32 %v3252, 16
    %v3255 = vand.u32 %v3251, 65535
    %v3256 = vshrl.u32 %v3251, 16
    %v3257 = vmul.u32 %v3253, %v3255
    %v3258 = vmul.u32 %v3253, %v3256
    %v3259 = vmul.u32 %v3254, %v3255
    %v3260 = vmul.u32 %v3254, %v3256
    %v3261 = vshll.u32 %v3258, 16
    %v3262 = vshrl.u32 %v3258, 16
    %v3263 = vshll.u32 %v3259, 16
    %v3264 = vshrl.u32 %v3259, 16
    %vm3265 = vc.u32 %v3257, %v3261
    %v3266 = vsel %vm3265, 1, 0
    %v3267 = vadd.s32 %v3257, %v3261
    %v3268 = vadd.s32 %v3260, %v3266
    %vm3269 = vc.u32 %v3267, %v3263
    %v3270 = vsel %vm3269, 1, 0
    %v3271 = vadd.s32 %v3267, %v3263
    %v3272 = vadd.s32 %v3268, %v3270
    %v3273 = vadd.s32 %v3272, %v3262
    %v3274 = vadd.s32 %v3273, %v3264
    %v3275 = vand.u32 %v3252, 65535
    %v3276 = vshrl.u32 %v3252, 16
    %v3277 = vand.u32 %v3247, 65535
    %v3278 = vshrl.u32 %v3247, 16
    %v3279 = vmul.u32 %v3275, %v3277
    %v3280 = vmul.u32 %v3275, %v3278
    %v3281 = vmul.u32 %v3276, %v3277
    %v3282 = vmul.u32 %v3276, %v3278
    %v3283 = vshll.u32 %v3280, 16
    %v3284 = vshrl.u32 %v3280, 16
    %v3285 = vshll.u32 %v3281, 16
    %v3286 = vshrl.u32 %v3281, 16
    %vm3287 = vc.u32 %v3279, %v3283
    %v3288 = vsel %vm3287, 1, 0
    %v3289 = vadd.s32 %v3279, %v3283
    %v3290 = vadd.s32 %v3282, %v3288
    %vm3291 = vc.u32 %v3289, %v3285
    %v3292 = vsel %vm3291, 1, 0
    %v3293 = vadd.s32 %v3289, %v3285
    %v3294 = vadd.s32 %v3290, %v3292
    %v3295 = vadd.s32 %v3294, %v3284
    %v3296 = vadd.s32 %v3295, %v3286
    %v3297 = vmul.u32 %v3252, %v3243
    %v3298 = vadd.s32 %v3274, %v3293
    %vm3299 = vc.u32 %v3274, %v3293
    %v3300 = vadd.s32 %v3296, 1
    %v3301 = vsel %vm3299, %v3300, %v3296
    %v3302 = vadd.s32 %v3297, %v3301
    %v3303 = vadd.s32 %v3302, 536870912
    %v3304 = vshrl.u32 %v3303, 30
    %v3305 = vshll.u32 %v3304, 30
    %v3306 = vsub.s32 %v3302, %v3305
    %vm3307 = vcmp.lt.s32.totalorder %v3306, 0
    %v3308 = vsub.s32 0, %v3306
    %v3309 = vsel %vm3307, %v3308, %v3306
    %v3310 = vclz %v3309
    %v3311 = vsub.s32 %v3310, 2
    %vm3312 = vcmp.gt.s32.totalorder 0, %v3311
    %v3313 = vsel %vm3312, 0, %v3311
    %v3314 = vsub.s32 32, %v3313
    %v3315 = vshll.u32 %v3306, %v3313
    %v3316 = vshrl.u32 %v3298, %v3314
    %v3317 = vor.u32 %v3315, %v3316
    %v3318 = vsub.s32 4294967266, %v3313
    %v3319 = vadd.s32 %v3318, 127
    %v3320 = vshll.u32 %v3319, 23
    %v3321 = vor.u32 4788187, %v3320
    %v3322 = vand.u32 2147483647, %v3321
    %v3324 = vcvt.s32.f32 %v3317
    %v3325 = vmul.f32 %v3324, %v3322
    %v3326 = vxor.u32 %v3325, 2147483648
    %v3327 = vsel %vm3206, %v3326, %v3325
    %v3328 = vsub.s32 4, %v3304
    %v3329 = vsel %vm3206, %v3328, %v3304
    %v3330 = vsel %vm3205, %v300, %v3327
    %v3331 = vsel %vm3205, 0, %v3329
    %v3332 = vmul.f32 %v3330, %v3330
    %v3333 = vmul.f32 %v3332, -0.001358992
    %v3334 = vadd.f32 %v3333, 0.041655596
    %v3335 = vmul.f32 %v3332, %v3334
    %v3336 = vadd.f32 %v3335, -0.4999988
    %v3337 = vmul.f32 %v3332, %v3336
    %v3338 = vadd.f32 1.0, %v3337
    %v3339 = vmul.f32 %v3330, %v3330
    %v3340 = vmul.f32 %v3339, -0.00019511016
    %v3341 = vadd.f32 %v3340, 0.008332121
    %v3342 = vmul.f32 %v3339, %v3341
    %v3343 = vadd.f32 %v3342, -0.16666654
    %v3344 = vmul.f32 %v3339, %v3343
    %v3345 = vadd.f32 %v3344, 1.0
    %v3346 = vmul.f32 %v3345, %v3330
    %vm3347 = vweird.f32 %v300
    %v3348 = vadd.s32 %v3331, 3
    %v3349 = vand.u32 %v3348, 3
    %vm3350 = vcmp.lt.s32.totalorder %v3349, 2
    %vm3351 = vcmp.eq.s32.totalorder %v3349, 0
    %v3352 = vxor.u32 %v3346, 2147483648
    %v3353 = vsel %vm3351, %v3338, %v3352
    %vm3354 = vcmp.eq.s32.totalorder %v3349, 2
    %v3355 = vxor.u32 %v3338, 2147483648
    %v3356 = vsel %vm3354, %v3355, %v3346
    %v3357 = vsel %vm3350, %v3353, %v3356
    %v3358 = vsel %vm3347, nan, %v3357
    %v3359 = vand.u32 2147483647, %v302
    %vm3360 = vcmp.le.f32.partialorder %v3359, 0.7853982
    %vm3361 = vcmp.lt.s32.totalorder %v302, 0
    %v3362 = vand.u32 %v302, 2139095040
    %v3363 = vshrl.u32 %v3362, 23
    %v3364 = vsub.s32 %v3363, 127
    %v3365 = vand.u32 2147483647, %v302
    %v3366 = vand.u32 %v3365, 8388607
    %v3367 = vor.u32 %v3366, 8388608
    %v3368 = vsub.s32 0, %v3367
    %v3369 = vadd.s32 %v3364, 1
    %vm3370 = vcmp.gt.s32.totalorder %v3369, 0
    %v3371 = vsel %vm3370, %v3369, 0
    %v3372 = vshrl.u32 %v3371, 5
    %v3373 = vand.u32 %v3371, 31
    %v3374 = vsub.s32 32, %v3373
    %v3375 = vshrl.u32 683565275, %v3374
    %v3376 = vshll.u32 683565275, %v3373
    %v3377 = vshrl.u32 2475754826, %v3374
    %v3378 = vor.u32 %v3376, %v3377
    %v3379 = vshll.u32 2475754826, %v3373
    %v3380 = vshrl.u32 2131351028, %v3374
    %v3381 = vor.u32 %v3379, %v3380
    %v3382 = vshll.u32 2131351028, %v3373
    %v3383 = vshrl.u32 2102212464, %v3374
    %v3384 = vor.u32 %v3382, %v3383
    %v3385 = vshll.u32 2102212464, %v3373
    %v3386 = vshrl.u32 920167782, %v3374
    %v3387 = vor.u32 %v3385, %v3386
    %v3388 = vshll.u32 920167782, %v3373
    %v3389 = vshrl.u32 1326507024, %v3374
    %v3390 = vor.u32 %v3388, %v3389
    %vm3391 = vcmp.lt.s32.totalorder %v3372, 1
    %vm3392 = vcmp.lt.s32.totalorder %v3372, 2
    %vm3393 = vcmp.lt.s32.totalorder %v3372, 3
    %vm3394 = vcmp.lt.s32.totalorder %v3372, 4
    %v3395 = vsel %vm3391, %v3375, %v3378
    %v3396 = vsel %vm3394, %v3384, 2102212464
    %v3397 = vsel %vm3393, %v3381, %v3396
    %v3398 = vsel %vm3392, %v3395, %v3397
    %v3399 = vsel %vm3391, %v3378, %v3381
    %v3400 = vsel %vm3394, %v3387, 920167782
    %v3401 = vsel %vm3393, %v3384, %v3400
    %v3402 = vsel %vm3392, %v3399, %v3401
    %v3403 = vsel %vm3391, %v3381, %v3384
    %v3404 = vsel %vm3394, %v3390, 1326507024
    %v3405 = vsel %vm3393, %v3387, %v3404
    %v3406 = vsel %vm3392, %v3403, %v3405
    %v3407 = vshll.u32 %v3367, 8
    %v3408 = vand.u32 %v3407, 65535
    %v3409 = vshrl.u32 %v3407, 16
    %v3410 = vand.u32 %v3406, 65535
    %v3411 = vshrl.u32 %v3406, 16
    %v3412 = vmul.u32 %v3408, %v3410
    %v3413 = vmul.u32 %v3408, %v3411
    %v3414 = vmul.u32 %v3409, %v3410
    %v3415 = vmul.u32 %v3409, %v3411
    %v3416 = vshll.u32 %v3413, 16
    %v3417 = vshrl.u32 %v3413, 16
    %v3418 = vshll.u32 %v3414, 16
    %v3419 = vshrl.u32 %v3414, 16
    %vm3420 = vc.u32 %v3412, %v3416
    %v3421 = vsel %vm3420, 1, 0
    %v3422 = vadd.s32 %v3412, %v3416
    %v3423 = vadd.s32 %v3415, %v3421
    %vm3424 = vc.u32 %v3422, %v3418
    %v3425 = vsel %vm3424, 1, 0
    %v3426 = vadd.s32 %v3422, %v3418
    %v3427 = vadd.s32 %v3423, %v3425
    %v3428 = vadd.s32 %v3427, %v3417
    %v3429 = vadd.s32 %v3428, %v3419
    %v3430 = vand.u32 %v3407, 65535
    %v3431 = vshrl.u32 %v3407, 16
    %v3432 = vand.u32 %v3402, 65535
    %v3433 = vshrl.u32 %v3402, 16
    %v3434 = vmul.u32 %v3430, %v3432
    %v3435 = vmul.u32 %v3430, %v3433
    %v3436 = vmul.u32 %v3431, %v3432
    %v3437 = vmul.u32 %v3431, %v3433
    %v3438 = vshll.u32 %v3435, 16
    %v3439 = vshrl.u32 %v3435, 16
    %v3440 = vshll.u32 %v3436, 16
    %v3441 = vshrl.u32 %v3436, 16
    %vm3442 = vc.u32 %v3434, %v3438
    %v3443 = vsel %vm3442, 1, 0
    %v3444 = vadd.s32 %v3434, %v3438
    %v3445 = vadd.s32 %v3437, %v3443
    %vm3446 = vc.u32 %v3444, %v3440
    %v3447 = vsel %vm3446, 1, 0
    %v3448 = vadd.s32 %v3444, %v3440
    %v3449 = vadd.s32 %v3445, %v3447
    %v3450 = vadd.s32 %v3449, %v3439
    %v3451 = vadd.s32 %v3450, %v3441
    %v3452 = vmul.u32 %v3407, %v3398
    %v3453 = vadd.s32 %v3429, %v3448
    %vm3454 = vc.u32 %v3429, %v3448
    %v3455 = vadd.s32 %v3451, 1
    %v3456 = vsel %vm3454, %v3455, %v3451
    %v3457 = vadd.s32 %v3452, %v3456
    %v3458 = vadd.s32 %v3457, 536870912
    %v3459 = vshrl.u32 %v3458, 30
    %v3460 = vshll.u32 %v3459, 30
    %v3461 = vsub.s32 %v3457, %v3460
    %vm3462 = vcmp.lt.s32.totalorder %v3461, 0
    %v3463 = vsub.s32 0, %v3461
    %v3464 = vsel %vm3462, %v3463, %v3461
    %v3465 = vclz %v3464
    %v3466 = vsub.s32 %v3465, 2
    %vm3467 = vcmp.gt.s32.totalorder 0, %v3466
    %v3468 = vsel %vm3467, 0, %v3466
    %v3469 = vsub.s32 32, %v3468
    %v3470 = vshll.u32 %v3461, %v3468
    %v3471 = vshrl.u32 %v3453, %v3469
    %v3472 = vor.u32 %v3470, %v3471
    %v3473 = vsub.s32 4294967266, %v3468
    %v3474 = vadd.s32 %v3473, 127
    %v3475 = vshll.u32 %v3474, 23
    %v3476 = vor.u32 4788187, %v3475
    %v3477 = vand.u32 2147483647, %v3476
    %v3479 = vcvt.s32.f32 %v3472
    %v3480 = vmul.f32 %v3479, %v3477
    %v3481 = vxor.u32 %v3480, 2147483648
    %v3482 = vsel %vm3361, %v3481, %v3480
    %v3483 = vsub.s32 4, %v3459
    %v3484 = vsel %vm3361, %v3483, %v3459
    %v3485 = vsel %vm3360, %v302, %v3482
    %v3486 = vsel %vm3360, 0, %v3484
    %v3487 = vmul.f32 %v3485, %v3485
    %v3488 = vmul.f32 %v3487, -0.001358992
    %v3489 = vadd.f32 %v3488, 0.041655596
    %v3490 = vmul.f32 %v3487, %v3489
    %v3491 = vadd.f32 %v3490, -0.4999988
    %v3492 = vmul.f32 %v3487, %v3491
    %v3493 = vadd.f32 1.0, %v3492
    %v3494 = vmul.f32 %v3485, %v3485
    %v3495 = vmul.f32 %v3494, -0.00019511016
    %v3496 = vadd.f32 %v3495, 0.008332121
    %v3497 = vmul.f32 %v3494, %v3496
    %v3498 = vadd.f32 %v3497, -0.16666654
    %v3499 = vmul.f32 %v3494, %v3498
    %v3500 = vadd.f32 %v3499, 1.0
    %v3501 = vmul.f32 %v3500, %v3485
    %vm3502 = vweird.f32 %v302
    %v3503 = vadd.s32 %v3486, 3
    %v3504 = vand.u32 %v3503, 3
    %vm3505 = vcmp.lt.s32.totalorder %v3504, 2
    %vm3506 = vcmp.eq.s32.totalorder %v3504, 0
    %v3507 = vxor.u32 %v3501, 2147483648
    %v3508 = vsel %vm3506, %v3493, %v3507
    %vm3509 = vcmp.eq.s32.totalorder %v3504, 2
    %v3510 = vxor.u32 %v3493, 2147483648
    %v3511 = vsel %vm3509, %v3510, %v3501
    %v3512 = vsel %vm3505, %v3508, %v3511
    %v3513 = vsel %vm3502, nan, %v3512
    %v3514 = vand.u32 2147483647, %v305
    %vm3515 = vcmp.le.f32.partialorder %v3514, 0.7853982
    %vm3516 = vcmp.lt.s32.totalorder %v305, 0
    %v3517 = vand.u32 %v305, 2139095040
    %v3518 = vshrl.u32 %v3517, 23
    %v3519 = vsub.s32 %v3518, 127
    %v3520 = vand.u32 2147483647, %v305
    %v3521 = vand.u32 %v3520, 8388607
    %v3522 = vor.u32 %v3521, 8388608
    %v3523 = vsub.s32 0, %v3522
    %v3524 = vadd.s32 %v3519, 1
    %vm3525 = vcmp.gt.s32.totalorder %v3524, 0
    %v3526 = vsel %vm3525, %v3524, 0
    %v3527 = vshrl.u32 %v3526, 5
    %v3528 = vand.u32 %v3526, 31
    %v3529 = vsub.s32 32, %v3528
    %v3530 = vshrl.u32 683565275, %v3529
    %v3531 = vshll.u32 683565275, %v3528
    %v3532 = vshrl.u32 2475754826, %v3529
    %v3533 = vor.u32 %v3531, %v3532
    %v3534 = vshll.u32 2475754826, %v3528
    %v3535 = vshrl.u32 2131351028, %v3529
    %v3536 = vor.u32 %v3534, %v3535
    %v3537 = vshll.u32 2131351028, %v3528
    %v3538 = vshrl.u32 2102212464, %v3529
    %v3539 = vor.u32 %v3537, %v3538
    %v3540 = vshll.u32 2102212464, %v3528
    %v3541 = vshrl.u32 920167782, %v3529
    %v3542 = vor.u32 %v3540, %v3541
    %v3543 = vshll.u32 920167782, %v3528
    %v3544 = vshrl.u32 1326507024, %v3529
    %v3545 = vor.u32 %v3543, %v3544
    %vm3546 = vcmp.lt.s32.totalorder %v3527, 1
    %vm3547 = vcmp.lt.s32.totalorder %v3527, 2
    %vm3548 = vcmp.lt.s32.totalorder %v3527, 3
    %vm3549 = vcmp.lt.s32.totalorder %v3527, 4
    %v3550 = vsel %vm3546, %v3530, %v3533
    %v3551 = vsel %vm3549, %v3539, 2102212464
    %v3552 = vsel %vm3548, %v3536, %v3551
    %v3553 = vsel %vm3547, %v3550, %v3552
    %v3554 = vsel %vm3546, %v3533, %v3536
    %v3555 = vsel %vm3549, %v3542, 920167782
    %v3556 = vsel %vm3548, %v3539, %v3555
    %v3557 = vsel %vm3547, %v3554, %v3556
    %v3558 = vsel %vm3546, %v3536, %v3539
    %v3559 = vsel %vm3549, %v3545, 1326507024
    %v3560 = vsel %vm3548, %v3542, %v3559
    %v3561 = vsel %vm3547, %v3558, %v3560
    %v3562 = vshll.u32 %v3522, 8
    %v3563 = vand.u32 %v3562, 65535
    %v3564 = vshrl.u32 %v3562, 16
    %v3565 = vand.u32 %v3561, 65535
    %v3566 = vshrl.u32 %v3561, 16
    %v3567 = vmul.u32 %v3563, %v3565
    %v3568 = vmul.u32 %v3563, %v3566
    %v3569 = vmul.u32 %v3564, %v3565
    %v3570 = vmul.u32 %v3564, %v3566
    %v3571 = vshll.u32 %v3568, 16
    %v3572 = vshrl.u32 %v3568, 16
    %v3573 = vshll.u32 %v3569, 16
    %v3574 = vshrl.u32 %v3569, 16
    %vm3575 = vc.u32 %v3567, %v3571
    %v3576 = vsel %vm3575, 1, 0
    %v3577 = vadd.s32 %v3567, %v3571
    %v3578 = vadd.s32 %v3570, %v3576
    %vm3579 = vc.u32 %v3577, %v3573
    %v3580 = vsel %vm3579, 1, 0
    %v3581 = vadd.s32 %v3577, %v3573
    %v3582 = vadd.s32 %v3578, %v3580
    %v3583 = vadd.s32 %v3582, %v3572
    %v3584 = vadd.s32 %v3583, %v3574
    %v3585 = vand.u32 %v3562, 65535
    %v3586 = vshrl.u32 %v3562, 16
    %v3587 = vand.u32 %v3557, 65535
    %v3588 = vshrl.u32 %v3557, 16
    %v3589 = vmul.u32 %v3585, %v3587
    %v3590 = vmul.u32 %v3585, %v3588
    %v3591 = vmul.u32 %v3586, %v3587
    %v3592 = vmul.u32 %v3586, %v3588
    %v3593 = vshll.u32 %v3590, 16
    %v3594 = vshrl.u32 %v3590, 16
    %v3595 = vshll.u32 %v3591, 16
    %v3596 = vshrl.u32 %v3591, 16
    %vm3597 = vc.u32 %v3589, %v3593
    %v3598 = vsel %vm3597, 1, 0
    %v3599 = vadd.s32 %v3589, %v3593
    %v3600 = vadd.s32 %v3592, %v3598
    %vm3601 = vc.u32 %v3599, %v3595
    %v3602 = vsel %vm3601, 1, 0
    %v3603 = vadd.s32 %v3599, %v3595
    %v3604 = vadd.s32 %v3600, %v3602
    %v3605 = vadd.s32 %v3604, %v3594
    %v3606 = vadd.s32 %v3605, %v3596
    %v3607 = vmul.u32 %v3562, %v3553
    %v3608 = vadd.s32 %v3584, %v3603
    %vm3609 = vc.u32 %v3584, %v3603
    %v3610 = vadd.s32 %v3606, 1
    %v3611 = vsel %vm3609, %v3610, %v3606
    %v3612 = vadd.s32 %v3607, %v3611
    %v3613 = vadd.s32 %v3612, 536870912
    %v3614 = vshrl.u32 %v3613, 30
    %v3615 = vshll.u32 %v3614, 30
    %v3616 = vsub.s32 %v3612, %v3615
    %vm3617 = vcmp.lt.s32.totalorder %v3616, 0
    %v3618 = vsub.s32 0, %v3616
    %v3619 = vsel %vm3617, %v3618, %v3616
    %v3620 = vclz %v3619
    %v3621 = vsub.s32 %v3620, 2
    %vm3622 = vcmp.gt.s32.totalorder 0, %v3621
    %v3623 = vsel %vm3622, 0, %v3621
    %v3624 = vsub.s32 32, %v3623
    %v3625 = vshll.u32 %v3616, %v3623
    %v3626 = vshrl.u32 %v3608, %v3624
    %v3627 = vor.u32 %v3625, %v3626
    %v3628 = vsub.s32 4294967266, %v3623
    %v3629 = vadd.s32 %v3628, 127
    %v3630 = vshll.u32 %v3629, 23
    %v3631 = vor.u32 4788187, %v3630
    %v3632 = vand.u32 2147483647, %v3631
    %v3634 = vcvt.s32.f32 %v3627
    %v3635 = vmul.f32 %v3634, %v3632
    %v3636 = vxor.u32 %v3635, 2147483648
    %v3637 = vsel %vm3516, %v3636, %v3635
    %v3638 = vsub.s32 4, %v3614
    %v3639 = vsel %vm3516, %v3638, %v3614
    %v3640 = vsel %vm3515, %v305, %v3637
    %v3641 = vsel %vm3515, 0, %v3639
    %v3642 = vmul.f32 %v3640, %v3640
    %v3643 = vmul.f32 %v3642, -0.001358992
    %v3644 = vadd.f32 %v3643, 0.041655596
    %v3645 = vmul.f32 %v3642, %v3644
    %v3646 = vadd.f32 %v3645, -0.4999988
    %v3647 = vmul.f32 %v3642, %v3646
    %v3648 = vadd.f32 1.0, %v3647
    %v3649 = vmul.f32 %v3640, %v3640
    %v3650 = vmul.f32 %v3649, -0.00019511016
    %v3651 = vadd.f32 %v3650, 0.008332121
    %v3652 = vmul.f32 %v3649, %v3651
    %v3653 = vadd.f32 %v3652, -0.16666654
    %v3654 = vmul.f32 %v3649, %v3653
    %v3655 = vadd.f32 %v3654, 1.0
    %v3656 = vmul.f32 %v3655, %v3640
    %vm3657 = vweird.f32 %v305
    %v3658 = vadd.s32 %v3641, 3
    %v3659 = vand.u32 %v3658, 3
    %vm3660 = vcmp.lt.s32.totalorder %v3659, 2
    %vm3661 = vcmp.eq.s32.totalorder %v3659, 0
    %v3662 = vxor.u32 %v3656, 2147483648
    %v3663 = vsel %vm3661, %v3648, %v3662
    %vm3664 = vcmp.eq.s32.totalorder %v3659, 2
    %v3665 = vxor.u32 %v3648, 2147483648
    %v3666 = vsel %vm3664, %v3665, %v3656
    %v3667 = vsel %vm3660, %v3663, %v3666
    %v3668 = vsel %vm3657, nan, %v3667
    %v3669 = vand.u32 2147483647, %v307
    %vm3670 = vcmp.le.f32.partialorder %v3669, 0.7853982
    %vm3671 = vcmp.lt.s32.totalorder %v307, 0
    %v3672 = vand.u32 %v307, 2139095040
    %v3673 = vshrl.u32 %v3672, 23
    %v3674 = vsub.s32 %v3673, 127
    %v3675 = vand.u32 2147483647, %v307
    %v3676 = vand.u32 %v3675, 8388607
    %v3677 = vor.u32 %v3676, 8388608
    %v3678 = vsub.s32 0, %v3677
    %v3679 = vadd.s32 %v3674, 1
    %vm3680 = vcmp.gt.s32.totalorder %v3679, 0
    %v3681 = vsel %vm3680, %v3679, 0
    %v3682 = vshrl.u32 %v3681, 5
    %v3683 = vand.u32 %v3681, 31
    %v3684 = vsub.s32 32, %v3683
    %v3685 = vshrl.u32 683565275, %v3684
    %v3686 = vshll.u32 683565275, %v3683
    %v3687 = vshrl.u32 2475754826, %v3684
    %v3688 = vor.u32 %v3686, %v3687
    %v3689 = vshll.u32 2475754826, %v3683
    %v3690 = vshrl.u32 2131351028, %v3684
    %v3691 = vor.u32 %v3689, %v3690
    %v3692 = vshll.u32 2131351028, %v3683
    %v3693 = vshrl.u32 2102212464, %v3684
    %v3694 = vor.u32 %v3692, %v3693
    %v3695 = vshll.u32 2102212464, %v3683
    %v3696 = vshrl.u32 920167782, %v3684
    %v3697 = vor.u32 %v3695, %v3696
    %v3698 = vshll.u32 920167782, %v3683
    %v3699 = vshrl.u32 1326507024, %v3684
    %v3700 = vor.u32 %v3698, %v3699
    %vm3701 = vcmp.lt.s32.totalorder %v3682, 1
    %vm3702 = vcmp.lt.s32.totalorder %v3682, 2
    %vm3703 = vcmp.lt.s32.totalorder %v3682, 3
    %vm3704 = vcmp.lt.s32.totalorder %v3682, 4
    %v3705 = vsel %vm3701, %v3685, %v3688
    %v3706 = vsel %vm3704, %v3694, 2102212464
    %v3707 = vsel %vm3703, %v3691, %v3706
    %v3708 = vsel %vm3702, %v3705, %v3707
    %v3709 = vsel %vm3701, %v3688, %v3691
    %v3710 = vsel %vm3704, %v3697, 920167782
    %v3711 = vsel %vm3703, %v3694, %v3710
    %v3712 = vsel %vm3702, %v3709, %v3711
    %v3713 = vsel %vm3701, %v3691, %v3694
    %v3714 = vsel %vm3704, %v3700, 1326507024
    %v3715 = vsel %vm3703, %v3697, %v3714
    %v3716 = vsel %vm3702, %v3713, %v3715
    %v3717 = vshll.u32 %v3677, 8
    %v3718 = vand.u32 %v3717, 65535
    %v3719 = vshrl.u32 %v3717, 16
    %v3720 = vand.u32 %v3716, 65535
    %v3721 = vshrl.u32 %v3716, 16
    %v3722 = vmul.u32 %v3718, %v3720
    %v3723 = vmul.u32 %v3718, %v3721
    %v3724 = vmul.u32 %v3719, %v3720
    %v3725 = vmul.u32 %v3719, %v3721
    %v3726 = vshll.u32 %v3723, 16
    %v3727 = vshrl.u32 %v3723, 16
    %v3728 = vshll.u32 %v3724, 16
    %v3729 = vshrl.u32 %v3724, 16
    %vm3730 = vc.u32 %v3722, %v3726
    %v3731 = vsel %vm3730, 1, 0
    %v3732 = vadd.s32 %v3722, %v3726
    %v3733 = vadd.s32 %v3725, %v3731
    %vm3734 = vc.u32 %v3732, %v3728
    %v3735 = vsel %vm3734, 1, 0
    %v3736 = vadd.s32 %v3732, %v3728
    %v3737 = vadd.s32 %v3733, %v3735
    %v3738 = vadd.s32 %v3737, %v3727
    %v3739 = vadd.s32 %v3738, %v3729
    %v3740 = vand.u32 %v3717, 65535
    %v3741 = vshrl.u32 %v3717, 16
    %v3742 = vand.u32 %v3712, 65535
    %v3743 = vshrl.u32 %v3712, 16
    %v3744 = vmul.u32 %v3740, %v3742
    %v3745 = vmul.u32 %v3740, %v3743
    %v3746 = vmul.u32 %v3741, %v3742
    %v3747 = vmul.u32 %v3741, %v3743
    %v3748 = vshll.u32 %v3745, 16
    %v3749 = vshrl.u32 %v3745, 16
    %v3750 = vshll.u32 %v3746, 16
    %v3751 = vshrl.u32 %v3746, 16
    %vm3752 = vc.u32 %v3744, %v3748
    %v3753 = vsel %vm3752, 1, 0
    %v3754 = vadd.s32 %v3744, %v3748
    %v3755 = vadd.s32 %v3747, %v3753
    %vm3756 = vc.u32 %v3754, %v3750
    %v3757 = vsel %vm3756, 1, 0
    %v3758 = vadd.s32 %v3754, %v3750
    %v3759 = vadd.s32 %v3755, %v3757
    %v3760 = vadd.s32 %v3759, %v3749
    %v3761 = vadd.s32 %v3760, %v3751
    %v3762 = vmul.u32 %v3717, %v3708
    %v3763 = vadd.s32 %v3739, %v3758
    %vm3764 = vc.u32 %v3739, %v3758
    %v3765 = vadd.s32 %v3761, 1
    %v3766 = vsel %vm3764, %v3765, %v3761
    %v3767 = vadd.s32 %v3762, %v3766
    %v3768 = vadd.s32 %v3767, 536870912
    %v3769 = vshrl.u32 %v3768, 30
    %v3770 = vshll.u32 %v3769, 30
    %v3771 = vsub.s32 %v3767, %v3770
    %vm3772 = vcmp.lt.s32.totalorder %v3771, 0
    %v3773 = vsub.s32 0, %v3771
    %v3774 = vsel %vm3772, %v3773, %v3771
    %v3775 = vclz %v3774
    %v3776 = vsub.s32 %v3775, 2
    %vm3777 = vcmp.gt.s32.totalorder 0, %v3776
    %v3778 = vsel %vm3777, 0, %v3776
    %v3779 = vsub.s32 32, %v3778
    %v3780 = vshll.u32 %v3771, %v3778
    %v3781 = vshrl.u32 %v3763, %v3779
    %v3782 = vor.u32 %v3780, %v3781
    %v3783 = vsub.s32 4294967266, %v3778
    %v3784 = vadd.s32 %v3783, 127
    %v3785 = vshll.u32 %v3784, 23
    %v3786 = vor.u32 4788187, %v3785
    %v3787 = vand.u32 2147483647, %v3786
    %v3789 = vcvt.s32.f32 %v3782
    %v3790 = vmul.f32 %v3789, %v3787
    %v3791 = vxor.u32 %v3790, 2147483648
    %v3792 = vsel %vm3671, %v3791, %v3790
    %v3793 = vsub.s32 4, %v3769
    %v3794 = vsel %vm3671, %v3793, %v3769
    %v3795 = vsel %vm3670, %v307, %v3792
    %v3796 = vsel %vm3670, 0, %v3794
    %v3797 = vmul.f32 %v3795, %v3795
    %v3798 = vmul.f32 %v3797, -0.001358992
    %v3799 = vadd.f32 %v3798, 0.041655596
    %v3800 = vmul.f32 %v3797, %v3799
    %v3801 = vadd.f32 %v3800, -0.4999988
    %v3802 = vmul.f32 %v3797, %v3801
    %v3803 = vadd.f32 1.0, %v3802
    %v3804 = vmul.f32 %v3795, %v3795
    %v3805 = vmul.f32 %v3804, -0.00019511016
    %v3806 = vadd.f32 %v3805, 0.008332121
    %v3807 = vmul.f32 %v3804, %v3806
    %v3808 = vadd.f32 %v3807, -0.16666654
    %v3809 = vmul.f32 %v3804, %v3808
    %v3810 = vadd.f32 %v3809, 1.0
    %v3811 = vmul.f32 %v3810, %v3795
    %vm3812 = vweird.f32 %v307
    %v3813 = vadd.s32 %v3796, 3
    %v3814 = vand.u32 %v3813, 3
    %vm3815 = vcmp.lt.s32.totalorder %v3814, 2
    %vm3816 = vcmp.eq.s32.totalorder %v3814, 0
    %v3817 = vxor.u32 %v3811, 2147483648
    %v3818 = vsel %vm3816, %v3803, %v3817
    %vm3819 = vcmp.eq.s32.totalorder %v3814, 2
    %v3820 = vxor.u32 %v3803, 2147483648
    %v3821 = vsel %vm3819, %v3820, %v3811
    %v3822 = vsel %vm3815, %v3818, %v3821
    %v3823 = vsel %vm3812, nan, %v3822
    %v3824 = vand.u32 2147483647, %v310
    %vm3825 = vcmp.le.f32.partialorder %v3824, 0.7853982
    %vm3826 = vcmp.lt.s32.totalorder %v310, 0
    %v3827 = vand.u32 %v310, 2139095040
    %v3828 = vshrl.u32 %v3827, 23
    %v3829 = vsub.s32 %v3828, 127
    %v3830 = vand.u32 2147483647, %v310
    %v3831 = vand.u32 %v3830, 8388607
    %v3832 = vor.u32 %v3831, 8388608
    %v3833 = vsub.s32 0, %v3832
    %v3834 = vadd.s32 %v3829, 1
    %vm3835 = vcmp.gt.s32.totalorder %v3834, 0
    %v3836 = vsel %vm3835, %v3834, 0
    %v3837 = vshrl.u32 %v3836, 5
    %v3838 = vand.u32 %v3836, 31
    %v3839 = vsub.s32 32, %v3838
    %v3840 = vshrl.u32 683565275, %v3839
    %v3841 = vshll.u32 683565275, %v3838
    %v3842 = vshrl.u32 2475754826, %v3839
    %v3843 = vor.u32 %v3841, %v3842
    %v3844 = vshll.u32 2475754826, %v3838
    %v3845 = vshrl.u32 2131351028, %v3839
    %v3846 = vor.u32 %v3844, %v3845
    %v3847 = vshll.u32 2131351028, %v3838
    %v3848 = vshrl.u32 2102212464, %v3839
    %v3849 = vor.u32 %v3847, %v3848
    %v3850 = vshll.u32 2102212464, %v3838
    %v3851 = vshrl.u32 920167782, %v3839
    %v3852 = vor.u32 %v3850, %v3851
    %v3853 = vshll.u32 920167782, %v3838
    %v3854 = vshrl.u32 1326507024, %v3839
    %v3855 = vor.u32 %v3853, %v3854
    %vm3856 = vcmp.lt.s32.totalorder %v3837, 1
    %vm3857 = vcmp.lt.s32.totalorder %v3837, 2
    %vm3858 = vcmp.lt.s32.totalorder %v3837, 3
    %vm3859 = vcmp.lt.s32.totalorder %v3837, 4
    %v3860 = vsel %vm3856, %v3840, %v3843
    %v3861 = vsel %vm3859, %v3849, 2102212464
    %v3862 = vsel %vm3858, %v3846, %v3861
    %v3863 = vsel %vm3857, %v3860, %v3862
    %v3864 = vsel %vm3856, %v3843, %v3846
    %v3865 = vsel %vm3859, %v3852, 920167782
    %v3866 = vsel %vm3858, %v3849, %v3865
    %v3867 = vsel %vm3857, %v3864, %v3866
    %v3868 = vsel %vm3856, %v3846, %v3849
    %v3869 = vsel %vm3859, %v3855, 1326507024
    %v3870 = vsel %vm3858, %v3852, %v3869
    %v3871 = vsel %vm3857, %v3868, %v3870
    %v3872 = vshll.u32 %v3832, 8
    %v3873 = vand.u32 %v3872, 65535
    %v3874 = vshrl.u32 %v3872, 16
    %v3875 = vand.u32 %v3871, 65535
    %v3876 = vshrl.u32 %v3871, 16
    %v3877 = vmul.u32 %v3873, %v3875
    %v3878 = vmul.u32 %v3873, %v3876
    %v3879 = vmul.u32 %v3874, %v3875
    %v3880 = vmul.u32 %v3874, %v3876
    %v3881 = vshll.u32 %v3878, 16
    %v3882 = vshrl.u32 %v3878, 16
    %v3883 = vshll.u32 %v3879, 16
    %v3884 = vshrl.u32 %v3879, 16
    %vm3885 = vc.u32 %v3877, %v3881
    %v3886 = vsel %vm3885, 1, 0
    %v3887 = vadd.s32 %v3877, %v3881
    %v3888 = vadd.s32 %v3880, %v3886
    %vm3889 = vc.u32 %v3887, %v3883
    %v3890 = vsel %vm3889, 1, 0
    %v3891 = vadd.s32 %v3887, %v3883
    %v3892 = vadd.s32 %v3888, %v3890
    %v3893 = vadd.s32 %v3892, %v3882
    %v3894 = vadd.s32 %v3893, %v3884
    %v3895 = vand.u32 %v3872, 65535
    %v3896 = vshrl.u32 %v3872, 16
    %v3897 = vand.u32 %v3867, 65535
    %v3898 = vshrl.u32 %v3867, 16
    %v3899 = vmul.u32 %v3895, %v3897
    %v3900 = vmul.u32 %v3895, %v3898
    %v3901 = vmul.u32 %v3896, %v3897
    %v3902 = vmul.u32 %v3896, %v3898
    %v3903 = vshll.u32 %v3900, 16
    %v3904 = vshrl.u32 %v3900, 16
    %v3905 = vshll.u32 %v3901, 16
    %v3906 = vshrl.u32 %v3901, 16
    %vm3907 = vc.u32 %v3899, %v3903
    %v3908 = vsel %vm3907, 1, 0
    %v3909 = vadd.s32 %v3899, %v3903
    %v3910 = vadd.s32 %v3902, %v3908
    %vm3911 = vc.u32 %v3909, %v3905
    %v3912 = vsel %vm3911, 1, 0
    %v3913 = vadd.s32 %v3909, %v3905
    %v3914 = vadd.s32 %v3910, %v3912
    %v3915 = vadd.s32 %v3914, %v3904
    %v3916 = vadd.s32 %v3915, %v3906
    %v3917 = vmul.u32 %v3872, %v3863
    %v3918 = vadd.s32 %v3894, %v3913
    %vm3919 = vc.u32 %v3894, %v3913
    %v3920 = vadd.s32 %v3916, 1
    %v3921 = vsel %vm3919, %v3920, %v3916
    %v3922 = vadd.s32 %v3917, %v3921
    %v3923 = vadd.s32 %v3922, 536870912
    %v3924 = vshrl.u32 %v3923, 30
    %v3925 = vshll.u32 %v3924, 30
    %v3926 = vsub.s32 %v3922, %v3925
    %vm3927 = vcmp.lt.s32.totalorder %v3926, 0
    %v3928 = vsub.s32 0, %v3926
    %v3929 = vsel %vm3927, %v3928, %v3926
    %v3930 = vclz %v3929
    %v3931 = vsub.s32 %v3930, 2
    %vm3932 = vcmp.gt.s32.totalorder 0, %v3931
    %v3933 = vsel %vm3932, 0, %v3931
    %v3934 = vsub.s32 32, %v3933
    %v3935 = vshll.u32 %v3926, %v3933
    %v3936 = vshrl.u32 %v3918, %v3934
    %v3937 = vor.u32 %v3935, %v3936
    %v3938 = vsub.s32 4294967266, %v3933
    %v3939 = vadd.s32 %v3938, 127
    %v3940 = vshll.u32 %v3939, 23
    %v3941 = vor.u32 4788187, %v3940
    %v3942 = vand.u32 2147483647, %v3941
    %v3944 = vcvt.s32.f32 %v3937
    %v3945 = vmul.f32 %v3944, %v3942
    %v3946 = vxor.u32 %v3945, 2147483648
    %v3947 = vsel %vm3826, %v3946, %v3945
    %v3948 = vsub.s32 4, %v3924
    %v3949 = vsel %vm3826, %v3948, %v3924
    %v3950 = vsel %vm3825, %v310, %v3947
    %v3951 = vsel %vm3825, 0, %v3949
    %v3952 = vmul.f32 %v3950, %v3950
    %v3953 = vmul.f32 %v3952, -0.001358992
    %v3954 = vadd.f32 %v3953, 0.041655596
    %v3955 = vmul.f32 %v3952, %v3954
    %v3956 = vadd.f32 %v3955, -0.4999988
    %v3957 = vmul.f32 %v3952, %v3956
    %v3958 = vadd.f32 1.0, %v3957
    %v3959 = vmul.f32 %v3950, %v3950
    %v3960 = vmul.f32 %v3959, -0.00019511016
    %v3961 = vadd.f32 %v3960, 0.008332121
    %v3962 = vmul.f32 %v3959, %v3961
    %v3963 = vadd.f32 %v3962, -0.16666654
    %v3964 = vmul.f32 %v3959, %v3963
    %v3965 = vadd.f32 %v3964, 1.0
    %v3966 = vmul.f32 %v3965, %v3950
    %vm3967 = vweird.f32 %v310
    %v3968 = vadd.s32 %v3951, 3
    %v3969 = vand.u32 %v3968, 3
    %vm3970 = vcmp.lt.s32.totalorder %v3969, 2
    %vm3971 = vcmp.eq.s32.totalorder %v3969, 0
    %v3972 = vxor.u32 %v3966, 2147483648
    %v3973 = vsel %vm3971, %v3958, %v3972
    %vm3974 = vcmp.eq.s32.totalorder %v3969, 2
    %v3975 = vxor.u32 %v3958, 2147483648
    %v3976 = vsel %vm3974, %v3975, %v3966
    %v3977 = vsel %vm3970, %v3973, %v3976
    %v3978 = vsel %vm3967, nan, %v3977
    %v3979 = vand.u32 2147483647, %v312
    %vm3980 = vcmp.le.f32.partialorder %v3979, 0.7853982
    %vm3981 = vcmp.lt.s32.totalorder %v312, 0
    %v3982 = vand.u32 %v312, 2139095040
    %v3983 = vshrl.u32 %v3982, 23
    %v3984 = vsub.s32 %v3983, 127
    %v3985 = vand.u32 2147483647, %v312
    %v3986 = vand.u32 %v3985, 8388607
    %v3987 = vor.u32 %v3986, 8388608
    %v3988 = vsub.s32 0, %v3987
    %v3989 = vadd.s32 %v3984, 1
    %vm3990 = vcmp.gt.s32.totalorder %v3989, 0
    %v3991 = vsel %vm3990, %v3989, 0
    %v3992 = vshrl.u32 %v3991, 5
    %v3993 = vand.u32 %v3991, 31
    %v3994 = vsub.s32 32, %v3993
    %v3995 = vshrl.u32 683565275, %v3994
    %v3996 = vshll.u32 683565275, %v3993
    %v3997 = vshrl.u32 2475754826, %v3994
    %v3998 = vor.u32 %v3996, %v3997
    %v3999 = vshll.u32 2475754826, %v3993
    %v4000 = vshrl.u32 2131351028, %v3994
    %v4001 = vor.u32 %v3999, %v4000
    %v4002 = vshll.u32 2131351028, %v3993
    %v4003 = vshrl.u32 2102212464, %v3994
    %v4004 = vor.u32 %v4002, %v4003
    %v4005 = vshll.u32 2102212464, %v3993
    %v4006 = vshrl.u32 920167782, %v3994
    %v4007 = vor.u32 %v4005, %v4006
    %v4008 = vshll.u32 920167782, %v3993
    %v4009 = vshrl.u32 1326507024, %v3994
    %v4010 = vor.u32 %v4008, %v4009
    %vm4011 = vcmp.lt.s32.totalorder %v3992, 1
    %vm4012 = vcmp.lt.s32.totalorder %v3992, 2
    %vm4013 = vcmp.lt.s32.totalorder %v3992, 3
    %vm4014 = vcmp.lt.s32.totalorder %v3992, 4
    %v4015 = vsel %vm4011, %v3995, %v3998
    %v4016 = vsel %vm4014, %v4004, 2102212464
    %v4017 = vsel %vm4013, %v4001, %v4016
    %v4018 = vsel %vm4012, %v4015, %v4017
    %v4019 = vsel %vm4011, %v3998, %v4001
    %v4020 = vsel %vm4014, %v4007, 920167782
    %v4021 = vsel %vm4013, %v4004, %v4020
    %v4022 = vsel %vm4012, %v4019, %v4021
    %v4023 = vsel %vm4011, %v4001, %v4004
    %v4024 = vsel %vm4014, %v4010, 1326507024
    %v4025 = vsel %vm4013, %v4007, %v4024
    %v4026 = vsel %vm4012, %v4023, %v4025
    %v4027 = vshll.u32 %v3987, 8
    %v4028 = vand.u32 %v4027, 65535
    %v4029 = vshrl.u32 %v4027, 16
    %v4030 = vand.u32 %v4026, 65535
    %v4031 = vshrl.u32 %v4026, 16
    %v4032 = vmul.u32 %v4028, %v4030
    %v4033 = vmul.u32 %v4028, %v4031
    %v4034 = vmul.u32 %v4029, %v4030
    %v4035 = vmul.u32 %v4029, %v4031
    %v4036 = vshll.u32 %v4033, 16
    %v4037 = vshrl.u32 %v4033, 16
    %v4038 = vshll.u32 %v4034, 16
    %v4039 = vshrl.u32 %v4034, 16
    %vm4040 = vc.u32 %v4032, %v4036
    %v4041 = vsel %vm4040, 1, 0
    %v4042 = vadd.s32 %v4032, %v4036
    %v4043 = vadd.s32 %v4035, %v4041
    %vm4044 = vc.u32 %v4042, %v4038
    %v4045 = vsel %vm4044, 1, 0
    %v4046 = vadd.s32 %v4042, %v4038
    %v4047 = vadd.s32 %v4043, %v4045
    %v4048 = vadd.s32 %v4047, %v4037
    %v4049 = vadd.s32 %v4048, %v4039
    %v4050 = vand.u32 %v4027, 65535
    %v4051 = vshrl.u32 %v4027, 16
    %v4052 = vand.u32 %v4022, 65535
    %v4053 = vshrl.u32 %v4022, 16
    %v4054 = vmul.u32 %v4050, %v4052
    %v4055 = vmul.u32 %v4050, %v4053
    %v4056 = vmul.u32 %v4051, %v4052
    %v4057 = vmul.u32 %v4051, %v4053
    %v4058 = vshll.u32 %v4055, 16
    %v4059 = vshrl.u32 %v4055, 16
    %v4060 = vshll.u32 %v4056, 16
    %v4061 = vshrl.u32 %v4056, 16
    %vm4062 = vc.u32 %v4054, %v4058
    %v4063 = vsel %vm4062, 1, 0
    %v4064 = vadd.s32 %v4054, %v4058
    %v4065 = vadd.s32 %v4057, %v4063
    %vm4066 = vc.u32 %v4064, %v4060
    %v4067 = vsel %vm4066, 1, 0
    %v4068 = vadd.s32 %v4064, %v4060
    %v4069 = vadd.s32 %v4065, %v4067
    %v4070 = vadd.s32 %v4069, %v4059
    %v4071 = vadd.s32 %v4070, %v4061
    %v4072 = vmul.u32 %v4027, %v4018
    %v4073 = vadd.s32 %v4049, %v4068
    %vm4074 = vc.u32 %v4049, %v4068
    %v4075 = vadd.s32 %v4071, 1
    %v4076 = vsel %vm4074, %v4075, %v4071
    %v4077 = vadd.s32 %v4072, %v4076
    %v4078 = vadd.s32 %v4077, 536870912
    %v4079 = vshrl.u32 %v4078, 30
    %v4080 = vshll.u32 %v4079, 30
    %v4081 = vsub.s32 %v4077, %v4080
    %vm4082 = vcmp.lt.s32.totalorder %v4081, 0
    %v4083 = vsub.s32 0, %v4081
    %v4084 = vsel %vm4082, %v4083, %v4081
    %v4085 = vclz %v4084
    %v4086 = vsub.s32 %v4085, 2
    %vm4087 = vcmp.gt.s32.totalorder 0, %v4086
    %v4088 = vsel %vm4087, 0, %v4086
    %v4089 = vsub.s32 32, %v4088
    %v4090 = vshll.u32 %v4081, %v4088
    %v4091 = vshrl.u32 %v4073, %v4089
    %v4092 = vor.u32 %v4090, %v4091
    %v4093 = vsub.s32 4294967266, %v4088
    %v4094 = vadd.s32 %v4093, 127
    %v4095 = vshll.u32 %v4094, 23
    %v4096 = vor.u32 4788187, %v4095
    %v4097 = vand.u32 2147483647, %v4096
    %v4099 = vcvt.s32.f32 %v4092
    %v4100 = vmul.f32 %v4099, %v4097
    %v4101 = vxor.u32 %v4100, 2147483648
    %v4102 = vsel %vm3981, %v4101, %v4100
    %v4103 = vsub.s32 4, %v4079
    %v4104 = vsel %vm3981, %v4103, %v4079
    %v4105 = vsel %vm3980, %v312, %v4102
    %v4106 = vsel %vm3980, 0, %v4104
    %v4107 = vmul.f32 %v4105, %v4105
    %v4108 = vmul.f32 %v4107, -0.001358992
    %v4109 = vadd.f32 %v4108, 0.041655596
    %v4110 = vmul.f32 %v4107, %v4109
    %v4111 = vadd.f32 %v4110, -0.4999988
    %v4112 = vmul.f32 %v4107, %v4111
    %v4113 = vadd.f32 1.0, %v4112
    %v4114 = vmul.f32 %v4105, %v4105
    %v4115 = vmul.f32 %v4114, -0.00019511016
    %v4116 = vadd.f32 %v4115, 0.008332121
    %v4117 = vmul.f32 %v4114, %v4116
    %v4118 = vadd.f32 %v4117, -0.16666654
    %v4119 = vmul.f32 %v4114, %v4118
    %v4120 = vadd.f32 %v4119, 1.0
    %v4121 = vmul.f32 %v4120, %v4105
    %vm4122 = vweird.f32 %v312
    %v4123 = vadd.s32 %v4106, 3
    %v4124 = vand.u32 %v4123, 3
    %vm4125 = vcmp.lt.s32.totalorder %v4124, 2
    %vm4126 = vcmp.eq.s32.totalorder %v4124, 0
    %v4127 = vxor.u32 %v4121, 2147483648
    %v4128 = vsel %vm4126, %v4113, %v4127
    %vm4129 = vcmp.eq.s32.totalorder %v4124, 2
    %v4130 = vxor.u32 %v4113, 2147483648
    %v4131 = vsel %vm4129, %v4130, %v4121
    %v4132 = vsel %vm4125, %v4128, %v4131
    %v4133 = vsel %vm4122, nan, %v4132
    %v4134 = vand.u32 2147483647, %v315
    %vm4135 = vcmp.le.f32.partialorder %v4134, 0.7853982
    %vm4136 = vcmp.lt.s32.totalorder %v315, 0
    %v4137 = vand.u32 %v315, 2139095040
    %v4138 = vshrl.u32 %v4137, 23
    %v4139 = vsub.s32 %v4138, 127
    %v4140 = vand.u32 2147483647, %v315
    %v4141 = vand.u32 %v4140, 8388607
    %v4142 = vor.u32 %v4141, 8388608
    %v4143 = vsub.s32 0, %v4142
    %v4144 = vadd.s32 %v4139, 1
    %vm4145 = vcmp.gt.s32.totalorder %v4144, 0
    %v4146 = vsel %vm4145, %v4144, 0
    %v4147 = vshrl.u32 %v4146, 5
    %v4148 = vand.u32 %v4146, 31
    %v4149 = vsub.s32 32, %v4148
    %v4150 = vshrl.u32 683565275, %v4149
    %v4151 = vshll.u32 683565275, %v4148
    %v4152 = vshrl.u32 2475754826, %v4149
    %v4153 = vor.u32 %v4151, %v4152
    %v4154 = vshll.u32 2475754826, %v4148
    %v4155 = vshrl.u32 2131351028, %v4149
    %v4156 = vor.u32 %v4154, %v4155
    %v4157 = vshll.u32 2131351028, %v4148
    %v4158 = vshrl.u32 2102212464, %v4149
    %v4159 = vor.u32 %v4157, %v4158
    %v4160 = vshll.u32 2102212464, %v4148
    %v4161 = vshrl.u32 920167782, %v4149
    %v4162 = vor.u32 %v4160, %v4161
    %v4163 = vshll.u32 920167782, %v4148
    %v4164 = vshrl.u32 1326507024, %v4149
    %v4165 = vor.u32 %v4163, %v4164
    %vm4166 = vcmp.lt.s32.totalorder %v4147, 1
    %vm4167 = vcmp.lt.s32.totalorder %v4147, 2
    %vm4168 = vcmp.lt.s32.totalorder %v4147, 3
    %vm4169 = vcmp.lt.s32.totalorder %v4147, 4
    %v4170 = vsel %vm4166, %v4150, %v4153
    %v4171 = vsel %vm4169, %v4159, 2102212464
    %v4172 = vsel %vm4168, %v4156, %v4171
    %v4173 = vsel %vm4167, %v4170, %v4172
    %v4174 = vsel %vm4166, %v4153, %v4156
    %v4175 = vsel %vm4169, %v4162, 920167782
    %v4176 = vsel %vm4168, %v4159, %v4175
    %v4177 = vsel %vm4167, %v4174, %v4176
    %v4178 = vsel %vm4166, %v4156, %v4159
    %v4179 = vsel %vm4169, %v4165, 1326507024
    %v4180 = vsel %vm4168, %v4162, %v4179
    %v4181 = vsel %vm4167, %v4178, %v4180
    %v4182 = vshll.u32 %v4142, 8
    %v4183 = vand.u32 %v4182, 65535
    %v4184 = vshrl.u32 %v4182, 16
    %v4185 = vand.u32 %v4181, 65535
    %v4186 = vshrl.u32 %v4181, 16
    %v4187 = vmul.u32 %v4183, %v4185
    %v4188 = vmul.u32 %v4183, %v4186
    %v4189 = vmul.u32 %v4184, %v4185
    %v4190 = vmul.u32 %v4184, %v4186
    %v4191 = vshll.u32 %v4188, 16
    %v4192 = vshrl.u32 %v4188, 16
    %v4193 = vshll.u32 %v4189, 16
    %v4194 = vshrl.u32 %v4189, 16
    %vm4195 = vc.u32 %v4187, %v4191
    %v4196 = vsel %vm4195, 1, 0
    %v4197 = vadd.s32 %v4187, %v4191
    %v4198 = vadd.s32 %v4190, %v4196
    %vm4199 = vc.u32 %v4197, %v4193
    %v4200 = vsel %vm4199, 1, 0
    %v4201 = vadd.s32 %v4197, %v4193
    %v4202 = vadd.s32 %v4198, %v4200
    %v4203 = vadd.s32 %v4202, %v4192
    %v4204 = vadd.s32 %v4203, %v4194
    %v4205 = vand.u32 %v4182, 65535
    %v4206 = vshrl.u32 %v4182, 16
    %v4207 = vand.u32 %v4177, 65535
    %v4208 = vshrl.u32 %v4177, 16
    %v4209 = vmul.u32 %v4205, %v4207
    %v4210 = vmul.u32 %v4205, %v4208
    %v4211 = vmul.u32 %v4206, %v4207
    %v4212 = vmul.u32 %v4206, %v4208
    %v4213 = vshll.u32 %v4210, 16
    %v4214 = vshrl.u32 %v4210, 16
    %v4215 = vshll.u32 %v4211, 16
    %v4216 = vshrl.u32 %v4211, 16
    %vm4217 = vc.u32 %v4209, %v4213
    %v4218 = vsel %vm4217, 1, 0
    %v4219 = vadd.s32 %v4209, %v4213
    %v4220 = vadd.s32 %v4212, %v4218
    %vm4221 = vc.u32 %v4219, %v4215
    %v4222 = vsel %vm4221, 1, 0
    %v4223 = vadd.s32 %v4219, %v4215
    %v4224 = vadd.s32 %v4220, %v4222
    %v4225 = vadd.s32 %v4224, %v4214
    %v4226 = vadd.s32 %v4225, %v4216
    %v4227 = vmul.u32 %v4182, %v4173
    %v4228 = vadd.s32 %v4204, %v4223
    %vm4229 = vc.u32 %v4204, %v4223
    %v4230 = vadd.s32 %v4226, 1
    %v4231 = vsel %vm4229, %v4230, %v4226
    %v4232 = vadd.s32 %v4227, %v4231
    %v4233 = vadd.s32 %v4232, 536870912
    %v4234 = vshrl.u32 %v4233, 30
    %v4235 = vshll.u32 %v4234, 30
    %v4236 = vsub.s32 %v4232, %v4235
    %vm4237 = vcmp.lt.s32.totalorder %v4236, 0
    %v4238 = vsub.s32 0, %v4236
    %v4239 = vsel %vm4237, %v4238, %v4236
    %v4240 = vclz %v4239
    %v4241 = vsub.s32 %v4240, 2
    %vm4242 = vcmp.gt.s32.totalorder 0, %v4241
    %v4243 = vsel %vm4242, 0, %v4241
    %v4244 = vsub.s32 32, %v4243
    %v4245 = vshll.u32 %v4236, %v4243
    %v4246 = vshrl.u32 %v4228, %v4244
    %v4247 = vor.u32 %v4245, %v4246
    %v4248 = vsub.s32 4294967266, %v4243
    %v4249 = vadd.s32 %v4248, 127
    %v4250 = vshll.u32 %v4249, 23
    %v4251 = vor.u32 4788187, %v4250
    %v4252 = vand.u32 2147483647, %v4251
    %v4254 = vcvt.s32.f32 %v4247
    %v4255 = vmul.f32 %v4254, %v4252
    %v4256 = vxor.u32 %v4255, 2147483648
    %v4257 = vsel %vm4136, %v4256, %v4255
    %v4258 = vsub.s32 4, %v4234
    %v4259 = vsel %vm4136, %v4258, %v4234
    %v4260 = vsel %vm4135, %v315, %v4257
    %v4261 = vsel %vm4135, 0, %v4259
    %v4262 = vmul.f32 %v4260, %v4260
    %v4263 = vmul.f32 %v4262, -0.001358992
    %v4264 = vadd.f32 %v4263, 0.041655596
    %v4265 = vmul.f32 %v4262, %v4264
    %v4266 = vadd.f32 %v4265, -0.4999988
    %v4267 = vmul.f32 %v4262, %v4266
    %v4268 = vadd.f32 1.0, %v4267
    %v4269 = vmul.f32 %v4260, %v4260
    %v4270 = vmul.f32 %v4269, -0.00019511016
    %v4271 = vadd.f32 %v4270, 0.008332121
    %v4272 = vmul.f32 %v4269, %v4271
    %v4273 = vadd.f32 %v4272, -0.16666654
    %v4274 = vmul.f32 %v4269, %v4273
    %v4275 = vadd.f32 %v4274, 1.0
    %v4276 = vmul.f32 %v4275, %v4260
    %vm4277 = vweird.f32 %v315
    %v4278 = vadd.s32 %v4261, 3
    %v4279 = vand.u32 %v4278, 3
    %vm4280 = vcmp.lt.s32.totalorder %v4279, 2
    %vm4281 = vcmp.eq.s32.totalorder %v4279, 0
    %v4282 = vxor.u32 %v4276, 2147483648
    %v4283 = vsel %vm4281, %v4268, %v4282
    %vm4284 = vcmp.eq.s32.totalorder %v4279, 2
    %v4285 = vxor.u32 %v4268, 2147483648
    %v4286 = vsel %vm4284, %v4285, %v4276
    %v4287 = vsel %vm4280, %v4283, %v4286
    %v4288 = vsel %vm4277, nan, %v4287
    %v4289 = vand.u32 2147483647, %v317
    %vm4290 = vcmp.le.f32.partialorder %v4289, 0.7853982
    %vm4291 = vcmp.lt.s32.totalorder %v317, 0
    %v4292 = vand.u32 %v317, 2139095040
    %v4293 = vshrl.u32 %v4292, 23
    %v4294 = vsub.s32 %v4293, 127
    %v4295 = vand.u32 2147483647, %v317
    %v4296 = vand.u32 %v4295, 8388607
    %v4297 = vor.u32 %v4296, 8388608
    %v4298 = vsub.s32 0, %v4297
    %v4299 = vadd.s32 %v4294, 1
    %vm4300 = vcmp.gt.s32.totalorder %v4299, 0
    %v4301 = vsel %vm4300, %v4299, 0
    %v4302 = vshrl.u32 %v4301, 5
    %v4303 = vand.u32 %v4301, 31
    %v4304 = vsub.s32 32, %v4303
    %v4305 = vshrl.u32 683565275, %v4304
    %v4306 = vshll.u32 683565275, %v4303
    %v4307 = vshrl.u32 2475754826, %v4304
    %v4308 = vor.u32 %v4306, %v4307
    %v4309 = vshll.u32 2475754826, %v4303
    %v4310 = vshrl.u32 2131351028, %v4304
    %v4311 = vor.u32 %v4309, %v4310
    %v4312 = vshll.u32 2131351028, %v4303
    %v4313 = vshrl.u32 2102212464, %v4304
    %v4314 = vor.u32 %v4312, %v4313
    %v4315 = vshll.u32 2102212464, %v4303
    %v4316 = vshrl.u32 920167782, %v4304
    %v4317 = vor.u32 %v4315, %v4316
    %v4318 = vshll.u32 920167782, %v4303
    %v4319 = vshrl.u32 1326507024, %v4304
    %v4320 = vor.u32 %v4318, %v4319
    %vm4321 = vcmp.lt.s32.totalorder %v4302, 1
    %vm4322 = vcmp.lt.s32.totalorder %v4302, 2
    %vm4323 = vcmp.lt.s32.totalorder %v4302, 3
    %vm4324 = vcmp.lt.s32.totalorder %v4302, 4
    %v4325 = vsel %vm4321, %v4305, %v4308
    %v4326 = vsel %vm4324, %v4314, 2102212464
    %v4327 = vsel %vm4323, %v4311, %v4326
    %v4328 = vsel %vm4322, %v4325, %v4327
    %v4329 = vsel %vm4321, %v4308, %v4311
    %v4330 = vsel %vm4324, %v4317, 920167782
    %v4331 = vsel %vm4323, %v4314, %v4330
    %v4332 = vsel %vm4322, %v4329, %v4331
    %v4333 = vsel %vm4321, %v4311, %v4314
    %v4334 = vsel %vm4324, %v4320, 1326507024
    %v4335 = vsel %vm4323, %v4317, %v4334
    %v4336 = vsel %vm4322, %v4333, %v4335
    %v4337 = vshll.u32 %v4297, 8
    %v4338 = vand.u32 %v4337, 65535
    %v4339 = vshrl.u32 %v4337, 16
    %v4340 = vand.u32 %v4336, 65535
    %v4341 = vshrl.u32 %v4336, 16
    %v4342 = vmul.u32 %v4338, %v4340
    %v4343 = vmul.u32 %v4338, %v4341
    %v4344 = vmul.u32 %v4339, %v4340
    %v4345 = vmul.u32 %v4339, %v4341
    %v4346 = vshll.u32 %v4343, 16
    %v4347 = vshrl.u32 %v4343, 16
    %v4348 = vshll.u32 %v4344, 16
    %v4349 = vshrl.u32 %v4344, 16
    %vm4350 = vc.u32 %v4342, %v4346
    %v4351 = vsel %vm4350, 1, 0
    %v4352 = vadd.s32 %v4342, %v4346
    %v4353 = vadd.s32 %v4345, %v4351
    %vm4354 = vc.u32 %v4352, %v4348
    %v4355 = vsel %vm4354, 1, 0
    %v4356 = vadd.s32 %v4352, %v4348
    %v4357 = vadd.s32 %v4353, %v4355
    %v4358 = vadd.s32 %v4357, %v4347
    %v4359 = vadd.s32 %v4358, %v4349
    %v4360 = vand.u32 %v4337, 65535
    %v4361 = vshrl.u32 %v4337, 16
    %v4362 = vand.u32 %v4332, 65535
    %v4363 = vshrl.u32 %v4332, 16
    %v4364 = vmul.u32 %v4360, %v4362
    %v4365 = vmul.u32 %v4360, %v4363
    %v4366 = vmul.u32 %v4361, %v4362
    %v4367 = vmul.u32 %v4361, %v4363
    %v4368 = vshll.u32 %v4365, 16
    %v4369 = vshrl.u32 %v4365, 16
    %v4370 = vshll.u32 %v4366, 16
    %v4371 = vshrl.u32 %v4366, 16
    %vm4372 = vc.u32 %v4364, %v4368
    %v4373 = vsel %vm4372, 1, 0
    %v4374 = vadd.s32 %v4364, %v4368
    %v4375 = vadd.s32 %v4367, %v4373
    %vm4376 = vc.u32 %v4374, %v4370
    %v4377 = vsel %vm4376, 1, 0
    %v4378 = vadd.s32 %v4374, %v4370
    %v4379 = vadd.s32 %v4375, %v4377
    %v4380 = vadd.s32 %v4379, %v4369
    %v4381 = vadd.s32 %v4380, %v4371
    %v4382 = vmul.u32 %v4337, %v4328
    %v4383 = vadd.s32 %v4359, %v4378
    %vm4384 = vc.u32 %v4359, %v4378
    %v4385 = vadd.s32 %v4381, 1
    %v4386 = vsel %vm4384, %v4385, %v4381
    %v4387 = vadd.s32 %v4382, %v4386
    %v4388 = vadd.s32 %v4387, 536870912
    %v4389 = vshrl.u32 %v4388, 30
    %v4390 = vshll.u32 %v4389, 30
    %v4391 = vsub.s32 %v4387, %v4390
    %vm4392 = vcmp.lt.s32.totalorder %v4391, 0
    %v4393 = vsub.s32 0, %v4391
    %v4394 = vsel %vm4392, %v4393, %v4391
    %v4395 = vclz %v4394
    %v4396 = vsub.s32 %v4395, 2
    %vm4397 = vcmp.gt.s32.totalorder 0, %v4396
    %v4398 = vsel %vm4397, 0, %v4396
    %v4399 = vsub.s32 32, %v4398
    %v4400 = vshll.u32 %v4391, %v4398
    %v4401 = vshrl.u32 %v4383, %v4399
    %v4402 = vor.u32 %v4400, %v4401
    %v4403 = vsub.s32 4294967266, %v4398
    %v4404 = vadd.s32 %v4403, 127
    %v4405 = vshll.u32 %v4404, 23
    %v4406 = vor.u32 4788187, %v4405
    %v4407 = vand.u32 2147483647, %v4406
    %v4409 = vcvt.s32.f32 %v4402
    %v4410 = vmul.f32 %v4409, %v4407
    %v4411 = vxor.u32 %v4410, 2147483648
    %v4412 = vsel %vm4291, %v4411, %v4410
    %v4413 = vsub.s32 4, %v4389
    %v4414 = vsel %vm4291, %v4413, %v4389
    %v4415 = vsel %vm4290, %v317, %v4412
    %v4416 = vsel %vm4290, 0, %v4414
    %v4417 = vmul.f32 %v4415, %v4415
    %v4418 = vmul.f32 %v4417, -0.001358992
    %v4419 = vadd.f32 %v4418, 0.041655596
    %v4420 = vmul.f32 %v4417, %v4419
    %v4421 = vadd.f32 %v4420, -0.4999988
    %v4422 = vmul.f32 %v4417, %v4421
    %v4423 = vadd.f32 1.0, %v4422
    %v4424 = vmul.f32 %v4415, %v4415
    %v4425 = vmul.f32 %v4424, -0.00019511016
    %v4426 = vadd.f32 %v4425, 0.008332121
    %v4427 = vmul.f32 %v4424, %v4426
    %v4428 = vadd.f32 %v4427, -0.16666654
    %v4429 = vmul.f32 %v4424, %v4428
    %v4430 = vadd.f32 %v4429, 1.0
    %v4431 = vmul.f32 %v4430, %v4415
    %vm4432 = vweird.f32 %v317
    %v4433 = vadd.s32 %v4416, 3
    %v4434 = vand.u32 %v4433, 3
    %vm4435 = vcmp.lt.s32.totalorder %v4434, 2
    %vm4436 = vcmp.eq.s32.totalorder %v4434, 0
    %v4437 = vxor.u32 %v4431, 2147483648
    %v4438 = vsel %vm4436, %v4423, %v4437
    %vm4439 = vcmp.eq.s32.totalorder %v4434, 2
    %v4440 = vxor.u32 %v4423, 2147483648
    %v4441 = vsel %vm4439, %v4440, %v4431
    %v4442 = vsel %vm4435, %v4438, %v4441
    %v4443 = vsel %vm4432, nan, %v4442
    %v4444 = vand.u32 2147483647, %v320
    %vm4445 = vcmp.le.f32.partialorder %v4444, 0.7853982
    %vm4446 = vcmp.lt.s32.totalorder %v320, 0
    %v4447 = vand.u32 %v320, 2139095040
    %v4448 = vshrl.u32 %v4447, 23
    %v4449 = vsub.s32 %v4448, 127
    %v4450 = vand.u32 2147483647, %v320
    %v4451 = vand.u32 %v4450, 8388607
    %v4452 = vor.u32 %v4451, 8388608
    %v4453 = vsub.s32 0, %v4452
    %v4454 = vadd.s32 %v4449, 1
    %vm4455 = vcmp.gt.s32.totalorder %v4454, 0
    %v4456 = vsel %vm4455, %v4454, 0
    %v4457 = vshrl.u32 %v4456, 5
    %v4458 = vand.u32 %v4456, 31
    %v4459 = vsub.s32 32, %v4458
    %v4460 = vshrl.u32 683565275, %v4459
    %v4461 = vshll.u32 683565275, %v4458
    %v4462 = vshrl.u32 2475754826, %v4459
    %v4463 = vor.u32 %v4461, %v4462
    %v4464 = vshll.u32 2475754826, %v4458
    %v4465 = vshrl.u32 2131351028, %v4459
    %v4466 = vor.u32 %v4464, %v4465
    %v4467 = vshll.u32 2131351028, %v4458
    %v4468 = vshrl.u32 2102212464, %v4459
    %v4469 = vor.u32 %v4467, %v4468
    %v4470 = vshll.u32 2102212464, %v4458
    %v4471 = vshrl.u32 920167782, %v4459
    %v4472 = vor.u32 %v4470, %v4471
    %v4473 = vshll.u32 920167782, %v4458
    %v4474 = vshrl.u32 1326507024, %v4459
    %v4475 = vor.u32 %v4473, %v4474
    %vm4476 = vcmp.lt.s32.totalorder %v4457, 1
    %vm4477 = vcmp.lt.s32.totalorder %v4457, 2
    %vm4478 = vcmp.lt.s32.totalorder %v4457, 3
    %vm4479 = vcmp.lt.s32.totalorder %v4457, 4
    %v4480 = vsel %vm4476, %v4460, %v4463
    %v4481 = vsel %vm4479, %v4469, 2102212464
    %v4482 = vsel %vm4478, %v4466, %v4481
    %v4483 = vsel %vm4477, %v4480, %v4482
    %v4484 = vsel %vm4476, %v4463, %v4466
    %v4485 = vsel %vm4479, %v4472, 920167782
    %v4486 = vsel %vm4478, %v4469, %v4485
    %v4487 = vsel %vm4477, %v4484, %v4486
    %v4488 = vsel %vm4476, %v4466, %v4469
    %v4489 = vsel %vm4479, %v4475, 1326507024
    %v4490 = vsel %vm4478, %v4472, %v4489
    %v4491 = vsel %vm4477, %v4488, %v4490
    %v4492 = vshll.u32 %v4452, 8
    %v4493 = vand.u32 %v4492, 65535
    %v4494 = vshrl.u32 %v4492, 16
    %v4495 = vand.u32 %v4491, 65535
    %v4496 = vshrl.u32 %v4491, 16
    %v4497 = vmul.u32 %v4493, %v4495
    %v4498 = vmul.u32 %v4493, %v4496
    %v4499 = vmul.u32 %v4494, %v4495
    %v4500 = vmul.u32 %v4494, %v4496
    %v4501 = vshll.u32 %v4498, 16
    %v4502 = vshrl.u32 %v4498, 16
    %v4503 = vshll.u32 %v4499, 16
    %v4504 = vshrl.u32 %v4499, 16
    %vm4505 = vc.u32 %v4497, %v4501
    %v4506 = vsel %vm4505, 1, 0
    %v4507 = vadd.s32 %v4497, %v4501
    %v4508 = vadd.s32 %v4500, %v4506
    %vm4509 = vc.u32 %v4507, %v4503
    %v4510 = vsel %vm4509, 1, 0
    %v4511 = vadd.s32 %v4507, %v4503
    %v4512 = vadd.s32 %v4508, %v4510
    %v4513 = vadd.s32 %v4512, %v4502
    %v4514 = vadd.s32 %v4513, %v4504
    %v4515 = vand.u32 %v4492, 65535
    %v4516 = vshrl.u32 %v4492, 16
    %v4517 = vand.u32 %v4487, 65535
    %v4518 = vshrl.u32 %v4487, 16
    %v4519 = vmul.u32 %v4515, %v4517
    %v4520 = vmul.u32 %v4515, %v4518
    %v4521 = vmul.u32 %v4516, %v4517
    %v4522 = vmul.u32 %v4516, %v4518
    %v4523 = vshll.u32 %v4520, 16
    %v4524 = vshrl.u32 %v4520, 16
    %v4525 = vshll.u32 %v4521, 16
    %v4526 = vshrl.u32 %v4521, 16
    %vm4527 = vc.u32 %v4519, %v4523
    %v4528 = vsel %vm4527, 1, 0
    %v4529 = vadd.s32 %v4519, %v4523
    %v4530 = vadd.s32 %v4522, %v4528
    %vm4531 = vc.u32 %v4529, %v4525
    %v4532 = vsel %vm4531, 1, 0
    %v4533 = vadd.s32 %v4529, %v4525
    %v4534 = vadd.s32 %v4530, %v4532
    %v4535 = vadd.s32 %v4534, %v4524
    %v4536 = vadd.s32 %v4535, %v4526
    %v4537 = vmul.u32 %v4492, %v4483
    %v4538 = vadd.s32 %v4514, %v4533
    %vm4539 = vc.u32 %v4514, %v4533
    %v4540 = vadd.s32 %v4536, 1
    %v4541 = vsel %vm4539, %v4540, %v4536
    %v4542 = vadd.s32 %v4537, %v4541
    %v4543 = vadd.s32 %v4542, 536870912
    %v4544 = vshrl.u32 %v4543, 30
    %v4545 = vshll.u32 %v4544, 30
    %v4546 = vsub.s32 %v4542, %v4545
    %vm4547 = vcmp.lt.s32.totalorder %v4546, 0
    %v4548 = vsub.s32 0, %v4546
    %v4549 = vsel %vm4547, %v4548, %v4546
    %v4550 = vclz %v4549
    %v4551 = vsub.s32 %v4550, 2
    %vm4552 = vcmp.gt.s32.totalorder 0, %v4551
    %v4553 = vsel %vm4552, 0, %v4551
    %v4554 = vsub.s32 32, %v4553
    %v4555 = vshll.u32 %v4546, %v4553
    %v4556 = vshrl.u32 %v4538, %v4554
    %v4557 = vor.u32 %v4555, %v4556
    %v4558 = vsub.s32 4294967266, %v4553
    %v4559 = vadd.s32 %v4558, 127
    %v4560 = vshll.u32 %v4559, 23
    %v4561 = vor.u32 4788187, %v4560
    %v4562 = vand.u32 2147483647, %v4561
    %v4564 = vcvt.s32.f32 %v4557
    %v4565 = vmul.f32 %v4564, %v4562
    %v4566 = vxor.u32 %v4565, 2147483648
    %v4567 = vsel %vm4446, %v4566, %v4565
    %v4568 = vsub.s32 4, %v4544
    %v4569 = vsel %vm4446, %v4568, %v4544
    %v4570 = vsel %vm4445, %v320, %v4567
    %v4571 = vsel %vm4445, 0, %v4569
    %v4572 = vmul.f32 %v4570, %v4570
    %v4573 = vmul.f32 %v4572, -0.001358992
    %v4574 = vadd.f32 %v4573, 0.041655596
    %v4575 = vmul.f32 %v4572, %v4574
    %v4576 = vadd.f32 %v4575, -0.4999988
    %v4577 = vmul.f32 %v4572, %v4576
    %v4578 = vadd.f32 1.0, %v4577
    %v4579 = vmul.f32 %v4570, %v4570
    %v4580 = vmul.f32 %v4579, -0.00019511016
    %v4581 = vadd.f32 %v4580, 0.008332121
    %v4582 = vmul.f32 %v4579, %v4581
    %v4583 = vadd.f32 %v4582, -0.16666654
    %v4584 = vmul.f32 %v4579, %v4583
    %v4585 = vadd.f32 %v4584, 1.0
    %v4586 = vmul.f32 %v4585, %v4570
    %vm4587 = vweird.f32 %v320
    %v4588 = vadd.s32 %v4571, 3
    %v4589 = vand.u32 %v4588, 3
    %vm4590 = vcmp.lt.s32.totalorder %v4589, 2
    %vm4591 = vcmp.eq.s32.totalorder %v4589, 0
    %v4592 = vxor.u32 %v4586, 2147483648
    %v4593 = vsel %vm4591, %v4578, %v4592
    %vm4594 = vcmp.eq.s32.totalorder %v4589, 2
    %v4595 = vxor.u32 %v4578, 2147483648
    %v4596 = vsel %vm4594, %v4595, %v4586
    %v4597 = vsel %vm4590, %v4593, %v4596
    %v4598 = vsel %vm4587, nan, %v4597
    %v4599 = vand.u32 2147483647, %v322
    %vm4600 = vcmp.le.f32.partialorder %v4599, 0.7853982
    %vm4601 = vcmp.lt.s32.totalorder %v322, 0
    %v4602 = vand.u32 %v322, 2139095040
    %v4603 = vshrl.u32 %v4602, 23
    %v4604 = vsub.s32 %v4603, 127
    %v4605 = vand.u32 2147483647, %v322
    %v4606 = vand.u32 %v4605, 8388607
    %v4607 = vor.u32 %v4606, 8388608
    %v4608 = vsub.s32 0, %v4607
    %v4609 = vadd.s32 %v4604, 1
    %vm4610 = vcmp.gt.s32.totalorder %v4609, 0
    %v4611 = vsel %vm4610, %v4609, 0
    %v4612 = vshrl.u32 %v4611, 5
    %v4613 = vand.u32 %v4611, 31
    %v4614 = vsub.s32 32, %v4613
    %v4615 = vshrl.u32 683565275, %v4614
    %v4616 = vshll.u32 683565275, %v4613
    %v4617 = vshrl.u32 2475754826, %v4614
    %v4618 = vor.u32 %v4616, %v4617
    %v4619 = vshll.u32 2475754826, %v4613
    %v4620 = vshrl.u32 2131351028, %v4614
    %v4621 = vor.u32 %v4619, %v4620
    %v4622 = vshll.u32 2131351028, %v4613
    %v4623 = vshrl.u32 2102212464, %v4614
    %v4624 = vor.u32 %v4622, %v4623
    %v4625 = vshll.u32 2102212464, %v4613
    %v4626 = vshrl.u32 920167782, %v4614
    %v4627 = vor.u32 %v4625, %v4626
    %v4628 = vshll.u32 920167782, %v4613
    %v4629 = vshrl.u32 1326507024, %v4614
    %v4630 = vor.u32 %v4628, %v4629
    %vm4631 = vcmp.lt.s32.totalorder %v4612, 1
    %vm4632 = vcmp.lt.s32.totalorder %v4612, 2
    %vm4633 = vcmp.lt.s32.totalorder %v4612, 3
    %vm4634 = vcmp.lt.s32.totalorder %v4612, 4
    %v4635 = vsel %vm4631, %v4615, %v4618
    %v4636 = vsel %vm4634, %v4624, 2102212464
    %v4637 = vsel %vm4633, %v4621, %v4636
    %v4638 = vsel %vm4632, %v4635, %v4637
    %v4639 = vsel %vm4631, %v4618, %v4621
    %v4640 = vsel %vm4634, %v4627, 920167782
    %v4641 = vsel %vm4633, %v4624, %v4640
    %v4642 = vsel %vm4632, %v4639, %v4641
    %v4643 = vsel %vm4631, %v4621, %v4624
    %v4644 = vsel %vm4634, %v4630, 1326507024
    %v4645 = vsel %vm4633, %v4627, %v4644
    %v4646 = vsel %vm4632, %v4643, %v4645
    %v4647 = vshll.u32 %v4607, 8
    %v4648 = vand.u32 %v4647, 65535
    %v4649 = vshrl.u32 %v4647, 16
    %v4650 = vand.u32 %v4646, 65535
    %v4651 = vshrl.u32 %v4646, 16
    %v4652 = vmul.u32 %v4648, %v4650
    %v4653 = vmul.u32 %v4648, %v4651
    %v4654 = vmul.u32 %v4649, %v4650
    %v4655 = vmul.u32 %v4649, %v4651
    %v4656 = vshll.u32 %v4653, 16
    %v4657 = vshrl.u32 %v4653, 16
    %v4658 = vshll.u32 %v4654, 16
    %v4659 = vshrl.u32 %v4654, 16
    %vm4660 = vc.u32 %v4652, %v4656
    %v4661 = vsel %vm4660, 1, 0
    %v4662 = vadd.s32 %v4652, %v4656
    %v4663 = vadd.s32 %v4655, %v4661
    %vm4664 = vc.u32 %v4662, %v4658
    %v4665 = vsel %vm4664, 1, 0
    %v4666 = vadd.s32 %v4662, %v4658
    %v4667 = vadd.s32 %v4663, %v4665
    %v4668 = vadd.s32 %v4667, %v4657
    %v4669 = vadd.s32 %v4668, %v4659
    %v4670 = vand.u32 %v4647, 65535
    %v4671 = vshrl.u32 %v4647, 16
    %v4672 = vand.u32 %v4642, 65535
    %v4673 = vshrl.u32 %v4642, 16
    %v4674 = vmul.u32 %v4670, %v4672
    %v4675 = vmul.u32 %v4670, %v4673
    %v4676 = vmul.u32 %v4671, %v4672
    %v4677 = vmul.u32 %v4671, %v4673
    %v4678 = vshll.u32 %v4675, 16
    %v4679 = vshrl.u32 %v4675, 16
    %v4680 = vshll.u32 %v4676, 16
    %v4681 = vshrl.u32 %v4676, 16
    %vm4682 = vc.u32 %v4674, %v4678
    %v4683 = vsel %vm4682, 1, 0
    %v4684 = vadd.s32 %v4674, %v4678
    %v4685 = vadd.s32 %v4677, %v4683
    %vm4686 = vc.u32 %v4684, %v4680
    %v4687 = vsel %vm4686, 1, 0
    %v4688 = vadd.s32 %v4684, %v4680
    %v4689 = vadd.s32 %v4685, %v4687
    %v4690 = vadd.s32 %v4689, %v4679
    %v4691 = vadd.s32 %v4690, %v4681
    %v4692 = vmul.u32 %v4647, %v4638
    %v4693 = vadd.s32 %v4669, %v4688
    %vm4694 = vc.u32 %v4669, %v4688
    %v4695 = vadd.s32 %v4691, 1
    %v4696 = vsel %vm4694, %v4695, %v4691
    %v4697 = vadd.s32 %v4692, %v4696
    %v4698 = vadd.s32 %v4697, 536870912
    %v4699 = vshrl.u32 %v4698, 30
    %v4700 = vshll.u32 %v4699, 30
    %v4701 = vsub.s32 %v4697, %v4700
    %vm4702 = vcmp.lt.s32.totalorder %v4701, 0
    %v4703 = vsub.s32 0, %v4701
    %v4704 = vsel %vm4702, %v4703, %v4701
    %v4705 = vclz %v4704
    %v4706 = vsub.s32 %v4705, 2
    %vm4707 = vcmp.gt.s32.totalorder 0, %v4706
    %v4708 = vsel %vm4707, 0, %v4706
    %v4709 = vsub.s32 32, %v4708
    %v4710 = vshll.u32 %v4701, %v4708
    %v4711 = vshrl.u32 %v4693, %v4709
    %v4712 = vor.u32 %v4710, %v4711
    %v4713 = vsub.s32 4294967266, %v4708
    %v4714 = vadd.s32 %v4713, 127
    %v4715 = vshll.u32 %v4714, 23
    %v4716 = vor.u32 4788187, %v4715
    %v4717 = vand.u32 2147483647, %v4716
    %v4719 = vcvt.s32.f32 %v4712
    %v4720 = vmul.f32 %v4719, %v4717
    %v4721 = vxor.u32 %v4720, 2147483648
    %v4722 = vsel %vm4601, %v4721, %v4720
    %v4723 = vsub.s32 4, %v4699
    %v4724 = vsel %vm4601, %v4723, %v4699
    %v4725 = vsel %vm4600, %v322, %v4722
    %v4726 = vsel %vm4600, 0, %v4724
    %v4727 = vmul.f32 %v4725, %v4725
    %v4728 = vmul.f32 %v4727, -0.001358992
    %v4729 = vadd.f32 %v4728, 0.041655596
    %v4730 = vmul.f32 %v4727, %v4729
    %v4731 = vadd.f32 %v4730, -0.4999988
    %v4732 = vmul.f32 %v4727, %v4731
    %v4733 = vadd.f32 1.0, %v4732
    %v4734 = vmul.f32 %v4725, %v4725
    %v4735 = vmul.f32 %v4734, -0.00019511016
    %v4736 = vadd.f32 %v4735, 0.008332121
    %v4737 = vmul.f32 %v4734, %v4736
    %v4738 = vadd.f32 %v4737, -0.16666654
    %v4739 = vmul.f32 %v4734, %v4738
    %v4740 = vadd.f32 %v4739, 1.0
    %v4741 = vmul.f32 %v4740, %v4725
    %vm4742 = vweird.f32 %v322
    %v4743 = vadd.s32 %v4726, 3
    %v4744 = vand.u32 %v4743, 3
    %vm4745 = vcmp.lt.s32.totalorder %v4744, 2
    %vm4746 = vcmp.eq.s32.totalorder %v4744, 0
    %v4747 = vxor.u32 %v4741, 2147483648
    %v4748 = vsel %vm4746, %v4733, %v4747
    %vm4749 = vcmp.eq.s32.totalorder %v4744, 2
    %v4750 = vxor.u32 %v4733, 2147483648
    %v4751 = vsel %vm4749, %v4750, %v4741
    %v4752 = vsel %vm4745, %v4748, %v4751
    %v4753 = vsel %vm4742, nan, %v4752
    %v4754 = vand.u32 2147483647, %v325
    %vm4755 = vcmp.le.f32.partialorder %v4754, 0.7853982
    %vm4756 = vcmp.lt.s32.totalorder %v325, 0
    %v4757 = vand.u32 %v325, 2139095040
    %v4758 = vshrl.u32 %v4757, 23
    %v4759 = vsub.s32 %v4758, 127
    %v4760 = vand.u32 2147483647, %v325
    %v4761 = vand.u32 %v4760, 8388607
    %v4762 = vor.u32 %v4761, 8388608
    %v4763 = vsub.s32 0, %v4762
    %v4764 = vadd.s32 %v4759, 1
    %vm4765 = vcmp.gt.s32.totalorder %v4764, 0
    %v4766 = vsel %vm4765, %v4764, 0
    %v4767 = vshrl.u32 %v4766, 5
    %v4768 = vand.u32 %v4766, 31
    %v4769 = vsub.s32 32, %v4768
    %v4770 = vshrl.u32 683565275, %v4769
    %v4771 = vshll.u32 683565275, %v4768
    %v4772 = vshrl.u32 2475754826, %v4769
    %v4773 = vor.u32 %v4771, %v4772
    %v4774 = vshll.u32 2475754826, %v4768
    %v4775 = vshrl.u32 2131351028, %v4769
    %v4776 = vor.u32 %v4774, %v4775
    %v4777 = vshll.u32 2131351028, %v4768
    %v4778 = vshrl.u32 2102212464, %v4769
    %v4779 = vor.u32 %v4777, %v4778
    %v4780 = vshll.u32 2102212464, %v4768
    %v4781 = vshrl.u32 920167782, %v4769
    %v4782 = vor.u32 %v4780, %v4781
    %v4783 = vshll.u32 920167782, %v4768
    %v4784 = vshrl.u32 1326507024, %v4769
    %v4785 = vor.u32 %v4783, %v4784
    %vm4786 = vcmp.lt.s32.totalorder %v4767, 1
    %vm4787 = vcmp.lt.s32.totalorder %v4767, 2
    %vm4788 = vcmp.lt.s32.totalorder %v4767, 3
    %vm4789 = vcmp.lt.s32.totalorder %v4767, 4
    %v4790 = vsel %vm4786, %v4770, %v4773
    %v4791 = vsel %vm4789, %v4779, 2102212464
    %v4792 = vsel %vm4788, %v4776, %v4791
    %v4793 = vsel %vm4787, %v4790, %v4792
    %v4794 = vsel %vm4786, %v4773, %v4776
    %v4795 = vsel %vm4789, %v4782, 920167782
    %v4796 = vsel %vm4788, %v4779, %v4795
    %v4797 = vsel %vm4787, %v4794, %v4796
    %v4798 = vsel %vm4786, %v4776, %v4779
    %v4799 = vsel %vm4789, %v4785, 1326507024
    %v4800 = vsel %vm4788, %v4782, %v4799
    %v4801 = vsel %vm4787, %v4798, %v4800
    %v4802 = vshll.u32 %v4762, 8
    %v4803 = vand.u32 %v4802, 65535
    %v4804 = vshrl.u32 %v4802, 16
    %v4805 = vand.u32 %v4801, 65535
    %v4806 = vshrl.u32 %v4801, 16
    %v4807 = vmul.u32 %v4803, %v4805
    %v4808 = vmul.u32 %v4803, %v4806
    %v4809 = vmul.u32 %v4804, %v4805
    %v4810 = vmul.u32 %v4804, %v4806
    %v4811 = vshll.u32 %v4808, 16
    %v4812 = vshrl.u32 %v4808, 16
    %v4813 = vshll.u32 %v4809, 16
    %v4814 = vshrl.u32 %v4809, 16
    %vm4815 = vc.u32 %v4807, %v4811
    %v4816 = vsel %vm4815, 1, 0
    %v4817 = vadd.s32 %v4807, %v4811
    %v4818 = vadd.s32 %v4810, %v4816
    %vm4819 = vc.u32 %v4817, %v4813
    %v4820 = vsel %vm4819, 1, 0
    %v4821 = vadd.s32 %v4817, %v4813
    %v4822 = vadd.s32 %v4818, %v4820
    %v4823 = vadd.s32 %v4822, %v4812
    %v4824 = vadd.s32 %v4823, %v4814
    %v4825 = vand.u32 %v4802, 65535
    %v4826 = vshrl.u32 %v4802, 16
    %v4827 = vand.u32 %v4797, 65535
    %v4828 = vshrl.u32 %v4797, 16
    %v4829 = vmul.u32 %v4825, %v4827
    %v4830 = vmul.u32 %v4825, %v4828
    %v4831 = vmul.u32 %v4826, %v4827
    %v4832 = vmul.u32 %v4826, %v4828
    %v4833 = vshll.u32 %v4830, 16
    %v4834 = vshrl.u32 %v4830, 16
    %v4835 = vshll.u32 %v4831, 16
    %v4836 = vshrl.u32 %v4831, 16
    %vm4837 = vc.u32 %v4829, %v4833
    %v4838 = vsel %vm4837, 1, 0
    %v4839 = vadd.s32 %v4829, %v4833
    %v4840 = vadd.s32 %v4832, %v4838
    %vm4841 = vc.u32 %v4839, %v4835
    %v4842 = vsel %vm4841, 1, 0
    %v4843 = vadd.s32 %v4839, %v4835
    %v4844 = vadd.s32 %v4840, %v4842
    %v4845 = vadd.s32 %v4844, %v4834
    %v4846 = vadd.s32 %v4845, %v4836
    %v4847 = vmul.u32 %v4802, %v4793
    %v4848 = vadd.s32 %v4824, %v4843
    %vm4849 = vc.u32 %v4824, %v4843
    %v4850 = vadd.s32 %v4846, 1
    %v4851 = vsel %vm4849, %v4850, %v4846
    %v4852 = vadd.s32 %v4847, %v4851
    %v4853 = vadd.s32 %v4852, 536870912
    %v4854 = vshrl.u32 %v4853, 30
    %v4855 = vshll.u32 %v4854, 30
    %v4856 = vsub.s32 %v4852, %v4855
    %vm4857 = vcmp.lt.s32.totalorder %v4856, 0
    %v4858 = vsub.s32 0, %v4856
    %v4859 = vsel %vm4857, %v4858, %v4856
    %v4860 = vclz %v4859
    %v4861 = vsub.s32 %v4860, 2
    %vm4862 = vcmp.gt.s32.totalorder 0, %v4861
    %v4863 = vsel %vm4862, 0, %v4861
    %v4864 = vsub.s32 32, %v4863
    %v4865 = vshll.u32 %v4856, %v4863
    %v4866 = vshrl.u32 %v4848, %v4864
    %v4867 = vor.u32 %v4865, %v4866
    %v4868 = vsub.s32 4294967266, %v4863
    %v4869 = vadd.s32 %v4868, 127
    %v4870 = vshll.u32 %v4869, 23
    %v4871 = vor.u32 4788187, %v4870
    %v4872 = vand.u32 2147483647, %v4871
    %v4874 = vcvt.s32.f32 %v4867
    %v4875 = vmul.f32 %v4874, %v4872
    %v4876 = vxor.u32 %v4875, 2147483648
    %v4877 = vsel %vm4756, %v4876, %v4875
    %v4878 = vsub.s32 4, %v4854
    %v4879 = vsel %vm4756, %v4878, %v4854
    %v4880 = vsel %vm4755, %v325, %v4877
    %v4881 = vsel %vm4755, 0, %v4879
    %v4882 = vmul.f32 %v4880, %v4880
    %v4883 = vmul.f32 %v4882, -0.001358992
    %v4884 = vadd.f32 %v4883, 0.041655596
    %v4885 = vmul.f32 %v4882, %v4884
    %v4886 = vadd.f32 %v4885, -0.4999988
    %v4887 = vmul.f32 %v4882, %v4886
    %v4888 = vadd.f32 1.0, %v4887
    %v4889 = vmul.f32 %v4880, %v4880
    %v4890 = vmul.f32 %v4889, -0.00019511016
    %v4891 = vadd.f32 %v4890, 0.008332121
    %v4892 = vmul.f32 %v4889, %v4891
    %v4893 = vadd.f32 %v4892, -0.16666654
    %v4894 = vmul.f32 %v4889, %v4893
    %v4895 = vadd.f32 %v4894, 1.0
    %v4896 = vmul.f32 %v4895, %v4880
    %vm4897 = vweird.f32 %v325
    %v4898 = vadd.s32 %v4881, 3
    %v4899 = vand.u32 %v4898, 3
    %vm4900 = vcmp.lt.s32.totalorder %v4899, 2
    %vm4901 = vcmp.eq.s32.totalorder %v4899, 0
    %v4902 = vxor.u32 %v4896, 2147483648
    %v4903 = vsel %vm4901, %v4888, %v4902
    %vm4904 = vcmp.eq.s32.totalorder %v4899, 2
    %v4905 = vxor.u32 %v4888, 2147483648
    %v4906 = vsel %vm4904, %v4905, %v4896
    %v4907 = vsel %vm4900, %v4903, %v4906
    %v4908 = vsel %vm4897, nan, %v4907
    %v4909 = vand.u32 2147483647, %v327
    %vm4910 = vcmp.le.f32.partialorder %v4909, 0.7853982
    %vm4911 = vcmp.lt.s32.totalorder %v327, 0
    %v4912 = vand.u32 %v327, 2139095040
    %v4913 = vshrl.u32 %v4912, 23
    %v4914 = vsub.s32 %v4913, 127
    %v4915 = vand.u32 2147483647, %v327
    %v4916 = vand.u32 %v4915, 8388607
    %v4917 = vor.u32 %v4916, 8388608
    %v4918 = vsub.s32 0, %v4917
    %v4919 = vadd.s32 %v4914, 1
    %vm4920 = vcmp.gt.s32.totalorder %v4919, 0
    %v4921 = vsel %vm4920, %v4919, 0
    %v4922 = vshrl.u32 %v4921, 5
    %v4923 = vand.u32 %v4921, 31
    %v4924 = vsub.s32 32, %v4923
    %v4925 = vshrl.u32 683565275, %v4924
    %v4926 = vshll.u32 683565275, %v4923
    %v4927 = vshrl.u32 2475754826, %v4924
    %v4928 = vor.u32 %v4926, %v4927
    %v4929 = vshll.u32 2475754826, %v4923
    %v4930 = vshrl.u32 2131351028, %v4924
    %v4931 = vor.u32 %v4929, %v4930
    %v4932 = vshll.u32 2131351028, %v4923
    %v4933 = vshrl.u32 2102212464, %v4924
    %v4934 = vor.u32 %v4932, %v4933
    %v4935 = vshll.u32 2102212464, %v4923
    %v4936 = vshrl.u32 920167782, %v4924
    %v4937 = vor.u32 %v4935, %v4936
    %v4938 = vshll.u32 920167782, %v4923
    %v4939 = vshrl.u32 1326507024, %v4924
    %v4940 = vor.u32 %v4938, %v4939
    %vm4941 = vcmp.lt.s32.totalorder %v4922, 1
    %vm4942 = vcmp.lt.s32.totalorder %v4922, 2
    %vm4943 = vcmp.lt.s32.totalorder %v4922, 3
    %vm4944 = vcmp.lt.s32.totalorder %v4922, 4
    %v4945 = vsel %vm4941, %v4925, %v4928
    %v4946 = vsel %vm4944, %v4934, 2102212464
    %v4947 = vsel %vm4943, %v4931, %v4946
    %v4948 = vsel %vm4942, %v4945, %v4947
    %v4949 = vsel %vm4941, %v4928, %v4931
    %v4950 = vsel %vm4944, %v4937, 920167782
    %v4951 = vsel %vm4943, %v4934, %v4950
    %v4952 = vsel %vm4942, %v4949, %v4951
    %v4953 = vsel %vm4941, %v4931, %v4934
    %v4954 = vsel %vm4944, %v4940, 1326507024
    %v4955 = vsel %vm4943, %v4937, %v4954
    %v4956 = vsel %vm4942, %v4953, %v4955
    %v4957 = vshll.u32 %v4917, 8
    %v4958 = vand.u32 %v4957, 65535
    %v4959 = vshrl.u32 %v4957, 16
    %v4960 = vand.u32 %v4956, 65535
    %v4961 = vshrl.u32 %v4956, 16
    %v4962 = vmul.u32 %v4958, %v4960
    %v4963 = vmul.u32 %v4958, %v4961
    %v4964 = vmul.u32 %v4959, %v4960
    %v4965 = vmul.u32 %v4959, %v4961
    %v4966 = vshll.u32 %v4963, 16
    %v4967 = vshrl.u32 %v4963, 16
    %v4968 = vshll.u32 %v4964, 16
    %v4969 = vshrl.u32 %v4964, 16
    %vm4970 = vc.u32 %v4962, %v4966
    %v4971 = vsel %vm4970, 1, 0
    %v4972 = vadd.s32 %v4962, %v4966
    %v4973 = vadd.s32 %v4965, %v4971
    %vm4974 = vc.u32 %v4972, %v4968
    %v4975 = vsel %vm4974, 1, 0
    %v4976 = vadd.s32 %v4972, %v4968
    %v4977 = vadd.s32 %v4973, %v4975
    %v4978 = vadd.s32 %v4977, %v4967
    %v4979 = vadd.s32 %v4978, %v4969
    %v4980 = vand.u32 %v4957, 65535
    %v4981 = vshrl.u32 %v4957, 16
    %v4982 = vand.u32 %v4952, 65535
    %v4983 = vshrl.u32 %v4952, 16
    %v4984 = vmul.u32 %v4980, %v4982
    %v4985 = vmul.u32 %v4980, %v4983
    %v4986 = vmul.u32 %v4981, %v4982
    %v4987 = vmul.u32 %v4981, %v4983
    %v4988 = vshll.u32 %v4985, 16
    %v4989 = vshrl.u32 %v4985, 16
    %v4990 = vshll.u32 %v4986, 16
    %v4991 = vshrl.u32 %v4986, 16
    %vm4992 = vc.u32 %v4984, %v4988
    %v4993 = vsel %vm4992, 1, 0
    %v4994 = vadd.s32 %v4984, %v4988
    %v4995 = vadd.s32 %v4987, %v4993
    %vm4996 = vc.u32 %v4994, %v4990
    %v4997 = vsel %vm4996, 1, 0
    %v4998 = vadd.s32 %v4994, %v4990
    %v4999 = vadd.s32 %v4995, %v4997
    %v5000 = vadd.s32 %v4999, %v4989
    %v5001 = vadd.s32 %v5000, %v4991
    %v5002 = vmul.u32 %v4957, %v4948
    %v5003 = vadd.s32 %v4979, %v4998
    %vm5004 = vc.u32 %v4979, %v4998
    %v5005 = vadd.s32 %v5001, 1
    %v5006 = vsel %vm5004, %v5005, %v5001
    %v5007 = vadd.s32 %v5002, %v5006
    %v5008 = vadd.s32 %v5007, 536870912
    %v5009 = vshrl.u32 %v5008, 30
    %v5010 = vshll.u32 %v5009, 30
    %v5011 = vsub.s32 %v5007, %v5010
    %vm5012 = vcmp.lt.s32.totalorder %v5011, 0
    %v5013 = vsub.s32 0, %v5011
    %v5014 = vsel %vm5012, %v5013, %v5011
    %v5015 = vclz %v5014
    %v5016 = vsub.s32 %v5015, 2
    %vm5017 = vcmp.gt.s32.totalorder 0, %v5016
    %v5018 = vsel %vm5017, 0, %v5016
    %v5019 = vsub.s32 32, %v5018
    %v5020 = vshll.u32 %v5011, %v5018
    %v5021 = vshrl.u32 %v5003, %v5019
    %v5022 = vor.u32 %v5020, %v5021
    %v5023 = vsub.s32 4294967266, %v5018
    %v5024 = vadd.s32 %v5023, 127
    %v5025 = vshll.u32 %v5024, 23
    %v5026 = vor.u32 4788187, %v5025
    %v5027 = vand.u32 2147483647, %v5026
    %v5029 = vcvt.s32.f32 %v5022
    %v5030 = vmul.f32 %v5029, %v5027
    %v5031 = vxor.u32 %v5030, 2147483648
    %v5032 = vsel %vm4911, %v5031, %v5030
    %v5033 = vsub.s32 4, %v5009
    %v5034 = vsel %vm4911, %v5033, %v5009
    %v5035 = vsel %vm4910, %v327, %v5032
    %v5036 = vsel %vm4910, 0, %v5034
    %v5037 = vmul.f32 %v5035, %v5035
    %v5038 = vmul.f32 %v5037, -0.001358992
    %v5039 = vadd.f32 %v5038, 0.041655596
    %v5040 = vmul.f32 %v5037, %v5039
    %v5041 = vadd.f32 %v5040, -0.4999988
    %v5042 = vmul.f32 %v5037, %v5041
    %v5043 = vadd.f32 1.0, %v5042
    %v5044 = vmul.f32 %v5035, %v5035
    %v5045 = vmul.f32 %v5044, -0.00019511016
    %v5046 = vadd.f32 %v5045, 0.008332121
    %v5047 = vmul.f32 %v5044, %v5046
    %v5048 = vadd.f32 %v5047, -0.16666654
    %v5049 = vmul.f32 %v5044, %v5048
    %v5050 = vadd.f32 %v5049, 1.0
    %v5051 = vmul.f32 %v5050, %v5035
    %vm5052 = vweird.f32 %v327
    %v5053 = vadd.s32 %v5036, 3
    %v5054 = vand.u32 %v5053, 3
    %vm5055 = vcmp.lt.s32.totalorder %v5054, 2
    %vm5056 = vcmp.eq.s32.totalorder %v5054, 0
    %v5057 = vxor.u32 %v5051, 2147483648
    %v5058 = vsel %vm5056, %v5043, %v5057
    %vm5059 = vcmp.eq.s32.totalorder %v5054, 2
    %v5060 = vxor.u32 %v5043, 2147483648
    %v5061 = vsel %vm5059, %v5060, %v5051
    %v5062 = vsel %vm5055, %v5058, %v5061
    %v5063 = vsel %vm5052, nan, %v5062
    %v5064 = vand.u32 2147483647, %v330
    %vm5065 = vcmp.le.f32.partialorder %v5064, 0.7853982
    %vm5066 = vcmp.lt.s32.totalorder %v330, 0
    %v5067 = vand.u32 %v330, 2139095040
    %v5068 = vshrl.u32 %v5067, 23
    %v5069 = vsub.s32 %v5068, 127
    %v5070 = vand.u32 2147483647, %v330
    %v5071 = vand.u32 %v5070, 8388607
    %v5072 = vor.u32 %v5071, 8388608
    %v5073 = vsub.s32 0, %v5072
    %v5074 = vadd.s32 %v5069, 1
    %vm5075 = vcmp.gt.s32.totalorder %v5074, 0
    %v5076 = vsel %vm5075, %v5074, 0
    %v5077 = vshrl.u32 %v5076, 5
    %v5078 = vand.u32 %v5076, 31
    %v5079 = vsub.s32 32, %v5078
    %v5080 = vshrl.u32 683565275, %v5079
    %v5081 = vshll.u32 683565275, %v5078
    %v5082 = vshrl.u32 2475754826, %v5079
    %v5083 = vor.u32 %v5081, %v5082
    %v5084 = vshll.u32 2475754826, %v5078
    %v5085 = vshrl.u32 2131351028, %v5079
    %v5086 = vor.u32 %v5084, %v5085
    %v5087 = vshll.u32 2131351028, %v5078
    %v5088 = vshrl.u32 2102212464, %v5079
    %v5089 = vor.u32 %v5087, %v5088
    %v5090 = vshll.u32 2102212464, %v5078
    %v5091 = vshrl.u32 920167782, %v5079
    %v5092 = vor.u32 %v5090, %v5091
    %v5093 = vshll.u32 920167782, %v5078
    %v5094 = vshrl.u32 1326507024, %v5079
    %v5095 = vor.u32 %v5093, %v5094
    %vm5096 = vcmp.lt.s32.totalorder %v5077, 1
    %vm5097 = vcmp.lt.s32.totalorder %v5077, 2
    %vm5098 = vcmp.lt.s32.totalorder %v5077, 3
    %vm5099 = vcmp.lt.s32.totalorder %v5077, 4
    %v5100 = vsel %vm5096, %v5080, %v5083
    %v5101 = vsel %vm5099, %v5089, 2102212464
    %v5102 = vsel %vm5098, %v5086, %v5101
    %v5103 = vsel %vm5097, %v5100, %v5102
    %v5104 = vsel %vm5096, %v5083, %v5086
    %v5105 = vsel %vm5099, %v5092, 920167782
    %v5106 = vsel %vm5098, %v5089, %v5105
    %v5107 = vsel %vm5097, %v5104, %v5106
    %v5108 = vsel %vm5096, %v5086, %v5089
    %v5109 = vsel %vm5099, %v5095, 1326507024
    %v5110 = vsel %vm5098, %v5092, %v5109
    %v5111 = vsel %vm5097, %v5108, %v5110
    %v5112 = vshll.u32 %v5072, 8
    %v5113 = vand.u32 %v5112, 65535
    %v5114 = vshrl.u32 %v5112, 16
    %v5115 = vand.u32 %v5111, 65535
    %v5116 = vshrl.u32 %v5111, 16
    %v5117 = vmul.u32 %v5113, %v5115
    %v5118 = vmul.u32 %v5113, %v5116
    %v5119 = vmul.u32 %v5114, %v5115
    %v5120 = vmul.u32 %v5114, %v5116
    %v5121 = vshll.u32 %v5118, 16
    %v5122 = vshrl.u32 %v5118, 16
    %v5123 = vshll.u32 %v5119, 16
    %v5124 = vshrl.u32 %v5119, 16
    %vm5125 = vc.u32 %v5117, %v5121
    %v5126 = vsel %vm5125, 1, 0
    %v5127 = vadd.s32 %v5117, %v5121
    %v5128 = vadd.s32 %v5120, %v5126
    %vm5129 = vc.u32 %v5127, %v5123
    %v5130 = vsel %vm5129, 1, 0
    %v5131 = vadd.s32 %v5127, %v5123
    %v5132 = vadd.s32 %v5128, %v5130
    %v5133 = vadd.s32 %v5132, %v5122
    %v5134 = vadd.s32 %v5133, %v5124
    %v5135 = vand.u32 %v5112, 65535
    %v5136 = vshrl.u32 %v5112, 16
    %v5137 = vand.u32 %v5107, 65535
    %v5138 = vshrl.u32 %v5107, 16
    %v5139 = vmul.u32 %v5135, %v5137
    %v5140 = vmul.u32 %v5135, %v5138
    %v5141 = vmul.u32 %v5136, %v5137
    %v5142 = vmul.u32 %v5136, %v5138
    %v5143 = vshll.u32 %v5140, 16
    %v5144 = vshrl.u32 %v5140, 16
    %v5145 = vshll.u32 %v5141, 16
    %v5146 = vshrl.u32 %v5141, 16
    %vm5147 = vc.u32 %v5139, %v5143
    %v5148 = vsel %vm5147, 1, 0
    %v5149 = vadd.s32 %v5139, %v5143
    %v5150 = vadd.s32 %v5142, %v5148
    %vm5151 = vc.u32 %v5149, %v5145
    %v5152 = vsel %vm5151, 1, 0
    %v5153 = vadd.s32 %v5149, %v5145
    %v5154 = vadd.s32 %v5150, %v5152
    %v5155 = vadd.s32 %v5154, %v5144
    %v5156 = vadd.s32 %v5155, %v5146
    %v5157 = vmul.u32 %v5112, %v5103
    %v5158 = vadd.s32 %v5134, %v5153
    %vm5159 = vc.u32 %v5134, %v5153
    %v5160 = vadd.s32 %v5156, 1
    %v5161 = vsel %vm5159, %v5160, %v5156
    %v5162 = vadd.s32 %v5157, %v5161
    %v5163 = vadd.s32 %v5162, 536870912
    %v5164 = vshrl.u32 %v5163, 30
    %v5165 = vshll.u32 %v5164, 30
    %v5166 = vsub.s32 %v5162, %v5165
    %vm5167 = vcmp.lt.s32.totalorder %v5166, 0
    %v5168 = vsub.s32 0, %v5166
    %v5169 = vsel %vm5167, %v5168, %v5166
    %v5170 = vclz %v5169
    %v5171 = vsub.s32 %v5170, 2
    %vm5172 = vcmp.gt.s32.totalorder 0, %v5171
    %v5173 = vsel %vm5172, 0, %v5171
    %v5174 = vsub.s32 32, %v5173
    %v5175 = vshll.u32 %v5166, %v5173
    %v5176 = vshrl.u32 %v5158, %v5174
    %v5177 = vor.u32 %v5175, %v5176
    %v5178 = vsub.s32 4294967266, %v5173
    %v5179 = vadd.s32 %v5178, 127
    %v5180 = vshll.u32 %v5179, 23
    %v5181 = vor.u32 4788187, %v5180
    %v5182 = vand.u32 2147483647, %v5181
    %v5184 = vcvt.s32.f32 %v5177
    %v5185 = vmul.f32 %v5184, %v5182
    %v5186 = vxor.u32 %v5185, 2147483648
    %v5187 = vsel %vm5066, %v5186, %v5185
    %v5188 = vsub.s32 4, %v5164
    %v5189 = vsel %vm5066, %v5188, %v5164
    %v5190 = vsel %vm5065, %v330, %v5187
    %v5191 = vsel %vm5065, 0, %v5189
    %v5192 = vmul.f32 %v5190, %v5190
    %v5193 = vmul.f32 %v5192, -0.001358992
    %v5194 = vadd.f32 %v5193, 0.041655596
    %v5195 = vmul.f32 %v5192, %v5194
    %v5196 = vadd.f32 %v5195, -0.4999988
    %v5197 = vmul.f32 %v5192, %v5196
    %v5198 = vadd.f32 1.0, %v5197
    %v5199 = vmul.f32 %v5190, %v5190
    %v5200 = vmul.f32 %v5199, -0.00019511016
    %v5201 = vadd.f32 %v5200, 0.008332121
    %v5202 = vmul.f32 %v5199, %v5201
    %v5203 = vadd.f32 %v5202, -0.16666654
    %v5204 = vmul.f32 %v5199, %v5203
    %v5205 = vadd.f32 %v5204, 1.0
    %v5206 = vmul.f32 %v5205, %v5190
    %vm5207 = vweird.f32 %v330
    %v5208 = vadd.s32 %v5191, 3
    %v5209 = vand.u32 %v5208, 3
    %vm5210 = vcmp.lt.s32.totalorder %v5209, 2
    %vm5211 = vcmp.eq.s32.totalorder %v5209, 0
    %v5212 = vxor.u32 %v5206, 2147483648
    %v5213 = vsel %vm5211, %v5198, %v5212
    %vm5214 = vcmp.eq.s32.totalorder %v5209, 2
    %v5215 = vxor.u32 %v5198, 2147483648
    %v5216 = vsel %vm5214, %v5215, %v5206
    %v5217 = vsel %vm5210, %v5213, %v5216
    %v5218 = vsel %vm5207, nan, %v5217
    %v5219 = vand.u32 2147483647, %v332
    %vm5220 = vcmp.le.f32.partialorder %v5219, 0.7853982
    %vm5221 = vcmp.lt.s32.totalorder %v332, 0
    %v5222 = vand.u32 %v332, 2139095040
    %v5223 = vshrl.u32 %v5222, 23
    %v5224 = vsub.s32 %v5223, 127
    %v5225 = vand.u32 2147483647, %v332
    %v5226 = vand.u32 %v5225, 8388607
    %v5227 = vor.u32 %v5226, 8388608
    %v5228 = vsub.s32 0, %v5227
    %v5229 = vadd.s32 %v5224, 1
    %vm5230 = vcmp.gt.s32.totalorder %v5229, 0
    %v5231 = vsel %vm5230, %v5229, 0
    %v5232 = vshrl.u32 %v5231, 5
    %v5233 = vand.u32 %v5231, 31
    %v5234 = vsub.s32 32, %v5233
    %v5235 = vshrl.u32 683565275, %v5234
    %v5236 = vshll.u32 683565275, %v5233
    %v5237 = vshrl.u32 2475754826, %v5234
    %v5238 = vor.u32 %v5236, %v5237
    %v5239 = vshll.u32 2475754826, %v5233
    %v5240 = vshrl.u32 2131351028, %v5234
    %v5241 = vor.u32 %v5239, %v5240
    %v5242 = vshll.u32 2131351028, %v5233
    %v5243 = vshrl.u32 2102212464, %v5234
    %v5244 = vor.u32 %v5242, %v5243
    %v5245 = vshll.u32 2102212464, %v5233
    %v5246 = vshrl.u32 920167782, %v5234
    %v5247 = vor.u32 %v5245, %v5246
    %v5248 = vshll.u32 920167782, %v5233
    %v5249 = vshrl.u32 1326507024, %v5234
    %v5250 = vor.u32 %v5248, %v5249
    %vm5251 = vcmp.lt.s32.totalorder %v5232, 1
    %vm5252 = vcmp.lt.s32.totalorder %v5232, 2
    %vm5253 = vcmp.lt.s32.totalorder %v5232, 3
    %vm5254 = vcmp.lt.s32.totalorder %v5232, 4
    %v5255 = vsel %vm5251, %v5235, %v5238
    %v5256 = vsel %vm5254, %v5244, 2102212464
    %v5257 = vsel %vm5253, %v5241, %v5256
    %v5258 = vsel %vm5252, %v5255, %v5257
    %v5259 = vsel %vm5251, %v5238, %v5241
    %v5260 = vsel %vm5254, %v5247, 920167782
    %v5261 = vsel %vm5253, %v5244, %v5260
    %v5262 = vsel %vm5252, %v5259, %v5261
    %v5263 = vsel %vm5251, %v5241, %v5244
    %v5264 = vsel %vm5254, %v5250, 1326507024
    %v5265 = vsel %vm5253, %v5247, %v5264
    %v5266 = vsel %vm5252, %v5263, %v5265
    %v5267 = vshll.u32 %v5227, 8
    %v5268 = vand.u32 %v5267, 65535
    %v5269 = vshrl.u32 %v5267, 16
    %v5270 = vand.u32 %v5266, 65535
    %v5271 = vshrl.u32 %v5266, 16
    %v5272 = vmul.u32 %v5268, %v5270
    %v5273 = vmul.u32 %v5268, %v5271
    %v5274 = vmul.u32 %v5269, %v5270
    %v5275 = vmul.u32 %v5269, %v5271
    %v5276 = vshll.u32 %v5273, 16
    %v5277 = vshrl.u32 %v5273, 16
    %v5278 = vshll.u32 %v5274, 16
    %v5279 = vshrl.u32 %v5274, 16
    %vm5280 = vc.u32 %v5272, %v5276
    %v5281 = vsel %vm5280, 1, 0
    %v5282 = vadd.s32 %v5272, %v5276
    %v5283 = vadd.s32 %v5275, %v5281
    %vm5284 = vc.u32 %v5282, %v5278
    %v5285 = vsel %vm5284, 1, 0
    %v5286 = vadd.s32 %v5282, %v5278
    %v5287 = vadd.s32 %v5283, %v5285
    %v5288 = vadd.s32 %v5287, %v5277
    %v5289 = vadd.s32 %v5288, %v5279
    %v5290 = vand.u32 %v5267, 65535
    %v5291 = vshrl.u32 %v5267, 16
    %v5292 = vand.u32 %v5262, 65535
    %v5293 = vshrl.u32 %v5262, 16
    %v5294 = vmul.u32 %v5290, %v5292
    %v5295 = vmul.u32 %v5290, %v5293
    %v5296 = vmul.u32 %v5291, %v5292
    %v5297 = vmul.u32 %v5291, %v5293
    %v5298 = vshll.u32 %v5295, 16
    %v5299 = vshrl.u32 %v5295, 16
    %v5300 = vshll.u32 %v5296, 16
    %v5301 = vshrl.u32 %v5296, 16
    %vm5302 = vc.u32 %v5294, %v5298
    %v5303 = vsel %vm5302, 1, 0
    %v5304 = vadd.s32 %v5294, %v5298
    %v5305 = vadd.s32 %v5297, %v5303
    %vm5306 = vc.u32 %v5304, %v5300
    %v5307 = vsel %vm5306, 1, 0
    %v5308 = vadd.s32 %v5304, %v5300
    %v5309 = vadd.s32 %v5305, %v5307
    %v5310 = vadd.s32 %v5309, %v5299
    %v5311 = vadd.s32 %v5310, %v5301
    %v5312 = vmul.u32 %v5267, %v5258
    %v5313 = vadd.s32 %v5289, %v5308
    %vm5314 = vc.u32 %v5289, %v5308
    %v5315 = vadd.s32 %v5311, 1
    %v5316 = vsel %vm5314, %v5315, %v5311
    %v5317 = vadd.s32 %v5312, %v5316
    %v5318 = vadd.s32 %v5317, 536870912
    %v5319 = vshrl.u32 %v5318, 30
    %v5320 = vshll.u32 %v5319, 30
    %v5321 = vsub.s32 %v5317, %v5320
    %vm5322 = vcmp.lt.s32.totalorder %v5321, 0
    %v5323 = vsub.s32 0, %v5321
    %v5324 = vsel %vm5322, %v5323, %v5321
    %v5325 = vclz %v5324
    %v5326 = vsub.s32 %v5325, 2
    %vm5327 = vcmp.gt.s32.totalorder 0, %v5326
    %v5328 = vsel %vm5327, 0, %v5326
    %v5329 = vsub.s32 32, %v5328
    %v5330 = vshll.u32 %v5321, %v5328
    %v5331 = vshrl.u32 %v5313, %v5329
    %v5332 = vor.u32 %v5330, %v5331
    %v5333 = vsub.s32 4294967266, %v5328
    %v5334 = vadd.s32 %v5333, 127
    %v5335 = vshll.u32 %v5334, 23
    %v5336 = vor.u32 4788187, %v5335
    %v5337 = vand.u32 2147483647, %v5336
    %v5339 = vcvt.s32.f32 %v5332
    %v5340 = vmul.f32 %v5339, %v5337
    %v5341 = vxor.u32 %v5340, 2147483648
    %v5342 = vsel %vm5221, %v5341, %v5340
    %v5343 = vsub.s32 4, %v5319
    %v5344 = vsel %vm5221, %v5343, %v5319
    %v5345 = vsel %vm5220, %v332, %v5342
    %v5346 = vsel %vm5220, 0, %v5344
    %v5347 = vmul.f32 %v5345, %v5345
    %v5348 = vmul.f32 %v5347, -0.001358992
    %v5349 = vadd.f32 %v5348, 0.041655596
    %v5350 = vmul.f32 %v5347, %v5349
    %v5351 = vadd.f32 %v5350, -0.4999988
    %v5352 = vmul.f32 %v5347, %v5351
    %v5353 = vadd.f32 1.0, %v5352
    %v5354 = vmul.f32 %v5345, %v5345
    %v5355 = vmul.f32 %v5354, -0.00019511016
    %v5356 = vadd.f32 %v5355, 0.008332121
    %v5357 = vmul.f32 %v5354, %v5356
    %v5358 = vadd.f32 %v5357, -0.16666654
    %v5359 = vmul.f32 %v5354, %v5358
    %v5360 = vadd.f32 %v5359, 1.0
    %v5361 = vmul.f32 %v5360, %v5345
    %vm5362 = vweird.f32 %v332
    %v5363 = vadd.s32 %v5346, 3
    %v5364 = vand.u32 %v5363, 3
    %vm5365 = vcmp.lt.s32.totalorder %v5364, 2
    %vm5366 = vcmp.eq.s32.totalorder %v5364, 0
    %v5367 = vxor.u32 %v5361, 2147483648
    %v5368 = vsel %vm5366, %v5353, %v5367
    %vm5369 = vcmp.eq.s32.totalorder %v5364, 2
    %v5370 = vxor.u32 %v5353, 2147483648
    %v5371 = vsel %vm5369, %v5370, %v5361
    %v5372 = vsel %vm5365, %v5368, %v5371
    %v5373 = vsel %vm5362, nan, %v5372
    %v5374 = vand.u32 2147483647, %v335
    %vm5375 = vcmp.le.f32.partialorder %v5374, 0.7853982
    %vm5376 = vcmp.lt.s32.totalorder %v335, 0
    %v5377 = vand.u32 %v335, 2139095040
    %v5378 = vshrl.u32 %v5377, 23
    %v5379 = vsub.s32 %v5378, 127
    %v5380 = vand.u32 2147483647, %v335
    %v5381 = vand.u32 %v5380, 8388607
    %v5382 = vor.u32 %v5381, 8388608
    %v5383 = vsub.s32 0, %v5382
    %v5384 = vadd.s32 %v5379, 1
    %vm5385 = vcmp.gt.s32.totalorder %v5384, 0
    %v5386 = vsel %vm5385, %v5384, 0
    %v5387 = vshrl.u32 %v5386, 5
    %v5388 = vand.u32 %v5386, 31
    %v5389 = vsub.s32 32, %v5388
    %v5390 = vshrl.u32 683565275, %v5389
    %v5391 = vshll.u32 683565275, %v5388
    %v5392 = vshrl.u32 2475754826, %v5389
    %v5393 = vor.u32 %v5391, %v5392
    %v5394 = vshll.u32 2475754826, %v5388
    %v5395 = vshrl.u32 2131351028, %v5389
    %v5396 = vor.u32 %v5394, %v5395
    %v5397 = vshll.u32 2131351028, %v5388
    %v5398 = vshrl.u32 2102212464, %v5389
    %v5399 = vor.u32 %v5397, %v5398
    %v5400 = vshll.u32 2102212464, %v5388
    %v5401 = vshrl.u32 920167782, %v5389
    %v5402 = vor.u32 %v5400, %v5401
    %v5403 = vshll.u32 920167782, %v5388
    %v5404 = vshrl.u32 1326507024, %v5389
    %v5405 = vor.u32 %v5403, %v5404
    %vm5406 = vcmp.lt.s32.totalorder %v5387, 1
    %vm5407 = vcmp.lt.s32.totalorder %v5387, 2
    %vm5408 = vcmp.lt.s32.totalorder %v5387, 3
    %vm5409 = vcmp.lt.s32.totalorder %v5387, 4
    %v5410 = vsel %vm5406, %v5390, %v5393
    %v5411 = vsel %vm5409, %v5399, 2102212464
    %v5412 = vsel %vm5408, %v5396, %v5411
    %v5413 = vsel %vm5407, %v5410, %v5412
    %v5414 = vsel %vm5406, %v5393, %v5396
    %v5415 = vsel %vm5409, %v5402, 920167782
    %v5416 = vsel %vm5408, %v5399, %v5415
    %v5417 = vsel %vm5407, %v5414, %v5416
    %v5418 = vsel %vm5406, %v5396, %v5399
    %v5419 = vsel %vm5409, %v5405, 1326507024
    %v5420 = vsel %vm5408, %v5402, %v5419
    %v5421 = vsel %vm5407, %v5418, %v5420
    %v5422 = vshll.u32 %v5382, 8
    %v5423 = vand.u32 %v5422, 65535
    %v5424 = vshrl.u32 %v5422, 16
    %v5425 = vand.u32 %v5421, 65535
    %v5426 = vshrl.u32 %v5421, 16
    %v5427 = vmul.u32 %v5423, %v5425
    %v5428 = vmul.u32 %v5423, %v5426
    %v5429 = vmul.u32 %v5424, %v5425
    %v5430 = vmul.u32 %v5424, %v5426
    %v5431 = vshll.u32 %v5428, 16
    %v5432 = vshrl.u32 %v5428, 16
    %v5433 = vshll.u32 %v5429, 16
    %v5434 = vshrl.u32 %v5429, 16
    %vm5435 = vc.u32 %v5427, %v5431
    %v5436 = vsel %vm5435, 1, 0
    %v5437 = vadd.s32 %v5427, %v5431
    %v5438 = vadd.s32 %v5430, %v5436
    %vm5439 = vc.u32 %v5437, %v5433
    %v5440 = vsel %vm5439, 1, 0
    %v5441 = vadd.s32 %v5437, %v5433
    %v5442 = vadd.s32 %v5438, %v5440
    %v5443 = vadd.s32 %v5442, %v5432
    %v5444 = vadd.s32 %v5443, %v5434
    %v5445 = vand.u32 %v5422, 65535
    %v5446 = vshrl.u32 %v5422, 16
    %v5447 = vand.u32 %v5417, 65535
    %v5448 = vshrl.u32 %v5417, 16
    %v5449 = vmul.u32 %v5445, %v5447
    %v5450 = vmul.u32 %v5445, %v5448
    %v5451 = vmul.u32 %v5446, %v5447
    %v5452 = vmul.u32 %v5446, %v5448
    %v5453 = vshll.u32 %v5450, 16
    %v5454 = vshrl.u32 %v5450, 16
    %v5455 = vshll.u32 %v5451, 16
    %v5456 = vshrl.u32 %v5451, 16
    %vm5457 = vc.u32 %v5449, %v5453
    %v5458 = vsel %vm5457, 1, 0
    %v5459 = vadd.s32 %v5449, %v5453
    %v5460 = vadd.s32 %v5452, %v5458
    %vm5461 = vc.u32 %v5459, %v5455
    %v5462 = vsel %vm5461, 1, 0
    %v5463 = vadd.s32 %v5459, %v5455
    %v5464 = vadd.s32 %v5460, %v5462
    %v5465 = vadd.s32 %v5464, %v5454
    %v5466 = vadd.s32 %v5465, %v5456
    %v5467 = vmul.u32 %v5422, %v5413
    %v5468 = vadd.s32 %v5444, %v5463
    %vm5469 = vc.u32 %v5444, %v5463
    %v5470 = vadd.s32 %v5466, 1
    %v5471 = vsel %vm5469, %v5470, %v5466
    %v5472 = vadd.s32 %v5467, %v5471
    %v5473 = vadd.s32 %v5472, 536870912
    %v5474 = vshrl.u32 %v5473, 30
    %v5475 = vshll.u32 %v5474, 30
    %v5476 = vsub.s32 %v5472, %v5475
    %vm5477 = vcmp.lt.s32.totalorder %v5476, 0
    %v5478 = vsub.s32 0, %v5476
    %v5479 = vsel %vm5477, %v5478, %v5476
    %v5480 = vclz %v5479
    %v5481 = vsub.s32 %v5480, 2
    %vm5482 = vcmp.gt.s32.totalorder 0, %v5481
    %v5483 = vsel %vm5482, 0, %v5481
    %v5484 = vsub.s32 32, %v5483
    %v5485 = vshll.u32 %v5476, %v5483
    %v5486 = vshrl.u32 %v5468, %v5484
    %v5487 = vor.u32 %v5485, %v5486
    %v5488 = vsub.s32 4294967266, %v5483
    %v5489 = vadd.s32 %v5488, 127
    %v5490 = vshll.u32 %v5489, 23
    %v5491 = vor.u32 4788187, %v5490
    %v5492 = vand.u32 2147483647, %v5491
    %v5494 = vcvt.s32.f32 %v5487
    %v5495 = vmul.f32 %v5494, %v5492
    %v5496 = vxor.u32 %v5495, 2147483648
    %v5497 = vsel %vm5376, %v5496, %v5495
    %v5498 = vsub.s32 4, %v5474
    %v5499 = vsel %vm5376, %v5498, %v5474
    %v5500 = vsel %vm5375, %v335, %v5497
    %v5501 = vsel %vm5375, 0, %v5499
    %v5502 = vmul.f32 %v5500, %v5500
    %v5503 = vmul.f32 %v5502, -0.001358992
    %v5504 = vadd.f32 %v5503, 0.041655596
    %v5505 = vmul.f32 %v5502, %v5504
    %v5506 = vadd.f32 %v5505, -0.4999988
    %v5507 = vmul.f32 %v5502, %v5506
    %v5508 = vadd.f32 1.0, %v5507
    %v5509 = vmul.f32 %v5500, %v5500
    %v5510 = vmul.f32 %v5509, -0.00019511016
    %v5511 = vadd.f32 %v5510, 0.008332121
    %v5512 = vmul.f32 %v5509, %v5511
    %v5513 = vadd.f32 %v5512, -0.16666654
    %v5514 = vmul.f32 %v5509, %v5513
    %v5515 = vadd.f32 %v5514, 1.0
    %v5516 = vmul.f32 %v5515, %v5500
    %vm5517 = vweird.f32 %v335
    %v5518 = vadd.s32 %v5501, 3
    %v5519 = vand.u32 %v5518, 3
    %vm5520 = vcmp.lt.s32.totalorder %v5519, 2
    %vm5521 = vcmp.eq.s32.totalorder %v5519, 0
    %v5522 = vxor.u32 %v5516, 2147483648
    %v5523 = vsel %vm5521, %v5508, %v5522
    %vm5524 = vcmp.eq.s32.totalorder %v5519, 2
    %v5525 = vxor.u32 %v5508, 2147483648
    %v5526 = vsel %vm5524, %v5525, %v5516
    %v5527 = vsel %vm5520, %v5523, %v5526
    %v5528 = vsel %vm5517, nan, %v5527
    %v5529 = vand.u32 2147483647, %v337
    %vm5530 = vcmp.le.f32.partialorder %v5529, 0.7853982
    %vm5531 = vcmp.lt.s32.totalorder %v337, 0
    %v5532 = vand.u32 %v337, 2139095040
    %v5533 = vshrl.u32 %v5532, 23
    %v5534 = vsub.s32 %v5533, 127
    %v5535 = vand.u32 2147483647, %v337
    %v5536 = vand.u32 %v5535, 8388607
    %v5537 = vor.u32 %v5536, 8388608
    %v5538 = vsub.s32 0, %v5537
    %v5539 = vadd.s32 %v5534, 1
    %vm5540 = vcmp.gt.s32.totalorder %v5539, 0
    %v5541 = vsel %vm5540, %v5539, 0
    %v5542 = vshrl.u32 %v5541, 5
    %v5543 = vand.u32 %v5541, 31
    %v5544 = vsub.s32 32, %v5543
    %v5545 = vshrl.u32 683565275, %v5544
    %v5546 = vshll.u32 683565275, %v5543
    %v5547 = vshrl.u32 2475754826, %v5544
    %v5548 = vor.u32 %v5546, %v5547
    %v5549 = vshll.u32 2475754826, %v5543
    %v5550 = vshrl.u32 2131351028, %v5544
    %v5551 = vor.u32 %v5549, %v5550
    %v5552 = vshll.u32 2131351028, %v5543
    %v5553 = vshrl.u32 2102212464, %v5544
    %v5554 = vor.u32 %v5552, %v5553
    %v5555 = vshll.u32 2102212464, %v5543
    %v5556 = vshrl.u32 920167782, %v5544
    %v5557 = vor.u32 %v5555, %v5556
    %v5558 = vshll.u32 920167782, %v5543
    %v5559 = vshrl.u32 1326507024, %v5544
    %v5560 = vor.u32 %v5558, %v5559
    %vm5561 = vcmp.lt.s32.totalorder %v5542, 1
    %vm5562 = vcmp.lt.s32.totalorder %v5542, 2
    %vm5563 = vcmp.lt.s32.totalorder %v5542, 3
    %vm5564 = vcmp.lt.s32.totalorder %v5542, 4
    %v5565 = vsel %vm5561, %v5545, %v5548
    %v5566 = vsel %vm5564, %v5554, 2102212464
    %v5567 = vsel %vm5563, %v5551, %v5566
    %v5568 = vsel %vm5562, %v5565, %v5567
    %v5569 = vsel %vm5561, %v5548, %v5551
    %v5570 = vsel %vm5564, %v5557, 920167782
    %v5571 = vsel %vm5563, %v5554, %v5570
    %v5572 = vsel %vm5562, %v5569, %v5571
    %v5573 = vsel %vm5561, %v5551, %v5554
    %v5574 = vsel %vm5564, %v5560, 1326507024
    %v5575 = vsel %vm5563, %v5557, %v5574
    %v5576 = vsel %vm5562, %v5573, %v5575
    %v5577 = vshll.u32 %v5537, 8
    %v5578 = vand.u32 %v5577, 65535
    %v5579 = vshrl.u32 %v5577, 16
    %v5580 = vand.u32 %v5576, 65535
    %v5581 = vshrl.u32 %v5576, 16
    %v5582 = vmul.u32 %v5578, %v5580
    %v5583 = vmul.u32 %v5578, %v5581
    %v5584 = vmul.u32 %v5579, %v5580
    %v5585 = vmul.u32 %v5579, %v5581
    %v5586 = vshll.u32 %v5583, 16
    %v5587 = vshrl.u32 %v5583, 16
    %v5588 = vshll.u32 %v5584, 16
    %v5589 = vshrl.u32 %v5584, 16
    %vm5590 = vc.u32 %v5582, %v5586
    %v5591 = vsel %vm5590, 1, 0
    %v5592 = vadd.s32 %v5582, %v5586
    %v5593 = vadd.s32 %v5585, %v5591
    %vm5594 = vc.u32 %v5592, %v5588
    %v5595 = vsel %vm5594, 1, 0
    %v5596 = vadd.s32 %v5592, %v5588
    %v5597 = vadd.s32 %v5593, %v5595
    %v5598 = vadd.s32 %v5597, %v5587
    %v5599 = vadd.s32 %v5598, %v5589
    %v5600 = vand.u32 %v5577, 65535
    %v5601 = vshrl.u32 %v5577, 16
    %v5602 = vand.u32 %v5572, 65535
    %v5603 = vshrl.u32 %v5572, 16
    %v5604 = vmul.u32 %v5600, %v5602
    %v5605 = vmul.u32 %v5600, %v5603
    %v5606 = vmul.u32 %v5601, %v5602
    %v5607 = vmul.u32 %v5601, %v5603
    %v5608 = vshll.u32 %v5605, 16
    %v5609 = vshrl.u32 %v5605, 16
    %v5610 = vshll.u32 %v5606, 16
    %v5611 = vshrl.u32 %v5606, 16
    %vm5612 = vc.u32 %v5604, %v5608
    %v5613 = vsel %vm5612, 1, 0
    %v5614 = vadd.s32 %v5604, %v5608
    %v5615 = vadd.s32 %v5607, %v5613
    %vm5616 = vc.u32 %v5614, %v5610
    %v5617 = vsel %vm5616, 1, 0
    %v5618 = vadd.s32 %v5614, %v5610
    %v5619 = vadd.s32 %v5615, %v5617
    %v5620 = vadd.s32 %v5619, %v5609
    %v5621 = vadd.s32 %v5620, %v5611
    %v5622 = vmul.u32 %v5577, %v5568
    %v5623 = vadd.s32 %v5599, %v5618
    %vm5624 = vc.u32 %v5599, %v5618
    %v5625 = vadd.s32 %v5621, 1
    %v5626 = vsel %vm5624, %v5625, %v5621
    %v5627 = vadd.s32 %v5622, %v5626
    %v5628 = vadd.s32 %v5627, 536870912
    %v5629 = vshrl.u32 %v5628, 30
    %v5630 = vshll.u32 %v5629, 30
    %v5631 = vsub.s32 %v5627, %v5630
    %vm5632 = vcmp.lt.s32.totalorder %v5631, 0
    %v5633 = vsub.s32 0, %v5631
    %v5634 = vsel %vm5632, %v5633, %v5631
    %v5635 = vclz %v5634
    %v5636 = vsub.s32 %v5635, 2
    %vm5637 = vcmp.gt.s32.totalorder 0, %v5636
    %v5638 = vsel %vm5637, 0, %v5636
    %v5639 = vsub.s32 32, %v5638
    %v5640 = vshll.u32 %v5631, %v5638
    %v5641 = vshrl.u32 %v5623, %v5639
    %v5642 = vor.u32 %v5640, %v5641
    %v5643 = vsub.s32 4294967266, %v5638
    %v5644 = vadd.s32 %v5643, 127
    %v5645 = vshll.u32 %v5644, 23
    %v5646 = vor.u32 4788187, %v5645
    %v5647 = vand.u32 2147483647, %v5646
    %v5649 = vcvt.s32.f32 %v5642
    %v5650 = vmul.f32 %v5649, %v5647
    %v5651 = vxor.u32 %v5650, 2147483648
    %v5652 = vsel %vm5531, %v5651, %v5650
    %v5653 = vsub.s32 4, %v5629
    %v5654 = vsel %vm5531, %v5653, %v5629
    %v5655 = vsel %vm5530, %v337, %v5652
    %v5656 = vsel %vm5530, 0, %v5654
    %v5657 = vmul.f32 %v5655, %v5655
    %v5658 = vmul.f32 %v5657, -0.001358992
    %v5659 = vadd.f32 %v5658, 0.041655596
    %v5660 = vmul.f32 %v5657, %v5659
    %v5661 = vadd.f32 %v5660, -0.4999988
    %v5662 = vmul.f32 %v5657, %v5661
    %v5663 = vadd.f32 1.0, %v5662
    %v5664 = vmul.f32 %v5655, %v5655
    %v5665 = vmul.f32 %v5664, -0.00019511016
    %v5666 = vadd.f32 %v5665, 0.008332121
    %v5667 = vmul.f32 %v5664, %v5666
    %v5668 = vadd.f32 %v5667, -0.16666654
    %v5669 = vmul.f32 %v5664, %v5668
    %v5670 = vadd.f32 %v5669, 1.0
    %v5671 = vmul.f32 %v5670, %v5655
    %vm5672 = vweird.f32 %v337
    %v5673 = vadd.s32 %v5656, 3
    %v5674 = vand.u32 %v5673, 3
    %vm5675 = vcmp.lt.s32.totalorder %v5674, 2
    %vm5676 = vcmp.eq.s32.totalorder %v5674, 0
    %v5677 = vxor.u32 %v5671, 2147483648
    %v5678 = vsel %vm5676, %v5663, %v5677
    %vm5679 = vcmp.eq.s32.totalorder %v5674, 2
    %v5680 = vxor.u32 %v5663, 2147483648
    %v5681 = vsel %vm5679, %v5680, %v5671
    %v5682 = vsel %vm5675, %v5678, %v5681
    %v5683 = vsel %vm5672, nan, %v5682
    %v5684 = vand.u32 2147483647, %v340
    %vm5685 = vcmp.le.f32.partialorder %v5684, 0.7853982
    %vm5686 = vcmp.lt.s32.totalorder %v340, 0
    %v5687 = vand.u32 %v340, 2139095040
    %v5688 = vshrl.u32 %v5687, 23
    %v5689 = vsub.s32 %v5688, 127
    %v5690 = vand.u32 2147483647, %v340
    %v5691 = vand.u32 %v5690, 8388607
    %v5692 = vor.u32 %v5691, 8388608
    %v5693 = vsub.s32 0, %v5692
    %v5694 = vadd.s32 %v5689, 1
    %vm5695 = vcmp.gt.s32.totalorder %v5694, 0
    %v5696 = vsel %vm5695, %v5694, 0
    %v5697 = vshrl.u32 %v5696, 5
    %v5698 = vand.u32 %v5696, 31
    %v5699 = vsub.s32 32, %v5698
    %v5700 = vshrl.u32 683565275, %v5699
    %v5701 = vshll.u32 683565275, %v5698
    %v5702 = vshrl.u32 2475754826, %v5699
    %v5703 = vor.u32 %v5701, %v5702
    %v5704 = vshll.u32 2475754826, %v5698
    %v5705 = vshrl.u32 2131351028, %v5699
    %v5706 = vor.u32 %v5704, %v5705
    %v5707 = vshll.u32 2131351028, %v5698
    %v5708 = vshrl.u32 2102212464, %v5699
    %v5709 = vor.u32 %v5707, %v5708
    %v5710 = vshll.u32 2102212464, %v5698
    %v5711 = vshrl.u32 920167782, %v5699
    %v5712 = vor.u32 %v5710, %v5711
    %v5713 = vshll.u32 920167782, %v5698
    %v5714 = vshrl.u32 1326507024, %v5699
    %v5715 = vor.u32 %v5713, %v5714
    %vm5716 = vcmp.lt.s32.totalorder %v5697, 1
    %vm5717 = vcmp.lt.s32.totalorder %v5697, 2
    %vm5718 = vcmp.lt.s32.totalorder %v5697, 3
    %vm5719 = vcmp.lt.s32.totalorder %v5697, 4
    %v5720 = vsel %vm5716, %v5700, %v5703
    %v5721 = vsel %vm5719, %v5709, 2102212464
    %v5722 = vsel %vm5718, %v5706, %v5721
    %v5723 = vsel %vm5717, %v5720, %v5722
    %v5724 = vsel %vm5716, %v5703, %v5706
    %v5725 = vsel %vm5719, %v5712, 920167782
    %v5726 = vsel %vm5718, %v5709, %v5725
    %v5727 = vsel %vm5717, %v5724, %v5726
    %v5728 = vsel %vm5716, %v5706, %v5709
    %v5729 = vsel %vm5719, %v5715, 1326507024
    %v5730 = vsel %vm5718, %v5712, %v5729
    %v5731 = vsel %vm5717, %v5728, %v5730
    %v5732 = vshll.u32 %v5692, 8
    %v5733 = vand.u32 %v5732, 65535
    %v5734 = vshrl.u32 %v5732, 16
    %v5735 = vand.u32 %v5731, 65535
    %v5736 = vshrl.u32 %v5731, 16
    %v5737 = vmul.u32 %v5733, %v5735
    %v5738 = vmul.u32 %v5733, %v5736
    %v5739 = vmul.u32 %v5734, %v5735
    %v5740 = vmul.u32 %v5734, %v5736
    %v5741 = vshll.u32 %v5738, 16
    %v5742 = vshrl.u32 %v5738, 16
    %v5743 = vshll.u32 %v5739, 16
    %v5744 = vshrl.u32 %v5739, 16
    %vm5745 = vc.u32 %v5737, %v5741
    %v5746 = vsel %vm5745, 1, 0
    %v5747 = vadd.s32 %v5737, %v5741
    %v5748 = vadd.s32 %v5740, %v5746
    %vm5749 = vc.u32 %v5747, %v5743
    %v5750 = vsel %vm5749, 1, 0
    %v5751 = vadd.s32 %v5747, %v5743
    %v5752 = vadd.s32 %v5748, %v5750
    %v5753 = vadd.s32 %v5752, %v5742
    %v5754 = vadd.s32 %v5753, %v5744
    %v5755 = vand.u32 %v5732, 65535
    %v5756 = vshrl.u32 %v5732, 16
    %v5757 = vand.u32 %v5727, 65535
    %v5758 = vshrl.u32 %v5727, 16
    %v5759 = vmul.u32 %v5755, %v5757
    %v5760 = vmul.u32 %v5755, %v5758
    %v5761 = vmul.u32 %v5756, %v5757
    %v5762 = vmul.u32 %v5756, %v5758
    %v5763 = vshll.u32 %v5760, 16
    %v5764 = vshrl.u32 %v5760, 16
    %v5765 = vshll.u32 %v5761, 16
    %v5766 = vshrl.u32 %v5761, 16
    %vm5767 = vc.u32 %v5759, %v5763
    %v5768 = vsel %vm5767, 1, 0
    %v5769 = vadd.s32 %v5759, %v5763
    %v5770 = vadd.s32 %v5762, %v5768
    %vm5771 = vc.u32 %v5769, %v5765
    %v5772 = vsel %vm5771, 1, 0
    %v5773 = vadd.s32 %v5769, %v5765
    %v5774 = vadd.s32 %v5770, %v5772
    %v5775 = vadd.s32 %v5774, %v5764
    %v5776 = vadd.s32 %v5775, %v5766
    %v5777 = vmul.u32 %v5732, %v5723
    %v5778 = vadd.s32 %v5754, %v5773
    %vm5779 = vc.u32 %v5754, %v5773
    %v5780 = vadd.s32 %v5776, 1
    %v5781 = vsel %vm5779, %v5780, %v5776
    %v5782 = vadd.s32 %v5777, %v5781
    %v5783 = vadd.s32 %v5782, 536870912
    %v5784 = vshrl.u32 %v5783, 30
    %v5785 = vshll.u32 %v5784, 30
    %v5786 = vsub.s32 %v5782, %v5785
    %vm5787 = vcmp.lt.s32.totalorder %v5786, 0
    %v5788 = vsub.s32 0, %v5786
    %v5789 = vsel %vm5787, %v5788, %v5786
    %v5790 = vclz %v5789
    %v5791 = vsub.s32 %v5790, 2
    %vm5792 = vcmp.gt.s32.totalorder 0, %v5791
    %v5793 = vsel %vm5792, 0, %v5791
    %v5794 = vsub.s32 32, %v5793
    %v5795 = vshll.u32 %v5786, %v5793
    %v5796 = vshrl.u32 %v5778, %v5794
    %v5797 = vor.u32 %v5795, %v5796
    %v5798 = vsub.s32 4294967266, %v5793
    %v5799 = vadd.s32 %v5798, 127
    %v5800 = vshll.u32 %v5799, 23
    %v5801 = vor.u32 4788187, %v5800
    %v5802 = vand.u32 2147483647, %v5801
    %v5804 = vcvt.s32.f32 %v5797
    %v5805 = vmul.f32 %v5804, %v5802
    %v5806 = vxor.u32 %v5805, 2147483648
    %v5807 = vsel %vm5686, %v5806, %v5805
    %v5808 = vsub.s32 4, %v5784
    %v5809 = vsel %vm5686, %v5808, %v5784
    %v5810 = vsel %vm5685, %v340, %v5807
    %v5811 = vsel %vm5685, 0, %v5809
    %v5812 = vmul.f32 %v5810, %v5810
    %v5813 = vmul.f32 %v5812, -0.001358992
    %v5814 = vadd.f32 %v5813, 0.041655596
    %v5815 = vmul.f32 %v5812, %v5814
    %v5816 = vadd.f32 %v5815, -0.4999988
    %v5817 = vmul.f32 %v5812, %v5816
    %v5818 = vadd.f32 1.0, %v5817
    %v5819 = vmul.f32 %v5810, %v5810
    %v5820 = vmul.f32 %v5819, -0.00019511016
    %v5821 = vadd.f32 %v5820, 0.008332121
    %v5822 = vmul.f32 %v5819, %v5821
    %v5823 = vadd.f32 %v5822, -0.16666654
    %v5824 = vmul.f32 %v5819, %v5823
    %v5825 = vadd.f32 %v5824, 1.0
    %v5826 = vmul.f32 %v5825, %v5810
    %vm5827 = vweird.f32 %v340
    %v5828 = vadd.s32 %v5811, 3
    %v5829 = vand.u32 %v5828, 3
    %vm5830 = vcmp.lt.s32.totalorder %v5829, 2
    %vm5831 = vcmp.eq.s32.totalorder %v5829, 0
    %v5832 = vxor.u32 %v5826, 2147483648
    %v5833 = vsel %vm5831, %v5818, %v5832
    %vm5834 = vcmp.eq.s32.totalorder %v5829, 2
    %v5835 = vxor.u32 %v5818, 2147483648
    %v5836 = vsel %vm5834, %v5835, %v5826
    %v5837 = vsel %vm5830, %v5833, %v5836
    %v5838 = vsel %vm5827, nan, %v5837
    %v5839 = vand.u32 2147483647, %v342
    %vm5840 = vcmp.le.f32.partialorder %v5839, 0.7853982
    %vm5841 = vcmp.lt.s32.totalorder %v342, 0
    %v5842 = vand.u32 %v342, 2139095040
    %v5843 = vshrl.u32 %v5842, 23
    %v5844 = vsub.s32 %v5843, 127
    %v5845 = vand.u32 2147483647, %v342
    %v5846 = vand.u32 %v5845, 8388607
    %v5847 = vor.u32 %v5846, 8388608
    %v5848 = vsub.s32 0, %v5847
    %v5849 = vadd.s32 %v5844, 1
    %vm5850 = vcmp.gt.s32.totalorder %v5849, 0
    %v5851 = vsel %vm5850, %v5849, 0
    %v5852 = vshrl.u32 %v5851, 5
    %v5853 = vand.u32 %v5851, 31
    %v5854 = vsub.s32 32, %v5853
    %v5855 = vshrl.u32 683565275, %v5854
    %v5856 = vshll.u32 683565275, %v5853
    %v5857 = vshrl.u32 2475754826, %v5854
    %v5858 = vor.u32 %v5856, %v5857
    %v5859 = vshll.u32 2475754826, %v5853
    %v5860 = vshrl.u32 2131351028, %v5854
    %v5861 = vor.u32 %v5859, %v5860
    %v5862 = vshll.u32 2131351028, %v5853
    %v5863 = vshrl.u32 2102212464, %v5854
    %v5864 = vor.u32 %v5862, %v5863
    %v5865 = vshll.u32 2102212464, %v5853
    %v5866 = vshrl.u32 920167782, %v5854
    %v5867 = vor.u32 %v5865, %v5866
    %v5868 = vshll.u32 920167782, %v5853
    %v5869 = vshrl.u32 1326507024, %v5854
    %v5870 = vor.u32 %v5868, %v5869
    %vm5871 = vcmp.lt.s32.totalorder %v5852, 1
    %vm5872 = vcmp.lt.s32.totalorder %v5852, 2
    %vm5873 = vcmp.lt.s32.totalorder %v5852, 3
    %vm5874 = vcmp.lt.s32.totalorder %v5852, 4
    %v5875 = vsel %vm5871, %v5855, %v5858
    %v5876 = vsel %vm5874, %v5864, 2102212464
    %v5877 = vsel %vm5873, %v5861, %v5876
    %v5878 = vsel %vm5872, %v5875, %v5877
    %v5879 = vsel %vm5871, %v5858, %v5861
    %v5880 = vsel %vm5874, %v5867, 920167782
    %v5881 = vsel %vm5873, %v5864, %v5880
    %v5882 = vsel %vm5872, %v5879, %v5881
    %v5883 = vsel %vm5871, %v5861, %v5864
    %v5884 = vsel %vm5874, %v5870, 1326507024
    %v5885 = vsel %vm5873, %v5867, %v5884
    %v5886 = vsel %vm5872, %v5883, %v5885
    %v5887 = vshll.u32 %v5847, 8
    %v5888 = vand.u32 %v5887, 65535
    %v5889 = vshrl.u32 %v5887, 16
    %v5890 = vand.u32 %v5886, 65535
    %v5891 = vshrl.u32 %v5886, 16
    %v5892 = vmul.u32 %v5888, %v5890
    %v5893 = vmul.u32 %v5888, %v5891
    %v5894 = vmul.u32 %v5889, %v5890
    %v5895 = vmul.u32 %v5889, %v5891
    %v5896 = vshll.u32 %v5893, 16
    %v5897 = vshrl.u32 %v5893, 16
    %v5898 = vshll.u32 %v5894, 16
    %v5899 = vshrl.u32 %v5894, 16
    %vm5900 = vc.u32 %v5892, %v5896
    %v5901 = vsel %vm5900, 1, 0
    %v5902 = vadd.s32 %v5892, %v5896
    %v5903 = vadd.s32 %v5895, %v5901
    %vm5904 = vc.u32 %v5902, %v5898
    %v5905 = vsel %vm5904, 1, 0
    %v5906 = vadd.s32 %v5902, %v5898
    %v5907 = vadd.s32 %v5903, %v5905
    %v5908 = vadd.s32 %v5907, %v5897
    %v5909 = vadd.s32 %v5908, %v5899
    %v5910 = vand.u32 %v5887, 65535
    %v5911 = vshrl.u32 %v5887, 16
    %v5912 = vand.u32 %v5882, 65535
    %v5913 = vshrl.u32 %v5882, 16
    %v5914 = vmul.u32 %v5910, %v5912
    %v5915 = vmul.u32 %v5910, %v5913
    %v5916 = vmul.u32 %v5911, %v5912
    %v5917 = vmul.u32 %v5911, %v5913
    %v5918 = vshll.u32 %v5915, 16
    %v5919 = vshrl.u32 %v5915, 16
    %v5920 = vshll.u32 %v5916, 16
    %v5921 = vshrl.u32 %v5916, 16
    %vm5922 = vc.u32 %v5914, %v5918
    %v5923 = vsel %vm5922, 1, 0
    %v5924 = vadd.s32 %v5914, %v5918
    %v5925 = vadd.s32 %v5917, %v5923
    %vm5926 = vc.u32 %v5924, %v5920
    %v5927 = vsel %vm5926, 1, 0
    %v5928 = vadd.s32 %v5924, %v5920
    %v5929 = vadd.s32 %v5925, %v5927
    %v5930 = vadd.s32 %v5929, %v5919
    %v5931 = vadd.s32 %v5930, %v5921
    %v5932 = vmul.u32 %v5887, %v5878
    %v5933 = vadd.s32 %v5909, %v5928
    %vm5934 = vc.u32 %v5909, %v5928
    %v5935 = vadd.s32 %v5931, 1
    %v5936 = vsel %vm5934, %v5935, %v5931
    %v5937 = vadd.s32 %v5932, %v5936
    %v5938 = vadd.s32 %v5937, 536870912
    %v5939 = vshrl.u32 %v5938, 30
    %v5940 = vshll.u32 %v5939, 30
    %v5941 = vsub.s32 %v5937, %v5940
    %vm5942 = vcmp.lt.s32.totalorder %v5941, 0
    %v5943 = vsub.s32 0, %v5941
    %v5944 = vsel %vm5942, %v5943, %v5941
    %v5945 = vclz %v5944
    %v5946 = vsub.s32 %v5945, 2
    %vm5947 = vcmp.gt.s32.totalorder 0, %v5946
    %v5948 = vsel %vm5947, 0, %v5946
    %v5949 = vsub.s32 32, %v5948
    %v5950 = vshll.u32 %v5941, %v5948
    %v5951 = vshrl.u32 %v5933, %v5949
    %v5952 = vor.u32 %v5950, %v5951
    %v5953 = vsub.s32 4294967266, %v5948
    %v5954 = vadd.s32 %v5953, 127
    %v5955 = vshll.u32 %v5954, 23
    %v5956 = vor.u32 4788187, %v5955
    %v5957 = vand.u32 2147483647, %v5956
    %v5959 = vcvt.s32.f32 %v5952
    %v5960 = vmul.f32 %v5959, %v5957
    %v5961 = vxor.u32 %v5960, 2147483648
    %v5962 = vsel %vm5841, %v5961, %v5960
    %v5963 = vsub.s32 4, %v5939
    %v5964 = vsel %vm5841, %v5963, %v5939
    %v5965 = vsel %vm5840, %v342, %v5962
    %v5966 = vsel %vm5840, 0, %v5964
    %v5967 = vmul.f32 %v5965, %v5965
    %v5968 = vmul.f32 %v5967, -0.001358992
    %v5969 = vadd.f32 %v5968, 0.041655596
    %v5970 = vmul.f32 %v5967, %v5969
    %v5971 = vadd.f32 %v5970, -0.4999988
    %v5972 = vmul.f32 %v5967, %v5971
    %v5973 = vadd.f32 1.0, %v5972
    %v5974 = vmul.f32 %v5965, %v5965
    %v5975 = vmul.f32 %v5974, -0.00019511016
    %v5976 = vadd.f32 %v5975, 0.008332121
    %v5977 = vmul.f32 %v5974, %v5976
    %v5978 = vadd.f32 %v5977, -0.16666654
    %v5979 = vmul.f32 %v5974, %v5978
    %v5980 = vadd.f32 %v5979, 1.0
    %v5981 = vmul.f32 %v5980, %v5965
    %vm5982 = vweird.f32 %v342
    %v5983 = vadd.s32 %v5966, 3
    %v5984 = vand.u32 %v5983, 3
    %vm5985 = vcmp.lt.s32.totalorder %v5984, 2
    %vm5986 = vcmp.eq.s32.totalorder %v5984, 0
    %v5987 = vxor.u32 %v5981, 2147483648
    %v5988 = vsel %vm5986, %v5973, %v5987
    %vm5989 = vcmp.eq.s32.totalorder %v5984, 2
    %v5990 = vxor.u32 %v5973, 2147483648
    %v5991 = vsel %vm5989, %v5990, %v5981
    %v5992 = vsel %vm5985, %v5988, %v5991
    %v5993 = vsel %vm5982, nan, %v5992
    %v5994 = vand.u32 2147483647, %v345
    %vm5995 = vcmp.le.f32.partialorder %v5994, 0.7853982
    %vm5996 = vcmp.lt.s32.totalorder %v345, 0
    %v5997 = vand.u32 %v345, 2139095040
    %v5998 = vshrl.u32 %v5997, 23
    %v5999 = vsub.s32 %v5998, 127
    %v6000 = vand.u32 2147483647, %v345
    %v6001 = vand.u32 %v6000, 8388607
    %v6002 = vor.u32 %v6001, 8388608
    %v6003 = vsub.s32 0, %v6002
    %v6004 = vadd.s32 %v5999, 1
    %vm6005 = vcmp.gt.s32.totalorder %v6004, 0
    %v6006 = vsel %vm6005, %v6004, 0
    %v6007 = vshrl.u32 %v6006, 5
    %v6008 = vand.u32 %v6006, 31
    %v6009 = vsub.s32 32, %v6008
    %v6010 = vshrl.u32 683565275, %v6009
    %v6011 = vshll.u32 683565275, %v6008
    %v6012 = vshrl.u32 2475754826, %v6009
    %v6013 = vor.u32 %v6011, %v6012
    %v6014 = vshll.u32 2475754826, %v6008
    %v6015 = vshrl.u32 2131351028, %v6009
    %v6016 = vor.u32 %v6014, %v6015
    %v6017 = vshll.u32 2131351028, %v6008
    %v6018 = vshrl.u32 2102212464, %v6009
    %v6019 = vor.u32 %v6017, %v6018
    %v6020 = vshll.u32 2102212464, %v6008
    %v6021 = vshrl.u32 920167782, %v6009
    %v6022 = vor.u32 %v6020, %v6021
    %v6023 = vshll.u32 920167782, %v6008
    %v6024 = vshrl.u32 1326507024, %v6009
    %v6025 = vor.u32 %v6023, %v6024
    %vm6026 = vcmp.lt.s32.totalorder %v6007, 1
    %vm6027 = vcmp.lt.s32.totalorder %v6007, 2
    %vm6028 = vcmp.lt.s32.totalorder %v6007, 3
    %vm6029 = vcmp.lt.s32.totalorder %v6007, 4
    %v6030 = vsel %vm6026, %v6010, %v6013
    %v6031 = vsel %vm6029, %v6019, 2102212464
    %v6032 = vsel %vm6028, %v6016, %v6031
    %v6033 = vsel %vm6027, %v6030, %v6032
    %v6034 = vsel %vm6026, %v6013, %v6016
    %v6035 = vsel %vm6029, %v6022, 920167782
    %v6036 = vsel %vm6028, %v6019, %v6035
    %v6037 = vsel %vm6027, %v6034, %v6036
    %v6038 = vsel %vm6026, %v6016, %v6019
    %v6039 = vsel %vm6029, %v6025, 1326507024
    %v6040 = vsel %vm6028, %v6022, %v6039
    %v6041 = vsel %vm6027, %v6038, %v6040
    %v6042 = vshll.u32 %v6002, 8
    %v6043 = vand.u32 %v6042, 65535
    %v6044 = vshrl.u32 %v6042, 16
    %v6045 = vand.u32 %v6041, 65535
    %v6046 = vshrl.u32 %v6041, 16
    %v6047 = vmul.u32 %v6043, %v6045
    %v6048 = vmul.u32 %v6043, %v6046
    %v6049 = vmul.u32 %v6044, %v6045
    %v6050 = vmul.u32 %v6044, %v6046
    %v6051 = vshll.u32 %v6048, 16
    %v6052 = vshrl.u32 %v6048, 16
    %v6053 = vshll.u32 %v6049, 16
    %v6054 = vshrl.u32 %v6049, 16
    %vm6055 = vc.u32 %v6047, %v6051
    %v6056 = vsel %vm6055, 1, 0
    %v6057 = vadd.s32 %v6047, %v6051
    %v6058 = vadd.s32 %v6050, %v6056
    %vm6059 = vc.u32 %v6057, %v6053
    %v6060 = vsel %vm6059, 1, 0
    %v6061 = vadd.s32 %v6057, %v6053
    %v6062 = vadd.s32 %v6058, %v6060
    %v6063 = vadd.s32 %v6062, %v6052
    %v6064 = vadd.s32 %v6063, %v6054
    %v6065 = vand.u32 %v6042, 65535
    %v6066 = vshrl.u32 %v6042, 16
    %v6067 = vand.u32 %v6037, 65535
    %v6068 = vshrl.u32 %v6037, 16
    %v6069 = vmul.u32 %v6065, %v6067
    %v6070 = vmul.u32 %v6065, %v6068
    %v6071 = vmul.u32 %v6066, %v6067
    %v6072 = vmul.u32 %v6066, %v6068
    %v6073 = vshll.u32 %v6070, 16
    %v6074 = vshrl.u32 %v6070, 16
    %v6075 = vshll.u32 %v6071, 16
    %v6076 = vshrl.u32 %v6071, 16
    %vm6077 = vc.u32 %v6069, %v6073
    %v6078 = vsel %vm6077, 1, 0
    %v6079 = vadd.s32 %v6069, %v6073
    %v6080 = vadd.s32 %v6072, %v6078
    %vm6081 = vc.u32 %v6079, %v6075
    %v6082 = vsel %vm6081, 1, 0
    %v6083 = vadd.s32 %v6079, %v6075
    %v6084 = vadd.s32 %v6080, %v6082
    %v6085 = vadd.s32 %v6084, %v6074
    %v6086 = vadd.s32 %v6085, %v6076
    %v6087 = vmul.u32 %v6042, %v6033
    %v6088 = vadd.s32 %v6064, %v6083
    %vm6089 = vc.u32 %v6064, %v6083
    %v6090 = vadd.s32 %v6086, 1
    %v6091 = vsel %vm6089, %v6090, %v6086
    %v6092 = vadd.s32 %v6087, %v6091
    %v6093 = vadd.s32 %v6092, 536870912
    %v6094 = vshrl.u32 %v6093, 30
    %v6095 = vshll.u32 %v6094, 30
    %v6096 = vsub.s32 %v6092, %v6095
    %vm6097 = vcmp.lt.s32.totalorder %v6096, 0
    %v6098 = vsub.s32 0, %v6096
    %v6099 = vsel %vm6097, %v6098, %v6096
    %v6100 = vclz %v6099
    %v6101 = vsub.s32 %v6100, 2
    %vm6102 = vcmp.gt.s32.totalorder 0, %v6101
    %v6103 = vsel %vm6102, 0, %v6101
    %v6104 = vsub.s32 32, %v6103
    %v6105 = vshll.u32 %v6096, %v6103
    %v6106 = vshrl.u32 %v6088, %v6104
    %v6107 = vor.u32 %v6105, %v6106
    %v6108 = vsub.s32 4294967266, %v6103
    %v6109 = vadd.s32 %v6108, 127
    %v6110 = vshll.u32 %v6109, 23
    %v6111 = vor.u32 4788187, %v6110
    %v6112 = vand.u32 2147483647, %v6111
    %v6114 = vcvt.s32.f32 %v6107
    %v6115 = vmul.f32 %v6114, %v6112
    %v6116 = vxor.u32 %v6115, 2147483648
    %v6117 = vsel %vm5996, %v6116, %v6115
    %v6118 = vsub.s32 4, %v6094
    %v6119 = vsel %vm5996, %v6118, %v6094
    %v6120 = vsel %vm5995, %v345, %v6117
    %v6121 = vsel %vm5995, 0, %v6119
    %v6122 = vmul.f32 %v6120, %v6120
    %v6123 = vmul.f32 %v6122, -0.001358992
    %v6124 = vadd.f32 %v6123, 0.041655596
    %v6125 = vmul.f32 %v6122, %v6124
    %v6126 = vadd.f32 %v6125, -0.4999988
    %v6127 = vmul.f32 %v6122, %v6126
    %v6128 = vadd.f32 1.0, %v6127
    %v6129 = vmul.f32 %v6120, %v6120
    %v6130 = vmul.f32 %v6129, -0.00019511016
    %v6131 = vadd.f32 %v6130, 0.008332121
    %v6132 = vmul.f32 %v6129, %v6131
    %v6133 = vadd.f32 %v6132, -0.16666654
    %v6134 = vmul.f32 %v6129, %v6133
    %v6135 = vadd.f32 %v6134, 1.0
    %v6136 = vmul.f32 %v6135, %v6120
    %vm6137 = vweird.f32 %v345
    %v6138 = vadd.s32 %v6121, 3
    %v6139 = vand.u32 %v6138, 3
    %vm6140 = vcmp.lt.s32.totalorder %v6139, 2
    %vm6141 = vcmp.eq.s32.totalorder %v6139, 0
    %v6142 = vxor.u32 %v6136, 2147483648
    %v6143 = vsel %vm6141, %v6128, %v6142
    %vm6144 = vcmp.eq.s32.totalorder %v6139, 2
    %v6145 = vxor.u32 %v6128, 2147483648
    %v6146 = vsel %vm6144, %v6145, %v6136
    %v6147 = vsel %vm6140, %v6143, %v6146
    %v6148 = vsel %vm6137, nan, %v6147
    %v6149 = vand.u32 2147483647, %v347
    %vm6150 = vcmp.le.f32.partialorder %v6149, 0.7853982
    %vm6151 = vcmp.lt.s32.totalorder %v347, 0
    %v6152 = vand.u32 %v347, 2139095040
    %v6153 = vshrl.u32 %v6152, 23
    %v6154 = vsub.s32 %v6153, 127
    %v6155 = vand.u32 2147483647, %v347
    %v6156 = vand.u32 %v6155, 8388607
    %v6157 = vor.u32 %v6156, 8388608
    %v6158 = vsub.s32 0, %v6157
    %v6159 = vadd.s32 %v6154, 1
    %vm6160 = vcmp.gt.s32.totalorder %v6159, 0
    %v6161 = vsel %vm6160, %v6159, 0
    %v6162 = vshrl.u32 %v6161, 5
    %v6163 = vand.u32 %v6161, 31
    %v6164 = vsub.s32 32, %v6163
    %v6165 = vshrl.u32 683565275, %v6164
    %v6166 = vshll.u32 683565275, %v6163
    %v6167 = vshrl.u32 2475754826, %v6164
    %v6168 = vor.u32 %v6166, %v6167
    %v6169 = vshll.u32 2475754826, %v6163
    %v6170 = vshrl.u32 2131351028, %v6164
    %v6171 = vor.u32 %v6169, %v6170
    %v6172 = vshll.u32 2131351028, %v6163
    %v6173 = vshrl.u32 2102212464, %v6164
    %v6174 = vor.u32 %v6172, %v6173
    %v6175 = vshll.u32 2102212464, %v6163
    %v6176 = vshrl.u32 920167782, %v6164
    %v6177 = vor.u32 %v6175, %v6176
    %v6178 = vshll.u32 920167782, %v6163
    %v6179 = vshrl.u32 1326507024, %v6164
    %v6180 = vor.u32 %v6178, %v6179
    %vm6181 = vcmp.lt.s32.totalorder %v6162, 1
    %vm6182 = vcmp.lt.s32.totalorder %v6162, 2
    %vm6183 = vcmp.lt.s32.totalorder %v6162, 3
    %vm6184 = vcmp.lt.s32.totalorder %v6162, 4
    %v6185 = vsel %vm6181, %v6165, %v6168
    %v6186 = vsel %vm6184, %v6174, 2102212464
    %v6187 = vsel %vm6183, %v6171, %v6186
    %v6188 = vsel %vm6182, %v6185, %v6187
    %v6189 = vsel %vm6181, %v6168, %v6171
    %v6190 = vsel %vm6184, %v6177, 920167782
    %v6191 = vsel %vm6183, %v6174, %v6190
    %v6192 = vsel %vm6182, %v6189, %v6191
    %v6193 = vsel %vm6181, %v6171, %v6174
    %v6194 = vsel %vm6184, %v6180, 1326507024
    %v6195 = vsel %vm6183, %v6177, %v6194
    %v6196 = vsel %vm6182, %v6193, %v6195
    %v6197 = vshll.u32 %v6157, 8
    %v6198 = vand.u32 %v6197, 65535
    %v6199 = vshrl.u32 %v6197, 16
    %v6200 = vand.u32 %v6196, 65535
    %v6201 = vshrl.u32 %v6196, 16
    %v6202 = vmul.u32 %v6198, %v6200
    %v6203 = vmul.u32 %v6198, %v6201
    %v6204 = vmul.u32 %v6199, %v6200
    %v6205 = vmul.u32 %v6199, %v6201
    %v6206 = vshll.u32 %v6203, 16
    %v6207 = vshrl.u32 %v6203, 16
    %v6208 = vshll.u32 %v6204, 16
    %v6209 = vshrl.u32 %v6204, 16
    %vm6210 = vc.u32 %v6202, %v6206
    %v6211 = vsel %vm6210, 1, 0
    %v6212 = vadd.s32 %v6202, %v6206
    %v6213 = vadd.s32 %v6205, %v6211
    %vm6214 = vc.u32 %v6212, %v6208
    %v6215 = vsel %vm6214, 1, 0
    %v6216 = vadd.s32 %v6212, %v6208
    %v6217 = vadd.s32 %v6213, %v6215
    %v6218 = vadd.s32 %v6217, %v6207
    %v6219 = vadd.s32 %v6218, %v6209
    %v6220 = vand.u32 %v6197, 65535
    %v6221 = vshrl.u32 %v6197, 16
    %v6222 = vand.u32 %v6192, 65535
    %v6223 = vshrl.u32 %v6192, 16
    %v6224 = vmul.u32 %v6220, %v6222
    %v6225 = vmul.u32 %v6220, %v6223
    %v6226 = vmul.u32 %v6221, %v6222
    %v6227 = vmul.u32 %v6221, %v6223
    %v6228 = vshll.u32 %v6225, 16
    %v6229 = vshrl.u32 %v6225, 16
    %v6230 = vshll.u32 %v6226, 16
    %v6231 = vshrl.u32 %v6226, 16
    %vm6232 = vc.u32 %v6224, %v6228
    %v6233 = vsel %vm6232, 1, 0
    %v6234 = vadd.s32 %v6224, %v6228
    %v6235 = vadd.s32 %v6227, %v6233
    %vm6236 = vc.u32 %v6234, %v6230
    %v6237 = vsel %vm6236, 1, 0
    %v6238 = vadd.s32 %v6234, %v6230
    %v6239 = vadd.s32 %v6235, %v6237
    %v6240 = vadd.s32 %v6239, %v6229
    %v6241 = vadd.s32 %v6240, %v6231
    %v6242 = vmul.u32 %v6197, %v6188
    %v6243 = vadd.s32 %v6219, %v6238
    %vm6244 = vc.u32 %v6219, %v6238
    %v6245 = vadd.s32 %v6241, 1
    %v6246 = vsel %vm6244, %v6245, %v6241
    %v6247 = vadd.s32 %v6242, %v6246
    %v6248 = vadd.s32 %v6247, 536870912
    %v6249 = vshrl.u32 %v6248, 30
    %v6250 = vshll.u32 %v6249, 30
    %v6251 = vsub.s32 %v6247, %v6250
    %vm6252 = vcmp.lt.s32.totalorder %v6251, 0
    %v6253 = vsub.s32 0, %v6251
    %v6254 = vsel %vm6252, %v6253, %v6251
    %v6255 = vclz %v6254
    %v6256 = vsub.s32 %v6255, 2
    %vm6257 = vcmp.gt.s32.totalorder 0, %v6256
    %v6258 = vsel %vm6257, 0, %v6256
    %v6259 = vsub.s32 32, %v6258
    %v6260 = vshll.u32 %v6251, %v6258
    %v6261 = vshrl.u32 %v6243, %v6259
    %v6262 = vor.u32 %v6260, %v6261
    %v6263 = vsub.s32 4294967266, %v6258
    %v6264 = vadd.s32 %v6263, 127
    %v6265 = vshll.u32 %v6264, 23
    %v6266 = vor.u32 4788187, %v6265
    %v6267 = vand.u32 2147483647, %v6266
    %v6269 = vcvt.s32.f32 %v6262
    %v6270 = vmul.f32 %v6269, %v6267
    %v6271 = vxor.u32 %v6270, 2147483648
    %v6272 = vsel %vm6151, %v6271, %v6270
    %v6273 = vsub.s32 4, %v6249
    %v6274 = vsel %vm6151, %v6273, %v6249
    %v6275 = vsel %vm6150, %v347, %v6272
    %v6276 = vsel %vm6150, 0, %v6274
    %v6277 = vmul.f32 %v6275, %v6275
    %v6278 = vmul.f32 %v6277, -0.001358992
    %v6279 = vadd.f32 %v6278, 0.041655596
    %v6280 = vmul.f32 %v6277, %v6279
    %v6281 = vadd.f32 %v6280, -0.4999988
    %v6282 = vmul.f32 %v6277, %v6281
    %v6283 = vadd.f32 1.0, %v6282
    %v6284 = vmul.f32 %v6275, %v6275
    %v6285 = vmul.f32 %v6284, -0.00019511016
    %v6286 = vadd.f32 %v6285, 0.008332121
    %v6287 = vmul.f32 %v6284, %v6286
    %v6288 = vadd.f32 %v6287, -0.16666654
    %v6289 = vmul.f32 %v6284, %v6288
    %v6290 = vadd.f32 %v6289, 1.0
    %v6291 = vmul.f32 %v6290, %v6275
    %vm6292 = vweird.f32 %v347
    %v6293 = vadd.s32 %v6276, 3
    %v6294 = vand.u32 %v6293, 3
    %vm6295 = vcmp.lt.s32.totalorder %v6294, 2
    %vm6296 = vcmp.eq.s32.totalorder %v6294, 0
    %v6297 = vxor.u32 %v6291, 2147483648
    %v6298 = vsel %vm6296, %v6283, %v6297
    %vm6299 = vcmp.eq.s32.totalorder %v6294, 2
    %v6300 = vxor.u32 %v6283, 2147483648
    %v6301 = vsel %vm6299, %v6300, %v6291
    %v6302 = vsel %vm6295, %v6298, %v6301
    %v6303 = vsel %vm6292, nan, %v6302
    %v6304 = vand.u32 2147483647, %v350
    %vm6305 = vcmp.le.f32.partialorder %v6304, 0.7853982
    %vm6306 = vcmp.lt.s32.totalorder %v350, 0
    %v6307 = vand.u32 %v350, 2139095040
    %v6308 = vshrl.u32 %v6307, 23
    %v6309 = vsub.s32 %v6308, 127
    %v6310 = vand.u32 2147483647, %v350
    %v6311 = vand.u32 %v6310, 8388607
    %v6312 = vor.u32 %v6311, 8388608
    %v6313 = vsub.s32 0, %v6312
    %v6314 = vadd.s32 %v6309, 1
    %vm6315 = vcmp.gt.s32.totalorder %v6314, 0
    %v6316 = vsel %vm6315, %v6314, 0
    %v6317 = vshrl.u32 %v6316, 5
    %v6318 = vand.u32 %v6316, 31
    %v6319 = vsub.s32 32, %v6318
    %v6320 = vshrl.u32 683565275, %v6319
    %v6321 = vshll.u32 683565275, %v6318
    %v6322 = vshrl.u32 2475754826, %v6319
    %v6323 = vor.u32 %v6321, %v6322
    %v6324 = vshll.u32 2475754826, %v6318
    %v6325 = vshrl.u32 2131351028, %v6319
    %v6326 = vor.u32 %v6324, %v6325
    %v6327 = vshll.u32 2131351028, %v6318
    %v6328 = vshrl.u32 2102212464, %v6319
    %v6329 = vor.u32 %v6327, %v6328
    %v6330 = vshll.u32 2102212464, %v6318
    %v6331 = vshrl.u32 920167782, %v6319
    %v6332 = vor.u32 %v6330, %v6331
    %v6333 = vshll.u32 920167782, %v6318
    %v6334 = vshrl.u32 1326507024, %v6319
    %v6335 = vor.u32 %v6333, %v6334
    %vm6336 = vcmp.lt.s32.totalorder %v6317, 1
    %vm6337 = vcmp.lt.s32.totalorder %v6317, 2
    %vm6338 = vcmp.lt.s32.totalorder %v6317, 3
    %vm6339 = vcmp.lt.s32.totalorder %v6317, 4
    %v6340 = vsel %vm6336, %v6320, %v6323
    %v6341 = vsel %vm6339, %v6329, 2102212464
    %v6342 = vsel %vm6338, %v6326, %v6341
    %v6343 = vsel %vm6337, %v6340, %v6342
    %v6344 = vsel %vm6336, %v6323, %v6326
    %v6345 = vsel %vm6339, %v6332, 920167782
    %v6346 = vsel %vm6338, %v6329, %v6345
    %v6347 = vsel %vm6337, %v6344, %v6346
    %v6348 = vsel %vm6336, %v6326, %v6329
    %v6349 = vsel %vm6339, %v6335, 1326507024
    %v6350 = vsel %vm6338, %v6332, %v6349
    %v6351 = vsel %vm6337, %v6348, %v6350
    %v6352 = vshll.u32 %v6312, 8
    %v6353 = vand.u32 %v6352, 65535
    %v6354 = vshrl.u32 %v6352, 16
    %v6355 = vand.u32 %v6351, 65535
    %v6356 = vshrl.u32 %v6351, 16
    %v6357 = vmul.u32 %v6353, %v6355
    %v6358 = vmul.u32 %v6353, %v6356
    %v6359 = vmul.u32 %v6354, %v6355
    %v6360 = vmul.u32 %v6354, %v6356
    %v6361 = vshll.u32 %v6358, 16
    %v6362 = vshrl.u32 %v6358, 16
    %v6363 = vshll.u32 %v6359, 16
    %v6364 = vshrl.u32 %v6359, 16
    %vm6365 = vc.u32 %v6357, %v6361
    %v6366 = vsel %vm6365, 1, 0
    %v6367 = vadd.s32 %v6357, %v6361
    %v6368 = vadd.s32 %v6360, %v6366
    %vm6369 = vc.u32 %v6367, %v6363
    %v6370 = vsel %vm6369, 1, 0
    %v6371 = vadd.s32 %v6367, %v6363
    %v6372 = vadd.s32 %v6368, %v6370
    %v6373 = vadd.s32 %v6372, %v6362
    %v6374 = vadd.s32 %v6373, %v6364
    %v6375 = vand.u32 %v6352, 65535
    %v6376 = vshrl.u32 %v6352, 16
    %v6377 = vand.u32 %v6347, 65535
    %v6378 = vshrl.u32 %v6347, 16
    %v6379 = vmul.u32 %v6375, %v6377
    %v6380 = vmul.u32 %v6375, %v6378
    %v6381 = vmul.u32 %v6376, %v6377
    %v6382 = vmul.u32 %v6376, %v6378
    %v6383 = vshll.u32 %v6380, 16
    %v6384 = vshrl.u32 %v6380, 16
    %v6385 = vshll.u32 %v6381, 16
    %v6386 = vshrl.u32 %v6381, 16
    %vm6387 = vc.u32 %v6379, %v6383
    %v6388 = vsel %vm6387, 1, 0
    %v6389 = vadd.s32 %v6379, %v6383
    %v6390 = vadd.s32 %v6382, %v6388
    %vm6391 = vc.u32 %v6389, %v6385
    %v6392 = vsel %vm6391, 1, 0
    %v6393 = vadd.s32 %v6389, %v6385
    %v6394 = vadd.s32 %v6390, %v6392
    %v6395 = vadd.s32 %v6394, %v6384
    %v6396 = vadd.s32 %v6395, %v6386
    %v6397 = vmul.u32 %v6352, %v6343
    %v6398 = vadd.s32 %v6374, %v6393
    %vm6399 = vc.u32 %v6374, %v6393
    %v6400 = vadd.s32 %v6396, 1
    %v6401 = vsel %vm6399, %v6400, %v6396
    %v6402 = vadd.s32 %v6397, %v6401
    %v6403 = vadd.s32 %v6402, 536870912
    %v6404 = vshrl.u32 %v6403, 30
    %v6405 = vshll.u32 %v6404, 30
    %v6406 = vsub.s32 %v6402, %v6405
    %vm6407 = vcmp.lt.s32.totalorder %v6406, 0
    %v6408 = vsub.s32 0, %v6406
    %v6409 = vsel %vm6407, %v6408, %v6406
    %v6410 = vclz %v6409
    %v6411 = vsub.s32 %v6410, 2
    %vm6412 = vcmp.gt.s32.totalorder 0, %v6411
    %v6413 = vsel %vm6412, 0, %v6411
    %v6414 = vsub.s32 32, %v6413
    %v6415 = vshll.u32 %v6406, %v6413
    %v6416 = vshrl.u32 %v6398, %v6414
    %v6417 = vor.u32 %v6415, %v6416
    %v6418 = vsub.s32 4294967266, %v6413
    %v6419 = vadd.s32 %v6418, 127
    %v6420 = vshll.u32 %v6419, 23
    %v6421 = vor.u32 4788187, %v6420
    %v6422 = vand.u32 2147483647, %v6421
    %v6424 = vcvt.s32.f32 %v6417
    %v6425 = vmul.f32 %v6424, %v6422
    %v6426 = vxor.u32 %v6425, 2147483648
    %v6427 = vsel %vm6306, %v6426, %v6425
    %v6428 = vsub.s32 4, %v6404
    %v6429 = vsel %vm6306, %v6428, %v6404
    %v6430 = vsel %vm6305, %v350, %v6427
    %v6431 = vsel %vm6305, 0, %v6429
    %v6432 = vmul.f32 %v6430, %v6430
    %v6433 = vmul.f32 %v6432, -0.001358992
    %v6434 = vadd.f32 %v6433, 0.041655596
    %v6435 = vmul.f32 %v6432, %v6434
    %v6436 = vadd.f32 %v6435, -0.4999988
    %v6437 = vmul.f32 %v6432, %v6436
    %v6438 = vadd.f32 1.0, %v6437
    %v6439 = vmul.f32 %v6430, %v6430
    %v6440 = vmul.f32 %v6439, -0.00019511016
    %v6441 = vadd.f32 %v6440, 0.008332121
    %v6442 = vmul.f32 %v6439, %v6441
    %v6443 = vadd.f32 %v6442, -0.16666654
    %v6444 = vmul.f32 %v6439, %v6443
    %v6445 = vadd.f32 %v6444, 1.0
    %v6446 = vmul.f32 %v6445, %v6430
    %vm6447 = vweird.f32 %v350
    %v6448 = vadd.s32 %v6431, 3
    %v6449 = vand.u32 %v6448, 3
    %vm6450 = vcmp.lt.s32.totalorder %v6449, 2
    %vm6451 = vcmp.eq.s32.totalorder %v6449, 0
    %v6452 = vxor.u32 %v6446, 2147483648
    %v6453 = vsel %vm6451, %v6438, %v6452
    %vm6454 = vcmp.eq.s32.totalorder %v6449, 2
    %v6455 = vxor.u32 %v6438, 2147483648
    %v6456 = vsel %vm6454, %v6455, %v6446
    %v6457 = vsel %vm6450, %v6453, %v6456
    %v6458 = vsel %vm6447, nan, %v6457
    %v6459 = vand.u32 2147483647, %v352
    %vm6460 = vcmp.le.f32.partialorder %v6459, 0.7853982
    %vm6461 = vcmp.lt.s32.totalorder %v352, 0
    %v6462 = vand.u32 %v352, 2139095040
    %v6463 = vshrl.u32 %v6462, 23
    %v6464 = vsub.s32 %v6463, 127
    %v6465 = vand.u32 2147483647, %v352
    %v6466 = vand.u32 %v6465, 8388607
    %v6467 = vor.u32 %v6466, 8388608
    %v6468 = vsub.s32 0, %v6467
    %v6469 = vadd.s32 %v6464, 1
    %vm6470 = vcmp.gt.s32.totalorder %v6469, 0
    %v6471 = vsel %vm6470, %v6469, 0
    %v6472 = vshrl.u32 %v6471, 5
    %v6473 = vand.u32 %v6471, 31
    %v6474 = vsub.s32 32, %v6473
    %v6475 = vshrl.u32 683565275, %v6474
    %v6476 = vshll.u32 683565275, %v6473
    %v6477 = vshrl.u32 2475754826, %v6474
    %v6478 = vor.u32 %v6476, %v6477
    %v6479 = vshll.u32 2475754826, %v6473
    %v6480 = vshrl.u32 2131351028, %v6474
    %v6481 = vor.u32 %v6479, %v6480
    %v6482 = vshll.u32 2131351028, %v6473
    %v6483 = vshrl.u32 2102212464, %v6474
    %v6484 = vor.u32 %v6482, %v6483
    %v6485 = vshll.u32 2102212464, %v6473
    %v6486 = vshrl.u32 920167782, %v6474
    %v6487 = vor.u32 %v6485, %v6486
    %v6488 = vshll.u32 920167782, %v6473
    %v6489 = vshrl.u32 1326507024, %v6474
    %v6490 = vor.u32 %v6488, %v6489
    %vm6491 = vcmp.lt.s32.totalorder %v6472, 1
    %vm6492 = vcmp.lt.s32.totalorder %v6472, 2
    %vm6493 = vcmp.lt.s32.totalorder %v6472, 3
    %vm6494 = vcmp.lt.s32.totalorder %v6472, 4
    %v6495 = vsel %vm6491, %v6475, %v6478
    %v6496 = vsel %vm6494, %v6484, 2102212464
    %v6497 = vsel %vm6493, %v6481, %v6496
    %v6498 = vsel %vm6492, %v6495, %v6497
    %v6499 = vsel %vm6491, %v6478, %v6481
    %v6500 = vsel %vm6494, %v6487, 920167782
    %v6501 = vsel %vm6493, %v6484, %v6500
    %v6502 = vsel %vm6492, %v6499, %v6501
    %v6503 = vsel %vm6491, %v6481, %v6484
    %v6504 = vsel %vm6494, %v6490, 1326507024
    %v6505 = vsel %vm6493, %v6487, %v6504
    %v6506 = vsel %vm6492, %v6503, %v6505
    %v6507 = vshll.u32 %v6467, 8
    %v6508 = vand.u32 %v6507, 65535
    %v6509 = vshrl.u32 %v6507, 16
    %v6510 = vand.u32 %v6506, 65535
    %v6511 = vshrl.u32 %v6506, 16
    %v6512 = vmul.u32 %v6508, %v6510
    %v6513 = vmul.u32 %v6508, %v6511
    %v6514 = vmul.u32 %v6509, %v6510
    %v6515 = vmul.u32 %v6509, %v6511
    %v6516 = vshll.u32 %v6513, 16
    %v6517 = vshrl.u32 %v6513, 16
    %v6518 = vshll.u32 %v6514, 16
    %v6519 = vshrl.u32 %v6514, 16
    %vm6520 = vc.u32 %v6512, %v6516
    %v6521 = vsel %vm6520, 1, 0
    %v6522 = vadd.s32 %v6512, %v6516
    %v6523 = vadd.s32 %v6515, %v6521
    %vm6524 = vc.u32 %v6522, %v6518
    %v6525 = vsel %vm6524, 1, 0
    %v6526 = vadd.s32 %v6522, %v6518
    %v6527 = vadd.s32 %v6523, %v6525
    %v6528 = vadd.s32 %v6527, %v6517
    %v6529 = vadd.s32 %v6528, %v6519
    %v6530 = vand.u32 %v6507, 65535
    %v6531 = vshrl.u32 %v6507, 16
    %v6532 = vand.u32 %v6502, 65535
    %v6533 = vshrl.u32 %v6502, 16
    %v6534 = vmul.u32 %v6530, %v6532
    %v6535 = vmul.u32 %v6530, %v6533
    %v6536 = vmul.u32 %v6531, %v6532
    %v6537 = vmul.u32 %v6531, %v6533
    %v6538 = vshll.u32 %v6535, 16
    %v6539 = vshrl.u32 %v6535, 16
    %v6540 = vshll.u32 %v6536, 16
    %v6541 = vshrl.u32 %v6536, 16
    %vm6542 = vc.u32 %v6534, %v6538
    %v6543 = vsel %vm6542, 1, 0
    %v6544 = vadd.s32 %v6534, %v6538
    %v6545 = vadd.s32 %v6537, %v6543
    %vm6546 = vc.u32 %v6544, %v6540
    %v6547 = vsel %vm6546, 1, 0
    %v6548 = vadd.s32 %v6544, %v6540
    %v6549 = vadd.s32 %v6545, %v6547
    %v6550 = vadd.s32 %v6549, %v6539
    %v6551 = vadd.s32 %v6550, %v6541
    %v6552 = vmul.u32 %v6507, %v6498
    %v6553 = vadd.s32 %v6529, %v6548
    %vm6554 = vc.u32 %v6529, %v6548
    %v6555 = vadd.s32 %v6551, 1
    %v6556 = vsel %vm6554, %v6555, %v6551
    %v6557 = vadd.s32 %v6552, %v6556
    %v6558 = vadd.s32 %v6557, 536870912
    %v6559 = vshrl.u32 %v6558, 30
    %v6560 = vshll.u32 %v6559, 30
    %v6561 = vsub.s32 %v6557, %v6560
    %vm6562 = vcmp.lt.s32.totalorder %v6561, 0
    %v6563 = vsub.s32 0, %v6561
    %v6564 = vsel %vm6562, %v6563, %v6561
    %v6565 = vclz %v6564
    %v6566 = vsub.s32 %v6565, 2
    %vm6567 = vcmp.gt.s32.totalorder 0, %v6566
    %v6568 = vsel %vm6567, 0, %v6566
    %v6569 = vsub.s32 32, %v6568
    %v6570 = vshll.u32 %v6561, %v6568
    %v6571 = vshrl.u32 %v6553, %v6569
    %v6572 = vor.u32 %v6570, %v6571
    %v6573 = vsub.s32 4294967266, %v6568
    %v6574 = vadd.s32 %v6573, 127
    %v6575 = vshll.u32 %v6574, 23
    %v6576 = vor.u32 4788187, %v6575
    %v6577 = vand.u32 2147483647, %v6576
    %v6579 = vcvt.s32.f32 %v6572
    %v6580 = vmul.f32 %v6579, %v6577
    %v6581 = vxor.u32 %v6580, 2147483648
    %v6582 = vsel %vm6461, %v6581, %v6580
    %v6583 = vsub.s32 4, %v6559
    %v6584 = vsel %vm6461, %v6583, %v6559
    %v6585 = vsel %vm6460, %v352, %v6582
    %v6586 = vsel %vm6460, 0, %v6584
    %v6587 = vmul.f32 %v6585, %v6585
    %v6588 = vmul.f32 %v6587, -0.001358992
    %v6589 = vadd.f32 %v6588, 0.041655596
    %v6590 = vmul.f32 %v6587, %v6589
    %v6591 = vadd.f32 %v6590, -0.4999988
    %v6592 = vmul.f32 %v6587, %v6591
    %v6593 = vadd.f32 1.0, %v6592
    %v6594 = vmul.f32 %v6585, %v6585
    %v6595 = vmul.f32 %v6594, -0.00019511016
    %v6596 = vadd.f32 %v6595, 0.008332121
    %v6597 = vmul.f32 %v6594, %v6596
    %v6598 = vadd.f32 %v6597, -0.16666654
    %v6599 = vmul.f32 %v6594, %v6598
    %v6600 = vadd.f32 %v6599, 1.0
    %v6601 = vmul.f32 %v6600, %v6585
    %vm6602 = vweird.f32 %v352
    %v6603 = vadd.s32 %v6586, 3
    %v6604 = vand.u32 %v6603, 3
    %vm6605 = vcmp.lt.s32.totalorder %v6604, 2
    %vm6606 = vcmp.eq.s32.totalorder %v6604, 0
    %v6607 = vxor.u32 %v6601, 2147483648
    %v6608 = vsel %vm6606, %v6593, %v6607
    %vm6609 = vcmp.eq.s32.totalorder %v6604, 2
    %v6610 = vxor.u32 %v6593, 2147483648
    %v6611 = vsel %vm6609, %v6610, %v6601
    %v6612 = vsel %vm6605, %v6608, %v6611
    %v6613 = vsel %vm6602, nan, %v6612
    %v6614 = vand.u32 2147483647, %v355
    %vm6615 = vcmp.le.f32.partialorder %v6614, 0.7853982
    %vm6616 = vcmp.lt.s32.totalorder %v355, 0
    %v6617 = vand.u32 %v355, 2139095040
    %v6618 = vshrl.u32 %v6617, 23
    %v6619 = vsub.s32 %v6618, 127
    %v6620 = vand.u32 2147483647, %v355
    %v6621 = vand.u32 %v6620, 8388607
    %v6622 = vor.u32 %v6621, 8388608
    %v6623 = vsub.s32 0, %v6622
    %v6624 = vadd.s32 %v6619, 1
    %vm6625 = vcmp.gt.s32.totalorder %v6624, 0
    %v6626 = vsel %vm6625, %v6624, 0
    %v6627 = vshrl.u32 %v6626, 5
    %v6628 = vand.u32 %v6626, 31
    %v6629 = vsub.s32 32, %v6628
    %v6630 = vshrl.u32 683565275, %v6629
    %v6631 = vshll.u32 683565275, %v6628
    %v6632 = vshrl.u32 2475754826, %v6629
    %v6633 = vor.u32 %v6631, %v6632
    %v6634 = vshll.u32 2475754826, %v6628
    %v6635 = vshrl.u32 2131351028, %v6629
    %v6636 = vor.u32 %v6634, %v6635
    %v6637 = vshll.u32 2131351028, %v6628
    %v6638 = vshrl.u32 2102212464, %v6629
    %v6639 = vor.u32 %v6637, %v6638
    %v6640 = vshll.u32 2102212464, %v6628
    %v6641 = vshrl.u32 920167782, %v6629
    %v6642 = vor.u32 %v6640, %v6641
    %v6643 = vshll.u32 920167782, %v6628
    %v6644 = vshrl.u32 1326507024, %v6629
    %v6645 = vor.u32 %v6643, %v6644
    %vm6646 = vcmp.lt.s32.totalorder %v6627, 1
    %vm6647 = vcmp.lt.s32.totalorder %v6627, 2
    %vm6648 = vcmp.lt.s32.totalorder %v6627, 3
    %vm6649 = vcmp.lt.s32.totalorder %v6627, 4
    %v6650 = vsel %vm6646, %v6630, %v6633
    %v6651 = vsel %vm6649, %v6639, 2102212464
    %v6652 = vsel %vm6648, %v6636, %v6651
    %v6653 = vsel %vm6647, %v6650, %v6652
    %v6654 = vsel %vm6646, %v6633, %v6636
    %v6655 = vsel %vm6649, %v6642, 920167782
    %v6656 = vsel %vm6648, %v6639, %v6655
    %v6657 = vsel %vm6647, %v6654, %v6656
    %v6658 = vsel %vm6646, %v6636, %v6639
    %v6659 = vsel %vm6649, %v6645, 1326507024
    %v6660 = vsel %vm6648, %v6642, %v6659
    %v6661 = vsel %vm6647, %v6658, %v6660
    %v6662 = vshll.u32 %v6622, 8
    %v6663 = vand.u32 %v6662, 65535
    %v6664 = vshrl.u32 %v6662, 16
    %v6665 = vand.u32 %v6661, 65535
    %v6666 = vshrl.u32 %v6661, 16
    %v6667 = vmul.u32 %v6663, %v6665
    %v6668 = vmul.u32 %v6663, %v6666
    %v6669 = vmul.u32 %v6664, %v6665
    %v6670 = vmul.u32 %v6664, %v6666
    %v6671 = vshll.u32 %v6668, 16
    %v6672 = vshrl.u32 %v6668, 16
    %v6673 = vshll.u32 %v6669, 16
    %v6674 = vshrl.u32 %v6669, 16
    %vm6675 = vc.u32 %v6667, %v6671
    %v6676 = vsel %vm6675, 1, 0
    %v6677 = vadd.s32 %v6667, %v6671
    %v6678 = vadd.s32 %v6670, %v6676
    %vm6679 = vc.u32 %v6677, %v6673
    %v6680 = vsel %vm6679, 1, 0
    %v6681 = vadd.s32 %v6677, %v6673
    %v6682 = vadd.s32 %v6678, %v6680
    %v6683 = vadd.s32 %v6682, %v6672
    %v6684 = vadd.s32 %v6683, %v6674
    %v6685 = vand.u32 %v6662, 65535
    %v6686 = vshrl.u32 %v6662, 16
    %v6687 = vand.u32 %v6657, 65535
    %v6688 = vshrl.u32 %v6657, 16
    %v6689 = vmul.u32 %v6685, %v6687
    %v6690 = vmul.u32 %v6685, %v6688
    %v6691 = vmul.u32 %v6686, %v6687
    %v6692 = vmul.u32 %v6686, %v6688
    %v6693 = vshll.u32 %v6690, 16
    %v6694 = vshrl.u32 %v6690, 16
    %v6695 = vshll.u32 %v6691, 16
    %v6696 = vshrl.u32 %v6691, 16
    %vm6697 = vc.u32 %v6689, %v6693
    %v6698 = vsel %vm6697, 1, 0
    %v6699 = vadd.s32 %v6689, %v6693
    %v6700 = vadd.s32 %v6692, %v6698
    %vm6701 = vc.u32 %v6699, %v6695
    %v6702 = vsel %vm6701, 1, 0
    %v6703 = vadd.s32 %v6699, %v6695
    %v6704 = vadd.s32 %v6700, %v6702
    %v6705 = vadd.s32 %v6704, %v6694
    %v6706 = vadd.s32 %v6705, %v6696
    %v6707 = vmul.u32 %v6662, %v6653
    %v6708 = vadd.s32 %v6684, %v6703
    %vm6709 = vc.u32 %v6684, %v6703
    %v6710 = vadd.s32 %v6706, 1
    %v6711 = vsel %vm6709, %v6710, %v6706
    %v6712 = vadd.s32 %v6707, %v6711
    %v6713 = vadd.s32 %v6712, 536870912
    %v6714 = vshrl.u32 %v6713, 30
    %v6715 = vshll.u32 %v6714, 30
    %v6716 = vsub.s32 %v6712, %v6715
    %vm6717 = vcmp.lt.s32.totalorder %v6716, 0
    %v6718 = vsub.s32 0, %v6716
    %v6719 = vsel %vm6717, %v6718, %v6716
    %v6720 = vclz %v6719
    %v6721 = vsub.s32 %v6720, 2
    %vm6722 = vcmp.gt.s32.totalorder 0, %v6721
    %v6723 = vsel %vm6722, 0, %v6721
    %v6724 = vsub.s32 32, %v6723
    %v6725 = vshll.u32 %v6716, %v6723
    %v6726 = vshrl.u32 %v6708, %v6724
    %v6727 = vor.u32 %v6725, %v6726
    %v6728 = vsub.s32 4294967266, %v6723
    %v6729 = vadd.s32 %v6728, 127
    %v6730 = vshll.u32 %v6729, 23
    %v6731 = vor.u32 4788187, %v6730
    %v6732 = vand.u32 2147483647, %v6731
    %v6734 = vcvt.s32.f32 %v6727
    %v6735 = vmul.f32 %v6734, %v6732
    %v6736 = vxor.u32 %v6735, 2147483648
    %v6737 = vsel %vm6616, %v6736, %v6735
    %v6738 = vsub.s32 4, %v6714
    %v6739 = vsel %vm6616, %v6738, %v6714
    %v6740 = vsel %vm6615, %v355, %v6737
    %v6741 = vsel %vm6615, 0, %v6739
    %v6742 = vmul.f32 %v6740, %v6740
    %v6743 = vmul.f32 %v6742, -0.001358992
    %v6744 = vadd.f32 %v6743, 0.041655596
    %v6745 = vmul.f32 %v6742, %v6744
    %v6746 = vadd.f32 %v6745, -0.4999988
    %v6747 = vmul.f32 %v6742, %v6746
    %v6748 = vadd.f32 1.0, %v6747
    %v6749 = vmul.f32 %v6740, %v6740
    %v6750 = vmul.f32 %v6749, -0.00019511016
    %v6751 = vadd.f32 %v6750, 0.008332121
    %v6752 = vmul.f32 %v6749, %v6751
    %v6753 = vadd.f32 %v6752, -0.16666654
    %v6754 = vmul.f32 %v6749, %v6753
    %v6755 = vadd.f32 %v6754, 1.0
    %v6756 = vmul.f32 %v6755, %v6740
    %vm6757 = vweird.f32 %v355
    %v6758 = vadd.s32 %v6741, 3
    %v6759 = vand.u32 %v6758, 3
    %vm6760 = vcmp.lt.s32.totalorder %v6759, 2
    %vm6761 = vcmp.eq.s32.totalorder %v6759, 0
    %v6762 = vxor.u32 %v6756, 2147483648
    %v6763 = vsel %vm6761, %v6748, %v6762
    %vm6764 = vcmp.eq.s32.totalorder %v6759, 2
    %v6765 = vxor.u32 %v6748, 2147483648
    %v6766 = vsel %vm6764, %v6765, %v6756
    %v6767 = vsel %vm6760, %v6763, %v6766
    %v6768 = vsel %vm6757, nan, %v6767
    %v6769 = vand.u32 2147483647, %v357
    %vm6770 = vcmp.le.f32.partialorder %v6769, 0.7853982
    %vm6771 = vcmp.lt.s32.totalorder %v357, 0
    %v6772 = vand.u32 %v357, 2139095040
    %v6773 = vshrl.u32 %v6772, 23
    %v6774 = vsub.s32 %v6773, 127
    %v6775 = vand.u32 2147483647, %v357
    %v6776 = vand.u32 %v6775, 8388607
    %v6777 = vor.u32 %v6776, 8388608
    %v6778 = vsub.s32 0, %v6777
    %v6779 = vadd.s32 %v6774, 1
    %vm6780 = vcmp.gt.s32.totalorder %v6779, 0
    %v6781 = vsel %vm6780, %v6779, 0
    %v6782 = vshrl.u32 %v6781, 5
    %v6783 = vand.u32 %v6781, 31
    %v6784 = vsub.s32 32, %v6783
    %v6785 = vshrl.u32 683565275, %v6784
    %v6786 = vshll.u32 683565275, %v6783
    %v6787 = vshrl.u32 2475754826, %v6784
    %v6788 = vor.u32 %v6786, %v6787
    %v6789 = vshll.u32 2475754826, %v6783
    %v6790 = vshrl.u32 2131351028, %v6784
    %v6791 = vor.u32 %v6789, %v6790
    %v6792 = vshll.u32 2131351028, %v6783
    %v6793 = vshrl.u32 2102212464, %v6784
    %v6794 = vor.u32 %v6792, %v6793
    %v6795 = vshll.u32 2102212464, %v6783
    %v6796 = vshrl.u32 920167782, %v6784
    %v6797 = vor.u32 %v6795, %v6796
    %v6798 = vshll.u32 920167782, %v6783
    %v6799 = vshrl.u32 1326507024, %v6784
    %v6800 = vor.u32 %v6798, %v6799
    %vm6801 = vcmp.lt.s32.totalorder %v6782, 1
    %vm6802 = vcmp.lt.s32.totalorder %v6782, 2
    %vm6803 = vcmp.lt.s32.totalorder %v6782, 3
    %vm6804 = vcmp.lt.s32.totalorder %v6782, 4
    %v6805 = vsel %vm6801, %v6785, %v6788
    %v6806 = vsel %vm6804, %v6794, 2102212464
    %v6807 = vsel %vm6803, %v6791, %v6806
    %v6808 = vsel %vm6802, %v6805, %v6807
    %v6809 = vsel %vm6801, %v6788, %v6791
    %v6810 = vsel %vm6804, %v6797, 920167782
    %v6811 = vsel %vm6803, %v6794, %v6810
    %v6812 = vsel %vm6802, %v6809, %v6811
    %v6813 = vsel %vm6801, %v6791, %v6794
    %v6814 = vsel %vm6804, %v6800, 1326507024
    %v6815 = vsel %vm6803, %v6797, %v6814
    %v6816 = vsel %vm6802, %v6813, %v6815
    %v6817 = vshll.u32 %v6777, 8
    %v6818 = vand.u32 %v6817, 65535
    %v6819 = vshrl.u32 %v6817, 16
    %v6820 = vand.u32 %v6816, 65535
    %v6821 = vshrl.u32 %v6816, 16
    %v6822 = vmul.u32 %v6818, %v6820
    %v6823 = vmul.u32 %v6818, %v6821
    %v6824 = vmul.u32 %v6819, %v6820
    %v6825 = vmul.u32 %v6819, %v6821
    %v6826 = vshll.u32 %v6823, 16
    %v6827 = vshrl.u32 %v6823, 16
    %v6828 = vshll.u32 %v6824, 16
    %v6829 = vshrl.u32 %v6824, 16
    %vm6830 = vc.u32 %v6822, %v6826
    %v6831 = vsel %vm6830, 1, 0
    %v6832 = vadd.s32 %v6822, %v6826
    %v6833 = vadd.s32 %v6825, %v6831
    %vm6834 = vc.u32 %v6832, %v6828
    %v6835 = vsel %vm6834, 1, 0
    %v6836 = vadd.s32 %v6832, %v6828
    %v6837 = vadd.s32 %v6833, %v6835
    %v6838 = vadd.s32 %v6837, %v6827
    %v6839 = vadd.s32 %v6838, %v6829
    %v6840 = vand.u32 %v6817, 65535
    %v6841 = vshrl.u32 %v6817, 16
    %v6842 = vand.u32 %v6812, 65535
    %v6843 = vshrl.u32 %v6812, 16
    %v6844 = vmul.u32 %v6840, %v6842
    %v6845 = vmul.u32 %v6840, %v6843
    %v6846 = vmul.u32 %v6841, %v6842
    %v6847 = vmul.u32 %v6841, %v6843
    %v6848 = vshll.u32 %v6845, 16
    %v6849 = vshrl.u32 %v6845, 16
    %v6850 = vshll.u32 %v6846, 16
    %v6851 = vshrl.u32 %v6846, 16
    %vm6852 = vc.u32 %v6844, %v6848
    %v6853 = vsel %vm6852, 1, 0
    %v6854 = vadd.s32 %v6844, %v6848
    %v6855 = vadd.s32 %v6847, %v6853
    %vm6856 = vc.u32 %v6854, %v6850
    %v6857 = vsel %vm6856, 1, 0
    %v6858 = vadd.s32 %v6854, %v6850
    %v6859 = vadd.s32 %v6855, %v6857
    %v6860 = vadd.s32 %v6859, %v6849
    %v6861 = vadd.s32 %v6860, %v6851
    %v6862 = vmul.u32 %v6817, %v6808
    %v6863 = vadd.s32 %v6839, %v6858
    %vm6864 = vc.u32 %v6839, %v6858
    %v6865 = vadd.s32 %v6861, 1
    %v6866 = vsel %vm6864, %v6865, %v6861
    %v6867 = vadd.s32 %v6862, %v6866
    %v6868 = vadd.s32 %v6867, 536870912
    %v6869 = vshrl.u32 %v6868, 30
    %v6870 = vshll.u32 %v6869, 30
    %v6871 = vsub.s32 %v6867, %v6870
    %vm6872 = vcmp.lt.s32.totalorder %v6871, 0
    %v6873 = vsub.s32 0, %v6871
    %v6874 = vsel %vm6872, %v6873, %v6871
    %v6875 = vclz %v6874
    %v6876 = vsub.s32 %v6875, 2
    %vm6877 = vcmp.gt.s32.totalorder 0, %v6876
    %v6878 = vsel %vm6877, 0, %v6876
    %v6879 = vsub.s32 32, %v6878
    %v6880 = vshll.u32 %v6871, %v6878
    %v6881 = vshrl.u32 %v6863, %v6879
    %v6882 = vor.u32 %v6880, %v6881
    %v6883 = vsub.s32 4294967266, %v6878
    %v6884 = vadd.s32 %v6883, 127
    %v6885 = vshll.u32 %v6884, 23
    %v6886 = vor.u32 4788187, %v6885
    %v6887 = vand.u32 2147483647, %v6886
    %v6889 = vcvt.s32.f32 %v6882
    %v6890 = vmul.f32 %v6889, %v6887
    %v6891 = vxor.u32 %v6890, 2147483648
    %v6892 = vsel %vm6771, %v6891, %v6890
    %v6893 = vsub.s32 4, %v6869
    %v6894 = vsel %vm6771, %v6893, %v6869
    %v6895 = vsel %vm6770, %v357, %v6892
    %v6896 = vsel %vm6770, 0, %v6894
    %v6897 = vmul.f32 %v6895, %v6895
    %v6898 = vmul.f32 %v6897, -0.001358992
    %v6899 = vadd.f32 %v6898, 0.041655596
    %v6900 = vmul.f32 %v6897, %v6899
    %v6901 = vadd.f32 %v6900, -0.4999988
    %v6902 = vmul.f32 %v6897, %v6901
    %v6903 = vadd.f32 1.0, %v6902
    %v6904 = vmul.f32 %v6895, %v6895
    %v6905 = vmul.f32 %v6904, -0.00019511016
    %v6906 = vadd.f32 %v6905, 0.008332121
    %v6907 = vmul.f32 %v6904, %v6906
    %v6908 = vadd.f32 %v6907, -0.16666654
    %v6909 = vmul.f32 %v6904, %v6908
    %v6910 = vadd.f32 %v6909, 1.0
    %v6911 = vmul.f32 %v6910, %v6895
    %vm6912 = vweird.f32 %v357
    %v6913 = vadd.s32 %v6896, 3
    %v6914 = vand.u32 %v6913, 3
    %vm6915 = vcmp.lt.s32.totalorder %v6914, 2
    %vm6916 = vcmp.eq.s32.totalorder %v6914, 0
    %v6917 = vxor.u32 %v6911, 2147483648
    %v6918 = vsel %vm6916, %v6903, %v6917
    %vm6919 = vcmp.eq.s32.totalorder %v6914, 2
    %v6920 = vxor.u32 %v6903, 2147483648
    %v6921 = vsel %vm6919, %v6920, %v6911
    %v6922 = vsel %vm6915, %v6918, %v6921
    %v6923 = vsel %vm6912, nan, %v6922
    %v6924 = vand.u32 2147483647, %v360
    %vm6925 = vcmp.le.f32.partialorder %v6924, 0.7853982
    %vm6926 = vcmp.lt.s32.totalorder %v360, 0
    %v6927 = vand.u32 %v360, 2139095040
    %v6928 = vshrl.u32 %v6927, 23
    %v6929 = vsub.s32 %v6928, 127
    %v6930 = vand.u32 2147483647, %v360
    %v6931 = vand.u32 %v6930, 8388607
    %v6932 = vor.u32 %v6931, 8388608
    %v6933 = vsub.s32 0, %v6932
    %v6934 = vadd.s32 %v6929, 1
    %vm6935 = vcmp.gt.s32.totalorder %v6934, 0
    %v6936 = vsel %vm6935, %v6934, 0
    %v6937 = vshrl.u32 %v6936, 5
    %v6938 = vand.u32 %v6936, 31
    %v6939 = vsub.s32 32, %v6938
    %v6940 = vshrl.u32 683565275, %v6939
    %v6941 = vshll.u32 683565275, %v6938
    %v6942 = vshrl.u32 2475754826, %v6939
    %v6943 = vor.u32 %v6941, %v6942
    %v6944 = vshll.u32 2475754826, %v6938
    %v6945 = vshrl.u32 2131351028, %v6939
    %v6946 = vor.u32 %v6944, %v6945
    %v6947 = vshll.u32 2131351028, %v6938
    %v6948 = vshrl.u32 2102212464, %v6939
    %v6949 = vor.u32 %v6947, %v6948
    %v6950 = vshll.u32 2102212464, %v6938
    %v6951 = vshrl.u32 920167782, %v6939
    %v6952 = vor.u32 %v6950, %v6951
    %v6953 = vshll.u32 920167782, %v6938
    %v6954 = vshrl.u32 1326507024, %v6939
    %v6955 = vor.u32 %v6953, %v6954
    %vm6956 = vcmp.lt.s32.totalorder %v6937, 1
    %vm6957 = vcmp.lt.s32.totalorder %v6937, 2
    %vm6958 = vcmp.lt.s32.totalorder %v6937, 3
    %vm6959 = vcmp.lt.s32.totalorder %v6937, 4
    %v6960 = vsel %vm6956, %v6940, %v6943
    %v6961 = vsel %vm6959, %v6949, 2102212464
    %v6962 = vsel %vm6958, %v6946, %v6961
    %v6963 = vsel %vm6957, %v6960, %v6962
    %v6964 = vsel %vm6956, %v6943, %v6946
    %v6965 = vsel %vm6959, %v6952, 920167782
    %v6966 = vsel %vm6958, %v6949, %v6965
    %v6967 = vsel %vm6957, %v6964, %v6966
    %v6968 = vsel %vm6956, %v6946, %v6949
    %v6969 = vsel %vm6959, %v6955, 1326507024
    %v6970 = vsel %vm6958, %v6952, %v6969
    %v6971 = vsel %vm6957, %v6968, %v6970
    %v6972 = vshll.u32 %v6932, 8
    %v6973 = vand.u32 %v6972, 65535
    %v6974 = vshrl.u32 %v6972, 16
    %v6975 = vand.u32 %v6971, 65535
    %v6976 = vshrl.u32 %v6971, 16
    %v6977 = vmul.u32 %v6973, %v6975
    %v6978 = vmul.u32 %v6973, %v6976
    %v6979 = vmul.u32 %v6974, %v6975
    %v6980 = vmul.u32 %v6974, %v6976
    %v6981 = vshll.u32 %v6978, 16
    %v6982 = vshrl.u32 %v6978, 16
    %v6983 = vshll.u32 %v6979, 16
    %v6984 = vshrl.u32 %v6979, 16
    %vm6985 = vc.u32 %v6977, %v6981
    %v6986 = vsel %vm6985, 1, 0
    %v6987 = vadd.s32 %v6977, %v6981
    %v6988 = vadd.s32 %v6980, %v6986
    %vm6989 = vc.u32 %v6987, %v6983
    %v6990 = vsel %vm6989, 1, 0
    %v6991 = vadd.s32 %v6987, %v6983
    %v6992 = vadd.s32 %v6988, %v6990
    %v6993 = vadd.s32 %v6992, %v6982
    %v6994 = vadd.s32 %v6993, %v6984
    %v6995 = vand.u32 %v6972, 65535
    %v6996 = vshrl.u32 %v6972, 16
    %v6997 = vand.u32 %v6967, 65535
    %v6998 = vshrl.u32 %v6967, 16
    %v6999 = vmul.u32 %v6995, %v6997
    %v7000 = vmul.u32 %v6995, %v6998
    %v7001 = vmul.u32 %v6996, %v6997
    %v7002 = vmul.u32 %v6996, %v6998
    %v7003 = vshll.u32 %v7000, 16
    %v7004 = vshrl.u32 %v7000, 16
    %v7005 = vshll.u32 %v7001, 16
    %v7006 = vshrl.u32 %v7001, 16
    %vm7007 = vc.u32 %v6999, %v7003
    %v7008 = vsel %vm7007, 1, 0
    %v7009 = vadd.s32 %v6999, %v7003
    %v7010 = vadd.s32 %v7002, %v7008
    %vm7011 = vc.u32 %v7009, %v7005
    %v7012 = vsel %vm7011, 1, 0
    %v7013 = vadd.s32 %v7009, %v7005
    %v7014 = vadd.s32 %v7010, %v7012
    %v7015 = vadd.s32 %v7014, %v7004
    %v7016 = vadd.s32 %v7015, %v7006
    %v7017 = vmul.u32 %v6972, %v6963
    %v7018 = vadd.s32 %v6994, %v7013
    %vm7019 = vc.u32 %v6994, %v7013
    %v7020 = vadd.s32 %v7016, 1
    %v7021 = vsel %vm7019, %v7020, %v7016
    %v7022 = vadd.s32 %v7017, %v7021
    %v7023 = vadd.s32 %v7022, 536870912
    %v7024 = vshrl.u32 %v7023, 30
    %v7025 = vshll.u32 %v7024, 30
    %v7026 = vsub.s32 %v7022, %v7025
    %vm7027 = vcmp.lt.s32.totalorder %v7026, 0
    %v7028 = vsub.s32 0, %v7026
    %v7029 = vsel %vm7027, %v7028, %v7026
    %v7030 = vclz %v7029
    %v7031 = vsub.s32 %v7030, 2
    %vm7032 = vcmp.gt.s32.totalorder 0, %v7031
    %v7033 = vsel %vm7032, 0, %v7031
    %v7034 = vsub.s32 32, %v7033
    %v7035 = vshll.u32 %v7026, %v7033
    %v7036 = vshrl.u32 %v7018, %v7034
    %v7037 = vor.u32 %v7035, %v7036
    %v7038 = vsub.s32 4294967266, %v7033
    %v7039 = vadd.s32 %v7038, 127
    %v7040 = vshll.u32 %v7039, 23
    %v7041 = vor.u32 4788187, %v7040
    %v7042 = vand.u32 2147483647, %v7041
    %v7044 = vcvt.s32.f32 %v7037
    %v7045 = vmul.f32 %v7044, %v7042
    %v7046 = vxor.u32 %v7045, 2147483648
    %v7047 = vsel %vm6926, %v7046, %v7045
    %v7048 = vsub.s32 4, %v7024
    %v7049 = vsel %vm6926, %v7048, %v7024
    %v7050 = vsel %vm6925, %v360, %v7047
    %v7051 = vsel %vm6925, 0, %v7049
    %v7052 = vmul.f32 %v7050, %v7050
    %v7053 = vmul.f32 %v7052, -0.001358992
    %v7054 = vadd.f32 %v7053, 0.041655596
    %v7055 = vmul.f32 %v7052, %v7054
    %v7056 = vadd.f32 %v7055, -0.4999988
    %v7057 = vmul.f32 %v7052, %v7056
    %v7058 = vadd.f32 1.0, %v7057
    %v7059 = vmul.f32 %v7050, %v7050
    %v7060 = vmul.f32 %v7059, -0.00019511016
    %v7061 = vadd.f32 %v7060, 0.008332121
    %v7062 = vmul.f32 %v7059, %v7061
    %v7063 = vadd.f32 %v7062, -0.16666654
    %v7064 = vmul.f32 %v7059, %v7063
    %v7065 = vadd.f32 %v7064, 1.0
    %v7066 = vmul.f32 %v7065, %v7050
    %vm7067 = vweird.f32 %v360
    %v7068 = vadd.s32 %v7051, 3
    %v7069 = vand.u32 %v7068, 3
    %vm7070 = vcmp.lt.s32.totalorder %v7069, 2
    %vm7071 = vcmp.eq.s32.totalorder %v7069, 0
    %v7072 = vxor.u32 %v7066, 2147483648
    %v7073 = vsel %vm7071, %v7058, %v7072
    %vm7074 = vcmp.eq.s32.totalorder %v7069, 2
    %v7075 = vxor.u32 %v7058, 2147483648
    %v7076 = vsel %vm7074, %v7075, %v7066
    %v7077 = vsel %vm7070, %v7073, %v7076
    %v7078 = vsel %vm7067, nan, %v7077
    %v7079 = vand.u32 2147483647, %v362
    %vm7080 = vcmp.le.f32.partialorder %v7079, 0.7853982
    %vm7081 = vcmp.lt.s32.totalorder %v362, 0
    %v7082 = vand.u32 %v362, 2139095040
    %v7083 = vshrl.u32 %v7082, 23
    %v7084 = vsub.s32 %v7083, 127
    %v7085 = vand.u32 2147483647, %v362
    %v7086 = vand.u32 %v7085, 8388607
    %v7087 = vor.u32 %v7086, 8388608
    %v7088 = vsub.s32 0, %v7087
    %v7089 = vadd.s32 %v7084, 1
    %vm7090 = vcmp.gt.s32.totalorder %v7089, 0
    %v7091 = vsel %vm7090, %v7089, 0
    %v7092 = vshrl.u32 %v7091, 5
    %v7093 = vand.u32 %v7091, 31
    %v7094 = vsub.s32 32, %v7093
    %v7095 = vshrl.u32 683565275, %v7094
    %v7096 = vshll.u32 683565275, %v7093
    %v7097 = vshrl.u32 2475754826, %v7094
    %v7098 = vor.u32 %v7096, %v7097
    %v7099 = vshll.u32 2475754826, %v7093
    %v7100 = vshrl.u32 2131351028, %v7094
    %v7101 = vor.u32 %v7099, %v7100
    %v7102 = vshll.u32 2131351028, %v7093
    %v7103 = vshrl.u32 2102212464, %v7094
    %v7104 = vor.u32 %v7102, %v7103
    %v7105 = vshll.u32 2102212464, %v7093
    %v7106 = vshrl.u32 920167782, %v7094
    %v7107 = vor.u32 %v7105, %v7106
    %v7108 = vshll.u32 920167782, %v7093
    %v7109 = vshrl.u32 1326507024, %v7094
    %v7110 = vor.u32 %v7108, %v7109
    %vm7111 = vcmp.lt.s32.totalorder %v7092, 1
    %vm7112 = vcmp.lt.s32.totalorder %v7092, 2
    %vm7113 = vcmp.lt.s32.totalorder %v7092, 3
    %vm7114 = vcmp.lt.s32.totalorder %v7092, 4
    %v7115 = vsel %vm7111, %v7095, %v7098
    %v7116 = vsel %vm7114, %v7104, 2102212464
    %v7117 = vsel %vm7113, %v7101, %v7116
    %v7118 = vsel %vm7112, %v7115, %v7117
    %v7119 = vsel %vm7111, %v7098, %v7101
    %v7120 = vsel %vm7114, %v7107, 920167782
    %v7121 = vsel %vm7113, %v7104, %v7120
    %v7122 = vsel %vm7112, %v7119, %v7121
    %v7123 = vsel %vm7111, %v7101, %v7104
    %v7124 = vsel %vm7114, %v7110, 1326507024
    %v7125 = vsel %vm7113, %v7107, %v7124
    %v7126 = vsel %vm7112, %v7123, %v7125
    %v7127 = vshll.u32 %v7087, 8
    %v7128 = vand.u32 %v7127, 65535
    %v7129 = vshrl.u32 %v7127, 16
    %v7130 = vand.u32 %v7126, 65535
    %v7131 = vshrl.u32 %v7126, 16
    %v7132 = vmul.u32 %v7128, %v7130
    %v7133 = vmul.u32 %v7128, %v7131
    %v7134 = vmul.u32 %v7129, %v7130
    %v7135 = vmul.u32 %v7129, %v7131
    %v7136 = vshll.u32 %v7133, 16
    %v7137 = vshrl.u32 %v7133, 16
    %v7138 = vshll.u32 %v7134, 16
    %v7139 = vshrl.u32 %v7134, 16
    %vm7140 = vc.u32 %v7132, %v7136
    %v7141 = vsel %vm7140, 1, 0
    %v7142 = vadd.s32 %v7132, %v7136
    %v7143 = vadd.s32 %v7135, %v7141
    %vm7144 = vc.u32 %v7142, %v7138
    %v7145 = vsel %vm7144, 1, 0
    %v7146 = vadd.s32 %v7142, %v7138
    %v7147 = vadd.s32 %v7143, %v7145
    %v7148 = vadd.s32 %v7147, %v7137
    %v7149 = vadd.s32 %v7148, %v7139
    %v7150 = vand.u32 %v7127, 65535
    %v7151 = vshrl.u32 %v7127, 16
    %v7152 = vand.u32 %v7122, 65535
    %v7153 = vshrl.u32 %v7122, 16
    %v7154 = vmul.u32 %v7150, %v7152
    %v7155 = vmul.u32 %v7150, %v7153
    %v7156 = vmul.u32 %v7151, %v7152
    %v7157 = vmul.u32 %v7151, %v7153
    %v7158 = vshll.u32 %v7155, 16
    %v7159 = vshrl.u32 %v7155, 16
    %v7160 = vshll.u32 %v7156, 16
    %v7161 = vshrl.u32 %v7156, 16
    %vm7162 = vc.u32 %v7154, %v7158
    %v7163 = vsel %vm7162, 1, 0
    %v7164 = vadd.s32 %v7154, %v7158
    %v7165 = vadd.s32 %v7157, %v7163
    %vm7166 = vc.u32 %v7164, %v7160
    %v7167 = vsel %vm7166, 1, 0
    %v7168 = vadd.s32 %v7164, %v7160
    %v7169 = vadd.s32 %v7165, %v7167
    %v7170 = vadd.s32 %v7169, %v7159
    %v7171 = vadd.s32 %v7170, %v7161
    %v7172 = vmul.u32 %v7127, %v7118
    %v7173 = vadd.s32 %v7149, %v7168
    %vm7174 = vc.u32 %v7149, %v7168
    %v7175 = vadd.s32 %v7171, 1
    %v7176 = vsel %vm7174, %v7175, %v7171
    %v7177 = vadd.s32 %v7172, %v7176
    %v7178 = vadd.s32 %v7177, 536870912
    %v7179 = vshrl.u32 %v7178, 30
    %v7180 = vshll.u32 %v7179, 30
    %v7181 = vsub.s32 %v7177, %v7180
    %vm7182 = vcmp.lt.s32.totalorder %v7181, 0
    %v7183 = vsub.s32 0, %v7181
    %v7184 = vsel %vm7182, %v7183, %v7181
    %v7185 = vclz %v7184
    %v7186 = vsub.s32 %v7185, 2
    %vm7187 = vcmp.gt.s32.totalorder 0, %v7186
    %v7188 = vsel %vm7187, 0, %v7186
    %v7189 = vsub.s32 32, %v7188
    %v7190 = vshll.u32 %v7181, %v7188
    %v7191 = vshrl.u32 %v7173, %v7189
    %v7192 = vor.u32 %v7190, %v7191
    %v7193 = vsub.s32 4294967266, %v7188
    %v7194 = vadd.s32 %v7193, 127
    %v7195 = vshll.u32 %v7194, 23
    %v7196 = vor.u32 4788187, %v7195
    %v7197 = vand.u32 2147483647, %v7196
    %v7199 = vcvt.s32.f32 %v7192
    %v7200 = vmul.f32 %v7199, %v7197
    %v7201 = vxor.u32 %v7200, 2147483648
    %v7202 = vsel %vm7081, %v7201, %v7200
    %v7203 = vsub.s32 4, %v7179
    %v7204 = vsel %vm7081, %v7203, %v7179
    %v7205 = vsel %vm7080, %v362, %v7202
    %v7206 = vsel %vm7080, 0, %v7204
    %v7207 = vmul.f32 %v7205, %v7205
    %v7208 = vmul.f32 %v7207, -0.001358992
    %v7209 = vadd.f32 %v7208, 0.041655596
    %v7210 = vmul.f32 %v7207, %v7209
    %v7211 = vadd.f32 %v7210, -0.4999988
    %v7212 = vmul.f32 %v7207, %v7211
    %v7213 = vadd.f32 1.0, %v7212
    %v7214 = vmul.f32 %v7205, %v7205
    %v7215 = vmul.f32 %v7214, -0.00019511016
    %v7216 = vadd.f32 %v7215, 0.008332121
    %v7217 = vmul.f32 %v7214, %v7216
    %v7218 = vadd.f32 %v7217, -0.16666654
    %v7219 = vmul.f32 %v7214, %v7218
    %v7220 = vadd.f32 %v7219, 1.0
    %v7221 = vmul.f32 %v7220, %v7205
    %vm7222 = vweird.f32 %v362
    %v7223 = vadd.s32 %v7206, 3
    %v7224 = vand.u32 %v7223, 3
    %vm7225 = vcmp.lt.s32.totalorder %v7224, 2
    %vm7226 = vcmp.eq.s32.totalorder %v7224, 0
    %v7227 = vxor.u32 %v7221, 2147483648
    %v7228 = vsel %vm7226, %v7213, %v7227
    %vm7229 = vcmp.eq.s32.totalorder %v7224, 2
    %v7230 = vxor.u32 %v7213, 2147483648
    %v7231 = vsel %vm7229, %v7230, %v7221
    %v7232 = vsel %vm7225, %v7228, %v7231
    %v7233 = vsel %vm7222, nan, %v7232
    %v7234 = vand.u32 2147483647, %v365
    %vm7235 = vcmp.le.f32.partialorder %v7234, 0.7853982
    %vm7236 = vcmp.lt.s32.totalorder %v365, 0
    %v7237 = vand.u32 %v365, 2139095040
    %v7238 = vshrl.u32 %v7237, 23
    %v7239 = vsub.s32 %v7238, 127
    %v7240 = vand.u32 2147483647, %v365
    %v7241 = vand.u32 %v7240, 8388607
    %v7242 = vor.u32 %v7241, 8388608
    %v7243 = vsub.s32 0, %v7242
    %v7244 = vadd.s32 %v7239, 1
    %vm7245 = vcmp.gt.s32.totalorder %v7244, 0
    %v7246 = vsel %vm7245, %v7244, 0
    %v7247 = vshrl.u32 %v7246, 5
    %v7248 = vand.u32 %v7246, 31
    %v7249 = vsub.s32 32, %v7248
    %v7250 = vshrl.u32 683565275, %v7249
    %v7251 = vshll.u32 683565275, %v7248
    %v7252 = vshrl.u32 2475754826, %v7249
    %v7253 = vor.u32 %v7251, %v7252
    %v7254 = vshll.u32 2475754826, %v7248
    %v7255 = vshrl.u32 2131351028, %v7249
    %v7256 = vor.u32 %v7254, %v7255
    %v7257 = vshll.u32 2131351028, %v7248
    %v7258 = vshrl.u32 2102212464, %v7249
    %v7259 = vor.u32 %v7257, %v7258
    %v7260 = vshll.u32 2102212464, %v7248
    %v7261 = vshrl.u32 920167782, %v7249
    %v7262 = vor.u32 %v7260, %v7261
    %v7263 = vshll.u32 920167782, %v7248
    %v7264 = vshrl.u32 1326507024, %v7249
    %v7265 = vor.u32 %v7263, %v7264
    %vm7266 = vcmp.lt.s32.totalorder %v7247, 1
    %vm7267 = vcmp.lt.s32.totalorder %v7247, 2
    %vm7268 = vcmp.lt.s32.totalorder %v7247, 3
    %vm7269 = vcmp.lt.s32.totalorder %v7247, 4
    %v7270 = vsel %vm7266, %v7250, %v7253
    %v7271 = vsel %vm7269, %v7259, 2102212464
    %v7272 = vsel %vm7268, %v7256, %v7271
    %v7273 = vsel %vm7267, %v7270, %v7272
    %v7274 = vsel %vm7266, %v7253, %v7256
    %v7275 = vsel %vm7269, %v7262, 920167782
    %v7276 = vsel %vm7268, %v7259, %v7275
    %v7277 = vsel %vm7267, %v7274, %v7276
    %v7278 = vsel %vm7266, %v7256, %v7259
    %v7279 = vsel %vm7269, %v7265, 1326507024
    %v7280 = vsel %vm7268, %v7262, %v7279
    %v7281 = vsel %vm7267, %v7278, %v7280
    %v7282 = vshll.u32 %v7242, 8
    %v7283 = vand.u32 %v7282, 65535
    %v7284 = vshrl.u32 %v7282, 16
    %v7285 = vand.u32 %v7281, 65535
    %v7286 = vshrl.u32 %v7281, 16
    %v7287 = vmul.u32 %v7283, %v7285
    %v7288 = vmul.u32 %v7283, %v7286
    %v7289 = vmul.u32 %v7284, %v7285
    %v7290 = vmul.u32 %v7284, %v7286
    %v7291 = vshll.u32 %v7288, 16
    %v7292 = vshrl.u32 %v7288, 16
    %v7293 = vshll.u32 %v7289, 16
    %v7294 = vshrl.u32 %v7289, 16
    %vm7295 = vc.u32 %v7287, %v7291
    %v7296 = vsel %vm7295, 1, 0
    %v7297 = vadd.s32 %v7287, %v7291
    %v7298 = vadd.s32 %v7290, %v7296
    %vm7299 = vc.u32 %v7297, %v7293
    %v7300 = vsel %vm7299, 1, 0
    %v7301 = vadd.s32 %v7297, %v7293
    %v7302 = vadd.s32 %v7298, %v7300
    %v7303 = vadd.s32 %v7302, %v7292
    %v7304 = vadd.s32 %v7303, %v7294
    %v7305 = vand.u32 %v7282, 65535
    %v7306 = vshrl.u32 %v7282, 16
    %v7307 = vand.u32 %v7277, 65535
    %v7308 = vshrl.u32 %v7277, 16
    %v7309 = vmul.u32 %v7305, %v7307
    %v7310 = vmul.u32 %v7305, %v7308
    %v7311 = vmul.u32 %v7306, %v7307
    %v7312 = vmul.u32 %v7306, %v7308
    %v7313 = vshll.u32 %v7310, 16
    %v7314 = vshrl.u32 %v7310, 16
    %v7315 = vshll.u32 %v7311, 16
    %v7316 = vshrl.u32 %v7311, 16
    %vm7317 = vc.u32 %v7309, %v7313
    %v7318 = vsel %vm7317, 1, 0
    %v7319 = vadd.s32 %v7309, %v7313
    %v7320 = vadd.s32 %v7312, %v7318
    %vm7321 = vc.u32 %v7319, %v7315
    %v7322 = vsel %vm7321, 1, 0
    %v7323 = vadd.s32 %v7319, %v7315
    %v7324 = vadd.s32 %v7320, %v7322
    %v7325 = vadd.s32 %v7324, %v7314
    %v7326 = vadd.s32 %v7325, %v7316
    %v7327 = vmul.u32 %v7282, %v7273
    %v7328 = vadd.s32 %v7304, %v7323
    %vm7329 = vc.u32 %v7304, %v7323
    %v7330 = vadd.s32 %v7326, 1
    %v7331 = vsel %vm7329, %v7330, %v7326
    %v7332 = vadd.s32 %v7327, %v7331
    %v7333 = vadd.s32 %v7332, 536870912
    %v7334 = vshrl.u32 %v7333, 30
    %v7335 = vshll.u32 %v7334, 30
    %v7336 = vsub.s32 %v7332, %v7335
    %vm7337 = vcmp.lt.s32.totalorder %v7336, 0
    %v7338 = vsub.s32 0, %v7336
    %v7339 = vsel %vm7337, %v7338, %v7336
    %v7340 = vclz %v7339
    %v7341 = vsub.s32 %v7340, 2
    %vm7342 = vcmp.gt.s32.totalorder 0, %v7341
    %v7343 = vsel %vm7342, 0, %v7341
    %v7344 = vsub.s32 32, %v7343
    %v7345 = vshll.u32 %v7336, %v7343
    %v7346 = vshrl.u32 %v7328, %v7344
    %v7347 = vor.u32 %v7345, %v7346
    %v7348 = vsub.s32 4294967266, %v7343
    %v7349 = vadd.s32 %v7348, 127
    %v7350 = vshll.u32 %v7349, 23
    %v7351 = vor.u32 4788187, %v7350
    %v7352 = vand.u32 2147483647, %v7351
    %v7354 = vcvt.s32.f32 %v7347
    %v7355 = vmul.f32 %v7354, %v7352
    %v7356 = vxor.u32 %v7355, 2147483648
    %v7357 = vsel %vm7236, %v7356, %v7355
    %v7358 = vsub.s32 4, %v7334
    %v7359 = vsel %vm7236, %v7358, %v7334
    %v7360 = vsel %vm7235, %v365, %v7357
    %v7361 = vsel %vm7235, 0, %v7359
    %v7362 = vmul.f32 %v7360, %v7360
    %v7363 = vmul.f32 %v7362, -0.001358992
    %v7364 = vadd.f32 %v7363, 0.041655596
    %v7365 = vmul.f32 %v7362, %v7364
    %v7366 = vadd.f32 %v7365, -0.4999988
    %v7367 = vmul.f32 %v7362, %v7366
    %v7368 = vadd.f32 1.0, %v7367
    %v7369 = vmul.f32 %v7360, %v7360
    %v7370 = vmul.f32 %v7369, -0.00019511016
    %v7371 = vadd.f32 %v7370, 0.008332121
    %v7372 = vmul.f32 %v7369, %v7371
    %v7373 = vadd.f32 %v7372, -0.16666654
    %v7374 = vmul.f32 %v7369, %v7373
    %v7375 = vadd.f32 %v7374, 1.0
    %v7376 = vmul.f32 %v7375, %v7360
    %vm7377 = vweird.f32 %v365
    %v7378 = vadd.s32 %v7361, 3
    %v7379 = vand.u32 %v7378, 3
    %vm7380 = vcmp.lt.s32.totalorder %v7379, 2
    %vm7381 = vcmp.eq.s32.totalorder %v7379, 0
    %v7382 = vxor.u32 %v7376, 2147483648
    %v7383 = vsel %vm7381, %v7368, %v7382
    %vm7384 = vcmp.eq.s32.totalorder %v7379, 2
    %v7385 = vxor.u32 %v7368, 2147483648
    %v7386 = vsel %vm7384, %v7385, %v7376
    %v7387 = vsel %vm7380, %v7383, %v7386
    %v7388 = vsel %vm7377, nan, %v7387
    %v7389 = vand.u32 2147483647, %v367
    %vm7390 = vcmp.le.f32.partialorder %v7389, 0.7853982
    %vm7391 = vcmp.lt.s32.totalorder %v367, 0
    %v7392 = vand.u32 %v367, 2139095040
    %v7393 = vshrl.u32 %v7392, 23
    %v7394 = vsub.s32 %v7393, 127
    %v7395 = vand.u32 2147483647, %v367
    %v7396 = vand.u32 %v7395, 8388607
    %v7397 = vor.u32 %v7396, 8388608
    %v7398 = vsub.s32 0, %v7397
    %v7399 = vadd.s32 %v7394, 1
    %vm7400 = vcmp.gt.s32.totalorder %v7399, 0
    %v7401 = vsel %vm7400, %v7399, 0
    %v7402 = vshrl.u32 %v7401, 5
    %v7403 = vand.u32 %v7401, 31
    %v7404 = vsub.s32 32, %v7403
    %v7405 = vshrl.u32 683565275, %v7404
    %v7406 = vshll.u32 683565275, %v7403
    %v7407 = vshrl.u32 2475754826, %v7404
    %v7408 = vor.u32 %v7406, %v7407
    %v7409 = vshll.u32 2475754826, %v7403
    %v7410 = vshrl.u32 2131351028, %v7404
    %v7411 = vor.u32 %v7409, %v7410
    %v7412 = vshll.u32 2131351028, %v7403
    %v7413 = vshrl.u32 2102212464, %v7404
    %v7414 = vor.u32 %v7412, %v7413
    %v7415 = vshll.u32 2102212464, %v7403
    %v7416 = vshrl.u32 920167782, %v7404
    %v7417 = vor.u32 %v7415, %v7416
    %v7418 = vshll.u32 920167782, %v7403
    %v7419 = vshrl.u32 1326507024, %v7404
    %v7420 = vor.u32 %v7418, %v7419
    %vm7421 = vcmp.lt.s32.totalorder %v7402, 1
    %vm7422 = vcmp.lt.s32.totalorder %v7402, 2
    %vm7423 = vcmp.lt.s32.totalorder %v7402, 3
    %vm7424 = vcmp.lt.s32.totalorder %v7402, 4
    %v7425 = vsel %vm7421, %v7405, %v7408
    %v7426 = vsel %vm7424, %v7414, 2102212464
    %v7427 = vsel %vm7423, %v7411, %v7426
    %v7428 = vsel %vm7422, %v7425, %v7427
    %v7429 = vsel %vm7421, %v7408, %v7411
    %v7430 = vsel %vm7424, %v7417, 920167782
    %v7431 = vsel %vm7423, %v7414, %v7430
    %v7432 = vsel %vm7422, %v7429, %v7431
    %v7433 = vsel %vm7421, %v7411, %v7414
    %v7434 = vsel %vm7424, %v7420, 1326507024
    %v7435 = vsel %vm7423, %v7417, %v7434
    %v7436 = vsel %vm7422, %v7433, %v7435
    %v7437 = vshll.u32 %v7397, 8
    %v7438 = vand.u32 %v7437, 65535
    %v7439 = vshrl.u32 %v7437, 16
    %v7440 = vand.u32 %v7436, 65535
    %v7441 = vshrl.u32 %v7436, 16
    %v7442 = vmul.u32 %v7438, %v7440
    %v7443 = vmul.u32 %v7438, %v7441
    %v7444 = vmul.u32 %v7439, %v7440
    %v7445 = vmul.u32 %v7439, %v7441
    %v7446 = vshll.u32 %v7443, 16
    %v7447 = vshrl.u32 %v7443, 16
    %v7448 = vshll.u32 %v7444, 16
    %v7449 = vshrl.u32 %v7444, 16
    %vm7450 = vc.u32 %v7442, %v7446
    %v7451 = vsel %vm7450, 1, 0
    %v7452 = vadd.s32 %v7442, %v7446
    %v7453 = vadd.s32 %v7445, %v7451
    %vm7454 = vc.u32 %v7452, %v7448
    %v7455 = vsel %vm7454, 1, 0
    %v7456 = vadd.s32 %v7452, %v7448
    %v7457 = vadd.s32 %v7453, %v7455
    %v7458 = vadd.s32 %v7457, %v7447
    %v7459 = vadd.s32 %v7458, %v7449
    %v7460 = vand.u32 %v7437, 65535
    %v7461 = vshrl.u32 %v7437, 16
    %v7462 = vand.u32 %v7432, 65535
    %v7463 = vshrl.u32 %v7432, 16
    %v7464 = vmul.u32 %v7460, %v7462
    %v7465 = vmul.u32 %v7460, %v7463
    %v7466 = vmul.u32 %v7461, %v7462
    %v7467 = vmul.u32 %v7461, %v7463
    %v7468 = vshll.u32 %v7465, 16
    %v7469 = vshrl.u32 %v7465, 16
    %v7470 = vshll.u32 %v7466, 16
    %v7471 = vshrl.u32 %v7466, 16
    %vm7472 = vc.u32 %v7464, %v7468
    %v7473 = vsel %vm7472, 1, 0
    %v7474 = vadd.s32 %v7464, %v7468
    %v7475 = vadd.s32 %v7467, %v7473
    %vm7476 = vc.u32 %v7474, %v7470
    %v7477 = vsel %vm7476, 1, 0
    %v7478 = vadd.s32 %v7474, %v7470
    %v7479 = vadd.s32 %v7475, %v7477
    %v7480 = vadd.s32 %v7479, %v7469
    %v7481 = vadd.s32 %v7480, %v7471
    %v7482 = vmul.u32 %v7437, %v7428
    %v7483 = vadd.s32 %v7459, %v7478
    %vm7484 = vc.u32 %v7459, %v7478
    %v7485 = vadd.s32 %v7481, 1
    %v7486 = vsel %vm7484, %v7485, %v7481
    %v7487 = vadd.s32 %v7482, %v7486
    %v7488 = vadd.s32 %v7487, 536870912
    %v7489 = vshrl.u32 %v7488, 30
    %v7490 = vshll.u32 %v7489, 30
    %v7491 = vsub.s32 %v7487, %v7490
    %vm7492 = vcmp.lt.s32.totalorder %v7491, 0
    %v7493 = vsub.s32 0, %v7491
    %v7494 = vsel %vm7492, %v7493, %v7491
    %v7495 = vclz %v7494
    %v7496 = vsub.s32 %v7495, 2
    %vm7497 = vcmp.gt.s32.totalorder 0, %v7496
    %v7498 = vsel %vm7497, 0, %v7496
    %v7499 = vsub.s32 32, %v7498
    %v7500 = vshll.u32 %v7491, %v7498
    %v7501 = vshrl.u32 %v7483, %v7499
    %v7502 = vor.u32 %v7500, %v7501
    %v7503 = vsub.s32 4294967266, %v7498
    %v7504 = vadd.s32 %v7503, 127
    %v7505 = vshll.u32 %v7504, 23
    %v7506 = vor.u32 4788187, %v7505
    %v7507 = vand.u32 2147483647, %v7506
    %v7509 = vcvt.s32.f32 %v7502
    %v7510 = vmul.f32 %v7509, %v7507
    %v7511 = vxor.u32 %v7510, 2147483648
    %v7512 = vsel %vm7391, %v7511, %v7510
    %v7513 = vsub.s32 4, %v7489
    %v7514 = vsel %vm7391, %v7513, %v7489
    %v7515 = vsel %vm7390, %v367, %v7512
    %v7516 = vsel %vm7390, 0, %v7514
    %v7517 = vmul.f32 %v7515, %v7515
    %v7518 = vmul.f32 %v7517, -0.001358992
    %v7519 = vadd.f32 %v7518, 0.041655596
    %v7520 = vmul.f32 %v7517, %v7519
    %v7521 = vadd.f32 %v7520, -0.4999988
    %v7522 = vmul.f32 %v7517, %v7521
    %v7523 = vadd.f32 1.0, %v7522
    %v7524 = vmul.f32 %v7515, %v7515
    %v7525 = vmul.f32 %v7524, -0.00019511016
    %v7526 = vadd.f32 %v7525, 0.008332121
    %v7527 = vmul.f32 %v7524, %v7526
    %v7528 = vadd.f32 %v7527, -0.16666654
    %v7529 = vmul.f32 %v7524, %v7528
    %v7530 = vadd.f32 %v7529, 1.0
    %v7531 = vmul.f32 %v7530, %v7515
    %vm7532 = vweird.f32 %v367
    %v7533 = vadd.s32 %v7516, 3
    %v7534 = vand.u32 %v7533, 3
    %vm7535 = vcmp.lt.s32.totalorder %v7534, 2
    %vm7536 = vcmp.eq.s32.totalorder %v7534, 0
    %v7537 = vxor.u32 %v7531, 2147483648
    %v7538 = vsel %vm7536, %v7523, %v7537
    %vm7539 = vcmp.eq.s32.totalorder %v7534, 2
    %v7540 = vxor.u32 %v7523, 2147483648
    %v7541 = vsel %vm7539, %v7540, %v7531
    %v7542 = vsel %vm7535, %v7538, %v7541
    %v7543 = vsel %vm7532, nan, %v7542
    %v7544 = vand.u32 2147483647, %v370
    %vm7545 = vcmp.le.f32.partialorder %v7544, 0.7853982
    %vm7546 = vcmp.lt.s32.totalorder %v370, 0
    %v7547 = vand.u32 %v370, 2139095040
    %v7548 = vshrl.u32 %v7547, 23
    %v7549 = vsub.s32 %v7548, 127
    %v7550 = vand.u32 2147483647, %v370
    %v7551 = vand.u32 %v7550, 8388607
    %v7552 = vor.u32 %v7551, 8388608
    %v7553 = vsub.s32 0, %v7552
    %v7554 = vadd.s32 %v7549, 1
    %vm7555 = vcmp.gt.s32.totalorder %v7554, 0
    %v7556 = vsel %vm7555, %v7554, 0
    %v7557 = vshrl.u32 %v7556, 5
    %v7558 = vand.u32 %v7556, 31
    %v7559 = vsub.s32 32, %v7558
    %v7560 = vshrl.u32 683565275, %v7559
    %v7561 = vshll.u32 683565275, %v7558
    %v7562 = vshrl.u32 2475754826, %v7559
    %v7563 = vor.u32 %v7561, %v7562
    %v7564 = vshll.u32 2475754826, %v7558
    %v7565 = vshrl.u32 2131351028, %v7559
    %v7566 = vor.u32 %v7564, %v7565
    %v7567 = vshll.u32 2131351028, %v7558
    %v7568 = vshrl.u32 2102212464, %v7559
    %v7569 = vor.u32 %v7567, %v7568
    %v7570 = vshll.u32 2102212464, %v7558
    %v7571 = vshrl.u32 920167782, %v7559
    %v7572 = vor.u32 %v7570, %v7571
    %v7573 = vshll.u32 920167782, %v7558
    %v7574 = vshrl.u32 1326507024, %v7559
    %v7575 = vor.u32 %v7573, %v7574
    %vm7576 = vcmp.lt.s32.totalorder %v7557, 1
    %vm7577 = vcmp.lt.s32.totalorder %v7557, 2
    %vm7578 = vcmp.lt.s32.totalorder %v7557, 3
    %vm7579 = vcmp.lt.s32.totalorder %v7557, 4
    %v7580 = vsel %vm7576, %v7560, %v7563
    %v7581 = vsel %vm7579, %v7569, 2102212464
    %v7582 = vsel %vm7578, %v7566, %v7581
    %v7583 = vsel %vm7577, %v7580, %v7582
    %v7584 = vsel %vm7576, %v7563, %v7566
    %v7585 = vsel %vm7579, %v7572, 920167782
    %v7586 = vsel %vm7578, %v7569, %v7585
    %v7587 = vsel %vm7577, %v7584, %v7586
    %v7588 = vsel %vm7576, %v7566, %v7569
    %v7589 = vsel %vm7579, %v7575, 1326507024
    %v7590 = vsel %vm7578, %v7572, %v7589
    %v7591 = vsel %vm7577, %v7588, %v7590
    %v7592 = vshll.u32 %v7552, 8
    %v7593 = vand.u32 %v7592, 65535
    %v7594 = vshrl.u32 %v7592, 16
    %v7595 = vand.u32 %v7591, 65535
    %v7596 = vshrl.u32 %v7591, 16
    %v7597 = vmul.u32 %v7593, %v7595
    %v7598 = vmul.u32 %v7593, %v7596
    %v7599 = vmul.u32 %v7594, %v7595
    %v7600 = vmul.u32 %v7594, %v7596
    %v7601 = vshll.u32 %v7598, 16
    %v7602 = vshrl.u32 %v7598, 16
    %v7603 = vshll.u32 %v7599, 16
    %v7604 = vshrl.u32 %v7599, 16
    %vm7605 = vc.u32 %v7597, %v7601
    %v7606 = vsel %vm7605, 1, 0
    %v7607 = vadd.s32 %v7597, %v7601
    %v7608 = vadd.s32 %v7600, %v7606
    %vm7609 = vc.u32 %v7607, %v7603
    %v7610 = vsel %vm7609, 1, 0
    %v7611 = vadd.s32 %v7607, %v7603
    %v7612 = vadd.s32 %v7608, %v7610
    %v7613 = vadd.s32 %v7612, %v7602
    %v7614 = vadd.s32 %v7613, %v7604
    %v7615 = vand.u32 %v7592, 65535
    %v7616 = vshrl.u32 %v7592, 16
    %v7617 = vand.u32 %v7587, 65535
    %v7618 = vshrl.u32 %v7587, 16
    %v7619 = vmul.u32 %v7615, %v7617
    %v7620 = vmul.u32 %v7615, %v7618
    %v7621 = vmul.u32 %v7616, %v7617
    %v7622 = vmul.u32 %v7616, %v7618
    %v7623 = vshll.u32 %v7620, 16
    %v7624 = vshrl.u32 %v7620, 16
    %v7625 = vshll.u32 %v7621, 16
    %v7626 = vshrl.u32 %v7621, 16
    %vm7627 = vc.u32 %v7619, %v7623
    %v7628 = vsel %vm7627, 1, 0
    %v7629 = vadd.s32 %v7619, %v7623
    %v7630 = vadd.s32 %v7622, %v7628
    %vm7631 = vc.u32 %v7629, %v7625
    %v7632 = vsel %vm7631, 1, 0
    %v7633 = vadd.s32 %v7629, %v7625
    %v7634 = vadd.s32 %v7630, %v7632
    %v7635 = vadd.s32 %v7634, %v7624
    %v7636 = vadd.s32 %v7635, %v7626
    %v7637 = vmul.u32 %v7592, %v7583
    %v7638 = vadd.s32 %v7614, %v7633
    %vm7639 = vc.u32 %v7614, %v7633
    %v7640 = vadd.s32 %v7636, 1
    %v7641 = vsel %vm7639, %v7640, %v7636
    %v7642 = vadd.s32 %v7637, %v7641
    %v7643 = vadd.s32 %v7642, 536870912
    %v7644 = vshrl.u32 %v7643, 30
    %v7645 = vshll.u32 %v7644, 30
    %v7646 = vsub.s32 %v7642, %v7645
    %vm7647 = vcmp.lt.s32.totalorder %v7646, 0
    %v7648 = vsub.s32 0, %v7646
    %v7649 = vsel %vm7647, %v7648, %v7646
    %v7650 = vclz %v7649
    %v7651 = vsub.s32 %v7650, 2
    %vm7652 = vcmp.gt.s32.totalorder 0, %v7651
    %v7653 = vsel %vm7652, 0, %v7651
    %v7654 = vsub.s32 32, %v7653
    %v7655 = vshll.u32 %v7646, %v7653
    %v7656 = vshrl.u32 %v7638, %v7654
    %v7657 = vor.u32 %v7655, %v7656
    %v7658 = vsub.s32 4294967266, %v7653
    %v7659 = vadd.s32 %v7658, 127
    %v7660 = vshll.u32 %v7659, 23
    %v7661 = vor.u32 4788187, %v7660
    %v7662 = vand.u32 2147483647, %v7661
    %v7664 = vcvt.s32.f32 %v7657
    %v7665 = vmul.f32 %v7664, %v7662
    %v7666 = vxor.u32 %v7665, 2147483648
    %v7667 = vsel %vm7546, %v7666, %v7665
    %v7668 = vsub.s32 4, %v7644
    %v7669 = vsel %vm7546, %v7668, %v7644
    %v7670 = vsel %vm7545, %v370, %v7667
    %v7671 = vsel %vm7545, 0, %v7669
    %v7672 = vmul.f32 %v7670, %v7670
    %v7673 = vmul.f32 %v7672, -0.001358992
    %v7674 = vadd.f32 %v7673, 0.041655596
    %v7675 = vmul.f32 %v7672, %v7674
    %v7676 = vadd.f32 %v7675, -0.4999988
    %v7677 = vmul.f32 %v7672, %v7676
    %v7678 = vadd.f32 1.0, %v7677
    %v7679 = vmul.f32 %v7670, %v7670
    %v7680 = vmul.f32 %v7679, -0.00019511016
    %v7681 = vadd.f32 %v7680, 0.008332121
    %v7682 = vmul.f32 %v7679, %v7681
    %v7683 = vadd.f32 %v7682, -0.16666654
    %v7684 = vmul.f32 %v7679, %v7683
    %v7685 = vadd.f32 %v7684, 1.0
    %v7686 = vmul.f32 %v7685, %v7670
    %vm7687 = vweird.f32 %v370
    %v7688 = vadd.s32 %v7671, 3
    %v7689 = vand.u32 %v7688, 3
    %vm7690 = vcmp.lt.s32.totalorder %v7689, 2
    %vm7691 = vcmp.eq.s32.totalorder %v7689, 0
    %v7692 = vxor.u32 %v7686, 2147483648
    %v7693 = vsel %vm7691, %v7678, %v7692
    %vm7694 = vcmp.eq.s32.totalorder %v7689, 2
    %v7695 = vxor.u32 %v7678, 2147483648
    %v7696 = vsel %vm7694, %v7695, %v7686
    %v7697 = vsel %vm7690, %v7693, %v7696
    %v7698 = vsel %vm7687, nan, %v7697
    %v7699 = vand.u32 2147483647, %v372
    %vm7700 = vcmp.le.f32.partialorder %v7699, 0.7853982
    %vm7701 = vcmp.lt.s32.totalorder %v372, 0
    %v7702 = vand.u32 %v372, 2139095040
    %v7703 = vshrl.u32 %v7702, 23
    %v7704 = vsub.s32 %v7703, 127
    %v7705 = vand.u32 2147483647, %v372
    %v7706 = vand.u32 %v7705, 8388607
    %v7707 = vor.u32 %v7706, 8388608
    %v7708 = vsub.s32 0, %v7707
    %v7709 = vadd.s32 %v7704, 1
    %vm7710 = vcmp.gt.s32.totalorder %v7709, 0
    %v7711 = vsel %vm7710, %v7709, 0
    %v7712 = vshrl.u32 %v7711, 5
    %v7713 = vand.u32 %v7711, 31
    %v7714 = vsub.s32 32, %v7713
    %v7715 = vshrl.u32 683565275, %v7714
    %v7716 = vshll.u32 683565275, %v7713
    %v7717 = vshrl.u32 2475754826, %v7714
    %v7718 = vor.u32 %v7716, %v7717
    %v7719 = vshll.u32 2475754826, %v7713
    %v7720 = vshrl.u32 2131351028, %v7714
    %v7721 = vor.u32 %v7719, %v7720
    %v7722 = vshll.u32 2131351028, %v7713
    %v7723 = vshrl.u32 2102212464, %v7714
    %v7724 = vor.u32 %v7722, %v7723
    %v7725 = vshll.u32 2102212464, %v7713
    %v7726 = vshrl.u32 920167782, %v7714
    %v7727 = vor.u32 %v7725, %v7726
    %v7728 = vshll.u32 920167782, %v7713
    %v7729 = vshrl.u32 1326507024, %v7714
    %v7730 = vor.u32 %v7728, %v7729
    %vm7731 = vcmp.lt.s32.totalorder %v7712, 1
    %vm7732 = vcmp.lt.s32.totalorder %v7712, 2
    %vm7733 = vcmp.lt.s32.totalorder %v7712, 3
    %vm7734 = vcmp.lt.s32.totalorder %v7712, 4
    %v7735 = vsel %vm7731, %v7715, %v7718
    %v7736 = vsel %vm7734, %v7724, 2102212464
    %v7737 = vsel %vm7733, %v7721, %v7736
    %v7738 = vsel %vm7732, %v7735, %v7737
    %v7739 = vsel %vm7731, %v7718, %v7721
    %v7740 = vsel %vm7734, %v7727, 920167782
    %v7741 = vsel %vm7733, %v7724, %v7740
    %v7742 = vsel %vm7732, %v7739, %v7741
    %v7743 = vsel %vm7731, %v7721, %v7724
    %v7744 = vsel %vm7734, %v7730, 1326507024
    %v7745 = vsel %vm7733, %v7727, %v7744
    %v7746 = vsel %vm7732, %v7743, %v7745
    %v7747 = vshll.u32 %v7707, 8
    %v7748 = vand.u32 %v7747, 65535
    %v7749 = vshrl.u32 %v7747, 16
    %v7750 = vand.u32 %v7746, 65535
    %v7751 = vshrl.u32 %v7746, 16
    %v7752 = vmul.u32 %v7748, %v7750
    %v7753 = vmul.u32 %v7748, %v7751
    %v7754 = vmul.u32 %v7749, %v7750
    %v7755 = vmul.u32 %v7749, %v7751
    %v7756 = vshll.u32 %v7753, 16
    %v7757 = vshrl.u32 %v7753, 16
    %v7758 = vshll.u32 %v7754, 16
    %v7759 = vshrl.u32 %v7754, 16
    %vm7760 = vc.u32 %v7752, %v7756
    %v7761 = vsel %vm7760, 1, 0
    %v7762 = vadd.s32 %v7752, %v7756
    %v7763 = vadd.s32 %v7755, %v7761
    %vm7764 = vc.u32 %v7762, %v7758
    %v7765 = vsel %vm7764, 1, 0
    %v7766 = vadd.s32 %v7762, %v7758
    %v7767 = vadd.s32 %v7763, %v7765
    %v7768 = vadd.s32 %v7767, %v7757
    %v7769 = vadd.s32 %v7768, %v7759
    %v7770 = vand.u32 %v7747, 65535
    %v7771 = vshrl.u32 %v7747, 16
    %v7772 = vand.u32 %v7742, 65535
    %v7773 = vshrl.u32 %v7742, 16
    %v7774 = vmul.u32 %v7770, %v7772
    %v7775 = vmul.u32 %v7770, %v7773
    %v7776 = vmul.u32 %v7771, %v7772
    %v7777 = vmul.u32 %v7771, %v7773
    %v7778 = vshll.u32 %v7775, 16
    %v7779 = vshrl.u32 %v7775, 16
    %v7780 = vshll.u32 %v7776, 16
    %v7781 = vshrl.u32 %v7776, 16
    %vm7782 = vc.u32 %v7774, %v7778
    %v7783 = vsel %vm7782, 1, 0
    %v7784 = vadd.s32 %v7774, %v7778
    %v7785 = vadd.s32 %v7777, %v7783
    %vm7786 = vc.u32 %v7784, %v7780
    %v7787 = vsel %vm7786, 1, 0
    %v7788 = vadd.s32 %v7784, %v7780
    %v7789 = vadd.s32 %v7785, %v7787
    %v7790 = vadd.s32 %v7789, %v7779
    %v7791 = vadd.s32 %v7790, %v7781
    %v7792 = vmul.u32 %v7747, %v7738
    %v7793 = vadd.s32 %v7769, %v7788
    %vm7794 = vc.u32 %v7769, %v7788
    %v7795 = vadd.s32 %v7791, 1
    %v7796 = vsel %vm7794, %v7795, %v7791
    %v7797 = vadd.s32 %v7792, %v7796
    %v7798 = vadd.s32 %v7797, 536870912
    %v7799 = vshrl.u32 %v7798, 30
    %v7800 = vshll.u32 %v7799, 30
    %v7801 = vsub.s32 %v7797, %v7800
    %vm7802 = vcmp.lt.s32.totalorder %v7801, 0
    %v7803 = vsub.s32 0, %v7801
    %v7804 = vsel %vm7802, %v7803, %v7801
    %v7805 = vclz %v7804
    %v7806 = vsub.s32 %v7805, 2
    %vm7807 = vcmp.gt.s32.totalorder 0, %v7806
    %v7808 = vsel %vm7807, 0, %v7806
    %v7809 = vsub.s32 32, %v7808
    %v7810 = vshll.u32 %v7801, %v7808
    %v7811 = vshrl.u32 %v7793, %v7809
    %v7812 = vor.u32 %v7810, %v7811
    %v7813 = vsub.s32 4294967266, %v7808
    %v7814 = vadd.s32 %v7813, 127
    %v7815 = vshll.u32 %v7814, 23
    %v7816 = vor.u32 4788187, %v7815
    %v7817 = vand.u32 2147483647, %v7816
    %v7819 = vcvt.s32.f32 %v7812
    %v7820 = vmul.f32 %v7819, %v7817
    %v7821 = vxor.u32 %v7820, 2147483648
    %v7822 = vsel %vm7701, %v7821, %v7820
    %v7823 = vsub.s32 4, %v7799
    %v7824 = vsel %vm7701, %v7823, %v7799
    %v7825 = vsel %vm7700, %v372, %v7822
    %v7826 = vsel %vm7700, 0, %v7824
    %v7827 = vmul.f32 %v7825, %v7825
    %v7828 = vmul.f32 %v7827, -0.001358992
    %v7829 = vadd.f32 %v7828, 0.041655596
    %v7830 = vmul.f32 %v7827, %v7829
    %v7831 = vadd.f32 %v7830, -0.4999988
    %v7832 = vmul.f32 %v7827, %v7831
    %v7833 = vadd.f32 1.0, %v7832
    %v7834 = vmul.f32 %v7825, %v7825
    %v7835 = vmul.f32 %v7834, -0.00019511016
    %v7836 = vadd.f32 %v7835, 0.008332121
    %v7837 = vmul.f32 %v7834, %v7836
    %v7838 = vadd.f32 %v7837, -0.16666654
    %v7839 = vmul.f32 %v7834, %v7838
    %v7840 = vadd.f32 %v7839, 1.0
    %v7841 = vmul.f32 %v7840, %v7825
    %vm7842 = vweird.f32 %v372
    %v7843 = vadd.s32 %v7826, 3
    %v7844 = vand.u32 %v7843, 3
    %vm7845 = vcmp.lt.s32.totalorder %v7844, 2
    %vm7846 = vcmp.eq.s32.totalorder %v7844, 0
    %v7847 = vxor.u32 %v7841, 2147483648
    %v7848 = vsel %vm7846, %v7833, %v7847
    %vm7849 = vcmp.eq.s32.totalorder %v7844, 2
    %v7850 = vxor.u32 %v7833, 2147483648
    %v7851 = vsel %vm7849, %v7850, %v7841
    %v7852 = vsel %vm7845, %v7848, %v7851
    %v7853 = vsel %vm7842, nan, %v7852
    %v7854 = vand.u32 2147483647, %v375
    %vm7855 = vcmp.le.f32.partialorder %v7854, 0.7853982
    %vm7856 = vcmp.lt.s32.totalorder %v375, 0
    %v7857 = vand.u32 %v375, 2139095040
    %v7858 = vshrl.u32 %v7857, 23
    %v7859 = vsub.s32 %v7858, 127
    %v7860 = vand.u32 2147483647, %v375
    %v7861 = vand.u32 %v7860, 8388607
    %v7862 = vor.u32 %v7861, 8388608
    %v7863 = vsub.s32 0, %v7862
    %v7864 = vadd.s32 %v7859, 1
    %vm7865 = vcmp.gt.s32.totalorder %v7864, 0
    %v7866 = vsel %vm7865, %v7864, 0
    %v7867 = vshrl.u32 %v7866, 5
    %v7868 = vand.u32 %v7866, 31
    %v7869 = vsub.s32 32, %v7868
    %v7870 = vshrl.u32 683565275, %v7869
    %v7871 = vshll.u32 683565275, %v7868
    %v7872 = vshrl.u32 2475754826, %v7869
    %v7873 = vor.u32 %v7871, %v7872
    %v7874 = vshll.u32 2475754826, %v7868
    %v7875 = vshrl.u32 2131351028, %v7869
    %v7876 = vor.u32 %v7874, %v7875
    %v7877 = vshll.u32 2131351028, %v7868
    %v7878 = vshrl.u32 2102212464, %v7869
    %v7879 = vor.u32 %v7877, %v7878
    %v7880 = vshll.u32 2102212464, %v7868
    %v7881 = vshrl.u32 920167782, %v7869
    %v7882 = vor.u32 %v7880, %v7881
    %v7883 = vshll.u32 920167782, %v7868
    %v7884 = vshrl.u32 1326507024, %v7869
    %v7885 = vor.u32 %v7883, %v7884
    %vm7886 = vcmp.lt.s32.totalorder %v7867, 1
    %vm7887 = vcmp.lt.s32.totalorder %v7867, 2
    %vm7888 = vcmp.lt.s32.totalorder %v7867, 3
    %vm7889 = vcmp.lt.s32.totalorder %v7867, 4
    %v7890 = vsel %vm7886, %v7870, %v7873
    %v7891 = vsel %vm7889, %v7879, 2102212464
    %v7892 = vsel %vm7888, %v7876, %v7891
    %v7893 = vsel %vm7887, %v7890, %v7892
    %v7894 = vsel %vm7886, %v7873, %v7876
    %v7895 = vsel %vm7889, %v7882, 920167782
    %v7896 = vsel %vm7888, %v7879, %v7895
    %v7897 = vsel %vm7887, %v7894, %v7896
    %v7898 = vsel %vm7886, %v7876, %v7879
    %v7899 = vsel %vm7889, %v7885, 1326507024
    %v7900 = vsel %vm7888, %v7882, %v7899
    %v7901 = vsel %vm7887, %v7898, %v7900
    %v7902 = vshll.u32 %v7862, 8
    %v7903 = vand.u32 %v7902, 65535
    %v7904 = vshrl.u32 %v7902, 16
    %v7905 = vand.u32 %v7901, 65535
    %v7906 = vshrl.u32 %v7901, 16
    %v7907 = vmul.u32 %v7903, %v7905
    %v7908 = vmul.u32 %v7903, %v7906
    %v7909 = vmul.u32 %v7904, %v7905
    %v7910 = vmul.u32 %v7904, %v7906
    %v7911 = vshll.u32 %v7908, 16
    %v7912 = vshrl.u32 %v7908, 16
    %v7913 = vshll.u32 %v7909, 16
    %v7914 = vshrl.u32 %v7909, 16
    %vm7915 = vc.u32 %v7907, %v7911
    %v7916 = vsel %vm7915, 1, 0
    %v7917 = vadd.s32 %v7907, %v7911
    %v7918 = vadd.s32 %v7910, %v7916
    %vm7919 = vc.u32 %v7917, %v7913
    %v7920 = vsel %vm7919, 1, 0
    %v7921 = vadd.s32 %v7917, %v7913
    %v7922 = vadd.s32 %v7918, %v7920
    %v7923 = vadd.s32 %v7922, %v7912
    %v7924 = vadd.s32 %v7923, %v7914
    %v7925 = vand.u32 %v7902, 65535
    %v7926 = vshrl.u32 %v7902, 16
    %v7927 = vand.u32 %v7897, 65535
    %v7928 = vshrl.u32 %v7897, 16
    %v7929 = vmul.u32 %v7925, %v7927
    %v7930 = vmul.u32 %v7925, %v7928
    %v7931 = vmul.u32 %v7926, %v7927
    %v7932 = vmul.u32 %v7926, %v7928
    %v7933 = vshll.u32 %v7930, 16
    %v7934 = vshrl.u32 %v7930, 16
    %v7935 = vshll.u32 %v7931, 16
    %v7936 = vshrl.u32 %v7931, 16
    %vm7937 = vc.u32 %v7929, %v7933
    %v7938 = vsel %vm7937, 1, 0
    %v7939 = vadd.s32 %v7929, %v7933
    %v7940 = vadd.s32 %v7932, %v7938
    %vm7941 = vc.u32 %v7939, %v7935
    %v7942 = vsel %vm7941, 1, 0
    %v7943 = vadd.s32 %v7939, %v7935
    %v7944 = vadd.s32 %v7940, %v7942
    %v7945 = vadd.s32 %v7944, %v7934
    %v7946 = vadd.s32 %v7945, %v7936
    %v7947 = vmul.u32 %v7902, %v7893
    %v7948 = vadd.s32 %v7924, %v7943
    %vm7949 = vc.u32 %v7924, %v7943
    %v7950 = vadd.s32 %v7946, 1
    %v7951 = vsel %vm7949, %v7950, %v7946
    %v7952 = vadd.s32 %v7947, %v7951
    %v7953 = vadd.s32 %v7952, 536870912
    %v7954 = vshrl.u32 %v7953, 30
    %v7955 = vshll.u32 %v7954, 30
    %v7956 = vsub.s32 %v7952, %v7955
    %vm7957 = vcmp.lt.s32.totalorder %v7956, 0
    %v7958 = vsub.s32 0, %v7956
    %v7959 = vsel %vm7957, %v7958, %v7956
    %v7960 = vclz %v7959
    %v7961 = vsub.s32 %v7960, 2
    %vm7962 = vcmp.gt.s32.totalorder 0, %v7961
    %v7963 = vsel %vm7962, 0, %v7961
    %v7964 = vsub.s32 32, %v7963
    %v7965 = vshll.u32 %v7956, %v7963
    %v7966 = vshrl.u32 %v7948, %v7964
    %v7967 = vor.u32 %v7965, %v7966
    %v7968 = vsub.s32 4294967266, %v7963
    %v7969 = vadd.s32 %v7968, 127
    %v7970 = vshll.u32 %v7969, 23
    %v7971 = vor.u32 4788187, %v7970
    %v7972 = vand.u32 2147483647, %v7971
    %v7974 = vcvt.s32.f32 %v7967
    %v7975 = vmul.f32 %v7974, %v7972
    %v7976 = vxor.u32 %v7975, 2147483648
    %v7977 = vsel %vm7856, %v7976, %v7975
    %v7978 = vsub.s32 4, %v7954
    %v7979 = vsel %vm7856, %v7978, %v7954
    %v7980 = vsel %vm7855, %v375, %v7977
    %v7981 = vsel %vm7855, 0, %v7979
    %v7982 = vmul.f32 %v7980, %v7980
    %v7983 = vmul.f32 %v7982, -0.001358992
    %v7984 = vadd.f32 %v7983, 0.041655596
    %v7985 = vmul.f32 %v7982, %v7984
    %v7986 = vadd.f32 %v7985, -0.4999988
    %v7987 = vmul.f32 %v7982, %v7986
    %v7988 = vadd.f32 1.0, %v7987
    %v7989 = vmul.f32 %v7980, %v7980
    %v7990 = vmul.f32 %v7989, -0.00019511016
    %v7991 = vadd.f32 %v7990, 0.008332121
    %v7992 = vmul.f32 %v7989, %v7991
    %v7993 = vadd.f32 %v7992, -0.16666654
    %v7994 = vmul.f32 %v7989, %v7993
    %v7995 = vadd.f32 %v7994, 1.0
    %v7996 = vmul.f32 %v7995, %v7980
    %vm7997 = vweird.f32 %v375
    %v7998 = vadd.s32 %v7981, 3
    %v7999 = vand.u32 %v7998, 3
    %vm8000 = vcmp.lt.s32.totalorder %v7999, 2
    %vm8001 = vcmp.eq.s32.totalorder %v7999, 0
    %v8002 = vxor.u32 %v7996, 2147483648
    %v8003 = vsel %vm8001, %v7988, %v8002
    %vm8004 = vcmp.eq.s32.totalorder %v7999, 2
    %v8005 = vxor.u32 %v7988, 2147483648
    %v8006 = vsel %vm8004, %v8005, %v7996
    %v8007 = vsel %vm8000, %v8003, %v8006
    %v8008 = vsel %vm7997, nan, %v8007
    %v8009 = vand.u32 2147483647, %v377
    %vm8010 = vcmp.le.f32.partialorder %v8009, 0.7853982
    %vm8011 = vcmp.lt.s32.totalorder %v377, 0
    %v8012 = vand.u32 %v377, 2139095040
    %v8013 = vshrl.u32 %v8012, 23
    %v8014 = vsub.s32 %v8013, 127
    %v8015 = vand.u32 2147483647, %v377
    %v8016 = vand.u32 %v8015, 8388607
    %v8017 = vor.u32 %v8016, 8388608
    %v8018 = vsub.s32 0, %v8017
    %v8019 = vadd.s32 %v8014, 1
    %vm8020 = vcmp.gt.s32.totalorder %v8019, 0
    %v8021 = vsel %vm8020, %v8019, 0
    %v8022 = vshrl.u32 %v8021, 5
    %v8023 = vand.u32 %v8021, 31
    %v8024 = vsub.s32 32, %v8023
    %v8025 = vshrl.u32 683565275, %v8024
    %v8026 = vshll.u32 683565275, %v8023
    %v8027 = vshrl.u32 2475754826, %v8024
    %v8028 = vor.u32 %v8026, %v8027
    %v8029 = vshll.u32 2475754826, %v8023
    %v8030 = vshrl.u32 2131351028, %v8024
    %v8031 = vor.u32 %v8029, %v8030
    %v8032 = vshll.u32 2131351028, %v8023
    %v8033 = vshrl.u32 2102212464, %v8024
    %v8034 = vor.u32 %v8032, %v8033
    %v8035 = vshll.u32 2102212464, %v8023
    %v8036 = vshrl.u32 920167782, %v8024
    %v8037 = vor.u32 %v8035, %v8036
    %v8038 = vshll.u32 920167782, %v8023
    %v8039 = vshrl.u32 1326507024, %v8024
    %v8040 = vor.u32 %v8038, %v8039
    %vm8041 = vcmp.lt.s32.totalorder %v8022, 1
    %vm8042 = vcmp.lt.s32.totalorder %v8022, 2
    %vm8043 = vcmp.lt.s32.totalorder %v8022, 3
    %vm8044 = vcmp.lt.s32.totalorder %v8022, 4
    %v8045 = vsel %vm8041, %v8025, %v8028
    %v8046 = vsel %vm8044, %v8034, 2102212464
    %v8047 = vsel %vm8043, %v8031, %v8046
    %v8048 = vsel %vm8042, %v8045, %v8047
    %v8049 = vsel %vm8041, %v8028, %v8031
    %v8050 = vsel %vm8044, %v8037, 920167782
    %v8051 = vsel %vm8043, %v8034, %v8050
    %v8052 = vsel %vm8042, %v8049, %v8051
    %v8053 = vsel %vm8041, %v8031, %v8034
    %v8054 = vsel %vm8044, %v8040, 1326507024
    %v8055 = vsel %vm8043, %v8037, %v8054
    %v8056 = vsel %vm8042, %v8053, %v8055
    %v8057 = vshll.u32 %v8017, 8
    %v8058 = vand.u32 %v8057, 65535
    %v8059 = vshrl.u32 %v8057, 16
    %v8060 = vand.u32 %v8056, 65535
    %v8061 = vshrl.u32 %v8056, 16
    %v8062 = vmul.u32 %v8058, %v8060
    %v8063 = vmul.u32 %v8058, %v8061
    %v8064 = vmul.u32 %v8059, %v8060
    %v8065 = vmul.u32 %v8059, %v8061
    %v8066 = vshll.u32 %v8063, 16
    %v8067 = vshrl.u32 %v8063, 16
    %v8068 = vshll.u32 %v8064, 16
    %v8069 = vshrl.u32 %v8064, 16
    %vm8070 = vc.u32 %v8062, %v8066
    %v8071 = vsel %vm8070, 1, 0
    %v8072 = vadd.s32 %v8062, %v8066
    %v8073 = vadd.s32 %v8065, %v8071
    %vm8074 = vc.u32 %v8072, %v8068
    %v8075 = vsel %vm8074, 1, 0
    %v8076 = vadd.s32 %v8072, %v8068
    %v8077 = vadd.s32 %v8073, %v8075
    %v8078 = vadd.s32 %v8077, %v8067
    %v8079 = vadd.s32 %v8078, %v8069
    %v8080 = vand.u32 %v8057, 65535
    %v8081 = vshrl.u32 %v8057, 16
    %v8082 = vand.u32 %v8052, 65535
    %v8083 = vshrl.u32 %v8052, 16
    %v8084 = vmul.u32 %v8080, %v8082
    %v8085 = vmul.u32 %v8080, %v8083
    %v8086 = vmul.u32 %v8081, %v8082
    %v8087 = vmul.u32 %v8081, %v8083
    %v8088 = vshll.u32 %v8085, 16
    %v8089 = vshrl.u32 %v8085, 16
    %v8090 = vshll.u32 %v8086, 16
    %v8091 = vshrl.u32 %v8086, 16
    %vm8092 = vc.u32 %v8084, %v8088
    %v8093 = vsel %vm8092, 1, 0
    %v8094 = vadd.s32 %v8084, %v8088
    %v8095 = vadd.s32 %v8087, %v8093
    %vm8096 = vc.u32 %v8094, %v8090
    %v8097 = vsel %vm8096, 1, 0
    %v8098 = vadd.s32 %v8094, %v8090
    %v8099 = vadd.s32 %v8095, %v8097
    %v8100 = vadd.s32 %v8099, %v8089
    %v8101 = vadd.s32 %v8100, %v8091
    %v8102 = vmul.u32 %v8057, %v8048
    %v8103 = vadd.s32 %v8079, %v8098
    %vm8104 = vc.u32 %v8079, %v8098
    %v8105 = vadd.s32 %v8101, 1
    %v8106 = vsel %vm8104, %v8105, %v8101
    %v8107 = vadd.s32 %v8102, %v8106
    %v8108 = vadd.s32 %v8107, 536870912
    %v8109 = vshrl.u32 %v8108, 30
    %v8110 = vshll.u32 %v8109, 30
    %v8111 = vsub.s32 %v8107, %v8110
    %vm8112 = vcmp.lt.s32.totalorder %v8111, 0
    %v8113 = vsub.s32 0, %v8111
    %v8114 = vsel %vm8112, %v8113, %v8111
    %v8115 = vclz %v8114
    %v8116 = vsub.s32 %v8115, 2
    %vm8117 = vcmp.gt.s32.totalorder 0, %v8116
    %v8118 = vsel %vm8117, 0, %v8116
    %v8119 = vsub.s32 32, %v8118
    %v8120 = vshll.u32 %v8111, %v8118
    %v8121 = vshrl.u32 %v8103, %v8119
    %v8122 = vor.u32 %v8120, %v8121
    %v8123 = vsub.s32 4294967266, %v8118
    %v8124 = vadd.s32 %v8123, 127
    %v8125 = vshll.u32 %v8124, 23
    %v8126 = vor.u32 4788187, %v8125
    %v8127 = vand.u32 2147483647, %v8126
    %v8129 = vcvt.s32.f32 %v8122
    %v8130 = vmul.f32 %v8129, %v8127
    %v8131 = vxor.u32 %v8130, 2147483648
    %v8132 = vsel %vm8011, %v8131, %v8130
    %v8133 = vsub.s32 4, %v8109
    %v8134 = vsel %vm8011, %v8133, %v8109
    %v8135 = vsel %vm8010, %v377, %v8132
    %v8136 = vsel %vm8010, 0, %v8134
    %v8137 = vmul.f32 %v8135, %v8135
    %v8138 = vmul.f32 %v8137, -0.001358992
    %v8139 = vadd.f32 %v8138, 0.041655596
    %v8140 = vmul.f32 %v8137, %v8139
    %v8141 = vadd.f32 %v8140, -0.4999988
    %v8142 = vmul.f32 %v8137, %v8141
    %v8143 = vadd.f32 1.0, %v8142
    %v8144 = vmul.f32 %v8135, %v8135
    %v8145 = vmul.f32 %v8144, -0.00019511016
    %v8146 = vadd.f32 %v8145, 0.008332121
    %v8147 = vmul.f32 %v8144, %v8146
    %v8148 = vadd.f32 %v8147, -0.16666654
    %v8149 = vmul.f32 %v8144, %v8148
    %v8150 = vadd.f32 %v8149, 1.0
    %v8151 = vmul.f32 %v8150, %v8135
    %vm8152 = vweird.f32 %v377
    %v8153 = vadd.s32 %v8136, 3
    %v8154 = vand.u32 %v8153, 3
    %vm8155 = vcmp.lt.s32.totalorder %v8154, 2
    %vm8156 = vcmp.eq.s32.totalorder %v8154, 0
    %v8157 = vxor.u32 %v8151, 2147483648
    %v8158 = vsel %vm8156, %v8143, %v8157
    %vm8159 = vcmp.eq.s32.totalorder %v8154, 2
    %v8160 = vxor.u32 %v8143, 2147483648
    %v8161 = vsel %vm8159, %v8160, %v8151
    %v8162 = vsel %vm8155, %v8158, %v8161
    %v8163 = vsel %vm8152, nan, %v8162
    %v8164 = vand.u32 2147483647, %v380
    %vm8165 = vcmp.le.f32.partialorder %v8164, 0.7853982
    %vm8166 = vcmp.lt.s32.totalorder %v380, 0
    %v8167 = vand.u32 %v380, 2139095040
    %v8168 = vshrl.u32 %v8167, 23
    %v8169 = vsub.s32 %v8168, 127
    %v8170 = vand.u32 2147483647, %v380
    %v8171 = vand.u32 %v8170, 8388607
    %v8172 = vor.u32 %v8171, 8388608
    %v8173 = vsub.s32 0, %v8172
    %v8174 = vadd.s32 %v8169, 1
    %vm8175 = vcmp.gt.s32.totalorder %v8174, 0
    %v8176 = vsel %vm8175, %v8174, 0
    %v8177 = vshrl.u32 %v8176, 5
    %v8178 = vand.u32 %v8176, 31
    %v8179 = vsub.s32 32, %v8178
    %v8180 = vshrl.u32 683565275, %v8179
    %v8181 = vshll.u32 683565275, %v8178
    %v8182 = vshrl.u32 2475754826, %v8179
    %v8183 = vor.u32 %v8181, %v8182
    %v8184 = vshll.u32 2475754826, %v8178
    %v8185 = vshrl.u32 2131351028, %v8179
    %v8186 = vor.u32 %v8184, %v8185
    %v8187 = vshll.u32 2131351028, %v8178
    %v8188 = vshrl.u32 2102212464, %v8179
    %v8189 = vor.u32 %v8187, %v8188
    %v8190 = vshll.u32 2102212464, %v8178
    %v8191 = vshrl.u32 920167782, %v8179
    %v8192 = vor.u32 %v8190, %v8191
    %v8193 = vshll.u32 920167782, %v8178
    %v8194 = vshrl.u32 1326507024, %v8179
    %v8195 = vor.u32 %v8193, %v8194
    %vm8196 = vcmp.lt.s32.totalorder %v8177, 1
    %vm8197 = vcmp.lt.s32.totalorder %v8177, 2
    %vm8198 = vcmp.lt.s32.totalorder %v8177, 3
    %vm8199 = vcmp.lt.s32.totalorder %v8177, 4
    %v8200 = vsel %vm8196, %v8180, %v8183
    %v8201 = vsel %vm8199, %v8189, 2102212464
    %v8202 = vsel %vm8198, %v8186, %v8201
    %v8203 = vsel %vm8197, %v8200, %v8202
    %v8204 = vsel %vm8196, %v8183, %v8186
    %v8205 = vsel %vm8199, %v8192, 920167782
    %v8206 = vsel %vm8198, %v8189, %v8205
    %v8207 = vsel %vm8197, %v8204, %v8206
    %v8208 = vsel %vm8196, %v8186, %v8189
    %v8209 = vsel %vm8199, %v8195, 1326507024
    %v8210 = vsel %vm8198, %v8192, %v8209
    %v8211 = vsel %vm8197, %v8208, %v8210
    %v8212 = vshll.u32 %v8172, 8
    %v8213 = vand.u32 %v8212, 65535
    %v8214 = vshrl.u32 %v8212, 16
    %v8215 = vand.u32 %v8211, 65535
    %v8216 = vshrl.u32 %v8211, 16
    %v8217 = vmul.u32 %v8213, %v8215
    %v8218 = vmul.u32 %v8213, %v8216
    %v8219 = vmul.u32 %v8214, %v8215
    %v8220 = vmul.u32 %v8214, %v8216
    %v8221 = vshll.u32 %v8218, 16
    %v8222 = vshrl.u32 %v8218, 16
    %v8223 = vshll.u32 %v8219, 16
    %v8224 = vshrl.u32 %v8219, 16
    %vm8225 = vc.u32 %v8217, %v8221
    %v8226 = vsel %vm8225, 1, 0
    %v8227 = vadd.s32 %v8217, %v8221
    %v8228 = vadd.s32 %v8220, %v8226
    %vm8229 = vc.u32 %v8227, %v8223
    %v8230 = vsel %vm8229, 1, 0
    %v8231 = vadd.s32 %v8227, %v8223
    %v8232 = vadd.s32 %v8228, %v8230
    %v8233 = vadd.s32 %v8232, %v8222
    %v8234 = vadd.s32 %v8233, %v8224
    %v8235 = vand.u32 %v8212, 65535
    %v8236 = vshrl.u32 %v8212, 16
    %v8237 = vand.u32 %v8207, 65535
    %v8238 = vshrl.u32 %v8207, 16
    %v8239 = vmul.u32 %v8235, %v8237
    %v8240 = vmul.u32 %v8235, %v8238
    %v8241 = vmul.u32 %v8236, %v8237
    %v8242 = vmul.u32 %v8236, %v8238
    %v8243 = vshll.u32 %v8240, 16
    %v8244 = vshrl.u32 %v8240, 16
    %v8245 = vshll.u32 %v8241, 16
    %v8246 = vshrl.u32 %v8241, 16
    %vm8247 = vc.u32 %v8239, %v8243
    %v8248 = vsel %vm8247, 1, 0
    %v8249 = vadd.s32 %v8239, %v8243
    %v8250 = vadd.s32 %v8242, %v8248
    %vm8251 = vc.u32 %v8249, %v8245
    %v8252 = vsel %vm8251, 1, 0
    %v8253 = vadd.s32 %v8249, %v8245
    %v8254 = vadd.s32 %v8250, %v8252
    %v8255 = vadd.s32 %v8254, %v8244
    %v8256 = vadd.s32 %v8255, %v8246
    %v8257 = vmul.u32 %v8212, %v8203
    %v8258 = vadd.s32 %v8234, %v8253
    %vm8259 = vc.u32 %v8234, %v8253
    %v8260 = vadd.s32 %v8256, 1
    %v8261 = vsel %vm8259, %v8260, %v8256
    %v8262 = vadd.s32 %v8257, %v8261
    %v8263 = vadd.s32 %v8262, 536870912
    %v8264 = vshrl.u32 %v8263, 30
    %v8265 = vshll.u32 %v8264, 30
    %v8266 = vsub.s32 %v8262, %v8265
    %vm8267 = vcmp.lt.s32.totalorder %v8266, 0
    %v8268 = vsub.s32 0, %v8266
    %v8269 = vsel %vm8267, %v8268, %v8266
    %v8270 = vclz %v8269
    %v8271 = vsub.s32 %v8270, 2
    %vm8272 = vcmp.gt.s32.totalorder 0, %v8271
    %v8273 = vsel %vm8272, 0, %v8271
    %v8274 = vsub.s32 32, %v8273
    %v8275 = vshll.u32 %v8266, %v8273
    %v8276 = vshrl.u32 %v8258, %v8274
    %v8277 = vor.u32 %v8275, %v8276
    %v8278 = vsub.s32 4294967266, %v8273
    %v8279 = vadd.s32 %v8278, 127
    %v8280 = vshll.u32 %v8279, 23
    %v8281 = vor.u32 4788187, %v8280
    %v8282 = vand.u32 2147483647, %v8281
    %v8284 = vcvt.s32.f32 %v8277
    %v8285 = vmul.f32 %v8284, %v8282
    %v8286 = vxor.u32 %v8285, 2147483648
    %v8287 = vsel %vm8166, %v8286, %v8285
    %v8288 = vsub.s32 4, %v8264
    %v8289 = vsel %vm8166, %v8288, %v8264
    %v8290 = vsel %vm8165, %v380, %v8287
    %v8291 = vsel %vm8165, 0, %v8289
    %v8292 = vmul.f32 %v8290, %v8290
    %v8293 = vmul.f32 %v8292, -0.001358992
    %v8294 = vadd.f32 %v8293, 0.041655596
    %v8295 = vmul.f32 %v8292, %v8294
    %v8296 = vadd.f32 %v8295, -0.4999988
    %v8297 = vmul.f32 %v8292, %v8296
    %v8298 = vadd.f32 1.0, %v8297
    %v8299 = vmul.f32 %v8290, %v8290
    %v8300 = vmul.f32 %v8299, -0.00019511016
    %v8301 = vadd.f32 %v8300, 0.008332121
    %v8302 = vmul.f32 %v8299, %v8301
    %v8303 = vadd.f32 %v8302, -0.16666654
    %v8304 = vmul.f32 %v8299, %v8303
    %v8305 = vadd.f32 %v8304, 1.0
    %v8306 = vmul.f32 %v8305, %v8290
    %vm8307 = vweird.f32 %v380
    %v8308 = vadd.s32 %v8291, 3
    %v8309 = vand.u32 %v8308, 3
    %vm8310 = vcmp.lt.s32.totalorder %v8309, 2
    %vm8311 = vcmp.eq.s32.totalorder %v8309, 0
    %v8312 = vxor.u32 %v8306, 2147483648
    %v8313 = vsel %vm8311, %v8298, %v8312
    %vm8314 = vcmp.eq.s32.totalorder %v8309, 2
    %v8315 = vxor.u32 %v8298, 2147483648
    %v8316 = vsel %vm8314, %v8315, %v8306
    %v8317 = vsel %vm8310, %v8313, %v8316
    %v8318 = vsel %vm8307, nan, %v8317
    %v8319 = vand.u32 2147483647, %v382
    %vm8320 = vcmp.le.f32.partialorder %v8319, 0.7853982
    %vm8321 = vcmp.lt.s32.totalorder %v382, 0
    %v8322 = vand.u32 %v382, 2139095040
    %v8323 = vshrl.u32 %v8322, 23
    %v8324 = vsub.s32 %v8323, 127
    %v8325 = vand.u32 2147483647, %v382
    %v8326 = vand.u32 %v8325, 8388607
    %v8327 = vor.u32 %v8326, 8388608
    %v8328 = vsub.s32 0, %v8327
    %v8329 = vadd.s32 %v8324, 1
    %vm8330 = vcmp.gt.s32.totalorder %v8329, 0
    %v8331 = vsel %vm8330, %v8329, 0
    %v8332 = vshrl.u32 %v8331, 5
    %v8333 = vand.u32 %v8331, 31
    %v8334 = vsub.s32 32, %v8333
    %v8335 = vshrl.u32 683565275, %v8334
    %v8336 = vshll.u32 683565275, %v8333
    %v8337 = vshrl.u32 2475754826, %v8334
    %v8338 = vor.u32 %v8336, %v8337
    %v8339 = vshll.u32 2475754826, %v8333
    %v8340 = vshrl.u32 2131351028, %v8334
    %v8341 = vor.u32 %v8339, %v8340
    %v8342 = vshll.u32 2131351028, %v8333
    %v8343 = vshrl.u32 2102212464, %v8334
    %v8344 = vor.u32 %v8342, %v8343
    %v8345 = vshll.u32 2102212464, %v8333
    %v8346 = vshrl.u32 920167782, %v8334
    %v8347 = vor.u32 %v8345, %v8346
    %v8348 = vshll.u32 920167782, %v8333
    %v8349 = vshrl.u32 1326507024, %v8334
    %v8350 = vor.u32 %v8348, %v8349
    %vm8351 = vcmp.lt.s32.totalorder %v8332, 1
    %vm8352 = vcmp.lt.s32.totalorder %v8332, 2
    %vm8353 = vcmp.lt.s32.totalorder %v8332, 3
    %vm8354 = vcmp.lt.s32.totalorder %v8332, 4
    %v8355 = vsel %vm8351, %v8335, %v8338
    %v8356 = vsel %vm8354, %v8344, 2102212464
    %v8357 = vsel %vm8353, %v8341, %v8356
    %v8358 = vsel %vm8352, %v8355, %v8357
    %v8359 = vsel %vm8351, %v8338, %v8341
    %v8360 = vsel %vm8354, %v8347, 920167782
    %v8361 = vsel %vm8353, %v8344, %v8360
    %v8362 = vsel %vm8352, %v8359, %v8361
    %v8363 = vsel %vm8351, %v8341, %v8344
    %v8364 = vsel %vm8354, %v8350, 1326507024
    %v8365 = vsel %vm8353, %v8347, %v8364
    %v8366 = vsel %vm8352, %v8363, %v8365
    %v8367 = vshll.u32 %v8327, 8
    %v8368 = vand.u32 %v8367, 65535
    %v8369 = vshrl.u32 %v8367, 16
    %v8370 = vand.u32 %v8366, 65535
    %v8371 = vshrl.u32 %v8366, 16
    %v8372 = vmul.u32 %v8368, %v8370
    %v8373 = vmul.u32 %v8368, %v8371
    %v8374 = vmul.u32 %v8369, %v8370
    %v8375 = vmul.u32 %v8369, %v8371
    %v8376 = vshll.u32 %v8373, 16
    %v8377 = vshrl.u32 %v8373, 16
    %v8378 = vshll.u32 %v8374, 16
    %v8379 = vshrl.u32 %v8374, 16
    %vm8380 = vc.u32 %v8372, %v8376
    %v8381 = vsel %vm8380, 1, 0
    %v8382 = vadd.s32 %v8372, %v8376
    %v8383 = vadd.s32 %v8375, %v8381
    %vm8384 = vc.u32 %v8382, %v8378
    %v8385 = vsel %vm8384, 1, 0
    %v8386 = vadd.s32 %v8382, %v8378
    %v8387 = vadd.s32 %v8383, %v8385
    %v8388 = vadd.s32 %v8387, %v8377
    %v8389 = vadd.s32 %v8388, %v8379
    %v8390 = vand.u32 %v8367, 65535
    %v8391 = vshrl.u32 %v8367, 16
    %v8392 = vand.u32 %v8362, 65535
    %v8393 = vshrl.u32 %v8362, 16
    %v8394 = vmul.u32 %v8390, %v8392
    %v8395 = vmul.u32 %v8390, %v8393
    %v8396 = vmul.u32 %v8391, %v8392
    %v8397 = vmul.u32 %v8391, %v8393
    %v8398 = vshll.u32 %v8395, 16
    %v8399 = vshrl.u32 %v8395, 16
    %v8400 = vshll.u32 %v8396, 16
    %v8401 = vshrl.u32 %v8396, 16
    %vm8402 = vc.u32 %v8394, %v8398
    %v8403 = vsel %vm8402, 1, 0
    %v8404 = vadd.s32 %v8394, %v8398
    %v8405 = vadd.s32 %v8397, %v8403
    %vm8406 = vc.u32 %v8404, %v8400
    %v8407 = vsel %vm8406, 1, 0
    %v8408 = vadd.s32 %v8404, %v8400
    %v8409 = vadd.s32 %v8405, %v8407
    %v8410 = vadd.s32 %v8409, %v8399
    %v8411 = vadd.s32 %v8410, %v8401
    %v8412 = vmul.u32 %v8367, %v8358
    %v8413 = vadd.s32 %v8389, %v8408
    %vm8414 = vc.u32 %v8389, %v8408
    %v8415 = vadd.s32 %v8411, 1
    %v8416 = vsel %vm8414, %v8415, %v8411
    %v8417 = vadd.s32 %v8412, %v8416
    %v8418 = vadd.s32 %v8417, 536870912
    %v8419 = vshrl.u32 %v8418, 30
    %v8420 = vshll.u32 %v8419, 30
    %v8421 = vsub.s32 %v8417, %v8420
    %vm8422 = vcmp.lt.s32.totalorder %v8421, 0
    %v8423 = vsub.s32 0, %v8421
    %v8424 = vsel %vm8422, %v8423, %v8421
    %v8425 = vclz %v8424
    %v8426 = vsub.s32 %v8425, 2
    %vm8427 = vcmp.gt.s32.totalorder 0, %v8426
    %v8428 = vsel %vm8427, 0, %v8426
    %v8429 = vsub.s32 32, %v8428
    %v8430 = vshll.u32 %v8421, %v8428
    %v8431 = vshrl.u32 %v8413, %v8429
    %v8432 = vor.u32 %v8430, %v8431
    %v8433 = vsub.s32 4294967266, %v8428
    %v8434 = vadd.s32 %v8433, 127
    %v8435 = vshll.u32 %v8434, 23
    %v8436 = vor.u32 4788187, %v8435
    %v8437 = vand.u32 2147483647, %v8436
    %v8439 = vcvt.s32.f32 %v8432
    %v8440 = vmul.f32 %v8439, %v8437
    %v8441 = vxor.u32 %v8440, 2147483648
    %v8442 = vsel %vm8321, %v8441, %v8440
    %v8443 = vsub.s32 4, %v8419
    %v8444 = vsel %vm8321, %v8443, %v8419
    %v8445 = vsel %vm8320, %v382, %v8442
    %v8446 = vsel %vm8320, 0, %v8444
    %v8447 = vmul.f32 %v8445, %v8445
    %v8448 = vmul.f32 %v8447, -0.001358992
    %v8449 = vadd.f32 %v8448, 0.041655596
    %v8450 = vmul.f32 %v8447, %v8449
    %v8451 = vadd.f32 %v8450, -0.4999988
    %v8452 = vmul.f32 %v8447, %v8451
    %v8453 = vadd.f32 1.0, %v8452
    %v8454 = vmul.f32 %v8445, %v8445
    %v8455 = vmul.f32 %v8454, -0.00019511016
    %v8456 = vadd.f32 %v8455, 0.008332121
    %v8457 = vmul.f32 %v8454, %v8456
    %v8458 = vadd.f32 %v8457, -0.16666654
    %v8459 = vmul.f32 %v8454, %v8458
    %v8460 = vadd.f32 %v8459, 1.0
    %v8461 = vmul.f32 %v8460, %v8445
    %vm8462 = vweird.f32 %v382
    %v8463 = vadd.s32 %v8446, 3
    %v8464 = vand.u32 %v8463, 3
    %vm8465 = vcmp.lt.s32.totalorder %v8464, 2
    %vm8466 = vcmp.eq.s32.totalorder %v8464, 0
    %v8467 = vxor.u32 %v8461, 2147483648
    %v8468 = vsel %vm8466, %v8453, %v8467
    %vm8469 = vcmp.eq.s32.totalorder %v8464, 2
    %v8470 = vxor.u32 %v8453, 2147483648
    %v8471 = vsel %vm8469, %v8470, %v8461
    %v8472 = vsel %vm8465, %v8468, %v8471
    %v8473 = vsel %vm8462, nan, %v8472
    %v8474 = vand.u32 2147483647, %v385
    %vm8475 = vcmp.le.f32.partialorder %v8474, 0.7853982
    %vm8476 = vcmp.lt.s32.totalorder %v385, 0
    %v8477 = vand.u32 %v385, 2139095040
    %v8478 = vshrl.u32 %v8477, 23
    %v8479 = vsub.s32 %v8478, 127
    %v8480 = vand.u32 2147483647, %v385
    %v8481 = vand.u32 %v8480, 8388607
    %v8482 = vor.u32 %v8481, 8388608
    %v8483 = vsub.s32 0, %v8482
    %v8484 = vadd.s32 %v8479, 1
    %vm8485 = vcmp.gt.s32.totalorder %v8484, 0
    %v8486 = vsel %vm8485, %v8484, 0
    %v8487 = vshrl.u32 %v8486, 5
    %v8488 = vand.u32 %v8486, 31
    %v8489 = vsub.s32 32, %v8488
    %v8490 = vshrl.u32 683565275, %v8489
    %v8491 = vshll.u32 683565275, %v8488
    %v8492 = vshrl.u32 2475754826, %v8489
    %v8493 = vor.u32 %v8491, %v8492
    %v8494 = vshll.u32 2475754826, %v8488
    %v8495 = vshrl.u32 2131351028, %v8489
    %v8496 = vor.u32 %v8494, %v8495
    %v8497 = vshll.u32 2131351028, %v8488
    %v8498 = vshrl.u32 2102212464, %v8489
    %v8499 = vor.u32 %v8497, %v8498
    %v8500 = vshll.u32 2102212464, %v8488
    %v8501 = vshrl.u32 920167782, %v8489
    %v8502 = vor.u32 %v8500, %v8501
    %v8503 = vshll.u32 920167782, %v8488
    %v8504 = vshrl.u32 1326507024, %v8489
    %v8505 = vor.u32 %v8503, %v8504
    %vm8506 = vcmp.lt.s32.totalorder %v8487, 1
    %vm8507 = vcmp.lt.s32.totalorder %v8487, 2
    %vm8508 = vcmp.lt.s32.totalorder %v8487, 3
    %vm8509 = vcmp.lt.s32.totalorder %v8487, 4
    %v8510 = vsel %vm8506, %v8490, %v8493
    %v8511 = vsel %vm8509, %v8499, 2102212464
    %v8512 = vsel %vm8508, %v8496, %v8511
    %v8513 = vsel %vm8507, %v8510, %v8512
    %v8514 = vsel %vm8506, %v8493, %v8496
    %v8515 = vsel %vm8509, %v8502, 920167782
    %v8516 = vsel %vm8508, %v8499, %v8515
    %v8517 = vsel %vm8507, %v8514, %v8516
    %v8518 = vsel %vm8506, %v8496, %v8499
    %v8519 = vsel %vm8509, %v8505, 1326507024
    %v8520 = vsel %vm8508, %v8502, %v8519
    %v8521 = vsel %vm8507, %v8518, %v8520
    %v8522 = vshll.u32 %v8482, 8
    %v8523 = vand.u32 %v8522, 65535
    %v8524 = vshrl.u32 %v8522, 16
    %v8525 = vand.u32 %v8521, 65535
    %v8526 = vshrl.u32 %v8521, 16
    %v8527 = vmul.u32 %v8523, %v8525
    %v8528 = vmul.u32 %v8523, %v8526
    %v8529 = vmul.u32 %v8524, %v8525
    %v8530 = vmul.u32 %v8524, %v8526
    %v8531 = vshll.u32 %v8528, 16
    %v8532 = vshrl.u32 %v8528, 16
    %v8533 = vshll.u32 %v8529, 16
    %v8534 = vshrl.u32 %v8529, 16
    %vm8535 = vc.u32 %v8527, %v8531
    %v8536 = vsel %vm8535, 1, 0
    %v8537 = vadd.s32 %v8527, %v8531
    %v8538 = vadd.s32 %v8530, %v8536
    %vm8539 = vc.u32 %v8537, %v8533
    %v8540 = vsel %vm8539, 1, 0
    %v8541 = vadd.s32 %v8537, %v8533
    %v8542 = vadd.s32 %v8538, %v8540
    %v8543 = vadd.s32 %v8542, %v8532
    %v8544 = vadd.s32 %v8543, %v8534
    %v8545 = vand.u32 %v8522, 65535
    %v8546 = vshrl.u32 %v8522, 16
    %v8547 = vand.u32 %v8517, 65535
    %v8548 = vshrl.u32 %v8517, 16
    %v8549 = vmul.u32 %v8545, %v8547
    %v8550 = vmul.u32 %v8545, %v8548
    %v8551 = vmul.u32 %v8546, %v8547
    %v8552 = vmul.u32 %v8546, %v8548
    %v8553 = vshll.u32 %v8550, 16
    %v8554 = vshrl.u32 %v8550, 16
    %v8555 = vshll.u32 %v8551, 16
    %v8556 = vshrl.u32 %v8551, 16
    %vm8557 = vc.u32 %v8549, %v8553
    %v8558 = vsel %vm8557, 1, 0
    %v8559 = vadd.s32 %v8549, %v8553
    %v8560 = vadd.s32 %v8552, %v8558
    %vm8561 = vc.u32 %v8559, %v8555
    %v8562 = vsel %vm8561, 1, 0
    %v8563 = vadd.s32 %v8559, %v8555
    %v8564 = vadd.s32 %v8560, %v8562
    %v8565 = vadd.s32 %v8564, %v8554
    %v8566 = vadd.s32 %v8565, %v8556
    %v8567 = vmul.u32 %v8522, %v8513
    %v8568 = vadd.s32 %v8544, %v8563
    %vm8569 = vc.u32 %v8544, %v8563
    %v8570 = vadd.s32 %v8566, 1
    %v8571 = vsel %vm8569, %v8570, %v8566
    %v8572 = vadd.s32 %v8567, %v8571
    %v8573 = vadd.s32 %v8572, 536870912
    %v8574 = vshrl.u32 %v8573, 30
    %v8575 = vshll.u32 %v8574, 30
    %v8576 = vsub.s32 %v8572, %v8575
    %vm8577 = vcmp.lt.s32.totalorder %v8576, 0
    %v8578 = vsub.s32 0, %v8576
    %v8579 = vsel %vm8577, %v8578, %v8576
    %v8580 = vclz %v8579
    %v8581 = vsub.s32 %v8580, 2
    %vm8582 = vcmp.gt.s32.totalorder 0, %v8581
    %v8583 = vsel %vm8582, 0, %v8581
    %v8584 = vsub.s32 32, %v8583
    %v8585 = vshll.u32 %v8576, %v8583
    %v8586 = vshrl.u32 %v8568, %v8584
    %v8587 = vor.u32 %v8585, %v8586
    %v8588 = vsub.s32 4294967266, %v8583
    %v8589 = vadd.s32 %v8588, 127
    %v8590 = vshll.u32 %v8589, 23
    %v8591 = vor.u32 4788187, %v8590
    %v8592 = vand.u32 2147483647, %v8591
    %v8594 = vcvt.s32.f32 %v8587
    %v8595 = vmul.f32 %v8594, %v8592
    %v8596 = vxor.u32 %v8595, 2147483648
    %v8597 = vsel %vm8476, %v8596, %v8595
    %v8598 = vsub.s32 4, %v8574
    %v8599 = vsel %vm8476, %v8598, %v8574
    %v8600 = vsel %vm8475, %v385, %v8597
    %v8601 = vsel %vm8475, 0, %v8599
    %v8602 = vmul.f32 %v8600, %v8600
    %v8603 = vmul.f32 %v8602, -0.001358992
    %v8604 = vadd.f32 %v8603, 0.041655596
    %v8605 = vmul.f32 %v8602, %v8604
    %v8606 = vadd.f32 %v8605, -0.4999988
    %v8607 = vmul.f32 %v8602, %v8606
    %v8608 = vadd.f32 1.0, %v8607
    %v8609 = vmul.f32 %v8600, %v8600
    %v8610 = vmul.f32 %v8609, -0.00019511016
    %v8611 = vadd.f32 %v8610, 0.008332121
    %v8612 = vmul.f32 %v8609, %v8611
    %v8613 = vadd.f32 %v8612, -0.16666654
    %v8614 = vmul.f32 %v8609, %v8613
    %v8615 = vadd.f32 %v8614, 1.0
    %v8616 = vmul.f32 %v8615, %v8600
    %vm8617 = vweird.f32 %v385
    %v8618 = vadd.s32 %v8601, 3
    %v8619 = vand.u32 %v8618, 3
    %vm8620 = vcmp.lt.s32.totalorder %v8619, 2
    %vm8621 = vcmp.eq.s32.totalorder %v8619, 0
    %v8622 = vxor.u32 %v8616, 2147483648
    %v8623 = vsel %vm8621, %v8608, %v8622
    %vm8624 = vcmp.eq.s32.totalorder %v8619, 2
    %v8625 = vxor.u32 %v8608, 2147483648
    %v8626 = vsel %vm8624, %v8625, %v8616
    %v8627 = vsel %vm8620, %v8623, %v8626
    %v8628 = vsel %vm8617, nan, %v8627
    %v8629 = vand.u32 2147483647, %v387
    %vm8630 = vcmp.le.f32.partialorder %v8629, 0.7853982
    %vm8631 = vcmp.lt.s32.totalorder %v387, 0
    %v8632 = vand.u32 %v387, 2139095040
    %v8633 = vshrl.u32 %v8632, 23
    %v8634 = vsub.s32 %v8633, 127
    %v8635 = vand.u32 2147483647, %v387
    %v8636 = vand.u32 %v8635, 8388607
    %v8637 = vor.u32 %v8636, 8388608
    %v8638 = vsub.s32 0, %v8637
    %v8639 = vadd.s32 %v8634, 1
    %vm8640 = vcmp.gt.s32.totalorder %v8639, 0
    %v8641 = vsel %vm8640, %v8639, 0
    %v8642 = vshrl.u32 %v8641, 5
    %v8643 = vand.u32 %v8641, 31
    %v8644 = vsub.s32 32, %v8643
    %v8645 = vshrl.u32 683565275, %v8644
    %v8646 = vshll.u32 683565275, %v8643
    %v8647 = vshrl.u32 2475754826, %v8644
    %v8648 = vor.u32 %v8646, %v8647
    %v8649 = vshll.u32 2475754826, %v8643
    %v8650 = vshrl.u32 2131351028, %v8644
    %v8651 = vor.u32 %v8649, %v8650
    %v8652 = vshll.u32 2131351028, %v8643
    %v8653 = vshrl.u32 2102212464, %v8644
    %v8654 = vor.u32 %v8652, %v8653
    %v8655 = vshll.u32 2102212464, %v8643
    %v8656 = vshrl.u32 920167782, %v8644
    %v8657 = vor.u32 %v8655, %v8656
    %v8658 = vshll.u32 920167782, %v8643
    %v8659 = vshrl.u32 1326507024, %v8644
    %v8660 = vor.u32 %v8658, %v8659
    %vm8661 = vcmp.lt.s32.totalorder %v8642, 1
    %vm8662 = vcmp.lt.s32.totalorder %v8642, 2
    %vm8663 = vcmp.lt.s32.totalorder %v8642, 3
    %vm8664 = vcmp.lt.s32.totalorder %v8642, 4
    %v8665 = vsel %vm8661, %v8645, %v8648
    %v8666 = vsel %vm8664, %v8654, 2102212464
    %v8667 = vsel %vm8663, %v8651, %v8666
    %v8668 = vsel %vm8662, %v8665, %v8667
    %v8669 = vsel %vm8661, %v8648, %v8651
    %v8670 = vsel %vm8664, %v8657, 920167782
    %v8671 = vsel %vm8663, %v8654, %v8670
    %v8672 = vsel %vm8662, %v8669, %v8671
    %v8673 = vsel %vm8661, %v8651, %v8654
    %v8674 = vsel %vm8664, %v8660, 1326507024
    %v8675 = vsel %vm8663, %v8657, %v8674
    %v8676 = vsel %vm8662, %v8673, %v8675
    %v8677 = vshll.u32 %v8637, 8
    %v8678 = vand.u32 %v8677, 65535
    %v8679 = vshrl.u32 %v8677, 16
    %v8680 = vand.u32 %v8676, 65535
    %v8681 = vshrl.u32 %v8676, 16
    %v8682 = vmul.u32 %v8678, %v8680
    %v8683 = vmul.u32 %v8678, %v8681
    %v8684 = vmul.u32 %v8679, %v8680
    %v8685 = vmul.u32 %v8679, %v8681
    %v8686 = vshll.u32 %v8683, 16
    %v8687 = vshrl.u32 %v8683, 16
    %v8688 = vshll.u32 %v8684, 16
    %v8689 = vshrl.u32 %v8684, 16
    %vm8690 = vc.u32 %v8682, %v8686
    %v8691 = vsel %vm8690, 1, 0
    %v8692 = vadd.s32 %v8682, %v8686
    %v8693 = vadd.s32 %v8685, %v8691
    %vm8694 = vc.u32 %v8692, %v8688
    %v8695 = vsel %vm8694, 1, 0
    %v8696 = vadd.s32 %v8692, %v8688
    %v8697 = vadd.s32 %v8693, %v8695
    %v8698 = vadd.s32 %v8697, %v8687
    %v8699 = vadd.s32 %v8698, %v8689
    %v8700 = vand.u32 %v8677, 65535
    %v8701 = vshrl.u32 %v8677, 16
    %v8702 = vand.u32 %v8672, 65535
    %v8703 = vshrl.u32 %v8672, 16
    %v8704 = vmul.u32 %v8700, %v8702
    %v8705 = vmul.u32 %v8700, %v8703
    %v8706 = vmul.u32 %v8701, %v8702
    %v8707 = vmul.u32 %v8701, %v8703
    %v8708 = vshll.u32 %v8705, 16
    %v8709 = vshrl.u32 %v8705, 16
    %v8710 = vshll.u32 %v8706, 16
    %v8711 = vshrl.u32 %v8706, 16
    %vm8712 = vc.u32 %v8704, %v8708
    %v8713 = vsel %vm8712, 1, 0
    %v8714 = vadd.s32 %v8704, %v8708
    %v8715 = vadd.s32 %v8707, %v8713
    %vm8716 = vc.u32 %v8714, %v8710
    %v8717 = vsel %vm8716, 1, 0
    %v8718 = vadd.s32 %v8714, %v8710
    %v8719 = vadd.s32 %v8715, %v8717
    %v8720 = vadd.s32 %v8719, %v8709
    %v8721 = vadd.s32 %v8720, %v8711
    %v8722 = vmul.u32 %v8677, %v8668
    %v8723 = vadd.s32 %v8699, %v8718
    %vm8724 = vc.u32 %v8699, %v8718
    %v8725 = vadd.s32 %v8721, 1
    %v8726 = vsel %vm8724, %v8725, %v8721
    %v8727 = vadd.s32 %v8722, %v8726
    %v8728 = vadd.s32 %v8727, 536870912
    %v8729 = vshrl.u32 %v8728, 30
    %v8730 = vshll.u32 %v8729, 30
    %v8731 = vsub.s32 %v8727, %v8730
    %vm8732 = vcmp.lt.s32.totalorder %v8731, 0
    %v8733 = vsub.s32 0, %v8731
    %v8734 = vsel %vm8732, %v8733, %v8731
    %v8735 = vclz %v8734
    %v8736 = vsub.s32 %v8735, 2
    %vm8737 = vcmp.gt.s32.totalorder 0, %v8736
    %v8738 = vsel %vm8737, 0, %v8736
    %v8739 = vsub.s32 32, %v8738
    %v8740 = vshll.u32 %v8731, %v8738
    %v8741 = vshrl.u32 %v8723, %v8739
    %v8742 = vor.u32 %v8740, %v8741
    %v8743 = vsub.s32 4294967266, %v8738
    %v8744 = vadd.s32 %v8743, 127
    %v8745 = vshll.u32 %v8744, 23
    %v8746 = vor.u32 4788187, %v8745
    %v8747 = vand.u32 2147483647, %v8746
    %v8749 = vcvt.s32.f32 %v8742
    %v8750 = vmul.f32 %v8749, %v8747
    %v8751 = vxor.u32 %v8750, 2147483648
    %v8752 = vsel %vm8631, %v8751, %v8750
    %v8753 = vsub.s32 4, %v8729
    %v8754 = vsel %vm8631, %v8753, %v8729
    %v8755 = vsel %vm8630, %v387, %v8752
    %v8756 = vsel %vm8630, 0, %v8754
    %v8757 = vmul.f32 %v8755, %v8755
    %v8758 = vmul.f32 %v8757, -0.001358992
    %v8759 = vadd.f32 %v8758, 0.041655596
    %v8760 = vmul.f32 %v8757, %v8759
    %v8761 = vadd.f32 %v8760, -0.4999988
    %v8762 = vmul.f32 %v8757, %v8761
    %v8763 = vadd.f32 1.0, %v8762
    %v8764 = vmul.f32 %v8755, %v8755
    %v8765 = vmul.f32 %v8764, -0.00019511016
    %v8766 = vadd.f32 %v8765, 0.008332121
    %v8767 = vmul.f32 %v8764, %v8766
    %v8768 = vadd.f32 %v8767, -0.16666654
    %v8769 = vmul.f32 %v8764, %v8768
    %v8770 = vadd.f32 %v8769, 1.0
    %v8771 = vmul.f32 %v8770, %v8755
    %vm8772 = vweird.f32 %v387
    %v8773 = vadd.s32 %v8756, 3
    %v8774 = vand.u32 %v8773, 3
    %vm8775 = vcmp.lt.s32.totalorder %v8774, 2
    %vm8776 = vcmp.eq.s32.totalorder %v8774, 0
    %v8777 = vxor.u32 %v8771, 2147483648
    %v8778 = vsel %vm8776, %v8763, %v8777
    %vm8779 = vcmp.eq.s32.totalorder %v8774, 2
    %v8780 = vxor.u32 %v8763, 2147483648
    %v8781 = vsel %vm8779, %v8780, %v8771
    %v8782 = vsel %vm8775, %v8778, %v8781
    %v8783 = vsel %vm8772, nan, %v8782
    %v8784 = vand.u32 2147483647, %v390
    %vm8785 = vcmp.le.f32.partialorder %v8784, 0.7853982
    %vm8786 = vcmp.lt.s32.totalorder %v390, 0
    %v8787 = vand.u32 %v390, 2139095040
    %v8788 = vshrl.u32 %v8787, 23
    %v8789 = vsub.s32 %v8788, 127
    %v8790 = vand.u32 2147483647, %v390
    %v8791 = vand.u32 %v8790, 8388607
    %v8792 = vor.u32 %v8791, 8388608
    %v8793 = vsub.s32 0, %v8792
    %v8794 = vadd.s32 %v8789, 1
    %vm8795 = vcmp.gt.s32.totalorder %v8794, 0
    %v8796 = vsel %vm8795, %v8794, 0
    %v8797 = vshrl.u32 %v8796, 5
    %v8798 = vand.u32 %v8796, 31
    %v8799 = vsub.s32 32, %v8798
    %v8800 = vshrl.u32 683565275, %v8799
    %v8801 = vshll.u32 683565275, %v8798
    %v8802 = vshrl.u32 2475754826, %v8799
    %v8803 = vor.u32 %v8801, %v8802
    %v8804 = vshll.u32 2475754826, %v8798
    %v8805 = vshrl.u32 2131351028, %v8799
    %v8806 = vor.u32 %v8804, %v8805
    %v8807 = vshll.u32 2131351028, %v8798
    %v8808 = vshrl.u32 2102212464, %v8799
    %v8809 = vor.u32 %v8807, %v8808
    %v8810 = vshll.u32 2102212464, %v8798
    %v8811 = vshrl.u32 920167782, %v8799
    %v8812 = vor.u32 %v8810, %v8811
    %v8813 = vshll.u32 920167782, %v8798
    %v8814 = vshrl.u32 1326507024, %v8799
    %v8815 = vor.u32 %v8813, %v8814
    %vm8816 = vcmp.lt.s32.totalorder %v8797, 1
    %vm8817 = vcmp.lt.s32.totalorder %v8797, 2
    %vm8818 = vcmp.lt.s32.totalorder %v8797, 3
    %vm8819 = vcmp.lt.s32.totalorder %v8797, 4
    %v8820 = vsel %vm8816, %v8800, %v8803
    %v8821 = vsel %vm8819, %v8809, 2102212464
    %v8822 = vsel %vm8818, %v8806, %v8821
    %v8823 = vsel %vm8817, %v8820, %v8822
    %v8824 = vsel %vm8816, %v8803, %v8806
    %v8825 = vsel %vm8819, %v8812, 920167782
    %v8826 = vsel %vm8818, %v8809, %v8825
    %v8827 = vsel %vm8817, %v8824, %v8826
    %v8828 = vsel %vm8816, %v8806, %v8809
    %v8829 = vsel %vm8819, %v8815, 1326507024
    %v8830 = vsel %vm8818, %v8812, %v8829
    %v8831 = vsel %vm8817, %v8828, %v8830
    %v8832 = vshll.u32 %v8792, 8
    %v8833 = vand.u32 %v8832, 65535
    %v8834 = vshrl.u32 %v8832, 16
    %v8835 = vand.u32 %v8831, 65535
    %v8836 = vshrl.u32 %v8831, 16
    %v8837 = vmul.u32 %v8833, %v8835
    %v8838 = vmul.u32 %v8833, %v8836
    %v8839 = vmul.u32 %v8834, %v8835
    %v8840 = vmul.u32 %v8834, %v8836
    %v8841 = vshll.u32 %v8838, 16
    %v8842 = vshrl.u32 %v8838, 16
    %v8843 = vshll.u32 %v8839, 16
    %v8844 = vshrl.u32 %v8839, 16
    %vm8845 = vc.u32 %v8837, %v8841
    %v8846 = vsel %vm8845, 1, 0
    %v8847 = vadd.s32 %v8837, %v8841
    %v8848 = vadd.s32 %v8840, %v8846
    %vm8849 = vc.u32 %v8847, %v8843
    %v8850 = vsel %vm8849, 1, 0
    %v8851 = vadd.s32 %v8847, %v8843
    %v8852 = vadd.s32 %v8848, %v8850
    %v8853 = vadd.s32 %v8852, %v8842
    %v8854 = vadd.s32 %v8853, %v8844
    %v8855 = vand.u32 %v8832, 65535
    %v8856 = vshrl.u32 %v8832, 16
    %v8857 = vand.u32 %v8827, 65535
    %v8858 = vshrl.u32 %v8827, 16
    %v8859 = vmul.u32 %v8855, %v8857
    %v8860 = vmul.u32 %v8855, %v8858
    %v8861 = vmul.u32 %v8856, %v8857
    %v8862 = vmul.u32 %v8856, %v8858
    %v8863 = vshll.u32 %v8860, 16
    %v8864 = vshrl.u32 %v8860, 16
    %v8865 = vshll.u32 %v8861, 16
    %v8866 = vshrl.u32 %v8861, 16
    %vm8867 = vc.u32 %v8859, %v8863
    %v8868 = vsel %vm8867, 1, 0
    %v8869 = vadd.s32 %v8859, %v8863
    %v8870 = vadd.s32 %v8862, %v8868
    %vm8871 = vc.u32 %v8869, %v8865
    %v8872 = vsel %vm8871, 1, 0
    %v8873 = vadd.s32 %v8869, %v8865
    %v8874 = vadd.s32 %v8870, %v8872
    %v8875 = vadd.s32 %v8874, %v8864
    %v8876 = vadd.s32 %v8875, %v8866
    %v8877 = vmul.u32 %v8832, %v8823
    %v8878 = vadd.s32 %v8854, %v8873
    %vm8879 = vc.u32 %v8854, %v8873
    %v8880 = vadd.s32 %v8876, 1
    %v8881 = vsel %vm8879, %v8880, %v8876
    %v8882 = vadd.s32 %v8877, %v8881
    %v8883 = vadd.s32 %v8882, 536870912
    %v8884 = vshrl.u32 %v8883, 30
    %v8885 = vshll.u32 %v8884, 30
    %v8886 = vsub.s32 %v8882, %v8885
    %vm8887 = vcmp.lt.s32.totalorder %v8886, 0
    %v8888 = vsub.s32 0, %v8886
    %v8889 = vsel %vm8887, %v8888, %v8886
    %v8890 = vclz %v8889
    %v8891 = vsub.s32 %v8890, 2
    %vm8892 = vcmp.gt.s32.totalorder 0, %v8891
    %v8893 = vsel %vm8892, 0, %v8891
    %v8894 = vsub.s32 32, %v8893
    %v8895 = vshll.u32 %v8886, %v8893
    %v8896 = vshrl.u32 %v8878, %v8894
    %v8897 = vor.u32 %v8895, %v8896
    %v8898 = vsub.s32 4294967266, %v8893
    %v8899 = vadd.s32 %v8898, 127
    %v8900 = vshll.u32 %v8899, 23
    %v8901 = vor.u32 4788187, %v8900
    %v8902 = vand.u32 2147483647, %v8901
    %v8904 = vcvt.s32.f32 %v8897
    %v8905 = vmul.f32 %v8904, %v8902
    %v8906 = vxor.u32 %v8905, 2147483648
    %v8907 = vsel %vm8786, %v8906, %v8905
    %v8908 = vsub.s32 4, %v8884
    %v8909 = vsel %vm8786, %v8908, %v8884
    %v8910 = vsel %vm8785, %v390, %v8907
    %v8911 = vsel %vm8785, 0, %v8909
    %v8912 = vmul.f32 %v8910, %v8910
    %v8913 = vmul.f32 %v8912, -0.001358992
    %v8914 = vadd.f32 %v8913, 0.041655596
    %v8915 = vmul.f32 %v8912, %v8914
    %v8916 = vadd.f32 %v8915, -0.4999988
    %v8917 = vmul.f32 %v8912, %v8916
    %v8918 = vadd.f32 1.0, %v8917
    %v8919 = vmul.f32 %v8910, %v8910
    %v8920 = vmul.f32 %v8919, -0.00019511016
    %v8921 = vadd.f32 %v8920, 0.008332121
    %v8922 = vmul.f32 %v8919, %v8921
    %v8923 = vadd.f32 %v8922, -0.16666654
    %v8924 = vmul.f32 %v8919, %v8923
    %v8925 = vadd.f32 %v8924, 1.0
    %v8926 = vmul.f32 %v8925, %v8910
    %vm8927 = vweird.f32 %v390
    %v8928 = vadd.s32 %v8911, 3
    %v8929 = vand.u32 %v8928, 3
    %vm8930 = vcmp.lt.s32.totalorder %v8929, 2
    %vm8931 = vcmp.eq.s32.totalorder %v8929, 0
    %v8932 = vxor.u32 %v8926, 2147483648
    %v8933 = vsel %vm8931, %v8918, %v8932
    %vm8934 = vcmp.eq.s32.totalorder %v8929, 2
    %v8935 = vxor.u32 %v8918, 2147483648
    %v8936 = vsel %vm8934, %v8935, %v8926
    %v8937 = vsel %vm8930, %v8933, %v8936
    %v8938 = vsel %vm8927, nan, %v8937
    %v8939 = vand.u32 2147483647, %v392
    %vm8940 = vcmp.le.f32.partialorder %v8939, 0.7853982
    %vm8941 = vcmp.lt.s32.totalorder %v392, 0
    %v8942 = vand.u32 %v392, 2139095040
    %v8943 = vshrl.u32 %v8942, 23
    %v8944 = vsub.s32 %v8943, 127
    %v8945 = vand.u32 2147483647, %v392
    %v8946 = vand.u32 %v8945, 8388607
    %v8947 = vor.u32 %v8946, 8388608
    %v8948 = vsub.s32 0, %v8947
    %v8949 = vadd.s32 %v8944, 1
    %vm8950 = vcmp.gt.s32.totalorder %v8949, 0
    %v8951 = vsel %vm8950, %v8949, 0
    %v8952 = vshrl.u32 %v8951, 5
    %v8953 = vand.u32 %v8951, 31
    %v8954 = vsub.s32 32, %v8953
    %v8955 = vshrl.u32 683565275, %v8954
    %v8956 = vshll.u32 683565275, %v8953
    %v8957 = vshrl.u32 2475754826, %v8954
    %v8958 = vor.u32 %v8956, %v8957
    %v8959 = vshll.u32 2475754826, %v8953
    %v8960 = vshrl.u32 2131351028, %v8954
    %v8961 = vor.u32 %v8959, %v8960
    %v8962 = vshll.u32 2131351028, %v8953
    %v8963 = vshrl.u32 2102212464, %v8954
    %v8964 = vor.u32 %v8962, %v8963
    %v8965 = vshll.u32 2102212464, %v8953
    %v8966 = vshrl.u32 920167782, %v8954
    %v8967 = vor.u32 %v8965, %v8966
    %v8968 = vshll.u32 920167782, %v8953
    %v8969 = vshrl.u32 1326507024, %v8954
    %v8970 = vor.u32 %v8968, %v8969
    %vm8971 = vcmp.lt.s32.totalorder %v8952, 1
    %vm8972 = vcmp.lt.s32.totalorder %v8952, 2
    %vm8973 = vcmp.lt.s32.totalorder %v8952, 3
    %vm8974 = vcmp.lt.s32.totalorder %v8952, 4
    %v8975 = vsel %vm8971, %v8955, %v8958
    %v8976 = vsel %vm8974, %v8964, 2102212464
    %v8977 = vsel %vm8973, %v8961, %v8976
    %v8978 = vsel %vm8972, %v8975, %v8977
    %v8979 = vsel %vm8971, %v8958, %v8961
    %v8980 = vsel %vm8974, %v8967, 920167782
    %v8981 = vsel %vm8973, %v8964, %v8980
    %v8982 = vsel %vm8972, %v8979, %v8981
    %v8983 = vsel %vm8971, %v8961, %v8964
    %v8984 = vsel %vm8974, %v8970, 1326507024
    %v8985 = vsel %vm8973, %v8967, %v8984
    %v8986 = vsel %vm8972, %v8983, %v8985
    %v8987 = vshll.u32 %v8947, 8
    %v8988 = vand.u32 %v8987, 65535
    %v8989 = vshrl.u32 %v8987, 16
    %v8990 = vand.u32 %v8986, 65535
    %v8991 = vshrl.u32 %v8986, 16
    %v8992 = vmul.u32 %v8988, %v8990
    %v8993 = vmul.u32 %v8988, %v8991
    %v8994 = vmul.u32 %v8989, %v8990
    %v8995 = vmul.u32 %v8989, %v8991
    %v8996 = vshll.u32 %v8993, 16
    %v8997 = vshrl.u32 %v8993, 16
    %v8998 = vshll.u32 %v8994, 16
    %v8999 = vshrl.u32 %v8994, 16
    %vm9000 = vc.u32 %v8992, %v8996
    %v9001 = vsel %vm9000, 1, 0
    %v9002 = vadd.s32 %v8992, %v8996
    %v9003 = vadd.s32 %v8995, %v9001
    %vm9004 = vc.u32 %v9002, %v8998
    %v9005 = vsel %vm9004, 1, 0
    %v9006 = vadd.s32 %v9002, %v8998
    %v9007 = vadd.s32 %v9003, %v9005
    %v9008 = vadd.s32 %v9007, %v8997
    %v9009 = vadd.s32 %v9008, %v8999
    %v9010 = vand.u32 %v8987, 65535
    %v9011 = vshrl.u32 %v8987, 16
    %v9012 = vand.u32 %v8982, 65535
    %v9013 = vshrl.u32 %v8982, 16
    %v9014 = vmul.u32 %v9010, %v9012
    %v9015 = vmul.u32 %v9010, %v9013
    %v9016 = vmul.u32 %v9011, %v9012
    %v9017 = vmul.u32 %v9011, %v9013
    %v9018 = vshll.u32 %v9015, 16
    %v9019 = vshrl.u32 %v9015, 16
    %v9020 = vshll.u32 %v9016, 16
    %v9021 = vshrl.u32 %v9016, 16
    %vm9022 = vc.u32 %v9014, %v9018
    %v9023 = vsel %vm9022, 1, 0
    %v9024 = vadd.s32 %v9014, %v9018
    %v9025 = vadd.s32 %v9017, %v9023
    %vm9026 = vc.u32 %v9024, %v9020
    %v9027 = vsel %vm9026, 1, 0
    %v9028 = vadd.s32 %v9024, %v9020
    %v9029 = vadd.s32 %v9025, %v9027
    %v9030 = vadd.s32 %v9029, %v9019
    %v9031 = vadd.s32 %v9030, %v9021
    %v9032 = vmul.u32 %v8987, %v8978
    %v9033 = vadd.s32 %v9009, %v9028
    %vm9034 = vc.u32 %v9009, %v9028
    %v9035 = vadd.s32 %v9031, 1
    %v9036 = vsel %vm9034, %v9035, %v9031
    %v9037 = vadd.s32 %v9032, %v9036
    %v9038 = vadd.s32 %v9037, 536870912
    %v9039 = vshrl.u32 %v9038, 30
    %v9040 = vshll.u32 %v9039, 30
    %v9041 = vsub.s32 %v9037, %v9040
    %vm9042 = vcmp.lt.s32.totalorder %v9041, 0
    %v9043 = vsub.s32 0, %v9041
    %v9044 = vsel %vm9042, %v9043, %v9041
    %v9045 = vclz %v9044
    %v9046 = vsub.s32 %v9045, 2
    %vm9047 = vcmp.gt.s32.totalorder 0, %v9046
    %v9048 = vsel %vm9047, 0, %v9046
    %v9049 = vsub.s32 32, %v9048
    %v9050 = vshll.u32 %v9041, %v9048
    %v9051 = vshrl.u32 %v9033, %v9049
    %v9052 = vor.u32 %v9050, %v9051
    %v9053 = vsub.s32 4294967266, %v9048
    %v9054 = vadd.s32 %v9053, 127
    %v9055 = vshll.u32 %v9054, 23
    %v9056 = vor.u32 4788187, %v9055
    %v9057 = vand.u32 2147483647, %v9056
    %v9059 = vcvt.s32.f32 %v9052
    %v9060 = vmul.f32 %v9059, %v9057
    %v9061 = vxor.u32 %v9060, 2147483648
    %v9062 = vsel %vm8941, %v9061, %v9060
    %v9063 = vsub.s32 4, %v9039
    %v9064 = vsel %vm8941, %v9063, %v9039
    %v9065 = vsel %vm8940, %v392, %v9062
    %v9066 = vsel %vm8940, 0, %v9064
    %v9067 = vmul.f32 %v9065, %v9065
    %v9068 = vmul.f32 %v9067, -0.001358992
    %v9069 = vadd.f32 %v9068, 0.041655596
    %v9070 = vmul.f32 %v9067, %v9069
    %v9071 = vadd.f32 %v9070, -0.4999988
    %v9072 = vmul.f32 %v9067, %v9071
    %v9073 = vadd.f32 1.0, %v9072
    %v9074 = vmul.f32 %v9065, %v9065
    %v9075 = vmul.f32 %v9074, -0.00019511016
    %v9076 = vadd.f32 %v9075, 0.008332121
    %v9077 = vmul.f32 %v9074, %v9076
    %v9078 = vadd.f32 %v9077, -0.16666654
    %v9079 = vmul.f32 %v9074, %v9078
    %v9080 = vadd.f32 %v9079, 1.0
    %v9081 = vmul.f32 %v9080, %v9065
    %vm9082 = vweird.f32 %v392
    %v9083 = vadd.s32 %v9066, 3
    %v9084 = vand.u32 %v9083, 3
    %vm9085 = vcmp.lt.s32.totalorder %v9084, 2
    %vm9086 = vcmp.eq.s32.totalorder %v9084, 0
    %v9087 = vxor.u32 %v9081, 2147483648
    %v9088 = vsel %vm9086, %v9073, %v9087
    %vm9089 = vcmp.eq.s32.totalorder %v9084, 2
    %v9090 = vxor.u32 %v9073, 2147483648
    %v9091 = vsel %vm9089, %v9090, %v9081
    %v9092 = vsel %vm9085, %v9088, %v9091
    %v9093 = vsel %vm9082, nan, %v9092
    %v9094 = vand.u32 2147483647, %v395
    %vm9095 = vcmp.le.f32.partialorder %v9094, 0.7853982
    %vm9096 = vcmp.lt.s32.totalorder %v395, 0
    %v9097 = vand.u32 %v395, 2139095040
    %v9098 = vshrl.u32 %v9097, 23
    %v9099 = vsub.s32 %v9098, 127
    %v9100 = vand.u32 2147483647, %v395
    %v9101 = vand.u32 %v9100, 8388607
    %v9102 = vor.u32 %v9101, 8388608
    %v9103 = vsub.s32 0, %v9102
    %v9104 = vadd.s32 %v9099, 1
    %vm9105 = vcmp.gt.s32.totalorder %v9104, 0
    %v9106 = vsel %vm9105, %v9104, 0
    %v9107 = vshrl.u32 %v9106, 5
    %v9108 = vand.u32 %v9106, 31
    %v9109 = vsub.s32 32, %v9108
    %v9110 = vshrl.u32 683565275, %v9109
    %v9111 = vshll.u32 683565275, %v9108
    %v9112 = vshrl.u32 2475754826, %v9109
    %v9113 = vor.u32 %v9111, %v9112
    %v9114 = vshll.u32 2475754826, %v9108
    %v9115 = vshrl.u32 2131351028, %v9109
    %v9116 = vor.u32 %v9114, %v9115
    %v9117 = vshll.u32 2131351028, %v9108
    %v9118 = vshrl.u32 2102212464, %v9109
    %v9119 = vor.u32 %v9117, %v9118
    %v9120 = vshll.u32 2102212464, %v9108
    %v9121 = vshrl.u32 920167782, %v9109
    %v9122 = vor.u32 %v9120, %v9121
    %v9123 = vshll.u32 920167782, %v9108
    %v9124 = vshrl.u32 1326507024, %v9109
    %v9125 = vor.u32 %v9123, %v9124
    %vm9126 = vcmp.lt.s32.totalorder %v9107, 1
    %vm9127 = vcmp.lt.s32.totalorder %v9107, 2
    %vm9128 = vcmp.lt.s32.totalorder %v9107, 3
    %vm9129 = vcmp.lt.s32.totalorder %v9107, 4
    %v9130 = vsel %vm9126, %v9110, %v9113
    %v9131 = vsel %vm9129, %v9119, 2102212464
    %v9132 = vsel %vm9128, %v9116, %v9131
    %v9133 = vsel %vm9127, %v9130, %v9132
    %v9134 = vsel %vm9126, %v9113, %v9116
    %v9135 = vsel %vm9129, %v9122, 920167782
    %v9136 = vsel %vm9128, %v9119, %v9135
    %v9137 = vsel %vm9127, %v9134, %v9136
    %v9138 = vsel %vm9126, %v9116, %v9119
    %v9139 = vsel %vm9129, %v9125, 1326507024
    %v9140 = vsel %vm9128, %v9122, %v9139
    %v9141 = vsel %vm9127, %v9138, %v9140
    %v9142 = vshll.u32 %v9102, 8
    %v9143 = vand.u32 %v9142, 65535
    %v9144 = vshrl.u32 %v9142, 16
    %v9145 = vand.u32 %v9141, 65535
    %v9146 = vshrl.u32 %v9141, 16
    %v9147 = vmul.u32 %v9143, %v9145
    %v9148 = vmul.u32 %v9143, %v9146
    %v9149 = vmul.u32 %v9144, %v9145
    %v9150 = vmul.u32 %v9144, %v9146
    %v9151 = vshll.u32 %v9148, 16
    %v9152 = vshrl.u32 %v9148, 16
    %v9153 = vshll.u32 %v9149, 16
    %v9154 = vshrl.u32 %v9149, 16
    %vm9155 = vc.u32 %v9147, %v9151
    %v9156 = vsel %vm9155, 1, 0
    %v9157 = vadd.s32 %v9147, %v9151
    %v9158 = vadd.s32 %v9150, %v9156
    %vm9159 = vc.u32 %v9157, %v9153
    %v9160 = vsel %vm9159, 1, 0
    %v9161 = vadd.s32 %v9157, %v9153
    %v9162 = vadd.s32 %v9158, %v9160
    %v9163 = vadd.s32 %v9162, %v9152
    %v9164 = vadd.s32 %v9163, %v9154
    %v9165 = vand.u32 %v9142, 65535
    %v9166 = vshrl.u32 %v9142, 16
    %v9167 = vand.u32 %v9137, 65535
    %v9168 = vshrl.u32 %v9137, 16
    %v9169 = vmul.u32 %v9165, %v9167
    %v9170 = vmul.u32 %v9165, %v9168
    %v9171 = vmul.u32 %v9166, %v9167
    %v9172 = vmul.u32 %v9166, %v9168
    %v9173 = vshll.u32 %v9170, 16
    %v9174 = vshrl.u32 %v9170, 16
    %v9175 = vshll.u32 %v9171, 16
    %v9176 = vshrl.u32 %v9171, 16
    %vm9177 = vc.u32 %v9169, %v9173
    %v9178 = vsel %vm9177, 1, 0
    %v9179 = vadd.s32 %v9169, %v9173
    %v9180 = vadd.s32 %v9172, %v9178
    %vm9181 = vc.u32 %v9179, %v9175
    %v9182 = vsel %vm9181, 1, 0
    %v9183 = vadd.s32 %v9179, %v9175
    %v9184 = vadd.s32 %v9180, %v9182
    %v9185 = vadd.s32 %v9184, %v9174
    %v9186 = vadd.s32 %v9185, %v9176
    %v9187 = vmul.u32 %v9142, %v9133
    %v9188 = vadd.s32 %v9164, %v9183
    %vm9189 = vc.u32 %v9164, %v9183
    %v9190 = vadd.s32 %v9186, 1
    %v9191 = vsel %vm9189, %v9190, %v9186
    %v9192 = vadd.s32 %v9187, %v9191
    %v9193 = vadd.s32 %v9192, 536870912
    %v9194 = vshrl.u32 %v9193, 30
    %v9195 = vshll.u32 %v9194, 30
    %v9196 = vsub.s32 %v9192, %v9195
    %vm9197 = vcmp.lt.s32.totalorder %v9196, 0
    %v9198 = vsub.s32 0, %v9196
    %v9199 = vsel %vm9197, %v9198, %v9196
    %v9200 = vclz %v9199
    %v9201 = vsub.s32 %v9200, 2
    %vm9202 = vcmp.gt.s32.totalorder 0, %v9201
    %v9203 = vsel %vm9202, 0, %v9201
    %v9204 = vsub.s32 32, %v9203
    %v9205 = vshll.u32 %v9196, %v9203
    %v9206 = vshrl.u32 %v9188, %v9204
    %v9207 = vor.u32 %v9205, %v9206
    %v9208 = vsub.s32 4294967266, %v9203
    %v9209 = vadd.s32 %v9208, 127
    %v9210 = vshll.u32 %v9209, 23
    %v9211 = vor.u32 4788187, %v9210
    %v9212 = vand.u32 2147483647, %v9211
    %v9214 = vcvt.s32.f32 %v9207
    %v9215 = vmul.f32 %v9214, %v9212
    %v9216 = vxor.u32 %v9215, 2147483648
    %v9217 = vsel %vm9096, %v9216, %v9215
    %v9218 = vsub.s32 4, %v9194
    %v9219 = vsel %vm9096, %v9218, %v9194
    %v9220 = vsel %vm9095, %v395, %v9217
    %v9221 = vsel %vm9095, 0, %v9219
    %v9222 = vmul.f32 %v9220, %v9220
    %v9223 = vmul.f32 %v9222, -0.001358992
    %v9224 = vadd.f32 %v9223, 0.041655596
    %v9225 = vmul.f32 %v9222, %v9224
    %v9226 = vadd.f32 %v9225, -0.4999988
    %v9227 = vmul.f32 %v9222, %v9226
    %v9228 = vadd.f32 1.0, %v9227
    %v9229 = vmul.f32 %v9220, %v9220
    %v9230 = vmul.f32 %v9229, -0.00019511016
    %v9231 = vadd.f32 %v9230, 0.008332121
    %v9232 = vmul.f32 %v9229, %v9231
    %v9233 = vadd.f32 %v9232, -0.16666654
    %v9234 = vmul.f32 %v9229, %v9233
    %v9235 = vadd.f32 %v9234, 1.0
    %v9236 = vmul.f32 %v9235, %v9220
    %vm9237 = vweird.f32 %v395
    %v9238 = vadd.s32 %v9221, 3
    %v9239 = vand.u32 %v9238, 3
    %vm9240 = vcmp.lt.s32.totalorder %v9239, 2
    %vm9241 = vcmp.eq.s32.totalorder %v9239, 0
    %v9242 = vxor.u32 %v9236, 2147483648
    %v9243 = vsel %vm9241, %v9228, %v9242
    %vm9244 = vcmp.eq.s32.totalorder %v9239, 2
    %v9245 = vxor.u32 %v9228, 2147483648
    %v9246 = vsel %vm9244, %v9245, %v9236
    %v9247 = vsel %vm9240, %v9243, %v9246
    %v9248 = vsel %vm9237, nan, %v9247
    %v9249 = vand.u32 2147483647, %v397
    %vm9250 = vcmp.le.f32.partialorder %v9249, 0.7853982
    %vm9251 = vcmp.lt.s32.totalorder %v397, 0
    %v9252 = vand.u32 %v397, 2139095040
    %v9253 = vshrl.u32 %v9252, 23
    %v9254 = vsub.s32 %v9253, 127
    %v9255 = vand.u32 2147483647, %v397
    %v9256 = vand.u32 %v9255, 8388607
    %v9257 = vor.u32 %v9256, 8388608
    %v9258 = vsub.s32 0, %v9257
    %v9259 = vadd.s32 %v9254, 1
    %vm9260 = vcmp.gt.s32.totalorder %v9259, 0
    %v9261 = vsel %vm9260, %v9259, 0
    %v9262 = vshrl.u32 %v9261, 5
    %v9263 = vand.u32 %v9261, 31
    %v9264 = vsub.s32 32, %v9263
    %v9265 = vshrl.u32 683565275, %v9264
    %v9266 = vshll.u32 683565275, %v9263
    %v9267 = vshrl.u32 2475754826, %v9264
    %v9268 = vor.u32 %v9266, %v9267
    %v9269 = vshll.u32 2475754826, %v9263
    %v9270 = vshrl.u32 2131351028, %v9264
    %v9271 = vor.u32 %v9269, %v9270
    %v9272 = vshll.u32 2131351028, %v9263
    %v9273 = vshrl.u32 2102212464, %v9264
    %v9274 = vor.u32 %v9272, %v9273
    %v9275 = vshll.u32 2102212464, %v9263
    %v9276 = vshrl.u32 920167782, %v9264
    %v9277 = vor.u32 %v9275, %v9276
    %v9278 = vshll.u32 920167782, %v9263
    %v9279 = vshrl.u32 1326507024, %v9264
    %v9280 = vor.u32 %v9278, %v9279
    %vm9281 = vcmp.lt.s32.totalorder %v9262, 1
    %vm9282 = vcmp.lt.s32.totalorder %v9262, 2
    %vm9283 = vcmp.lt.s32.totalorder %v9262, 3
    %vm9284 = vcmp.lt.s32.totalorder %v9262, 4
    %v9285 = vsel %vm9281, %v9265, %v9268
    %v9286 = vsel %vm9284, %v9274, 2102212464
    %v9287 = vsel %vm9283, %v9271, %v9286
    %v9288 = vsel %vm9282, %v9285, %v9287
    %v9289 = vsel %vm9281, %v9268, %v9271
    %v9290 = vsel %vm9284, %v9277, 920167782
    %v9291 = vsel %vm9283, %v9274, %v9290
    %v9292 = vsel %vm9282, %v9289, %v9291
    %v9293 = vsel %vm9281, %v9271, %v9274
    %v9294 = vsel %vm9284, %v9280, 1326507024
    %v9295 = vsel %vm9283, %v9277, %v9294
    %v9296 = vsel %vm9282, %v9293, %v9295
    %v9297 = vshll.u32 %v9257, 8
    %v9298 = vand.u32 %v9297, 65535
    %v9299 = vshrl.u32 %v9297, 16
    %v9300 = vand.u32 %v9296, 65535
    %v9301 = vshrl.u32 %v9296, 16
    %v9302 = vmul.u32 %v9298, %v9300
    %v9303 = vmul.u32 %v9298, %v9301
    %v9304 = vmul.u32 %v9299, %v9300
    %v9305 = vmul.u32 %v9299, %v9301
    %v9306 = vshll.u32 %v9303, 16
    %v9307 = vshrl.u32 %v9303, 16
    %v9308 = vshll.u32 %v9304, 16
    %v9309 = vshrl.u32 %v9304, 16
    %vm9310 = vc.u32 %v9302, %v9306
    %v9311 = vsel %vm9310, 1, 0
    %v9312 = vadd.s32 %v9302, %v9306
    %v9313 = vadd.s32 %v9305, %v9311
    %vm9314 = vc.u32 %v9312, %v9308
    %v9315 = vsel %vm9314, 1, 0
    %v9316 = vadd.s32 %v9312, %v9308
    %v9317 = vadd.s32 %v9313, %v9315
    %v9318 = vadd.s32 %v9317, %v9307
    %v9319 = vadd.s32 %v9318, %v9309
    %v9320 = vand.u32 %v9297, 65535
    %v9321 = vshrl.u32 %v9297, 16
    %v9322 = vand.u32 %v9292, 65535
    %v9323 = vshrl.u32 %v9292, 16
    %v9324 = vmul.u32 %v9320, %v9322
    %v9325 = vmul.u32 %v9320, %v9323
    %v9326 = vmul.u32 %v9321, %v9322
    %v9327 = vmul.u32 %v9321, %v9323
    %v9328 = vshll.u32 %v9325, 16
    %v9329 = vshrl.u32 %v9325, 16
    %v9330 = vshll.u32 %v9326, 16
    %v9331 = vshrl.u32 %v9326, 16
    %vm9332 = vc.u32 %v9324, %v9328
    %v9333 = vsel %vm9332, 1, 0
    %v9334 = vadd.s32 %v9324, %v9328
    %v9335 = vadd.s32 %v9327, %v9333
    %vm9336 = vc.u32 %v9334, %v9330
    %v9337 = vsel %vm9336, 1, 0
    %v9338 = vadd.s32 %v9334, %v9330
    %v9339 = vadd.s32 %v9335, %v9337
    %v9340 = vadd.s32 %v9339, %v9329
    %v9341 = vadd.s32 %v9340, %v9331
    %v9342 = vmul.u32 %v9297, %v9288
    %v9343 = vadd.s32 %v9319, %v9338
    %vm9344 = vc.u32 %v9319, %v9338
    %v9345 = vadd.s32 %v9341, 1
    %v9346 = vsel %vm9344, %v9345, %v9341
    %v9347 = vadd.s32 %v9342, %v9346
    %v9348 = vadd.s32 %v9347, 536870912
    %v9349 = vshrl.u32 %v9348, 30
    %v9350 = vshll.u32 %v9349, 30
    %v9351 = vsub.s32 %v9347, %v9350
    %vm9352 = vcmp.lt.s32.totalorder %v9351, 0
    %v9353 = vsub.s32 0, %v9351
    %v9354 = vsel %vm9352, %v9353, %v9351
    %v9355 = vclz %v9354
    %v9356 = vsub.s32 %v9355, 2
    %vm9357 = vcmp.gt.s32.totalorder 0, %v9356
    %v9358 = vsel %vm9357, 0, %v9356
    %v9359 = vsub.s32 32, %v9358
    %v9360 = vshll.u32 %v9351, %v9358
    %v9361 = vshrl.u32 %v9343, %v9359
    %v9362 = vor.u32 %v9360, %v9361
    %v9363 = vsub.s32 4294967266, %v9358
    %v9364 = vadd.s32 %v9363, 127
    %v9365 = vshll.u32 %v9364, 23
    %v9366 = vor.u32 4788187, %v9365
    %v9367 = vand.u32 2147483647, %v9366
    %v9369 = vcvt.s32.f32 %v9362
    %v9370 = vmul.f32 %v9369, %v9367
    %v9371 = vxor.u32 %v9370, 2147483648
    %v9372 = vsel %vm9251, %v9371, %v9370
    %v9373 = vsub.s32 4, %v9349
    %v9374 = vsel %vm9251, %v9373, %v9349
    %v9375 = vsel %vm9250, %v397, %v9372
    %v9376 = vsel %vm9250, 0, %v9374
    %v9377 = vmul.f32 %v9375, %v9375
    %v9378 = vmul.f32 %v9377, -0.001358992
    %v9379 = vadd.f32 %v9378, 0.041655596
    %v9380 = vmul.f32 %v9377, %v9379
    %v9381 = vadd.f32 %v9380, -0.4999988
    %v9382 = vmul.f32 %v9377, %v9381
    %v9383 = vadd.f32 1.0, %v9382
    %v9384 = vmul.f32 %v9375, %v9375
    %v9385 = vmul.f32 %v9384, -0.00019511016
    %v9386 = vadd.f32 %v9385, 0.008332121
    %v9387 = vmul.f32 %v9384, %v9386
    %v9388 = vadd.f32 %v9387, -0.16666654
    %v9389 = vmul.f32 %v9384, %v9388
    %v9390 = vadd.f32 %v9389, 1.0
    %v9391 = vmul.f32 %v9390, %v9375
    %vm9392 = vweird.f32 %v397
    %v9393 = vadd.s32 %v9376, 3
    %v9394 = vand.u32 %v9393, 3
    %vm9395 = vcmp.lt.s32.totalorder %v9394, 2
    %vm9396 = vcmp.eq.s32.totalorder %v9394, 0
    %v9397 = vxor.u32 %v9391, 2147483648
    %v9398 = vsel %vm9396, %v9383, %v9397
    %vm9399 = vcmp.eq.s32.totalorder %v9394, 2
    %v9400 = vxor.u32 %v9383, 2147483648
    %v9401 = vsel %vm9399, %v9400, %v9391
    %v9402 = vsel %vm9395, %v9398, %v9401
    %v9403 = vsel %vm9392, nan, %v9402
    %v9404 = vand.u32 2147483647, %v400
    %vm9405 = vcmp.le.f32.partialorder %v9404, 0.7853982
    %vm9406 = vcmp.lt.s32.totalorder %v400, 0
    %v9407 = vand.u32 %v400, 2139095040
    %v9408 = vshrl.u32 %v9407, 23
    %v9409 = vsub.s32 %v9408, 127
    %v9410 = vand.u32 2147483647, %v400
    %v9411 = vand.u32 %v9410, 8388607
    %v9412 = vor.u32 %v9411, 8388608
    %v9413 = vsub.s32 0, %v9412
    %v9414 = vadd.s32 %v9409, 1
    %vm9415 = vcmp.gt.s32.totalorder %v9414, 0
    %v9416 = vsel %vm9415, %v9414, 0
    %v9417 = vshrl.u32 %v9416, 5
    %v9418 = vand.u32 %v9416, 31
    %v9419 = vsub.s32 32, %v9418
    %v9420 = vshrl.u32 683565275, %v9419
    %v9421 = vshll.u32 683565275, %v9418
    %v9422 = vshrl.u32 2475754826, %v9419
    %v9423 = vor.u32 %v9421, %v9422
    %v9424 = vshll.u32 2475754826, %v9418
    %v9425 = vshrl.u32 2131351028, %v9419
    %v9426 = vor.u32 %v9424, %v9425
    %v9427 = vshll.u32 2131351028, %v9418
    %v9428 = vshrl.u32 2102212464, %v9419
    %v9429 = vor.u32 %v9427, %v9428
    %v9430 = vshll.u32 2102212464, %v9418
    %v9431 = vshrl.u32 920167782, %v9419
    %v9432 = vor.u32 %v9430, %v9431
    %v9433 = vshll.u32 920167782, %v9418
    %v9434 = vshrl.u32 1326507024, %v9419
    %v9435 = vor.u32 %v9433, %v9434
    %vm9436 = vcmp.lt.s32.totalorder %v9417, 1
    %vm9437 = vcmp.lt.s32.totalorder %v9417, 2
    %vm9438 = vcmp.lt.s32.totalorder %v9417, 3
    %vm9439 = vcmp.lt.s32.totalorder %v9417, 4
    %v9440 = vsel %vm9436, %v9420, %v9423
    %v9441 = vsel %vm9439, %v9429, 2102212464
    %v9442 = vsel %vm9438, %v9426, %v9441
    %v9443 = vsel %vm9437, %v9440, %v9442
    %v9444 = vsel %vm9436, %v9423, %v9426
    %v9445 = vsel %vm9439, %v9432, 920167782
    %v9446 = vsel %vm9438, %v9429, %v9445
    %v9447 = vsel %vm9437, %v9444, %v9446
    %v9448 = vsel %vm9436, %v9426, %v9429
    %v9449 = vsel %vm9439, %v9435, 1326507024
    %v9450 = vsel %vm9438, %v9432, %v9449
    %v9451 = vsel %vm9437, %v9448, %v9450
    %v9452 = vshll.u32 %v9412, 8
    %v9453 = vand.u32 %v9452, 65535
    %v9454 = vshrl.u32 %v9452, 16
    %v9455 = vand.u32 %v9451, 65535
    %v9456 = vshrl.u32 %v9451, 16
    %v9457 = vmul.u32 %v9453, %v9455
    %v9458 = vmul.u32 %v9453, %v9456
    %v9459 = vmul.u32 %v9454, %v9455
    %v9460 = vmul.u32 %v9454, %v9456
    %v9461 = vshll.u32 %v9458, 16
    %v9462 = vshrl.u32 %v9458, 16
    %v9463 = vshll.u32 %v9459, 16
    %v9464 = vshrl.u32 %v9459, 16
    %vm9465 = vc.u32 %v9457, %v9461
    %v9466 = vsel %vm9465, 1, 0
    %v9467 = vadd.s32 %v9457, %v9461
    %v9468 = vadd.s32 %v9460, %v9466
    %vm9469 = vc.u32 %v9467, %v9463
    %v9470 = vsel %vm9469, 1, 0
    %v9471 = vadd.s32 %v9467, %v9463
    %v9472 = vadd.s32 %v9468, %v9470
    %v9473 = vadd.s32 %v9472, %v9462
    %v9474 = vadd.s32 %v9473, %v9464
    %v9475 = vand.u32 %v9452, 65535
    %v9476 = vshrl.u32 %v9452, 16
    %v9477 = vand.u32 %v9447, 65535
    %v9478 = vshrl.u32 %v9447, 16
    %v9479 = vmul.u32 %v9475, %v9477
    %v9480 = vmul.u32 %v9475, %v9478
    %v9481 = vmul.u32 %v9476, %v9477
    %v9482 = vmul.u32 %v9476, %v9478
    %v9483 = vshll.u32 %v9480, 16
    %v9484 = vshrl.u32 %v9480, 16
    %v9485 = vshll.u32 %v9481, 16
    %v9486 = vshrl.u32 %v9481, 16
    %vm9487 = vc.u32 %v9479, %v9483
    %v9488 = vsel %vm9487, 1, 0
    %v9489 = vadd.s32 %v9479, %v9483
    %v9490 = vadd.s32 %v9482, %v9488
    %vm9491 = vc.u32 %v9489, %v9485
    %v9492 = vsel %vm9491, 1, 0
    %v9493 = vadd.s32 %v9489, %v9485
    %v9494 = vadd.s32 %v9490, %v9492
    %v9495 = vadd.s32 %v9494, %v9484
    %v9496 = vadd.s32 %v9495, %v9486
    %v9497 = vmul.u32 %v9452, %v9443
    %v9498 = vadd.s32 %v9474, %v9493
    %vm9499 = vc.u32 %v9474, %v9493
    %v9500 = vadd.s32 %v9496, 1
    %v9501 = vsel %vm9499, %v9500, %v9496
    %v9502 = vadd.s32 %v9497, %v9501
    %v9503 = vadd.s32 %v9502, 536870912
    %v9504 = vshrl.u32 %v9503, 30
    %v9505 = vshll.u32 %v9504, 30
    %v9506 = vsub.s32 %v9502, %v9505
    %vm9507 = vcmp.lt.s32.totalorder %v9506, 0
    %v9508 = vsub.s32 0, %v9506
    %v9509 = vsel %vm9507, %v9508, %v9506
    %v9510 = vclz %v9509
    %v9511 = vsub.s32 %v9510, 2
    %vm9512 = vcmp.gt.s32.totalorder 0, %v9511
    %v9513 = vsel %vm9512, 0, %v9511
    %v9514 = vsub.s32 32, %v9513
    %v9515 = vshll.u32 %v9506, %v9513
    %v9516 = vshrl.u32 %v9498, %v9514
    %v9517 = vor.u32 %v9515, %v9516
    %v9518 = vsub.s32 4294967266, %v9513
    %v9519 = vadd.s32 %v9518, 127
    %v9520 = vshll.u32 %v9519, 23
    %v9521 = vor.u32 4788187, %v9520
    %v9522 = vand.u32 2147483647, %v9521
    %v9524 = vcvt.s32.f32 %v9517
    %v9525 = vmul.f32 %v9524, %v9522
    %v9526 = vxor.u32 %v9525, 2147483648
    %v9527 = vsel %vm9406, %v9526, %v9525
    %v9528 = vsub.s32 4, %v9504
    %v9529 = vsel %vm9406, %v9528, %v9504
    %v9530 = vsel %vm9405, %v400, %v9527
    %v9531 = vsel %vm9405, 0, %v9529
    %v9532 = vmul.f32 %v9530, %v9530
    %v9533 = vmul.f32 %v9532, -0.001358992
    %v9534 = vadd.f32 %v9533, 0.041655596
    %v9535 = vmul.f32 %v9532, %v9534
    %v9536 = vadd.f32 %v9535, -0.4999988
    %v9537 = vmul.f32 %v9532, %v9536
    %v9538 = vadd.f32 1.0, %v9537
    %v9539 = vmul.f32 %v9530, %v9530
    %v9540 = vmul.f32 %v9539, -0.00019511016
    %v9541 = vadd.f32 %v9540, 0.008332121
    %v9542 = vmul.f32 %v9539, %v9541
    %v9543 = vadd.f32 %v9542, -0.16666654
    %v9544 = vmul.f32 %v9539, %v9543
    %v9545 = vadd.f32 %v9544, 1.0
    %v9546 = vmul.f32 %v9545, %v9530
    %vm9547 = vweird.f32 %v400
    %v9548 = vadd.s32 %v9531, 3
    %v9549 = vand.u32 %v9548, 3
    %vm9550 = vcmp.lt.s32.totalorder %v9549, 2
    %vm9551 = vcmp.eq.s32.totalorder %v9549, 0
    %v9552 = vxor.u32 %v9546, 2147483648
    %v9553 = vsel %vm9551, %v9538, %v9552
    %vm9554 = vcmp.eq.s32.totalorder %v9549, 2
    %v9555 = vxor.u32 %v9538, 2147483648
    %v9556 = vsel %vm9554, %v9555, %v9546
    %v9557 = vsel %vm9550, %v9553, %v9556
    %v9558 = vsel %vm9547, nan, %v9557
    %v9559 = vand.u32 2147483647, %v402
    %vm9560 = vcmp.le.f32.partialorder %v9559, 0.7853982
    %vm9561 = vcmp.lt.s32.totalorder %v402, 0
    %v9562 = vand.u32 %v402, 2139095040
    %v9563 = vshrl.u32 %v9562, 23
    %v9564 = vsub.s32 %v9563, 127
    %v9565 = vand.u32 2147483647, %v402
    %v9566 = vand.u32 %v9565, 8388607
    %v9567 = vor.u32 %v9566, 8388608
    %v9568 = vsub.s32 0, %v9567
    %v9569 = vadd.s32 %v9564, 1
    %vm9570 = vcmp.gt.s32.totalorder %v9569, 0
    %v9571 = vsel %vm9570, %v9569, 0
    %v9572 = vshrl.u32 %v9571, 5
    %v9573 = vand.u32 %v9571, 31
    %v9574 = vsub.s32 32, %v9573
    %v9575 = vshrl.u32 683565275, %v9574
    %v9576 = vshll.u32 683565275, %v9573
    %v9577 = vshrl.u32 2475754826, %v9574
    %v9578 = vor.u32 %v9576, %v9577
    %v9579 = vshll.u32 2475754826, %v9573
    %v9580 = vshrl.u32 2131351028, %v9574
    %v9581 = vor.u32 %v9579, %v9580
    %v9582 = vshll.u32 2131351028, %v9573
    %v9583 = vshrl.u32 2102212464, %v9574
    %v9584 = vor.u32 %v9582, %v9583
    %v9585 = vshll.u32 2102212464, %v9573
    %v9586 = vshrl.u32 920167782, %v9574
    %v9587 = vor.u32 %v9585, %v9586
    %v9588 = vshll.u32 920167782, %v9573
    %v9589 = vshrl.u32 1326507024, %v9574
    %v9590 = vor.u32 %v9588, %v9589
    %vm9591 = vcmp.lt.s32.totalorder %v9572, 1
    %vm9592 = vcmp.lt.s32.totalorder %v9572, 2
    %vm9593 = vcmp.lt.s32.totalorder %v9572, 3
    %vm9594 = vcmp.lt.s32.totalorder %v9572, 4
    %v9595 = vsel %vm9591, %v9575, %v9578
    %v9596 = vsel %vm9594, %v9584, 2102212464
    %v9597 = vsel %vm9593, %v9581, %v9596
    %v9598 = vsel %vm9592, %v9595, %v9597
    %v9599 = vsel %vm9591, %v9578, %v9581
    %v9600 = vsel %vm9594, %v9587, 920167782
    %v9601 = vsel %vm9593, %v9584, %v9600
    %v9602 = vsel %vm9592, %v9599, %v9601
    %v9603 = vsel %vm9591, %v9581, %v9584
    %v9604 = vsel %vm9594, %v9590, 1326507024
    %v9605 = vsel %vm9593, %v9587, %v9604
    %v9606 = vsel %vm9592, %v9603, %v9605
    %v9607 = vshll.u32 %v9567, 8
    %v9608 = vand.u32 %v9607, 65535
    %v9609 = vshrl.u32 %v9607, 16
    %v9610 = vand.u32 %v9606, 65535
    %v9611 = vshrl.u32 %v9606, 16
    %v9612 = vmul.u32 %v9608, %v9610
    %v9613 = vmul.u32 %v9608, %v9611
    %v9614 = vmul.u32 %v9609, %v9610
    %v9615 = vmul.u32 %v9609, %v9611
    %v9616 = vshll.u32 %v9613, 16
    %v9617 = vshrl.u32 %v9613, 16
    %v9618 = vshll.u32 %v9614, 16
    %v9619 = vshrl.u32 %v9614, 16
    %vm9620 = vc.u32 %v9612, %v9616
    %v9621 = vsel %vm9620, 1, 0
    %v9622 = vadd.s32 %v9612, %v9616
    %v9623 = vadd.s32 %v9615, %v9621
    %vm9624 = vc.u32 %v9622, %v9618
    %v9625 = vsel %vm9624, 1, 0
    %v9626 = vadd.s32 %v9622, %v9618
    %v9627 = vadd.s32 %v9623, %v9625
    %v9628 = vadd.s32 %v9627, %v9617
    %v9629 = vadd.s32 %v9628, %v9619
    %v9630 = vand.u32 %v9607, 65535
    %v9631 = vshrl.u32 %v9607, 16
    %v9632 = vand.u32 %v9602, 65535
    %v9633 = vshrl.u32 %v9602, 16
    %v9634 = vmul.u32 %v9630, %v9632
    %v9635 = vmul.u32 %v9630, %v9633
    %v9636 = vmul.u32 %v9631, %v9632
    %v9637 = vmul.u32 %v9631, %v9633
    %v9638 = vshll.u32 %v9635, 16
    %v9639 = vshrl.u32 %v9635, 16
    %v9640 = vshll.u32 %v9636, 16
    %v9641 = vshrl.u32 %v9636, 16
    %vm9642 = vc.u32 %v9634, %v9638
    %v9643 = vsel %vm9642, 1, 0
    %v9644 = vadd.s32 %v9634, %v9638
    %v9645 = vadd.s32 %v9637, %v9643
    %vm9646 = vc.u32 %v9644, %v9640
    %v9647 = vsel %vm9646, 1, 0
    %v9648 = vadd.s32 %v9644, %v9640
    %v9649 = vadd.s32 %v9645, %v9647
    %v9650 = vadd.s32 %v9649, %v9639
    %v9651 = vadd.s32 %v9650, %v9641
    %v9652 = vmul.u32 %v9607, %v9598
    %v9653 = vadd.s32 %v9629, %v9648
    %vm9654 = vc.u32 %v9629, %v9648
    %v9655 = vadd.s32 %v9651, 1
    %v9656 = vsel %vm9654, %v9655, %v9651
    %v9657 = vadd.s32 %v9652, %v9656
    %v9658 = vadd.s32 %v9657, 536870912
    %v9659 = vshrl.u32 %v9658, 30
    %v9660 = vshll.u32 %v9659, 30
    %v9661 = vsub.s32 %v9657, %v9660
    %vm9662 = vcmp.lt.s32.totalorder %v9661, 0
    %v9663 = vsub.s32 0, %v9661
    %v9664 = vsel %vm9662, %v9663, %v9661
    %v9665 = vclz %v9664
    %v9666 = vsub.s32 %v9665, 2
    %vm9667 = vcmp.gt.s32.totalorder 0, %v9666
    %v9668 = vsel %vm9667, 0, %v9666
    %v9669 = vsub.s32 32, %v9668
    %v9670 = vshll.u32 %v9661, %v9668
    %v9671 = vshrl.u32 %v9653, %v9669
    %v9672 = vor.u32 %v9670, %v9671
    %v9673 = vsub.s32 4294967266, %v9668
    %v9674 = vadd.s32 %v9673, 127
    %v9675 = vshll.u32 %v9674, 23
    %v9676 = vor.u32 4788187, %v9675
    %v9677 = vand.u32 2147483647, %v9676
    %v9679 = vcvt.s32.f32 %v9672
    %v9680 = vmul.f32 %v9679, %v9677
    %v9681 = vxor.u32 %v9680, 2147483648
    %v9682 = vsel %vm9561, %v9681, %v9680
    %v9683 = vsub.s32 4, %v9659
    %v9684 = vsel %vm9561, %v9683, %v9659
    %v9685 = vsel %vm9560, %v402, %v9682
    %v9686 = vsel %vm9560, 0, %v9684
    %v9687 = vmul.f32 %v9685, %v9685
    %v9688 = vmul.f32 %v9687, -0.001358992
    %v9689 = vadd.f32 %v9688, 0.041655596
    %v9690 = vmul.f32 %v9687, %v9689
    %v9691 = vadd.f32 %v9690, -0.4999988
    %v9692 = vmul.f32 %v9687, %v9691
    %v9693 = vadd.f32 1.0, %v9692
    %v9694 = vmul.f32 %v9685, %v9685
    %v9695 = vmul.f32 %v9694, -0.00019511016
    %v9696 = vadd.f32 %v9695, 0.008332121
    %v9697 = vmul.f32 %v9694, %v9696
    %v9698 = vadd.f32 %v9697, -0.16666654
    %v9699 = vmul.f32 %v9694, %v9698
    %v9700 = vadd.f32 %v9699, 1.0
    %v9701 = vmul.f32 %v9700, %v9685
    %vm9702 = vweird.f32 %v402
    %v9703 = vadd.s32 %v9686, 3
    %v9704 = vand.u32 %v9703, 3
    %vm9705 = vcmp.lt.s32.totalorder %v9704, 2
    %vm9706 = vcmp.eq.s32.totalorder %v9704, 0
    %v9707 = vxor.u32 %v9701, 2147483648
    %v9708 = vsel %vm9706, %v9693, %v9707
    %vm9709 = vcmp.eq.s32.totalorder %v9704, 2
    %v9710 = vxor.u32 %v9693, 2147483648
    %v9711 = vsel %vm9709, %v9710, %v9701
    %v9712 = vsel %vm9705, %v9708, %v9711
    %v9713 = vsel %vm9702, nan, %v9712
    %v9714 = vand.u32 2147483647, %v405
    %vm9715 = vcmp.le.f32.partialorder %v9714, 0.7853982
    %vm9716 = vcmp.lt.s32.totalorder %v405, 0
    %v9717 = vand.u32 %v405, 2139095040
    %v9718 = vshrl.u32 %v9717, 23
    %v9719 = vsub.s32 %v9718, 127
    %v9720 = vand.u32 2147483647, %v405
    %v9721 = vand.u32 %v9720, 8388607
    %v9722 = vor.u32 %v9721, 8388608
    %v9723 = vsub.s32 0, %v9722
    %v9724 = vadd.s32 %v9719, 1
    %vm9725 = vcmp.gt.s32.totalorder %v9724, 0
    %v9726 = vsel %vm9725, %v9724, 0
    %v9727 = vshrl.u32 %v9726, 5
    %v9728 = vand.u32 %v9726, 31
    %v9729 = vsub.s32 32, %v9728
    %v9730 = vshrl.u32 683565275, %v9729
    %v9731 = vshll.u32 683565275, %v9728
    %v9732 = vshrl.u32 2475754826, %v9729
    %v9733 = vor.u32 %v9731, %v9732
    %v9734 = vshll.u32 2475754826, %v9728
    %v9735 = vshrl.u32 2131351028, %v9729
    %v9736 = vor.u32 %v9734, %v9735
    %v9737 = vshll.u32 2131351028, %v9728
    %v9738 = vshrl.u32 2102212464, %v9729
    %v9739 = vor.u32 %v9737, %v9738
    %v9740 = vshll.u32 2102212464, %v9728
    %v9741 = vshrl.u32 920167782, %v9729
    %v9742 = vor.u32 %v9740, %v9741
    %v9743 = vshll.u32 920167782, %v9728
    %v9744 = vshrl.u32 1326507024, %v9729
    %v9745 = vor.u32 %v9743, %v9744
    %vm9746 = vcmp.lt.s32.totalorder %v9727, 1
    %vm9747 = vcmp.lt.s32.totalorder %v9727, 2
    %vm9748 = vcmp.lt.s32.totalorder %v9727, 3
    %vm9749 = vcmp.lt.s32.totalorder %v9727, 4
    %v9750 = vsel %vm9746, %v9730, %v9733
    %v9751 = vsel %vm9749, %v9739, 2102212464
    %v9752 = vsel %vm9748, %v9736, %v9751
    %v9753 = vsel %vm9747, %v9750, %v9752
    %v9754 = vsel %vm9746, %v9733, %v9736
    %v9755 = vsel %vm9749, %v9742, 920167782
    %v9756 = vsel %vm9748, %v9739, %v9755
    %v9757 = vsel %vm9747, %v9754, %v9756
    %v9758 = vsel %vm9746, %v9736, %v9739
    %v9759 = vsel %vm9749, %v9745, 1326507024
    %v9760 = vsel %vm9748, %v9742, %v9759
    %v9761 = vsel %vm9747, %v9758, %v9760
    %v9762 = vshll.u32 %v9722, 8
    %v9763 = vand.u32 %v9762, 65535
    %v9764 = vshrl.u32 %v9762, 16
    %v9765 = vand.u32 %v9761, 65535
    %v9766 = vshrl.u32 %v9761, 16
    %v9767 = vmul.u32 %v9763, %v9765
    %v9768 = vmul.u32 %v9763, %v9766
    %v9769 = vmul.u32 %v9764, %v9765
    %v9770 = vmul.u32 %v9764, %v9766
    %v9771 = vshll.u32 %v9768, 16
    %v9772 = vshrl.u32 %v9768, 16
    %v9773 = vshll.u32 %v9769, 16
    %v9774 = vshrl.u32 %v9769, 16
    %vm9775 = vc.u32 %v9767, %v9771
    %v9776 = vsel %vm9775, 1, 0
    %v9777 = vadd.s32 %v9767, %v9771
    %v9778 = vadd.s32 %v9770, %v9776
    %vm9779 = vc.u32 %v9777, %v9773
    %v9780 = vsel %vm9779, 1, 0
    %v9781 = vadd.s32 %v9777, %v9773
    %v9782 = vadd.s32 %v9778, %v9780
    %v9783 = vadd.s32 %v9782, %v9772
    %v9784 = vadd.s32 %v9783, %v9774
    %v9785 = vand.u32 %v9762, 65535
    %v9786 = vshrl.u32 %v9762, 16
    %v9787 = vand.u32 %v9757, 65535
    %v9788 = vshrl.u32 %v9757, 16
    %v9789 = vmul.u32 %v9785, %v9787
    %v9790 = vmul.u32 %v9785, %v9788
    %v9791 = vmul.u32 %v9786, %v9787
    %v9792 = vmul.u32 %v9786, %v9788
    %v9793 = vshll.u32 %v9790, 16
    %v9794 = vshrl.u32 %v9790, 16
    %v9795 = vshll.u32 %v9791, 16
    %v9796 = vshrl.u32 %v9791, 16
    %vm9797 = vc.u32 %v9789, %v9793
    %v9798 = vsel %vm9797, 1, 0
    %v9799 = vadd.s32 %v9789, %v9793
    %v9800 = vadd.s32 %v9792, %v9798
    %vm9801 = vc.u32 %v9799, %v9795
    %v9802 = vsel %vm9801, 1, 0
    %v9803 = vadd.s32 %v9799, %v9795
    %v9804 = vadd.s32 %v9800, %v9802
    %v9805 = vadd.s32 %v9804, %v9794
    %v9806 = vadd.s32 %v9805, %v9796
    %v9807 = vmul.u32 %v9762, %v9753
    %v9808 = vadd.s32 %v9784, %v9803
    %vm9809 = vc.u32 %v9784, %v9803
    %v9810 = vadd.s32 %v9806, 1
    %v9811 = vsel %vm9809, %v9810, %v9806
    %v9812 = vadd.s32 %v9807, %v9811
    %v9813 = vadd.s32 %v9812, 536870912
    %v9814 = vshrl.u32 %v9813, 30
    %v9815 = vshll.u32 %v9814, 30
    %v9816 = vsub.s32 %v9812, %v9815
    %vm9817 = vcmp.lt.s32.totalorder %v9816, 0
    %v9818 = vsub.s32 0, %v9816
    %v9819 = vsel %vm9817, %v9818, %v9816
    %v9820 = vclz %v9819
    %v9821 = vsub.s32 %v9820, 2
    %vm9822 = vcmp.gt.s32.totalorder 0, %v9821
    %v9823 = vsel %vm9822, 0, %v9821
    %v9824 = vsub.s32 32, %v9823
    %v9825 = vshll.u32 %v9816, %v9823
    %v9826 = vshrl.u32 %v9808, %v9824
    %v9827 = vor.u32 %v9825, %v9826
    %v9828 = vsub.s32 4294967266, %v9823
    %v9829 = vadd.s32 %v9828, 127
    %v9830 = vshll.u32 %v9829, 23
    %v9831 = vor.u32 4788187, %v9830
    %v9832 = vand.u32 2147483647, %v9831
    %v9834 = vcvt.s32.f32 %v9827
    %v9835 = vmul.f32 %v9834, %v9832
    %v9836 = vxor.u32 %v9835, 2147483648
    %v9837 = vsel %vm9716, %v9836, %v9835
    %v9838 = vsub.s32 4, %v9814
    %v9839 = vsel %vm9716, %v9838, %v9814
    %v9840 = vsel %vm9715, %v405, %v9837
    %v9841 = vsel %vm9715, 0, %v9839
    %v9842 = vmul.f32 %v9840, %v9840
    %v9843 = vmul.f32 %v9842, -0.001358992
    %v9844 = vadd.f32 %v9843, 0.041655596
    %v9845 = vmul.f32 %v9842, %v9844
    %v9846 = vadd.f32 %v9845, -0.4999988
    %v9847 = vmul.f32 %v9842, %v9846
    %v9848 = vadd.f32 1.0, %v9847
    %v9849 = vmul.f32 %v9840, %v9840
    %v9850 = vmul.f32 %v9849, -0.00019511016
    %v9851 = vadd.f32 %v9850, 0.008332121
    %v9852 = vmul.f32 %v9849, %v9851
    %v9853 = vadd.f32 %v9852, -0.16666654
    %v9854 = vmul.f32 %v9849, %v9853
    %v9855 = vadd.f32 %v9854, 1.0
    %v9856 = vmul.f32 %v9855, %v9840
    %vm9857 = vweird.f32 %v405
    %v9858 = vadd.s32 %v9841, 3
    %v9859 = vand.u32 %v9858, 3
    %vm9860 = vcmp.lt.s32.totalorder %v9859, 2
    %vm9861 = vcmp.eq.s32.totalorder %v9859, 0
    %v9862 = vxor.u32 %v9856, 2147483648
    %v9863 = vsel %vm9861, %v9848, %v9862
    %vm9864 = vcmp.eq.s32.totalorder %v9859, 2
    %v9865 = vxor.u32 %v9848, 2147483648
    %v9866 = vsel %vm9864, %v9865, %v9856
    %v9867 = vsel %vm9860, %v9863, %v9866
    %v9868 = vsel %vm9857, nan, %v9867
    %v9869 = vand.u32 2147483647, %v407
    %vm9870 = vcmp.le.f32.partialorder %v9869, 0.7853982
    %vm9871 = vcmp.lt.s32.totalorder %v407, 0
    %v9872 = vand.u32 %v407, 2139095040
    %v9873 = vshrl.u32 %v9872, 23
    %v9874 = vsub.s32 %v9873, 127
    %v9875 = vand.u32 2147483647, %v407
    %v9876 = vand.u32 %v9875, 8388607
    %v9877 = vor.u32 %v9876, 8388608
    %v9878 = vsub.s32 0, %v9877
    %v9879 = vadd.s32 %v9874, 1
    %vm9880 = vcmp.gt.s32.totalorder %v9879, 0
    %v9881 = vsel %vm9880, %v9879, 0
    %v9882 = vshrl.u32 %v9881, 5
    %v9883 = vand.u32 %v9881, 31
    %v9884 = vsub.s32 32, %v9883
    %v9885 = vshrl.u32 683565275, %v9884
    %v9886 = vshll.u32 683565275, %v9883
    %v9887 = vshrl.u32 2475754826, %v9884
    %v9888 = vor.u32 %v9886, %v9887
    %v9889 = vshll.u32 2475754826, %v9883
    %v9890 = vshrl.u32 2131351028, %v9884
    %v9891 = vor.u32 %v9889, %v9890
    %v9892 = vshll.u32 2131351028, %v9883
    %v9893 = vshrl.u32 2102212464, %v9884
    %v9894 = vor.u32 %v9892, %v9893
    %v9895 = vshll.u32 2102212464, %v9883
    %v9896 = vshrl.u32 920167782, %v9884
    %v9897 = vor.u32 %v9895, %v9896
    %v9898 = vshll.u32 920167782, %v9883
    %v9899 = vshrl.u32 1326507024, %v9884
    %v9900 = vor.u32 %v9898, %v9899
    %vm9901 = vcmp.lt.s32.totalorder %v9882, 1
    %vm9902 = vcmp.lt.s32.totalorder %v9882, 2
    %vm9903 = vcmp.lt.s32.totalorder %v9882, 3
    %vm9904 = vcmp.lt.s32.totalorder %v9882, 4
    %v9905 = vsel %vm9901, %v9885, %v9888
    %v9906 = vsel %vm9904, %v9894, 2102212464
    %v9907 = vsel %vm9903, %v9891, %v9906
    %v9908 = vsel %vm9902, %v9905, %v9907
    %v9909 = vsel %vm9901, %v9888, %v9891
    %v9910 = vsel %vm9904, %v9897, 920167782
    %v9911 = vsel %vm9903, %v9894, %v9910
    %v9912 = vsel %vm9902, %v9909, %v9911
    %v9913 = vsel %vm9901, %v9891, %v9894
    %v9914 = vsel %vm9904, %v9900, 1326507024
    %v9915 = vsel %vm9903, %v9897, %v9914
    %v9916 = vsel %vm9902, %v9913, %v9915
    %v9917 = vshll.u32 %v9877, 8
    %v9918 = vand.u32 %v9917, 65535
    %v9919 = vshrl.u32 %v9917, 16
    %v9920 = vand.u32 %v9916, 65535
    %v9921 = vshrl.u32 %v9916, 16
    %v9922 = vmul.u32 %v9918, %v9920
    %v9923 = vmul.u32 %v9918, %v9921
    %v9924 = vmul.u32 %v9919, %v9920
    %v9925 = vmul.u32 %v9919, %v9921
    %v9926 = vshll.u32 %v9923, 16
    %v9927 = vshrl.u32 %v9923, 16
    %v9928 = vshll.u32 %v9924, 16
    %v9929 = vshrl.u32 %v9924, 16
    %vm9930 = vc.u32 %v9922, %v9926
    %v9931 = vsel %vm9930, 1, 0
    %v9932 = vadd.s32 %v9922, %v9926
    %v9933 = vadd.s32 %v9925, %v9931
    %vm9934 = vc.u32 %v9932, %v9928
    %v9935 = vsel %vm9934, 1, 0
    %v9936 = vadd.s32 %v9932, %v9928
    %v9937 = vadd.s32 %v9933, %v9935
    %v9938 = vadd.s32 %v9937, %v9927
    %v9939 = vadd.s32 %v9938, %v9929
    %v9940 = vand.u32 %v9917, 65535
    %v9941 = vshrl.u32 %v9917, 16
    %v9942 = vand.u32 %v9912, 65535
    %v9943 = vshrl.u32 %v9912, 16
    %v9944 = vmul.u32 %v9940, %v9942
    %v9945 = vmul.u32 %v9940, %v9943
    %v9946 = vmul.u32 %v9941, %v9942
    %v9947 = vmul.u32 %v9941, %v9943
    %v9948 = vshll.u32 %v9945, 16
    %v9949 = vshrl.u32 %v9945, 16
    %v9950 = vshll.u32 %v9946, 16
    %v9951 = vshrl.u32 %v9946, 16
    %vm9952 = vc.u32 %v9944, %v9948
    %v9953 = vsel %vm9952, 1, 0
    %v9954 = vadd.s32 %v9944, %v9948
    %v9955 = vadd.s32 %v9947, %v9953
    %vm9956 = vc.u32 %v9954, %v9950
    %v9957 = vsel %vm9956, 1, 0
    %v9958 = vadd.s32 %v9954, %v9950
    %v9959 = vadd.s32 %v9955, %v9957
    %v9960 = vadd.s32 %v9959, %v9949
    %v9961 = vadd.s32 %v9960, %v9951
    %v9962 = vmul.u32 %v9917, %v9908
    %v9963 = vadd.s32 %v9939, %v9958
    %vm9964 = vc.u32 %v9939, %v9958
    %v9965 = vadd.s32 %v9961, 1
    %v9966 = vsel %vm9964, %v9965, %v9961
    %v9967 = vadd.s32 %v9962, %v9966
    %v9968 = vadd.s32 %v9967, 536870912
    %v9969 = vshrl.u32 %v9968, 30
    %v9970 = vshll.u32 %v9969, 30
    %v9971 = vsub.s32 %v9967, %v9970
    %vm9972 = vcmp.lt.s32.totalorder %v9971, 0
    %v9973 = vsub.s32 0, %v9971
    %v9974 = vsel %vm9972, %v9973, %v9971
    %v9975 = vclz %v9974
    %v9976 = vsub.s32 %v9975, 2
    %vm9977 = vcmp.gt.s32.totalorder 0, %v9976
    %v9978 = vsel %vm9977, 0, %v9976
    %v9979 = vsub.s32 32, %v9978
    %v9980 = vshll.u32 %v9971, %v9978
    %v9981 = vshrl.u32 %v9963, %v9979
    %v9982 = vor.u32 %v9980, %v9981
    %v9983 = vsub.s32 4294967266, %v9978
    %v9984 = vadd.s32 %v9983, 127
    %v9985 = vshll.u32 %v9984, 23
    %v9986 = vor.u32 4788187, %v9985
    %v9987 = vand.u32 2147483647, %v9986
    %v9989 = vcvt.s32.f32 %v9982
    %v9990 = vmul.f32 %v9989, %v9987
    %v9991 = vxor.u32 %v9990, 2147483648
    %v9992 = vsel %vm9871, %v9991, %v9990
    %v9993 = vsub.s32 4, %v9969
    %v9994 = vsel %vm9871, %v9993, %v9969
    %v9995 = vsel %vm9870, %v407, %v9992
    %v9996 = vsel %vm9870, 0, %v9994
    %v9997 = vmul.f32 %v9995, %v9995
    %v9998 = vmul.f32 %v9997, -0.001358992
    %v9999 = vadd.f32 %v9998, 0.041655596
    %v10000 = vmul.f32 %v9997, %v9999
    %v10001 = vadd.f32 %v10000, -0.4999988
    %v10002 = vmul.f32 %v9997, %v10001
    %v10003 = vadd.f32 1.0, %v10002
    %v10004 = vmul.f32 %v9995, %v9995
    %v10005 = vmul.f32 %v10004, -0.00019511016
    %v10006 = vadd.f32 %v10005, 0.008332121
    %v10007 = vmul.f32 %v10004, %v10006
    %v10008 = vadd.f32 %v10007, -0.16666654
    %v10009 = vmul.f32 %v10004, %v10008
    %v10010 = vadd.f32 %v10009, 1.0
    %v10011 = vmul.f32 %v10010, %v9995
    %vm10012 = vweird.f32 %v407
    %v10013 = vadd.s32 %v9996, 3
    %v10014 = vand.u32 %v10013, 3
    %vm10015 = vcmp.lt.s32.totalorder %v10014, 2
    %vm10016 = vcmp.eq.s32.totalorder %v10014, 0
    %v10017 = vxor.u32 %v10011, 2147483648
    %v10018 = vsel %vm10016, %v10003, %v10017
    %vm10019 = vcmp.eq.s32.totalorder %v10014, 2
    %v10020 = vxor.u32 %v10003, 2147483648
    %v10021 = vsel %vm10019, %v10020, %v10011
    %v10022 = vsel %vm10015, %v10018, %v10021
    %v10023 = vsel %vm10012, nan, %v10022
    %v10024 = vand.u32 2147483647, %v410
    %vm10025 = vcmp.le.f32.partialorder %v10024, 0.7853982
    %vm10026 = vcmp.lt.s32.totalorder %v410, 0
    %v10027 = vand.u32 %v410, 2139095040
    %v10028 = vshrl.u32 %v10027, 23
    %v10029 = vsub.s32 %v10028, 127
    %v10030 = vand.u32 2147483647, %v410
    %v10031 = vand.u32 %v10030, 8388607
    %v10032 = vor.u32 %v10031, 8388608
    %v10033 = vsub.s32 0, %v10032
    %v10034 = vadd.s32 %v10029, 1
    %vm10035 = vcmp.gt.s32.totalorder %v10034, 0
    %v10036 = vsel %vm10035, %v10034, 0
    %v10037 = vshrl.u32 %v10036, 5
    %v10038 = vand.u32 %v10036, 31
    %v10039 = vsub.s32 32, %v10038
    %v10040 = vshrl.u32 683565275, %v10039
    %v10041 = vshll.u32 683565275, %v10038
    %v10042 = vshrl.u32 2475754826, %v10039
    %v10043 = vor.u32 %v10041, %v10042
    %v10044 = vshll.u32 2475754826, %v10038
    %v10045 = vshrl.u32 2131351028, %v10039
    %v10046 = vor.u32 %v10044, %v10045
    %v10047 = vshll.u32 2131351028, %v10038
    %v10048 = vshrl.u32 2102212464, %v10039
    %v10049 = vor.u32 %v10047, %v10048
    %v10050 = vshll.u32 2102212464, %v10038
    %v10051 = vshrl.u32 920167782, %v10039
    %v10052 = vor.u32 %v10050, %v10051
    %v10053 = vshll.u32 920167782, %v10038
    %v10054 = vshrl.u32 1326507024, %v10039
    %v10055 = vor.u32 %v10053, %v10054
    %vm10056 = vcmp.lt.s32.totalorder %v10037, 1
    %vm10057 = vcmp.lt.s32.totalorder %v10037, 2
    %vm10058 = vcmp.lt.s32.totalorder %v10037, 3
    %vm10059 = vcmp.lt.s32.totalorder %v10037, 4
    %v10060 = vsel %vm10056, %v10040, %v10043
    %v10061 = vsel %vm10059, %v10049, 2102212464
    %v10062 = vsel %vm10058, %v10046, %v10061
    %v10063 = vsel %vm10057, %v10060, %v10062
    %v10064 = vsel %vm10056, %v10043, %v10046
    %v10065 = vsel %vm10059, %v10052, 920167782
    %v10066 = vsel %vm10058, %v10049, %v10065
    %v10067 = vsel %vm10057, %v10064, %v10066
    %v10068 = vsel %vm10056, %v10046, %v10049
    %v10069 = vsel %vm10059, %v10055, 1326507024
    %v10070 = vsel %vm10058, %v10052, %v10069
    %v10071 = vsel %vm10057, %v10068, %v10070
    %v10072 = vshll.u32 %v10032, 8
    %v10073 = vand.u32 %v10072, 65535
    %v10074 = vshrl.u32 %v10072, 16
    %v10075 = vand.u32 %v10071, 65535
    %v10076 = vshrl.u32 %v10071, 16
    %v10077 = vmul.u32 %v10073, %v10075
    %v10078 = vmul.u32 %v10073, %v10076
    %v10079 = vmul.u32 %v10074, %v10075
    %v10080 = vmul.u32 %v10074, %v10076
    %v10081 = vshll.u32 %v10078, 16
    %v10082 = vshrl.u32 %v10078, 16
    %v10083 = vshll.u32 %v10079, 16
    %v10084 = vshrl.u32 %v10079, 16
    %vm10085 = vc.u32 %v10077, %v10081
    %v10086 = vsel %vm10085, 1, 0
    %v10087 = vadd.s32 %v10077, %v10081
    %v10088 = vadd.s32 %v10080, %v10086
    %vm10089 = vc.u32 %v10087, %v10083
    %v10090 = vsel %vm10089, 1, 0
    %v10091 = vadd.s32 %v10087, %v10083
    %v10092 = vadd.s32 %v10088, %v10090
    %v10093 = vadd.s32 %v10092, %v10082
    %v10094 = vadd.s32 %v10093, %v10084
    %v10095 = vand.u32 %v10072, 65535
    %v10096 = vshrl.u32 %v10072, 16
    %v10097 = vand.u32 %v10067, 65535
    %v10098 = vshrl.u32 %v10067, 16
    %v10099 = vmul.u32 %v10095, %v10097
    %v10100 = vmul.u32 %v10095, %v10098
    %v10101 = vmul.u32 %v10096, %v10097
    %v10102 = vmul.u32 %v10096, %v10098
    %v10103 = vshll.u32 %v10100, 16
    %v10104 = vshrl.u32 %v10100, 16
    %v10105 = vshll.u32 %v10101, 16
    %v10106 = vshrl.u32 %v10101, 16
    %vm10107 = vc.u32 %v10099, %v10103
    %v10108 = vsel %vm10107, 1, 0
    %v10109 = vadd.s32 %v10099, %v10103
    %v10110 = vadd.s32 %v10102, %v10108
    %vm10111 = vc.u32 %v10109, %v10105
    %v10112 = vsel %vm10111, 1, 0
    %v10113 = vadd.s32 %v10109, %v10105
    %v10114 = vadd.s32 %v10110, %v10112
    %v10115 = vadd.s32 %v10114, %v10104
    %v10116 = vadd.s32 %v10115, %v10106
    %v10117 = vmul.u32 %v10072, %v10063
    %v10118 = vadd.s32 %v10094, %v10113
    %vm10119 = vc.u32 %v10094, %v10113
    %v10120 = vadd.s32 %v10116, 1
    %v10121 = vsel %vm10119, %v10120, %v10116
    %v10122 = vadd.s32 %v10117, %v10121
    %v10123 = vadd.s32 %v10122, 536870912
    %v10124 = vshrl.u32 %v10123, 30
    %v10125 = vshll.u32 %v10124, 30
    %v10126 = vsub.s32 %v10122, %v10125
    %vm10127 = vcmp.lt.s32.totalorder %v10126, 0
    %v10128 = vsub.s32 0, %v10126
    %v10129 = vsel %vm10127, %v10128, %v10126
    %v10130 = vclz %v10129
    %v10131 = vsub.s32 %v10130, 2
    %vm10132 = vcmp.gt.s32.totalorder 0, %v10131
    %v10133 = vsel %vm10132, 0, %v10131
    %v10134 = vsub.s32 32, %v10133
    %v10135 = vshll.u32 %v10126, %v10133
    %v10136 = vshrl.u32 %v10118, %v10134
    %v10137 = vor.u32 %v10135, %v10136
    %v10138 = vsub.s32 4294967266, %v10133
    %v10139 = vadd.s32 %v10138, 127
    %v10140 = vshll.u32 %v10139, 23
    %v10141 = vor.u32 4788187, %v10140
    %v10142 = vand.u32 2147483647, %v10141
    %v10144 = vcvt.s32.f32 %v10137
    %v10145 = vmul.f32 %v10144, %v10142
    %v10146 = vxor.u32 %v10145, 2147483648
    %v10147 = vsel %vm10026, %v10146, %v10145
    %v10148 = vsub.s32 4, %v10124
    %v10149 = vsel %vm10026, %v10148, %v10124
    %v10150 = vsel %vm10025, %v410, %v10147
    %v10151 = vsel %vm10025, 0, %v10149
    %v10152 = vmul.f32 %v10150, %v10150
    %v10153 = vmul.f32 %v10152, -0.001358992
    %v10154 = vadd.f32 %v10153, 0.041655596
    %v10155 = vmul.f32 %v10152, %v10154
    %v10156 = vadd.f32 %v10155, -0.4999988
    %v10157 = vmul.f32 %v10152, %v10156
    %v10158 = vadd.f32 1.0, %v10157
    %v10159 = vmul.f32 %v10150, %v10150
    %v10160 = vmul.f32 %v10159, -0.00019511016
    %v10161 = vadd.f32 %v10160, 0.008332121
    %v10162 = vmul.f32 %v10159, %v10161
    %v10163 = vadd.f32 %v10162, -0.16666654
    %v10164 = vmul.f32 %v10159, %v10163
    %v10165 = vadd.f32 %v10164, 1.0
    %v10166 = vmul.f32 %v10165, %v10150
    %vm10167 = vweird.f32 %v410
    %v10168 = vadd.s32 %v10151, 3
    %v10169 = vand.u32 %v10168, 3
    %vm10170 = vcmp.lt.s32.totalorder %v10169, 2
    %vm10171 = vcmp.eq.s32.totalorder %v10169, 0
    %v10172 = vxor.u32 %v10166, 2147483648
    %v10173 = vsel %vm10171, %v10158, %v10172
    %vm10174 = vcmp.eq.s32.totalorder %v10169, 2
    %v10175 = vxor.u32 %v10158, 2147483648
    %v10176 = vsel %vm10174, %v10175, %v10166
    %v10177 = vsel %vm10170, %v10173, %v10176
    %v10178 = vsel %vm10167, nan, %v10177
    %v10179 = vand.u32 2147483647, %v412
    %vm10180 = vcmp.le.f32.partialorder %v10179, 0.7853982
    %vm10181 = vcmp.lt.s32.totalorder %v412, 0
    %v10182 = vand.u32 %v412, 2139095040
    %v10183 = vshrl.u32 %v10182, 23
    %v10184 = vsub.s32 %v10183, 127
    %v10185 = vand.u32 2147483647, %v412
    %v10186 = vand.u32 %v10185, 8388607
    %v10187 = vor.u32 %v10186, 8388608
    %v10188 = vsub.s32 0, %v10187
    %v10189 = vadd.s32 %v10184, 1
    %vm10190 = vcmp.gt.s32.totalorder %v10189, 0
    %v10191 = vsel %vm10190, %v10189, 0
    %v10192 = vshrl.u32 %v10191, 5
    %v10193 = vand.u32 %v10191, 31
    %v10194 = vsub.s32 32, %v10193
    %v10195 = vshrl.u32 683565275, %v10194
    %v10196 = vshll.u32 683565275, %v10193
    %v10197 = vshrl.u32 2475754826, %v10194
    %v10198 = vor.u32 %v10196, %v10197
    %v10199 = vshll.u32 2475754826, %v10193
    %v10200 = vshrl.u32 2131351028, %v10194
    %v10201 = vor.u32 %v10199, %v10200
    %v10202 = vshll.u32 2131351028, %v10193
    %v10203 = vshrl.u32 2102212464, %v10194
    %v10204 = vor.u32 %v10202, %v10203
    %v10205 = vshll.u32 2102212464, %v10193
    %v10206 = vshrl.u32 920167782, %v10194
    %v10207 = vor.u32 %v10205, %v10206
    %v10208 = vshll.u32 920167782, %v10193
    %v10209 = vshrl.u32 1326507024, %v10194
    %v10210 = vor.u32 %v10208, %v10209
    %vm10211 = vcmp.lt.s32.totalorder %v10192, 1
    %vm10212 = vcmp.lt.s32.totalorder %v10192, 2
    %vm10213 = vcmp.lt.s32.totalorder %v10192, 3
    %vm10214 = vcmp.lt.s32.totalorder %v10192, 4
    %v10215 = vsel %vm10211, %v10195, %v10198
    %v10216 = vsel %vm10214, %v10204, 2102212464
    %v10217 = vsel %vm10213, %v10201, %v10216
    %v10218 = vsel %vm10212, %v10215, %v10217
    %v10219 = vsel %vm10211, %v10198, %v10201
    %v10220 = vsel %vm10214, %v10207, 920167782
    %v10221 = vsel %vm10213, %v10204, %v10220
    %v10222 = vsel %vm10212, %v10219, %v10221
    %v10223 = vsel %vm10211, %v10201, %v10204
    %v10224 = vsel %vm10214, %v10210, 1326507024
    %v10225 = vsel %vm10213, %v10207, %v10224
    %v10226 = vsel %vm10212, %v10223, %v10225
    %v10227 = vshll.u32 %v10187, 8
    %v10228 = vand.u32 %v10227, 65535
    %v10229 = vshrl.u32 %v10227, 16
    %v10230 = vand.u32 %v10226, 65535
    %v10231 = vshrl.u32 %v10226, 16
    %v10232 = vmul.u32 %v10228, %v10230
    %v10233 = vmul.u32 %v10228, %v10231
    %v10234 = vmul.u32 %v10229, %v10230
    %v10235 = vmul.u32 %v10229, %v10231
    %v10236 = vshll.u32 %v10233, 16
    %v10237 = vshrl.u32 %v10233, 16
    %v10238 = vshll.u32 %v10234, 16
    %v10239 = vshrl.u32 %v10234, 16
    %vm10240 = vc.u32 %v10232, %v10236
    %v10241 = vsel %vm10240, 1, 0
    %v10242 = vadd.s32 %v10232, %v10236
    %v10243 = vadd.s32 %v10235, %v10241
    %vm10244 = vc.u32 %v10242, %v10238
    %v10245 = vsel %vm10244, 1, 0
    %v10246 = vadd.s32 %v10242, %v10238
    %v10247 = vadd.s32 %v10243, %v10245
    %v10248 = vadd.s32 %v10247, %v10237
    %v10249 = vadd.s32 %v10248, %v10239
    %v10250 = vand.u32 %v10227, 65535
    %v10251 = vshrl.u32 %v10227, 16
    %v10252 = vand.u32 %v10222, 65535
    %v10253 = vshrl.u32 %v10222, 16
    %v10254 = vmul.u32 %v10250, %v10252
    %v10255 = vmul.u32 %v10250, %v10253
    %v10256 = vmul.u32 %v10251, %v10252
    %v10257 = vmul.u32 %v10251, %v10253
    %v10258 = vshll.u32 %v10255, 16
    %v10259 = vshrl.u32 %v10255, 16
    %v10260 = vshll.u32 %v10256, 16
    %v10261 = vshrl.u32 %v10256, 16
    %vm10262 = vc.u32 %v10254, %v10258
    %v10263 = vsel %vm10262, 1, 0
    %v10264 = vadd.s32 %v10254, %v10258
    %v10265 = vadd.s32 %v10257, %v10263
    %vm10266 = vc.u32 %v10264, %v10260
    %v10267 = vsel %vm10266, 1, 0
    %v10268 = vadd.s32 %v10264, %v10260
    %v10269 = vadd.s32 %v10265, %v10267
    %v10270 = vadd.s32 %v10269, %v10259
    %v10271 = vadd.s32 %v10270, %v10261
    %v10272 = vmul.u32 %v10227, %v10218
    %v10273 = vadd.s32 %v10249, %v10268
    %vm10274 = vc.u32 %v10249, %v10268
    %v10275 = vadd.s32 %v10271, 1
    %v10276 = vsel %vm10274, %v10275, %v10271
    %v10277 = vadd.s32 %v10272, %v10276
    %v10278 = vadd.s32 %v10277, 536870912
    %v10279 = vshrl.u32 %v10278, 30
    %v10280 = vshll.u32 %v10279, 30
    %v10281 = vsub.s32 %v10277, %v10280
    %vm10282 = vcmp.lt.s32.totalorder %v10281, 0
    %v10283 = vsub.s32 0, %v10281
    %v10284 = vsel %vm10282, %v10283, %v10281
    %v10285 = vclz %v10284
    %v10286 = vsub.s32 %v10285, 2
    %vm10287 = vcmp.gt.s32.totalorder 0, %v10286
    %v10288 = vsel %vm10287, 0, %v10286
    %v10289 = vsub.s32 32, %v10288
    %v10290 = vshll.u32 %v10281, %v10288
    %v10291 = vshrl.u32 %v10273, %v10289
    %v10292 = vor.u32 %v10290, %v10291
    %v10293 = vsub.s32 4294967266, %v10288
    %v10294 = vadd.s32 %v10293, 127
    %v10295 = vshll.u32 %v10294, 23
    %v10296 = vor.u32 4788187, %v10295
    %v10297 = vand.u32 2147483647, %v10296
    %v10299 = vcvt.s32.f32 %v10292
    %v10300 = vmul.f32 %v10299, %v10297
    %v10301 = vxor.u32 %v10300, 2147483648
    %v10302 = vsel %vm10181, %v10301, %v10300
    %v10303 = vsub.s32 4, %v10279
    %v10304 = vsel %vm10181, %v10303, %v10279
    %v10305 = vsel %vm10180, %v412, %v10302
    %v10306 = vsel %vm10180, 0, %v10304
    %v10307 = vmul.f32 %v10305, %v10305
    %v10308 = vmul.f32 %v10307, -0.001358992
    %v10309 = vadd.f32 %v10308, 0.041655596
    %v10310 = vmul.f32 %v10307, %v10309
    %v10311 = vadd.f32 %v10310, -0.4999988
    %v10312 = vmul.f32 %v10307, %v10311
    %v10313 = vadd.f32 1.0, %v10312
    %v10314 = vmul.f32 %v10305, %v10305
    %v10315 = vmul.f32 %v10314, -0.00019511016
    %v10316 = vadd.f32 %v10315, 0.008332121
    %v10317 = vmul.f32 %v10314, %v10316
    %v10318 = vadd.f32 %v10317, -0.16666654
    %v10319 = vmul.f32 %v10314, %v10318
    %v10320 = vadd.f32 %v10319, 1.0
    %v10321 = vmul.f32 %v10320, %v10305
    %vm10322 = vweird.f32 %v412
    %v10323 = vadd.s32 %v10306, 3
    %v10324 = vand.u32 %v10323, 3
    %vm10325 = vcmp.lt.s32.totalorder %v10324, 2
    %vm10326 = vcmp.eq.s32.totalorder %v10324, 0
    %v10327 = vxor.u32 %v10321, 2147483648
    %v10328 = vsel %vm10326, %v10313, %v10327
    %vm10329 = vcmp.eq.s32.totalorder %v10324, 2
    %v10330 = vxor.u32 %v10313, 2147483648
    %v10331 = vsel %vm10329, %v10330, %v10321
    %v10332 = vsel %vm10325, %v10328, %v10331
    %v10333 = vsel %vm10322, nan, %v10332
    %10334 = vst [vmem:[#allocation2] sm:$0xff] %v568
    %10335 = vst [vmem:[#allocation2 + $0x8] sm:$0xff] %v723
    %10336 = vst [vmem:[#allocation2 + $0x10] sm:$0xff] %v878
    %10337 = vst [vmem:[#allocation2 + $0x18] sm:$0xff] %v1033
    %10338 = vst [vmem:[#allocation2 + $0x20] sm:$0xff] %v1188
    %10339 = vst [vmem:[#allocation2 + $0x28] sm:$0xff] %v1343
    %10340 = vst [vmem:[#allocation2 + $0x30] sm:$0xff] %v1498
    %10341 = vst [vmem:[#allocation2 + $0x38] sm:$0xff] %v1653
    %10342 = vst [vmem:[#allocation2 + $0x40] sm:$0xff] %v1808
    %10343 = vst [vmem:[#allocation2 + $0x48] sm:$0xff] %v1963
    %10344 = vst [vmem:[#allocation2 + $0x50] sm:$0xff] %v2118
    %10345 = vst [vmem:[#allocation2 + $0x58] sm:$0xff] %v2273
    %10346 = vst [vmem:[#allocation2 + $0x60] sm:$0xff] %v2428
    %10347 = vst [vmem:[#allocation2 + $0x68] sm:$0xff] %v2583
    %10348 = vst [vmem:[#allocation2 + $0x70] sm:$0xff] %v2738
    %10349 = vst [vmem:[#allocation2 + $0x78] sm:$0xff] %v2893
    %10350 = vst [vmem:[#allocation2 + $0x80] sm:$0xff] %v3048
    %10351 = vst [vmem:[#allocation2 + $0x88] sm:$0xff] %v3203
    %10352 = vst [vmem:[#allocation2 + $0x90] sm:$0xff] %v3358
    %10353 = vst [vmem:[#allocation2 + $0x98] sm:$0xff] %v3513
    %10354 = vst [vmem:[#allocation2 + $0xa0] sm:$0xff] %v3668
    %10355 = vst [vmem:[#allocation2 + $0xa8] sm:$0xff] %v3823
    %10356 = vst [vmem:[#allocation2 + $0xb0] sm:$0xff] %v3978
    %10357 = vst [vmem:[#allocation2 + $0xb8] sm:$0xff] %v4133
    %10358 = vst [vmem:[#allocation2 + $0xc0] sm:$0xff] %v4288
    %10359 = vst [vmem:[#allocation2 + $0xc8] sm:$0xff] %v4443
    %10360 = vst [vmem:[#allocation2 + $0xd0] sm:$0xff] %v4598
    %10361 = vst [vmem:[#allocation2 + $0xd8] sm:$0xff] %v4753
    %10362 = vst [vmem:[#allocation2 + $0xe0] sm:$0xff] %v4908
    %10363 = vst [vmem:[#allocation2 + $0xe8] sm:$0xff] %v5063
    %10364 = vst [vmem:[#allocation2 + $0xf0] sm:$0xff] %v5218
    %10365 = vst [vmem:[#allocation2 + $0xf8] sm:$0xff] %v5373
    %10366 = vst [vmem:[#allocation2 + $0x100] sm:$0xff] %v5528
    %10367 = vst [vmem:[#allocation2 + $0x108] sm:$0xff] %v5683
    %10368 = vst [vmem:[#allocation2 + $0x110] sm:$0xff] %v5838
    %10369 = vst [vmem:[#allocation2 + $0x118] sm:$0xff] %v5993
    %10370 = vst [vmem:[#allocation2 + $0x120] sm:$0xff] %v6148
    %10371 = vst [vmem:[#allocation2 + $0x128] sm:$0xff] %v6303
    %10372 = vst [vmem:[#allocation2 + $0x130] sm:$0xff] %v6458
    %10373 = vst [vmem:[#allocation2 + $0x138] sm:$0xff] %v6613
    %10374 = vst [vmem:[#allocation2 + $0x140] sm:$0xff] %v6768
    %10375 = vst [vmem:[#allocation2 + $0x148] sm:$0xff] %v6923
    %10376 = vst [vmem:[#allocation2 + $0x150] sm:$0xff] %v7078
    %10377 = vst [vmem:[#allocation2 + $0x158] sm:$0xff] %v7233
    %10378 = vst [vmem:[#allocation2 + $0x160] sm:$0xff] %v7388
    %10379 = vst [vmem:[#allocation2 + $0x168] sm:$0xff] %v7543
    %10380 = vst [vmem:[#allocation2 + $0x170] sm:$0xff] %v7698
    %10381 = vst [vmem:[#allocation2 + $0x178] sm:$0xff] %v7853
    %10382 = vst [vmem:[#allocation2 + $0x180] sm:$0xff] %v8008
    %10383 = vst [vmem:[#allocation2 + $0x188] sm:$0xff] %v8163
    %10384 = vst [vmem:[#allocation2 + $0x190] sm:$0xff] %v8318
    %10385 = vst [vmem:[#allocation2 + $0x198] sm:$0xff] %v8473
    %10386 = vst [vmem:[#allocation2 + $0x1a0] sm:$0xff] %v8628
    %10387 = vst [vmem:[#allocation2 + $0x1a8] sm:$0xff] %v8783
    %10388 = vst [vmem:[#allocation2 + $0x1b0] sm:$0xff] %v8938
    %10389 = vst [vmem:[#allocation2 + $0x1b8] sm:$0xff] %v9093
    %10390 = vst [vmem:[#allocation2 + $0x1c0] sm:$0xff] %v9248
    %10391 = vst [vmem:[#allocation2 + $0x1c8] sm:$0xff] %v9403
    %10392 = vst [vmem:[#allocation2 + $0x1d0] sm:$0xff] %v9558
    %10393 = vst [vmem:[#allocation2 + $0x1d8] sm:$0xff] %v9713
    %10394 = vst [vmem:[#allocation2 + $0x1e0] sm:$0xff] %v9868
    %10395 = vst [vmem:[#allocation2 + $0x1e8] sm:$0xff] %v10023
    %10396 = vst [vmem:[#allocation2 + $0x1f0] sm:$0xff] %v10178
    %10397 = vst [vmem:[#allocation2 + $0x1f8] sm:$0xff] %v10333
    // Predicated region
    $region14: #{tpu_custom_call.1} parent=1 // pred_check
      _
    $region15: #{tpu_custom_call.1} parent=1 // pred_check_branch
      %10399 = sbr.rel (0) target = $region17
    $region16: #{tpu_custom_call.1} parent=1 // pred_region
      %10401 = vsyncadd [#allocation3], 0
      %s10402 = sshll.u32 [#allocation2], 4
      %s10403 = int_to_ptr.vmem [resolvable:$true] %s10402
      %s10404 = sshll.u32 %s3, 4
      %s10405 = int_to_ptr.hbm [resolvable:$true] %s10404
      %10410 = dma.vmem_to_hbm [thread:$0]  %s10403, 8192, %s10405, [#allocation3], 128, 128, 8
    $region17: #{tpu_custom_call.1} parent=1 // pred_fallthru
      _
    // Predicated region
    $region18: #{tpu_custom_call.1} parent=1 // pred_check
      _
    $region19: #{tpu_custom_call.1} parent=1 // pred_check_branch
      %10412 = sbr.rel (0) target = $region21
    $region20: #{tpu_custom_call.1} parent=1 // pred_region
      %10414 = dma.done [#allocation3], 8192
    $region21: #{tpu_custom_call.1} parent=1 // pred_fallthru
      _
    %10415 = vsyncpa [#allocation3], 1

</llo_original>
